<compile_context>
chip_gen: v6e
topology: v6e:2x2x1
jax: 0.10.0
libtpu: 0.0.40
codegen_flags: <defaults>
</compile_context>

<pallas_src>
import numpy as np
import jax
import jax.numpy as jnp
from jax import lax
from jax.experimental import pallas as pl
from jax.experimental.pallas import tpu as pltpu

# ---------------- configuration (mirrors cfg.task_arg) ----------------
COARSE_SAMPLES = 8              # cascade_samples = [8]
NEAR, FAR = 2.0, 6.0

# canonical NeRF MLP: D=8, W=256, skip after layer 4, view branch width 128
D_LAYERS = 8
WIDTH = 256
WIDTH_V = 128
L_XYZ, L_DIR = 10, 4
PE_X_RAW = 3 + 3 * 2 * L_XYZ    # 63
PE_D_RAW = 3 + 3 * 2 * L_DIR    # 27
PE_X = 64                       # padded (zero weight rows -> identical math)
PE_D = 32                       # padded

TILE_P = 512                    # points per MLP grid step (64 rays * 8 samples)
OUT_LANES = 128                 # packed, lane-dense output width
SIGMA_LANE = 3                  # output lane layout: [r, g, b, sigma, 0, ...]


# ===================== Pallas kernel: fused NeRF MLP ======================
def _nerf_mlp_kernel(xe_ref, de_ref, *refs):
    params, out_ref = refs[:-1], refs[-1]
    (w_in, b_in,
     w1, b1, w2, b2, w3, b3, w4, b4, w5, b5, w6, b6, w7, b7,
     w_skip,
     fw_aug, fb_aug, v_wf, v_wd, v_b, c_w, c_b) = params

    f32 = jnp.float32
    bf16 = jnp.bfloat16
    x = xe_ref[...]            # (TILE_P, PE_X) bf16
    d = de_ref[...]            # (TILE_P, PE_D) bf16

    h = jax.nn.relu(jnp.dot(x, w_in[...], preferred_element_type=f32) + b_in[...])
    hidden = ((w1, b1), (w2, b2), (w3, b3), (w4, b4), (w5, b5), (w6, b6), (w7, b7))
    for i, (w, b) in enumerate(hidden, start=1):
        pre = jnp.dot(h.astype(bf16), w[...], preferred_element_type=f32) + b[...]
        if i == 5:
            # skip connection: cat([x, h], -1) @ W  ==  x @ W_skip + h @ W
            pre = pre + jnp.dot(x, w_skip[...], preferred_element_type=f32)
        h = jax.nn.relu(pre)

    # feature head with the sigma head folded in as column WIDTH + SIGMA_LANE
    # (one lane-dense (256, 384) matmul; no cross-lane reduce needed).
    fs = jnp.dot(h.astype(bf16), fw_aug[...], preferred_element_type=f32) + fb_aug[...]
    feat = fs[:, :WIDTH]                         # (TILE_P, 256)
    sig_grp = jax.nn.relu(fs[:, WIDTH:])         # (TILE_P, 128); lane 3 = sigma, rest 0

    # view-dependent color head (c_w zero-padded to 128 output lanes)
    hv = jax.nn.relu(jnp.dot(feat.astype(bf16), v_wf[...], preferred_element_type=f32)
                     + jnp.dot(d, v_wd[...], preferred_element_type=f32)
                     + v_b[...])
    rgbp = jax.nn.sigmoid(jnp.dot(hv.astype(bf16), c_w[...], preferred_element_type=f32)
                          + c_b[...])            # (TILE_P, 128); lanes 0..2 = rgb

    lane = lax.broadcasted_iota(jnp.int32, rgbp.shape, 1)
    out_ref[...] = jnp.where(lane == SIGMA_LANE, sig_grp, rgbp)


def nerf_mlp(xe, de, kparams):
    P = xe.shape[0]
    P_pad = ((P + TILE_P - 1) // TILE_P) * TILE_P
    if P_pad != P:                                  # pad ragged tail
        xe = jnp.pad(xe, ((0, P_pad - P), (0, 0)))
        de = jnp.pad(de, ((0, P_pad - P), (0, 0)))
    grid = (P_pad // TILE_P,)

    def const_spec(arr):
        nd = arr.ndim
        return pl.BlockSpec(arr.shape, lambda i, _nd=nd: (0,) * _nd)

    in_specs = [pl.BlockSpec((TILE_P, PE_X), lambda i: (i, 0)),
                pl.BlockSpec((TILE_P, PE_D), lambda i: (i, 0))]
    in_specs += [const_spec(p) for p in kparams]
    out_specs = pl.BlockSpec((TILE_P, OUT_LANES), lambda i: (i, 0))

    out = pl.pallas_call(
        _nerf_mlp_kernel,
        out_shape=jax.ShapeDtypeStruct((P_pad, OUT_LANES), jnp.float32),
        grid_spec=pltpu.PrefetchScalarGridSpec(
            num_scalar_prefetch=0, grid=grid,
            in_specs=in_specs, out_specs=out_specs),
        compiler_params=pltpu.CompilerParams(
            dimension_semantics=("parallel",),
            vmem_limit_bytes=32 * 1024 * 1024),
    )(xe, de, *kparams)
    out = out[:P]
    return out[:, SIGMA_LANE:SIGMA_LANE + 1], out[:, :3]     # sigma, rgb


# =========================== glue (plain JAX, jitted) =========================
def embed(x, L, out_dim):
    feats = [x]
    for i in range(L):
        freq = 2.0 ** i
        feats.append(jnp.sin(freq * x))
        feats.append(jnp.cos(freq * x))
    e = jnp.concatenate(feats, axis=-1)
    return jnp.pad(e, ((0, 0), (0, out_dim - e.shape[-1])))


def volume_render(sigma, color, t, rays_d):
    # Tiny per-ray math (S=8): plain JAX under jit, per perf review.
    delta = jnp.concatenate([t[:, 1:] - t[:, :-1],
                             jnp.full_like(t[:, :1], 1e10)], axis=-1)
    delta = delta * jnp.linalg.norm(rays_d, axis=-1, keepdims=True)
    alpha = 1.0 - jnp.exp(-sigma * delta)
    Ti = jnp.cumprod(1.0 - alpha + 1e-10, axis=-1)
    Ti = jnp.roll(Ti, 1, axis=-1).at[:, 0].set(1.0)
    w = alpha * Ti
    rgb = jnp.sum(w[..., None] * color, axis=-2)
    depth = jnp.sum(w * t, axis=-1, keepdims=True)
    acc = jnp.sum(w, axis=-1, keepdims=True)
    return rgb, depth, acc


def render(kparams, rays_o, rays_d, near, far):
    R, S = rays_o.shape[0], COARSE_SAMPLES
    t = jnp.linspace(0.0, 1.0, S, dtype=jnp.float32)
    t = near * (1.0 - t) + far * t
    t = jnp.broadcast_to(t, (R, S))
    pts = rays_o[:, None, :] + rays_d[:, None, :] * t[:, :, None]     # (R,S,3)
    dirs = jnp.broadcast_to(rays_d[:, None, :], (R, S, 3))
    xe = embed(pts.reshape(-1, 3), L_XYZ, PE_X).astype(jnp.bfloat16)
    de = embed(dirs.reshape(-1, 3), L_DIR, PE_D).astype(jnp.bfloat16)
    sigma, color = nerf_mlp(xe, de, kparams)
    rgb, depth, acc = volume_render(sigma.reshape(R, S),
                                    color.reshape(R, S, 3), t, rays_d)
    return {'rgb_coarse': rgb, 'depth_coarse': depth, 'acc_coarse': acc}


@jax.jit
def _forward_impl(kparams, rays_o, rays_d, near, far):
    B, N, C = rays_o.shape
    ret = render(kparams, rays_o.reshape(-1, C), rays_d.reshape(-1, C), near, far)
    return {k: v.reshape(B, N, -1) for k, v in ret.items()}


def network_forward(kparams, batch):
    # Single jitted call over all rays; the torch batchify chunk loop is pure
    # execution batching (render() is per-ray), so results are identical.
    return _forward_impl(kparams, batch['rays_o'], batch['rays_d'],
                         jnp.float32(batch['near']), jnp.float32(batch['far']))


# ---------------------- deterministic parameter init ------------------
def init_params(key):
    keys = jax.random.split(key, 32)
    it = iter(keys)

    def lin(fan_in, shape):
        b = 1.0 / np.sqrt(fan_in)
        return jax.random.uniform(next(it), shape, jnp.float32, -b, b)

    params = []
    w_in = lin(PE_X_RAW, (PE_X, WIDTH)).at[PE_X_RAW:, :].set(0.0)
    params += [w_in, lin(PE_X_RAW, (1, WIDTH))]
    for i in range(1, D_LAYERS):
        fan = WIDTH + PE_X_RAW if i == 5 else WIDTH
        params += [lin(fan, (WIDTH, WIDTH)), lin(fan, (1, WIDTH))]
    w_skip = lin(WIDTH + PE_X_RAW, (PE_X, WIDTH)).at[PE_X_RAW:, :].set(0.0)
    params.append(w_skip)
    params += [lin(WIDTH, (1, WIDTH)), lin(WIDTH, (1, 1)),             # alpha head
               lin(WIDTH, (WIDTH, WIDTH)), lin(WIDTH, (1, WIDTH))]     # feature
    v_wd = lin(WIDTH + PE_D_RAW, (PE_D, WIDTH_V)).at[PE_D_RAW:, :].set(0.0)
    params += [lin(WIDTH + PE_D_RAW, (WIDTH, WIDTH_V)), v_wd,
               lin(WIDTH + PE_D_RAW, (1, WIDTH_V)),
               lin(WIDTH_V, (WIDTH_V, 3)), lin(WIDTH_V, (1, 3))]
    return tuple(params)


def pack_params(params):
    """f32 'logical' params -> bf16 / folded / lane-padded kernel params."""
    (w_in, b_in,
     w1, b1, w2, b2, w3, b3, w4, b4, w5, b5, w6, b6, w7, b7,
     w_skip, a_w, a_b, f_w, f_b, v_wf, v_wd, v_b, c_w, c_b) = params
    bf = jnp.bfloat16
    fw_aug = jnp.zeros((WIDTH, WIDTH + OUT_LANES), jnp.float32)
    fw_aug = fw_aug.at[:, :WIDTH].set(f_w).at[:, WIDTH + SIGMA_LANE].set(a_w[0])
    fb_aug = jnp.zeros((1, WIDTH + OUT_LANES), jnp.float32)
    fb_aug = fb_aug.at[:, :WIDTH].set(f_b).at[0, WIDTH + SIGMA_LANE].set(a_b[0, 0])
    c_w_pad = jnp.zeros((WIDTH_V, OUT_LANES), jnp.float32).at[:, :3].set(c_w)
    c_b_pad = jnp.zeros((1, OUT_LANES), jnp.float32).at[:, :3].set(c_b)
    return (w_in.astype(bf), b_in,
            w1.astype(bf), b1, w2.astype(bf), b2, w3.astype(bf), b3,
            w4.astype(bf), b4, w5.astype(bf), b5, w6.astype(bf), b6,
            w7.astype(bf), b7,
            w_skip.astype(bf),
            fw_aug.astype(bf), fb_aug,
            v_wf.astype(bf), v_wd.astype(bf), v_b,
            c_w_pad.astype(bf), c_b_pad)


# -------------------------- pure-JAX f32 reference ------------------------
def _nerf_mlp_ref(xe, de, params):
    (w_in, b_in,
     w1, b1, w2, b2, w3, b3, w4, b4, w5, b5, w6, b6, w7, b7,
     w_skip, a_w, a_b, f_w, f_b, v_wf, v_wd, v_b, c_w, c_b) = params
    hp = jax.lax.Precision.HIGHEST
    dot = lambda a, b: jnp.dot(a, b, precision=hp)
    h = jax.nn.relu(dot(xe, w_in) + b_in)
    hidden = ((w1, b1), (w2, b2), (w3, b3), (w4, b4), (w5, b5), (w6, b6), (w7, b7))
    for i, (w, b) in enumerate(hidden, start=1):
        pre = dot(h, w) + b
        if i == 5:
            pre = pre + dot(xe, w_skip)
        h = jax.nn.relu(pre)
    sigma = jax.nn.relu(jnp.sum(h * a_w, -1, keepdims=True) + a_b)
    feat = dot(h, f_w) + f_b
    hv = jax.nn.relu(dot(feat, v_wf) + dot(de, v_wd) + v_b)
    rgb = jax.nn.sigmoid(dot(hv, c_w) + c_b)
    return sigma, rgb


def _forward_ref(params, batch):
    rays_o = batch['rays_o'].reshape(-1, 3)
    rays_d = batch['rays_d'].reshape(-1, 3)
    B, N, _ = batch['rays_o'].shape
    R, S = rays_o.shape[0], COARSE_SAMPLES
    t = jnp.linspace(0.0, 1.0, S, dtype=jnp.float32)
    t = batch['near'] * (1.0 - t) + batch['far'] * t
    t = jnp.broadcast_to(t, (R, S))
    pts = rays_o[:, None, :] + rays_d[:, None, :] * t[:, :, None]
    dirs = jnp.broadcast_to(rays_d[:, None, :], (R, S, 3))
    xe = embed(pts.reshape(-1, 3), L_XYZ, PE_X)
    de = embed(dirs.reshape(-1, 3), L_DIR, PE_D)
    sigma, color = _nerf_mlp_ref(xe, de, params)
    rgb, depth, acc = volume_render(sigma.reshape(R, S),
                                    color.reshape(R, S, 3), t, rays_d)
    return {'rgb_coarse': rgb.reshape(B, N, -1),
            'depth_coarse': depth.reshape(B, N, -1),
            'acc_coarse': acc.reshape(B, N, -1)}


# =============================== main =================================
if __name__ == "__main__":
    key = jax.random.PRNGKey(0)
    kp, ko, kd = jax.random.split(key, 3)
    params = init_params(kp)          # f32 "logical" params (reference)
    kparams = pack_params(params)     # bf16 / padded / folded kernel params

    B, N_RAYS = 2, 512                # 1024 rays * 8 samples = 8192 pts = 16 tiles
    rays_o = jax.random.uniform(ko, (B, N_RAYS, 3), jnp.float32, -1.0, 1.0)
    rays_d = jax.random.normal(kd, (B, N_RAYS, 3), jnp.float32)
    rays_d = rays_d / jnp.linalg.norm(rays_d, axis=-1, keepdims=True)

    batch = {'rays_o': rays_o, 'rays_d': rays_d, 'near': NEAR, 'far': FAR}

    out = network_forward(kparams, batch)
    out = jax.block_until_ready(out)

    ref = _forward_ref(params, batch)
    # bf16 MXU operands (f32 accumulate) vs. the f32 HIGHEST-precision
    # reference: tolerance is slightly looser than the previous pure-f32 run.
    for k in out:
        np.testing.assert_allclose(np.asarray(out[k]), np.asarray(ref[k]),
                                   rtol=2e-2, atol=2e-2)

    print("KERNEL_OK")
</pallas_src>

<mosaic_0001>
module attributes {stable_mosaic.version = 11 : i64} {
  func.func @_nerf_mlp_kernel(%arg0: i32, %arg1: memref<512x64xbf16, #tpu.memory_space<vmem>>, %arg2: memref<512x32xbf16, #tpu.memory_space<vmem>>, %arg3: memref<64x256xbf16, #tpu.memory_space<vmem>>, %arg4: memref<1x256xf32, #tpu.memory_space<vmem>>, %arg5: memref<256x256xbf16, #tpu.memory_space<vmem>>, %arg6: memref<1x256xf32, #tpu.memory_space<vmem>>, %arg7: memref<256x256xbf16, #tpu.memory_space<vmem>>, %arg8: memref<1x256xf32, #tpu.memory_space<vmem>>, %arg9: memref<256x256xbf16, #tpu.memory_space<vmem>>, %arg10: memref<1x256xf32, #tpu.memory_space<vmem>>, %arg11: memref<256x256xbf16, #tpu.memory_space<vmem>>, %arg12: memref<1x256xf32, #tpu.memory_space<vmem>>, %arg13: memref<256x256xbf16, #tpu.memory_space<vmem>>, %arg14: memref<1x256xf32, #tpu.memory_space<vmem>>, %arg15: memref<256x256xbf16, #tpu.memory_space<vmem>>, %arg16: memref<1x256xf32, #tpu.memory_space<vmem>>, %arg17: memref<256x256xbf16, #tpu.memory_space<vmem>>, %arg18: memref<1x256xf32, #tpu.memory_space<vmem>>, %arg19: memref<64x256xbf16, #tpu.memory_space<vmem>>, %arg20: memref<256x384xbf16, #tpu.memory_space<vmem>>, %arg21: memref<1x384xf32, #tpu.memory_space<vmem>>, %arg22: memref<256x128xbf16, #tpu.memory_space<vmem>>, %arg23: memref<32x128xbf16, #tpu.memory_space<vmem>>, %arg24: memref<1x128xf32, #tpu.memory_space<vmem>>, %arg25: memref<128x128xbf16, #tpu.memory_space<vmem>>, %arg26: memref<1x128xf32, #tpu.memory_space<vmem>>, %arg27: memref<512x128xf32, #tpu.memory_space<vmem>>) attributes {dimension_semantics = [#tpu.dimension_semantics<parallel>], iteration_bounds = array<i64: 16>, scalar_prefetch = 0 : i64, scratch_operands = 0 : i64, tpu.core_type = #tpu.core_type<tc>, window_params = [{transform_indices = @transform_0, window_bounds = array<i64: 512, 64>}, {transform_indices = @transform_1, window_bounds = array<i64: 512, 32>}, {pipeline_mode = #tpu.pipeline_mode<synchronous>, transform_indices = @transform_2, window_bounds = array<i64: 64, 256>}, {pipeline_mode = #tpu.pipeline_mode<synchronous>, transform_indices = @transform_3, window_bounds = array<i64: 1, 256>}, {pipeline_mode = #tpu.pipeline_mode<synchronous>, transform_indices = @transform_4, window_bounds = array<i64: 256, 256>}, {pipeline_mode = #tpu.pipeline_mode<synchronous>, transform_indices = @transform_5, window_bounds = array<i64: 1, 256>}, {pipeline_mode = #tpu.pipeline_mode<synchronous>, transform_indices = @transform_6, window_bounds = array<i64: 256, 256>}, {pipeline_mode = #tpu.pipeline_mode<synchronous>, transform_indices = @transform_7, window_bounds = array<i64: 1, 256>}, {pipeline_mode = #tpu.pipeline_mode<synchronous>, transform_indices = @transform_8, window_bounds = array<i64: 256, 256>}, {pipeline_mode = #tpu.pipeline_mode<synchronous>, transform_indices = @transform_9, window_bounds = array<i64: 1, 256>}, {pipeline_mode = #tpu.pipeline_mode<synchronous>, transform_indices = @transform_10, window_bounds = array<i64: 256, 256>}, {pipeline_mode = #tpu.pipeline_mode<synchronous>, transform_indices = @transform_11, window_bounds = array<i64: 1, 256>}, {pipeline_mode = #tpu.pipeline_mode<synchronous>, transform_indices = @transform_12, window_bounds = array<i64: 256, 256>}, {pipeline_mode = #tpu.pipeline_mode<synchronous>, transform_indices = @transform_13, window_bounds = array<i64: 1, 256>}, {pipeline_mode = #tpu.pipeline_mode<synchronous>, transform_indices = @transform_14, window_bounds = array<i64: 256, 256>}, {pipeline_mode = #tpu.pipeline_mode<synchronous>, transform_indices = @transform_15, window_bounds = array<i64: 1, 256>}, {pipeline_mode = #tpu.pipeline_mode<synchronous>, transform_indices = @transform_16, window_bounds = array<i64: 256, 256>}, {pipeline_mode = #tpu.pipeline_mode<synchronous>, transform_indices = @transform_17, window_bounds = array<i64: 1, 256>}, {pipeline_mode = #tpu.pipeline_mode<synchronous>, transform_indices = @transform_18, window_bounds = array<i64: 64, 256>}, {pipeline_mode = #tpu.pipeline_mode<synchronous>, transform_indices = @transform_19, window_bounds = array<i64: 256, 384>}, {pipeline_mode = #tpu.pipeline_mode<synchronous>, transform_indices = @transform_20, window_bounds = array<i64: 1, 384>}, {pipeline_mode = #tpu.pipeline_mode<synchronous>, transform_indices = @transform_21, window_bounds = array<i64: 256, 128>}, {pipeline_mode = #tpu.pipeline_mode<synchronous>, transform_indices = @transform_22, window_bounds = array<i64: 32, 128>}, {pipeline_mode = #tpu.pipeline_mode<synchronous>, transform_indices = @transform_23, window_bounds = array<i64: 1, 128>}, {pipeline_mode = #tpu.pipeline_mode<synchronous>, transform_indices = @transform_24, window_bounds = array<i64: 128, 128>}, {pipeline_mode = #tpu.pipeline_mode<synchronous>, transform_indices = @transform_25, window_bounds = array<i64: 1, 128>}, {transform_indices = @transform_26, window_bounds = array<i64: 512, 128>}]} {
    %c0 = arith.constant 0 : index
    %c0_0 = arith.constant 0 : index
    %0 = vector.load %arg1[%c0, %c0_0] : memref<512x64xbf16, #tpu.memory_space<vmem>>, vector<512x64xbf16>
    %c0_1 = arith.constant 0 : index
    %c0_2 = arith.constant 0 : index
    %1 = vector.load %arg2[%c0_1, %c0_2] : memref<512x32xbf16, #tpu.memory_space<vmem>>, vector<512x32xbf16>
    %c0_3 = arith.constant 0 : index
    %c0_4 = arith.constant 0 : index
    %2 = vector.load %arg3[%c0_3, %c0_4] : memref<64x256xbf16, #tpu.memory_space<vmem>>, vector<64x256xbf16>
    %cst = arith.constant dense<0.000000e+00> : vector<512x256xf32>
    %3 = tpu.matmul %0, %2, %cst {dimension_numbers = #tpu.dot_dimension_numbers<[1], [0], [0], [1], [0, 0, 1, 1], [], []>} : vector<512x64xbf16>, vector<64x256xbf16>, vector<512x256xf32> -> vector<512x256xf32>
    %c0_5 = arith.constant 0 : index
    %c0_6 = arith.constant 0 : index
    %4 = vector.load %arg4[%c0_5, %c0_6] : memref<1x256xf32, #tpu.memory_space<vmem>>, vector<1x256xf32>
    %5 = vector.broadcast %4 : vector<1x256xf32> to vector<512x256xf32>
    %6 = arith.addf %3, %5 : vector<512x256xf32>
    %cst_7 = arith.constant 0.000000e+00 : f32
    %7 = vector.broadcast %cst_7 : f32 to vector<512x256xf32>
    %8 = arith.maximumf %6, %7 : vector<512x256xf32>
    %9 = arith.truncf %8 : vector<512x256xf32> to vector<512x256xbf16>
    %c0_8 = arith.constant 0 : index
    %c0_9 = arith.constant 0 : index
    %10 = vector.load %arg5[%c0_8, %c0_9] : memref<256x256xbf16, #tpu.memory_space<vmem>>, vector<256x256xbf16>
    %cst_10 = arith.constant dense<0.000000e+00> : vector<512x256xf32>
    %11 = tpu.matmul %9, %10, %cst_10 {dimension_numbers = #tpu.dot_dimension_numbers<[1], [0], [0], [1], [0, 0, 1, 1], [], []>} : vector<512x256xbf16>, vector<256x256xbf16>, vector<512x256xf32> -> vector<512x256xf32>
    %c0_11 = arith.constant 0 : index
    %c0_12 = arith.constant 0 : index
    %12 = vector.load %arg6[%c0_11, %c0_12] : memref<1x256xf32, #tpu.memory_space<vmem>>, vector<1x256xf32>
    %13 = vector.broadcast %12 : vector<1x256xf32> to vector<512x256xf32>
    %14 = arith.addf %11, %13 : vector<512x256xf32>
    %cst_13 = arith.constant 0.000000e+00 : f32
    %15 = vector.broadcast %cst_13 : f32 to vector<512x256xf32>
    %16 = arith.maximumf %14, %15 : vector<512x256xf32>
    %17 = arith.truncf %16 : vector<512x256xf32> to vector<512x256xbf16>
    %c0_14 = arith.constant 0 : index
    %c0_15 = arith.constant 0 : index
    %18 = vector.load %arg7[%c0_14, %c0_15] : memref<256x256xbf16, #tpu.memory_space<vmem>>, vector<256x256xbf16>
    %cst_16 = arith.constant dense<0.000000e+00> : vector<512x256xf32>
    %19 = tpu.matmul %17, %18, %cst_16 {dimension_numbers = #tpu.dot_dimension_numbers<[1], [0], [0], [1], [0, 0, 1, 1], [], []>} : vector<512x256xbf16>, vector<256x256xbf16>, vector<512x256xf32> -> vector<512x256xf32>
    %c0_17 = arith.constant 0 : index
    %c0_18 = arith.constant 0 : index
    %20 = vector.load %arg8[%c0_17, %c0_18] : memref<1x256xf32, #tpu.memory_space<vmem>>, vector<1x256xf32>
    %21 = vector.broadcast %20 : vector<1x256xf32> to vector<512x256xf32>
    %22 = arith.addf %19, %21 : vector<512x256xf32>
    %cst_19 = arith.constant 0.000000e+00 : f32
    %23 = vector.broadcast %cst_19 : f32 to vector<512x256xf32>
    %24 = arith.maximumf %22, %23 : vector<512x256xf32>
    %25 = arith.truncf %24 : vector<512x256xf32> to vector<512x256xbf16>
    %c0_20 = arith.constant 0 : index
    %c0_21 = arith.constant 0 : index
    %26 = vector.load %arg9[%c0_20, %c0_21] : memref<256x256xbf16, #tpu.memory_space<vmem>>, vector<256x256xbf16>
    %cst_22 = arith.constant dense<0.000000e+00> : vector<512x256xf32>
    %27 = tpu.matmul %25, %26, %cst_22 {dimension_numbers = #tpu.dot_dimension_numbers<[1], [0], [0], [1], [0, 0, 1, 1], [], []>} : vector<512x256xbf16>, vector<256x256xbf16>, vector<512x256xf32> -> vector<512x256xf32>
    %c0_23 = arith.constant 0 : index
    %c0_24 = arith.constant 0 : index
    %28 = vector.load %arg10[%c0_23, %c0_24] : memref<1x256xf32, #tpu.memory_space<vmem>>, vector<1x256xf32>
    %29 = vector.broadcast %28 : vector<1x256xf32> to vector<512x256xf32>
    %30 = arith.addf %27, %29 : vector<512x256xf32>
    %cst_25 = arith.constant 0.000000e+00 : f32
    %31 = vector.broadcast %cst_25 : f32 to vector<512x256xf32>
    %32 = arith.maximumf %30, %31 : vector<512x256xf32>
    %33 = arith.truncf %32 : vector<512x256xf32> to vector<512x256xbf16>
    %c0_26 = arith.constant 0 : index
    %c0_27 = arith.constant 0 : index
    %34 = vector.load %arg11[%c0_26, %c0_27] : memref<256x256xbf16, #tpu.memory_space<vmem>>, vector<256x256xbf16>
    %cst_28 = arith.constant dense<0.000000e+00> : vector<512x256xf32>
    %35 = tpu.matmul %33, %34, %cst_28 {dimension_numbers = #tpu.dot_dimension_numbers<[1], [0], [0], [1], [0, 0, 1, 1], [], []>} : vector<512x256xbf16>, vector<256x256xbf16>, vector<512x256xf32> -> vector<512x256xf32>
    %c0_29 = arith.constant 0 : index
    %c0_30 = arith.constant 0 : index
    %36 = vector.load %arg12[%c0_29, %c0_30] : memref<1x256xf32, #tpu.memory_space<vmem>>, vector<1x256xf32>
    %37 = vector.broadcast %36 : vector<1x256xf32> to vector<512x256xf32>
    %38 = arith.addf %35, %37 : vector<512x256xf32>
    %cst_31 = arith.constant 0.000000e+00 : f32
    %39 = vector.broadcast %cst_31 : f32 to vector<512x256xf32>
    %40 = arith.maximumf %38, %39 : vector<512x256xf32>
    %41 = arith.truncf %40 : vector<512x256xf32> to vector<512x256xbf16>
    %c0_32 = arith.constant 0 : index
    %c0_33 = arith.constant 0 : index
    %42 = vector.load %arg13[%c0_32, %c0_33] : memref<256x256xbf16, #tpu.memory_space<vmem>>, vector<256x256xbf16>
    %cst_34 = arith.constant dense<0.000000e+00> : vector<512x256xf32>
    %43 = tpu.matmul %41, %42, %cst_34 {dimension_numbers = #tpu.dot_dimension_numbers<[1], [0], [0], [1], [0, 0, 1, 1], [], []>} : vector<512x256xbf16>, vector<256x256xbf16>, vector<512x256xf32> -> vector<512x256xf32>
    %c0_35 = arith.constant 0 : index
    %c0_36 = arith.constant 0 : index
    %44 = vector.load %arg14[%c0_35, %c0_36] : memref<1x256xf32, #tpu.memory_space<vmem>>, vector<1x256xf32>
    %45 = vector.broadcast %44 : vector<1x256xf32> to vector<512x256xf32>
    %46 = arith.addf %43, %45 : vector<512x256xf32>
    %c0_37 = arith.constant 0 : index
    %c0_38 = arith.constant 0 : index
    %47 = vector.load %arg19[%c0_37, %c0_38] : memref<64x256xbf16, #tpu.memory_space<vmem>>, vector<64x256xbf16>
    %cst_39 = arith.constant dense<0.000000e+00> : vector<512x256xf32>
    %48 = tpu.matmul %0, %47, %cst_39 {dimension_numbers = #tpu.dot_dimension_numbers<[1], [0], [0], [1], [0, 0, 1, 1], [], []>} : vector<512x64xbf16>, vector<64x256xbf16>, vector<512x256xf32> -> vector<512x256xf32>
    %49 = arith.addf %46, %48 : vector<512x256xf32>
    %cst_40 = arith.constant 0.000000e+00 : f32
    %50 = vector.broadcast %cst_40 : f32 to vector<512x256xf32>
    %51 = arith.maximumf %49, %50 : vector<512x256xf32>
    %52 = arith.truncf %51 : vector<512x256xf32> to vector<512x256xbf16>
    %c0_41 = arith.constant 0 : index
    %c0_42 = arith.constant 0 : index
    %53 = vector.load %arg15[%c0_41, %c0_42] : memref<256x256xbf16, #tpu.memory_space<vmem>>, vector<256x256xbf16>
    %cst_43 = arith.constant dense<0.000000e+00> : vector<512x256xf32>
    %54 = tpu.matmul %52, %53, %cst_43 {dimension_numbers = #tpu.dot_dimension_numbers<[1], [0], [0], [1], [0, 0, 1, 1], [], []>} : vector<512x256xbf16>, vector<256x256xbf16>, vector<512x256xf32> -> vector<512x256xf32>
    %c0_44 = arith.constant 0 : index
    %c0_45 = arith.constant 0 : index
    %55 = vector.load %arg16[%c0_44, %c0_45] : memref<1x256xf32, #tpu.memory_space<vmem>>, vector<1x256xf32>
    %56 = vector.broadcast %55 : vector<1x256xf32> to vector<512x256xf32>
    %57 = arith.addf %54, %56 : vector<512x256xf32>
    %cst_46 = arith.constant 0.000000e+00 : f32
    %58 = vector.broadcast %cst_46 : f32 to vector<512x256xf32>
    %59 = arith.maximumf %57, %58 : vector<512x256xf32>
    %60 = arith.truncf %59 : vector<512x256xf32> to vector<512x256xbf16>
    %c0_47 = arith.constant 0 : index
    %c0_48 = arith.constant 0 : index
    %61 = vector.load %arg17[%c0_47, %c0_48] : memref<256x256xbf16, #tpu.memory_space<vmem>>, vector<256x256xbf16>
    %cst_49 = arith.constant dense<0.000000e+00> : vector<512x256xf32>
    %62 = tpu.matmul %60, %61, %cst_49 {dimension_numbers = #tpu.dot_dimension_numbers<[1], [0], [0], [1], [0, 0, 1, 1], [], []>} : vector<512x256xbf16>, vector<256x256xbf16>, vector<512x256xf32> -> vector<512x256xf32>
    %c0_50 = arith.constant 0 : index
    %c0_51 = arith.constant 0 : index
    %63 = vector.load %arg18[%c0_50, %c0_51] : memref<1x256xf32, #tpu.memory_space<vmem>>, vector<1x256xf32>
    %64 = vector.broadcast %63 : vector<1x256xf32> to vector<512x256xf32>
    %65 = arith.addf %62, %64 : vector<512x256xf32>
    %cst_52 = arith.constant 0.000000e+00 : f32
    %66 = vector.broadcast %cst_52 : f32 to vector<512x256xf32>
    %67 = arith.maximumf %65, %66 : vector<512x256xf32>
    %68 = arith.truncf %67 : vector<512x256xf32> to vector<512x256xbf16>
    %c0_53 = arith.constant 0 : index
    %c0_54 = arith.constant 0 : index
    %69 = vector.load %arg20[%c0_53, %c0_54] : memref<256x384xbf16, #tpu.memory_space<vmem>>, vector<256x384xbf16>
    %cst_55 = arith.constant dense<0.000000e+00> : vector<512x384xf32>
    %70 = tpu.matmul %68, %69, %cst_55 {dimension_numbers = #tpu.dot_dimension_numbers<[1], [0], [0], [1], [0, 0, 1, 1], [], []>} : vector<512x256xbf16>, vector<256x384xbf16>, vector<512x384xf32> -> vector<512x384xf32>
    %c0_56 = arith.constant 0 : index
    %c0_57 = arith.constant 0 : index
    %71 = vector.load %arg21[%c0_56, %c0_57] : memref<1x384xf32, #tpu.memory_space<vmem>>, vector<1x384xf32>
    %72 = vector.broadcast %71 : vector<1x384xf32> to vector<512x384xf32>
    %73 = arith.addf %70, %72 : vector<512x384xf32>
    %74 = vector.extract_strided_slice %73 {offsets = [0, 0], sizes = [512, 256], strides = [1, 1]} : vector<512x384xf32> to vector<512x256xf32>
    %75 = vector.extract_strided_slice %73 {offsets = [0, 256], sizes = [512, 128], strides = [1, 1]} : vector<512x384xf32> to vector<512x128xf32>
    %cst_58 = arith.constant 0.000000e+00 : f32
    %76 = vector.broadcast %cst_58 : f32 to vector<512x128xf32>
    %77 = arith.maximumf %75, %76 : vector<512x128xf32>
    %78 = arith.truncf %74 : vector<512x256xf32> to vector<512x256xbf16>
    %c0_59 = arith.constant 0 : index
    %c0_60 = arith.constant 0 : index
    %79 = vector.load %arg22[%c0_59, %c0_60] : memref<256x128xbf16, #tpu.memory_space<vmem>>, vector<256x128xbf16>
    %cst_61 = arith.constant dense<0.000000e+00> : vector<512x128xf32>
    %80 = tpu.matmul %78, %79, %cst_61 {dimension_numbers = #tpu.dot_dimension_numbers<[1], [0], [0], [1], [0, 0, 1, 1], [], []>} : vector<512x256xbf16>, vector<256x128xbf16>, vector<512x128xf32> -> vector<512x128xf32>
    %c0_62 = arith.constant 0 : index
    %c0_63 = arith.constant 0 : index
    %81 = vector.load %arg23[%c0_62, %c0_63] : memref<32x128xbf16, #tpu.memory_space<vmem>>, vector<32x128xbf16>
    %cst_64 = arith.constant dense<0.000000e+00> : vector<512x128xf32>
    %82 = tpu.matmul %1, %81, %cst_64 {dimension_numbers = #tpu.dot_dimension_numbers<[1], [0], [0], [1], [0, 0, 1, 1], [], []>} : vector<512x32xbf16>, vector<32x128xbf16>, vector<512x128xf32> -> vector<512x128xf32>
    %83 = arith.addf %80, %82 : vector<512x128xf32>
    %c0_65 = arith.constant 0 : index
    %c0_66 = arith.constant 0 : index
    %84 = vector.load %arg24[%c0_65, %c0_66] : memref<1x128xf32, #tpu.memory_space<vmem>>, vector<1x128xf32>
    %85 = vector.broadcast %84 : vector<1x128xf32> to vector<512x128xf32>
    %86 = arith.addf %83, %85 : vector<512x128xf32>
    %cst_67 = arith.constant 0.000000e+00 : f32
    %87 = vector.broadcast %cst_67 : f32 to vector<512x128xf32>
    %88 = arith.maximumf %86, %87 : vector<512x128xf32>
    %89 = arith.truncf %88 : vector<512x128xf32> to vector<512x128xbf16>
    %c0_68 = arith.constant 0 : index
    %c0_69 = arith.constant 0 : index
    %90 = vector.load %arg25[%c0_68, %c0_69] : memref<128x128xbf16, #tpu.memory_space<vmem>>, vector<128x128xbf16>
    %cst_70 = arith.constant dense<0.000000e+00> : vector<512x128xf32>
    %91 = tpu.matmul %89, %90, %cst_70 {dimension_numbers = #tpu.dot_dimension_numbers<[1], [0], [0], [1], [0, 0, 1, 1], [], []>} : vector<512x128xbf16>, vector<128x128xbf16>, vector<512x128xf32> -> vector<512x128xf32>
    %c0_71 = arith.constant 0 : index
    %c0_72 = arith.constant 0 : index
    %92 = vector.load %arg26[%c0_71, %c0_72] : memref<1x128xf32, #tpu.memory_space<vmem>>, vector<1x128xf32>
    %93 = vector.broadcast %92 : vector<1x128xf32> to vector<512x128xf32>
    %94 = arith.addf %91, %93 : vector<512x128xf32>
    %95 = arith.negf %94 : vector<512x128xf32>
    %96 = math.exp %95 : vector<512x128xf32>
    %cst_73 = arith.constant 1.000000e+00 : f32
    %97 = vector.broadcast %cst_73 : f32 to vector<512x128xf32>
    %98 = arith.addf %97, %96 : vector<512x128xf32>
    %99 = arith.divf %97, %98 : vector<512x128xf32>
    %100 = tpu.iota {dimensions = array<i32: 1>} : vector<512x128xi32>
    %c3_i32 = arith.constant 3 : i32
    %101 = vector.broadcast %c3_i32 : i32 to vector<512x128xi32>
    %102 = arith.cmpi eq, %100, %101 : vector<512x128xi32>
    %103 = arith.select %102, %77, %99 : vector<512x128xi1>, vector<512x128xf32>
    %c0_74 = arith.constant 0 : index
    %c0_75 = arith.constant 0 : index
    %104 = vector.load %arg27[%c0_74, %c0_75] : memref<512x128xf32, #tpu.memory_space<vmem>>, vector<512x128xf32>
    tpu.vector_store %arg27[%c0_74, %c0_75], %103 {strides = array<i32>} : memref<512x128xf32, #tpu.memory_space<vmem>>, vector<512x128xf32>,
    return
  }
  func.func @transform_0(%arg0: i32) -> (i32, i32) {
    %c0_i32 = arith.constant 0 : i32
    %c0_i32_0 = arith.constant 0 : i32
    return %arg0, %c0_i32 : i32, i32
  }
  func.func @transform_1(%arg0: i32) -> (i32, i32) {
    %c0_i32 = arith.constant 0 : i32
    %c0_i32_0 = arith.constant 0 : i32
    return %arg0, %c0_i32 : i32, i32
  }
  func.func @transform_2(%arg0: i32) -> (i32, i32) {
    %c0_i32 = arith.constant 0 : i32
    %c0_i32_0 = arith.constant 0 : i32
    %c0_i32_1 = arith.constant 0 : i32
    return %c0_i32, %c0_i32_0 : i32, i32
  }
  func.func @transform_3(%arg0: i32) -> (i32, i32) {
    %c0_i32 = arith.constant 0 : i32
    %c0_i32_0 = arith.constant 0 : i32
    %c0_i32_1 = arith.constant 0 : i32
    return %c0_i32, %c0_i32_0 : i32, i32
  }
  func.func @transform_4(%arg0: i32) -> (i32, i32) {
    %c0_i32 = arith.constant 0 : i32
    %c0_i32_0 = arith.constant 0 : i32
    %c0_i32_1 = arith.constant 0 : i32
    return %c0_i32, %c0_i32_0 : i32, i32
  }
  func.func @transform_5(%arg0: i32) -> (i32, i32) {
    %c0_i32 = arith.constant 0 : i32
    %c0_i32_0 = arith.constant 0 : i32
    %c0_i32_1 = arith.constant 0 : i32
    return %c0_i32, %c0_i32_0 : i32, i32
  }
  func.func @transform_6(%arg0: i32) -> (i32, i32) {
    %c0_i32 = arith.constant 0 : i32
    %c0_i32_0 = arith.constant 0 : i32
    %c0_i32_1 = arith.constant 0 : i32
    return %c0_i32, %c0_i32_0 : i32, i32
  }
  func.func @transform_7(%arg0: i32) -> (i32, i32) {
    %c0_i32 = arith.constant 0 : i32
    %c0_i32_0 = arith.constant 0 : i32
    %c0_i32_1 = arith.constant 0 : i32
    return %c0_i32, %c0_i32_0 : i32, i32
  }
  func.func @transform_8(%arg0: i32) -> (i32, i32) {
    %c0_i32 = arith.constant 0 : i32
    %c0_i32_0 = arith.constant 0 : i32
    %c0_i32_1 = arith.constant 0 : i32
    return %c0_i32, %c0_i32_0 : i32, i32
  }
  func.func @transform_9(%arg0: i32) -> (i32, i32) {
    %c0_i32 = arith.constant 0 : i32
    %c0_i32_0 = arith.constant 0 : i32
    %c0_i32_1 = arith.constant 0 : i32
    return %c0_i32, %c0_i32_0 : i32, i32
  }
  func.func @transform_10(%arg0: i32) -> (i32, i32) {
    %c0_i32 = arith.constant 0 : i32
    %c0_i32_0 = arith.constant 0 : i32
    %c0_i32_1 = arith.constant 0 : i32
    return %c0_i32, %c0_i32_0 : i32, i32
  }
  func.func @transform_11(%arg0: i32) -> (i32, i32) {
    %c0_i32 = arith.constant 0 : i32
    %c0_i32_0 = arith.constant 0 : i32
    %c0_i32_1 = arith.constant 0 : i32
    return %c0_i32, %c0_i32_0 : i32, i32
  }
  func.func @transform_12(%arg0: i32) -> (i32, i32) {
    %c0_i32 = arith.constant 0 : i32
    %c0_i32_0 = arith.constant 0 : i32
    %c0_i32_1 = arith.constant 0 : i32
    return %c0_i32, %c0_i32_0 : i32, i32
  }
  func.func @transform_13(%arg0: i32) -> (i32, i32) {
    %c0_i32 = arith.constant 0 : i32
    %c0_i32_0 = arith.constant 0 : i32
    %c0_i32_1 = arith.constant 0 : i32
    return %c0_i32, %c0_i32_0 : i32, i32
  }
  func.func @transform_14(%arg0: i32) -> (i32, i32) {
    %c0_i32 = arith.constant 0 : i32
    %c0_i32_0 = arith.constant 0 : i32
    %c0_i32_1 = arith.constant 0 : i32
    return %c0_i32, %c0_i32_0 : i32, i32
  }
  func.func @transform_15(%arg0: i32) -> (i32, i32) {
    %c0_i32 = arith.constant 0 : i32
    %c0_i32_0 = arith.constant 0 : i32
    %c0_i32_1 = arith.constant 0 : i32
    return %c0_i32, %c0_i32_0 : i32, i32
  }
  func.func @transform_16(%arg0: i32) -> (i32, i32) {
    %c0_i32 = arith.constant 0 : i32
    %c0_i32_0 = arith.constant 0 : i32
    %c0_i32_1 = arith.constant 0 : i32
    return %c0_i32, %c0_i32_0 : i32, i32
  }
  func.func @transform_17(%arg0: i32) -> (i32, i32) {
    %c0_i32 = arith.constant 0 : i32
    %c0_i32_0 = arith.constant 0 : i32
    %c0_i32_1 = arith.constant 0 : i32
    return %c0_i32, %c0_i32_0 : i32, i32
  }
  func.func @transform_18(%arg0: i32) -> (i32, i32) {
    %c0_i32 = arith.constant 0 : i32
    %c0_i32_0 = arith.constant 0 : i32
    %c0_i32_1 = arith.constant 0 : i32
    return %c0_i32, %c0_i32_0 : i32, i32
  }
  func.func @transform_19(%arg0: i32) -> (i32, i32) {
    %c0_i32 = arith.constant 0 : i32
    %c0_i32_0 = arith.constant 0 : i32
    %c0_i32_1 = arith.constant 0 : i32
    return %c0_i32, %c0_i32_0 : i32, i32
  }
  func.func @transform_20(%arg0: i32) -> (i32, i32) {
    %c0_i32 = arith.constant 0 : i32
    %c0_i32_0 = arith.constant 0 : i32
    %c0_i32_1 = arith.constant 0 : i32
    return %c0_i32, %c0_i32_0 : i32, i32
  }
  func.func @transform_21(%arg0: i32) -> (i32, i32) {
    %c0_i32 = arith.constant 0 : i32
    %c0_i32_0 = arith.constant 0 : i32
    %c0_i32_1 = arith.constant 0 : i32
    return %c0_i32, %c0_i32_0 : i32, i32
  }
  func.func @transform_22(%arg0: i32) -> (i32, i32) {
    %c0_i32 = arith.constant 0 : i32
    %c0_i32_0 = arith.constant 0 : i32
    %c0_i32_1 = arith.constant 0 : i32
    return %c0_i32, %c0_i32_0 : i32, i32
  }
  func.func @transform_23(%arg0: i32) -> (i32, i32) {
    %c0_i32 = arith.constant 0 : i32
    %c0_i32_0 = arith.constant 0 : i32
    %c0_i32_1 = arith.constant 0 : i32
    return %c0_i32, %c0_i32_0 : i32, i32
  }
  func.func @transform_24(%arg0: i32) -> (i32, i32) {
    %c0_i32 = arith.constant 0 : i32
    %c0_i32_0 = arith.constant 0 : i32
    %c0_i32_1 = arith.constant 0 : i32
    return %c0_i32, %c0_i32_0 : i32, i32
  }
  func.func @transform_25(%arg0: i32) -> (i32, i32) {
    %c0_i32 = arith.constant 0 : i32
    %c0_i32_0 = arith.constant 0 : i32
    %c0_i32_1 = arith.constant 0 : i32
    return %c0_i32, %c0_i32_0 : i32, i32
  }
  func.func @transform_26(%arg0: i32) -> (i32, i32) {
    %c0_i32 = arith.constant 0 : i32
    %c0_i32_0 = arith.constant 0 : i32
    return %arg0, %c0_i32 : i32, i32
  }
}

</mosaic_0001>

<llo_original>
// kernel: _forward_impl.1
$region0: #{_forward_impl.1}
  #allocation0 [shape = 'u32[]', space=smem, size = 0x4, offset = 0x4, fixed_abs, tag = 'smem constant byte address 0x4 - core index']
  #allocation1 [shape = 'u32[144,128]{1,0:T(1,128)}', space=vmem, size = 0x12000, scoped, tag = 'internal scratch']
  %s0 = inlined_call_operand.vmem [shape: bf16[8192,64], index: 0, kind: input, shape index: {}]
  %s1 = inlined_call_operand.vmem [shape: bf16[8192,32], index: 1, kind: input, shape index: {}]
  %s2 = inlined_call_operand.vmem [shape: bf16[64,256], index: 2, kind: input, shape index: {}]
  %s3 = inlined_call_operand.vmem [shape: f32[1,256], index: 3, kind: input, shape index: {}]
  %s4 = inlined_call_operand.vmem [shape: bf16[256,256], index: 4, kind: input, shape index: {}]
  %s5 = inlined_call_operand.vmem [shape: f32[1,256], index: 5, kind: input, shape index: {}]
  %s6 = inlined_call_operand.vmem [shape: bf16[256,256], index: 6, kind: input, shape index: {}]
  %s7 = inlined_call_operand.vmem [shape: f32[1,256], index: 7, kind: input, shape index: {}]
  %s8 = inlined_call_operand.vmem [shape: bf16[256,256], index: 8, kind: input, shape index: {}]
  %s9 = inlined_call_operand.vmem [shape: f32[1,256], index: 9, kind: input, shape index: {}]
  %s10 = inlined_call_operand.vmem [shape: bf16[256,256], index: 10, kind: input, shape index: {}]
  %s11 = inlined_call_operand.vmem [shape: f32[1,256], index: 11, kind: input, shape index: {}]
  %s12 = inlined_call_operand.vmem [shape: bf16[256,256], index: 12, kind: input, shape index: {}]
  %s13 = inlined_call_operand.vmem [shape: f32[1,256], index: 13, kind: input, shape index: {}]
  %s14 = inlined_call_operand.vmem [shape: bf16[256,256], index: 14, kind: input, shape index: {}]
  %s15 = inlined_call_operand.vmem [shape: f32[1,256], index: 15, kind: input, shape index: {}]
  %s16 = inlined_call_operand.vmem [shape: bf16[256,256], index: 16, kind: input, shape index: {}]
  %s17 = inlined_call_operand.vmem [shape: f32[1,256], index: 17, kind: input, shape index: {}]
  %s18 = inlined_call_operand.vmem [shape: bf16[64,256], index: 18, kind: input, shape index: {}]
  %s19 = inlined_call_operand.vmem [shape: bf16[256,384], index: 19, kind: input, shape index: {}]
  %s20 = inlined_call_operand.vmem [shape: f32[1,384], index: 20, kind: input, shape index: {}]
  %s21 = inlined_call_operand.vmem [shape: bf16[256,128], index: 21, kind: input, shape index: {}]
  %s22 = inlined_call_operand.vmem [shape: bf16[32,128], index: 22, kind: input, shape index: {}]
  %s23 = inlined_call_operand.vmem [shape: f32[1,128], index: 23, kind: input, shape index: {}]
  %s24 = inlined_call_operand.vmem [shape: bf16[128,128], index: 24, kind: input, shape index: {}]
  %s25 = inlined_call_operand.vmem [shape: f32[1,128], index: 25, kind: input, shape index: {}]
  %s26 = inlined_call_operand.vmem [shape: f32[8192,128], index: 26, kind: output, shape index: {}]
  %s27 = sld [smem:[#allocation0]]
  $region137: #{_forward_impl.1} parent=0
    _
  %s29 = ssub.s32 1, %s27
  %s30 = scalar_select 0, %s29, %s27
  loop: start=0, step=1, limit=18
  $region2: #{_forward_impl.1} parent=0 // loop_pre_header
    _
  $region3: #{_forward_impl.1} parent=0 // loop_header
    %s32 = sphi 0, %s36
    %p33 = scmp.ge.s32.totalorder %s32, 18
    %s42 = sphi 0, %s44
    %s45 = sphi 0, %s42
    %s46 = sphi 0, %s45
    %s62 = sphi 0, %s46
    %s68 = sphi 0, %s70
    %s71 = sphi 0, %s68
    %s72 = sphi 0, %s71
    %s88 = sphi 0, %s72
    %s92 = sphi 0, %s92
    %s94 = sphi 0, %s92
    %s95 = sphi 0, %s94
    %s109 = sphi 0, %s95
    %s113 = sphi 0, %s113
    %s115 = sphi 0, %s113
    %s116 = sphi 0, %s115
    %s130 = sphi 0, %s116
    %s134 = sphi 0, %s134
    %s136 = sphi 0, %s134
    %s137 = sphi 0, %s136
    %s151 = sphi 0, %s137
    %s155 = sphi 0, %s155
    %s157 = sphi 0, %s155
    %s158 = sphi 0, %s157
    %s172 = sphi 0, %s158
    %s176 = sphi 0, %s176
    %s178 = sphi 0, %s176
    %s179 = sphi 0, %s178
    %s193 = sphi 0, %s179
    %s197 = sphi 0, %s197
    %s199 = sphi 0, %s197
    %s200 = sphi 0, %s199
    %s214 = sphi 0, %s200
    %s218 = sphi 0, %s218
    %s220 = sphi 0, %s218
    %s221 = sphi 0, %s220
    %s235 = sphi 0, %s221
    %s239 = sphi 0, %s239
    %s241 = sphi 0, %s239
    %s242 = sphi 0, %s241
    %s256 = sphi 0, %s242
    %s260 = sphi 0, %s260
    %s262 = sphi 0, %s260
    %s263 = sphi 0, %s262
    %s277 = sphi 0, %s263
    %s281 = sphi 0, %s281
    %s283 = sphi 0, %s281
    %s284 = sphi 0, %s283
    %s298 = sphi 0, %s284
    %s302 = sphi 0, %s302
    %s304 = sphi 0, %s302
    %s305 = sphi 0, %s304
    %s319 = sphi 0, %s305
    %s323 = sphi 0, %s323
    %s325 = sphi 0, %s323
    %s326 = sphi 0, %s325
    %s340 = sphi 0, %s326
    %s344 = sphi 0, %s344
    %s346 = sphi 0, %s344
    %s347 = sphi 0, %s346
    %s361 = sphi 0, %s347
    %s365 = sphi 0, %s365
    %s367 = sphi 0, %s365
    %s368 = sphi 0, %s367
    %s382 = sphi 0, %s368
    %s386 = sphi 0, %s386
    %s388 = sphi 0, %s386
    %s389 = sphi 0, %s388
    %s403 = sphi 0, %s389
    %s407 = sphi 0, %s407
    %s409 = sphi 0, %s407
    %s410 = sphi 0, %s409
    %s424 = sphi 0, %s410
    %s428 = sphi 0, %s428
    %s430 = sphi 0, %s428
    %s431 = sphi 0, %s430
    %s445 = sphi 0, %s431
    %s449 = sphi 0, %s449
    %s451 = sphi 0, %s449
    %s452 = sphi 0, %s451
    %s466 = sphi 0, %s452
    %s470 = sphi 0, %s470
    %s472 = sphi 0, %s470
    %s473 = sphi 0, %s472
    %s487 = sphi 0, %s473
    %s491 = sphi 0, %s491
    %s493 = sphi 0, %s491
    %s494 = sphi 0, %s493
    %s508 = sphi 0, %s494
    %s512 = sphi 0, %s512
    %s514 = sphi 0, %s512
    %s515 = sphi 0, %s514
    %s529 = sphi 0, %s515
    %s533 = sphi 0, %s533
    %s535 = sphi 0, %s533
    %s536 = sphi 0, %s535
    %s550 = sphi 0, %s536
    %s554 = sphi 0, %s554
    %s556 = sphi 0, %s554
    %s557 = sphi 0, %s556
    %s571 = sphi 0, %s557
    %s575 = sphi 0, %s575
    %s577 = sphi 0, %s575
    %s578 = sphi 0, %s577
    %s592 = sphi 0, %s578
    %s598 = sphi 0, %s600
    %s601 = sphi 0, %s598
    %s602 = sphi 0, %s601
    %s618 = sphi 0, %s602
  $region4: #{_forward_impl.1} parent=0 // loop_header_branch
    %35 = sbr.rel (%p33) target = $region8
  $region5: #{_forward_impl.1} parent=0 // loop_body
    %s37 = ssub.s32 %s32, 1
    %s38 = ssub.s32 %s32, 2
    %s39 = sadd.s32 %s32, 1
    %s40 = ssub.s32 %s32, %s39
    %p41 = scmp.eq.s32.totalorder %s40, 0
    %s43 = sadd.s32 %s42, 1
    %s44 = scalar_select %p41, %s42, %s43
    %p47 = pneg %p41
    %p48 = scmp.eq.s32.totalorder %s32, 15
    %p49 = por %p47, %p48
    %p50 = scmp.ne.s32.totalorder %s42, %s45
    %p51 = scmp.eq.s32.totalorder %s32, 0
    %p52 = por %p50, %p51
    %p53 = scmp.ne.s32.totalorder %s42, %s45
    %p54 = scmp.eq.s32.totalorder %s37, 15
    %p55 = por %p53, %p54
    %p56 = scmp.ne.s32.totalorder %s45, %s46
    %p57 = scmp.eq.s32.totalorder %s37, 0
    %p58 = por %p56, %p57
    %p59 = scmp.ne.s32.totalorder %s45, %s46
    %p60 = scmp.eq.s32.totalorder %s38, 15
    %p61 = por %p59, %p60
    %p63 = scmp.ne.s32.totalorder %s46, %s62
    %p64 = scmp.eq.s32.totalorder %s38, 0
    %p65 = por %p63, %p64
    %s66 = ssub.s32 %s32, %s39
    %p67 = scmp.eq.s32.totalorder %s66, 0
    %s69 = sadd.s32 %s68, 1
    %s70 = scalar_select %p67, %s68, %s69
    %p73 = pneg %p67
    %p74 = scmp.eq.s32.totalorder %s32, 15
    %p75 = por %p73, %p74
    %p76 = scmp.ne.s32.totalorder %s68, %s71
    %p77 = scmp.eq.s32.totalorder %s32, 0
    %p78 = por %p76, %p77
    %p79 = scmp.ne.s32.totalorder %s68, %s71
    %p80 = scmp.eq.s32.totalorder %s37, 15
    %p81 = por %p79, %p80
    %p82 = scmp.ne.s32.totalorder %s71, %s72
    %p83 = scmp.eq.s32.totalorder %s37, 0
    %p84 = por %p82, %p83
    %p85 = scmp.ne.s32.totalorder %s71, %s72
    %p86 = scmp.eq.s32.totalorder %s38, 15
    %p87 = por %p85, %p86
    %p89 = scmp.ne.s32.totalorder %s72, %s88
    %p90 = scmp.eq.s32.totalorder %s38, 0
    %p91 = por %p89, %p90
    %s93 = sadd.s32 %s92, 1
    %p96 = scmp.eq.s32.totalorder %s32, 15
    %p97 = scmp.ne.s32.totalorder %s92, %s94
    %p98 = scmp.eq.s32.totalorder %s32, 0
    %p99 = por %p97, %p98
    %p100 = scmp.ne.s32.totalorder %s92, %s94
    %p101 = scmp.eq.s32.totalorder %s37, 15
    %p102 = por %p100, %p101
    %p103 = scmp.ne.s32.totalorder %s94, %s95
    %p104 = scmp.eq.s32.totalorder %s37, 0
    %p105 = por %p103, %p104
    %p106 = scmp.ne.s32.totalorder %s94, %s95
    %p107 = scmp.eq.s32.totalorder %s38, 15
    %p108 = por %p106, %p107
    %p110 = scmp.ne.s32.totalorder %s95, %s109
    %p111 = scmp.eq.s32.totalorder %s38, 0
    %p112 = por %p110, %p111
    %s114 = sadd.s32 %s113, 1
    %p117 = scmp.eq.s32.totalorder %s32, 15
    %p118 = scmp.ne.s32.totalorder %s113, %s115
    %p119 = scmp.eq.s32.totalorder %s32, 0
    %p120 = por %p118, %p119
    %p121 = scmp.ne.s32.totalorder %s113, %s115
    %p122 = scmp.eq.s32.totalorder %s37, 15
    %p123 = por %p121, %p122
    %p124 = scmp.ne.s32.totalorder %s115, %s116
    %p125 = scmp.eq.s32.totalorder %s37, 0
    %p126 = por %p124, %p125
    %p127 = scmp.ne.s32.totalorder %s115, %s116
    %p128 = scmp.eq.s32.totalorder %s38, 15
    %p129 = por %p127, %p128
    %p131 = scmp.ne.s32.totalorder %s116, %s130
    %p132 = scmp.eq.s32.totalorder %s38, 0
    %p133 = por %p131, %p132
    %s135 = sadd.s32 %s134, 1
    %p138 = scmp.eq.s32.totalorder %s32, 15
    %p139 = scmp.ne.s32.totalorder %s134, %s136
    %p140 = scmp.eq.s32.totalorder %s32, 0
    %p141 = por %p139, %p140
    %p142 = scmp.ne.s32.totalorder %s134, %s136
    %p143 = scmp.eq.s32.totalorder %s37, 15
    %p144 = por %p142, %p143
    %p145 = scmp.ne.s32.totalorder %s136, %s137
    %p146 = scmp.eq.s32.totalorder %s37, 0
    %p147 = por %p145, %p146
    %p148 = scmp.ne.s32.totalorder %s136, %s137
    %p149 = scmp.eq.s32.totalorder %s38, 15
    %p150 = por %p148, %p149
    %p152 = scmp.ne.s32.totalorder %s137, %s151
    %p153 = scmp.eq.s32.totalorder %s38, 0
    %p154 = por %p152, %p153
    %s156 = sadd.s32 %s155, 1
    %p159 = scmp.eq.s32.totalorder %s32, 15
    %p160 = scmp.ne.s32.totalorder %s155, %s157
    %p161 = scmp.eq.s32.totalorder %s32, 0
    %p162 = por %p160, %p161
    %p163 = scmp.ne.s32.totalorder %s155, %s157
    %p164 = scmp.eq.s32.totalorder %s37, 15
    %p165 = por %p163, %p164
    %p166 = scmp.ne.s32.totalorder %s157, %s158
    %p167 = scmp.eq.s32.totalorder %s37, 0
    %p168 = por %p166, %p167
    %p169 = scmp.ne.s32.totalorder %s157, %s158
    %p170 = scmp.eq.s32.totalorder %s38, 15
    %p171 = por %p169, %p170
    %p173 = scmp.ne.s32.totalorder %s158, %s172
    %p174 = scmp.eq.s32.totalorder %s38, 0
    %p175 = por %p173, %p174
    %s177 = sadd.s32 %s176, 1
    %p180 = scmp.eq.s32.totalorder %s32, 15
    %p181 = scmp.ne.s32.totalorder %s176, %s178
    %p182 = scmp.eq.s32.totalorder %s32, 0
    %p183 = por %p181, %p182
    %p184 = scmp.ne.s32.totalorder %s176, %s178
    %p185 = scmp.eq.s32.totalorder %s37, 15
    %p186 = por %p184, %p185
    %p187 = scmp.ne.s32.totalorder %s178, %s179
    %p188 = scmp.eq.s32.totalorder %s37, 0
    %p189 = por %p187, %p188
    %p190 = scmp.ne.s32.totalorder %s178, %s179
    %p191 = scmp.eq.s32.totalorder %s38, 15
    %p192 = por %p190, %p191
    %p194 = scmp.ne.s32.totalorder %s179, %s193
    %p195 = scmp.eq.s32.totalorder %s38, 0
    %p196 = por %p194, %p195
    %s198 = sadd.s32 %s197, 1
    %p201 = scmp.eq.s32.totalorder %s32, 15
    %p202 = scmp.ne.s32.totalorder %s197, %s199
    %p203 = scmp.eq.s32.totalorder %s32, 0
    %p204 = por %p202, %p203
    %p205 = scmp.ne.s32.totalorder %s197, %s199
    %p206 = scmp.eq.s32.totalorder %s37, 15
    %p207 = por %p205, %p206
    %p208 = scmp.ne.s32.totalorder %s199, %s200
    %p209 = scmp.eq.s32.totalorder %s37, 0
    %p210 = por %p208, %p209
    %p211 = scmp.ne.s32.totalorder %s199, %s200
    %p212 = scmp.eq.s32.totalorder %s38, 15
    %p213 = por %p211, %p212
    %p215 = scmp.ne.s32.totalorder %s200, %s214
    %p216 = scmp.eq.s32.totalorder %s38, 0
    %p217 = por %p215, %p216
    %s219 = sadd.s32 %s218, 1
    %p222 = scmp.eq.s32.totalorder %s32, 15
    %p223 = scmp.ne.s32.totalorder %s218, %s220
    %p224 = scmp.eq.s32.totalorder %s32, 0
    %p225 = por %p223, %p224
    %p226 = scmp.ne.s32.totalorder %s218, %s220
    %p227 = scmp.eq.s32.totalorder %s37, 15
    %p228 = por %p226, %p227
    %p229 = scmp.ne.s32.totalorder %s220, %s221
    %p230 = scmp.eq.s32.totalorder %s37, 0
    %p231 = por %p229, %p230
    %p232 = scmp.ne.s32.totalorder %s220, %s221
    %p233 = scmp.eq.s32.totalorder %s38, 15
    %p234 = por %p232, %p233
    %p236 = scmp.ne.s32.totalorder %s221, %s235
    %p237 = scmp.eq.s32.totalorder %s38, 0
    %p238 = por %p236, %p237
    %s240 = sadd.s32 %s239, 1
    %p243 = scmp.eq.s32.totalorder %s32, 15
    %p244 = scmp.ne.s32.totalorder %s239, %s241
    %p245 = scmp.eq.s32.totalorder %s32, 0
    %p246 = por %p244, %p245
    %p247 = scmp.ne.s32.totalorder %s239, %s241
    %p248 = scmp.eq.s32.totalorder %s37, 15
    %p249 = por %p247, %p248
    %p250 = scmp.ne.s32.totalorder %s241, %s242
    %p251 = scmp.eq.s32.totalorder %s37, 0
    %p252 = por %p250, %p251
    %p253 = scmp.ne.s32.totalorder %s241, %s242
    %p254 = scmp.eq.s32.totalorder %s38, 15
    %p255 = por %p253, %p254
    %p257 = scmp.ne.s32.totalorder %s242, %s256
    %p258 = scmp.eq.s32.totalorder %s38, 0
    %p259 = por %p257, %p258
    %s261 = sadd.s32 %s260, 1
    %p264 = scmp.eq.s32.totalorder %s32, 15
    %p265 = scmp.ne.s32.totalorder %s260, %s262
    %p266 = scmp.eq.s32.totalorder %s32, 0
    %p267 = por %p265, %p266
    %p268 = scmp.ne.s32.totalorder %s260, %s262
    %p269 = scmp.eq.s32.totalorder %s37, 15
    %p270 = por %p268, %p269
    %p271 = scmp.ne.s32.totalorder %s262, %s263
    %p272 = scmp.eq.s32.totalorder %s37, 0
    %p273 = por %p271, %p272
    %p274 = scmp.ne.s32.totalorder %s262, %s263
    %p275 = scmp.eq.s32.totalorder %s38, 15
    %p276 = por %p274, %p275
    %p278 = scmp.ne.s32.totalorder %s263, %s277
    %p279 = scmp.eq.s32.totalorder %s38, 0
    %p280 = por %p278, %p279
    %s282 = sadd.s32 %s281, 1
    %p285 = scmp.eq.s32.totalorder %s32, 15
    %p286 = scmp.ne.s32.totalorder %s281, %s283
    %p287 = scmp.eq.s32.totalorder %s32, 0
    %p288 = por %p286, %p287
    %p289 = scmp.ne.s32.totalorder %s281, %s283
    %p290 = scmp.eq.s32.totalorder %s37, 15
    %p291 = por %p289, %p290
    %p292 = scmp.ne.s32.totalorder %s283, %s284
    %p293 = scmp.eq.s32.totalorder %s37, 0
    %p294 = por %p292, %p293
    %p295 = scmp.ne.s32.totalorder %s283, %s284
    %p296 = scmp.eq.s32.totalorder %s38, 15
    %p297 = por %p295, %p296
    %p299 = scmp.ne.s32.totalorder %s284, %s298
    %p300 = scmp.eq.s32.totalorder %s38, 0
    %p301 = por %p299, %p300
    %s303 = sadd.s32 %s302, 1
    %p306 = scmp.eq.s32.totalorder %s32, 15
    %p307 = scmp.ne.s32.totalorder %s302, %s304
    %p308 = scmp.eq.s32.totalorder %s32, 0
    %p309 = por %p307, %p308
    %p310 = scmp.ne.s32.totalorder %s302, %s304
    %p311 = scmp.eq.s32.totalorder %s37, 15
    %p312 = por %p310, %p311
    %p313 = scmp.ne.s32.totalorder %s304, %s305
    %p314 = scmp.eq.s32.totalorder %s37, 0
    %p315 = por %p313, %p314
    %p316 = scmp.ne.s32.totalorder %s304, %s305
    %p317 = scmp.eq.s32.totalorder %s38, 15
    %p318 = por %p316, %p317
    %p320 = scmp.ne.s32.totalorder %s305, %s319
    %p321 = scmp.eq.s32.totalorder %s38, 0
    %p322 = por %p320, %p321
    %s324 = sadd.s32 %s323, 1
    %p327 = scmp.eq.s32.totalorder %s32, 15
    %p328 = scmp.ne.s32.totalorder %s323, %s325
    %p329 = scmp.eq.s32.totalorder %s32, 0
    %p330 = por %p328, %p329
    %p331 = scmp.ne.s32.totalorder %s323, %s325
    %p332 = scmp.eq.s32.totalorder %s37, 15
    %p333 = por %p331, %p332
    %p334 = scmp.ne.s32.totalorder %s325, %s326
    %p335 = scmp.eq.s32.totalorder %s37, 0
    %p336 = por %p334, %p335
    %p337 = scmp.ne.s32.totalorder %s325, %s326
    %p338 = scmp.eq.s32.totalorder %s38, 15
    %p339 = por %p337, %p338
    %p341 = scmp.ne.s32.totalorder %s326, %s340
    %p342 = scmp.eq.s32.totalorder %s38, 0
    %p343 = por %p341, %p342
    %s345 = sadd.s32 %s344, 1
    %p348 = scmp.eq.s32.totalorder %s32, 15
    %p349 = scmp.ne.s32.totalorder %s344, %s346
    %p350 = scmp.eq.s32.totalorder %s32, 0
    %p351 = por %p349, %p350
    %p352 = scmp.ne.s32.totalorder %s344, %s346
    %p353 = scmp.eq.s32.totalorder %s37, 15
    %p354 = por %p352, %p353
    %p355 = scmp.ne.s32.totalorder %s346, %s347
    %p356 = scmp.eq.s32.totalorder %s37, 0
    %p357 = por %p355, %p356
    %p358 = scmp.ne.s32.totalorder %s346, %s347
    %p359 = scmp.eq.s32.totalorder %s38, 15
    %p360 = por %p358, %p359
    %p362 = scmp.ne.s32.totalorder %s347, %s361
    %p363 = scmp.eq.s32.totalorder %s38, 0
    %p364 = por %p362, %p363
    %s366 = sadd.s32 %s365, 1
    %p369 = scmp.eq.s32.totalorder %s32, 15
    %p370 = scmp.ne.s32.totalorder %s365, %s367
    %p371 = scmp.eq.s32.totalorder %s32, 0
    %p372 = por %p370, %p371
    %p373 = scmp.ne.s32.totalorder %s365, %s367
    %p374 = scmp.eq.s32.totalorder %s37, 15
    %p375 = por %p373, %p374
    %p376 = scmp.ne.s32.totalorder %s367, %s368
    %p377 = scmp.eq.s32.totalorder %s37, 0
    %p378 = por %p376, %p377
    %p379 = scmp.ne.s32.totalorder %s367, %s368
    %p380 = scmp.eq.s32.totalorder %s38, 15
    %p381 = por %p379, %p380
    %p383 = scmp.ne.s32.totalorder %s368, %s382
    %p384 = scmp.eq.s32.totalorder %s38, 0
    %p385 = por %p383, %p384
    %s387 = sadd.s32 %s386, 1
    %p390 = scmp.eq.s32.totalorder %s32, 15
    %p391 = scmp.ne.s32.totalorder %s386, %s388
    %p392 = scmp.eq.s32.totalorder %s32, 0
    %p393 = por %p391, %p392
    %p394 = scmp.ne.s32.totalorder %s386, %s388
    %p395 = scmp.eq.s32.totalorder %s37, 15
    %p396 = por %p394, %p395
    %p397 = scmp.ne.s32.totalorder %s388, %s389
    %p398 = scmp.eq.s32.totalorder %s37, 0
    %p399 = por %p397, %p398
    %p400 = scmp.ne.s32.totalorder %s388, %s389
    %p401 = scmp.eq.s32.totalorder %s38, 15
    %p402 = por %p400, %p401
    %p404 = scmp.ne.s32.totalorder %s389, %s403
    %p405 = scmp.eq.s32.totalorder %s38, 0
    %p406 = por %p404, %p405
    %s408 = sadd.s32 %s407, 1
    %p411 = scmp.eq.s32.totalorder %s32, 15
    %p412 = scmp.ne.s32.totalorder %s407, %s409
    %p413 = scmp.eq.s32.totalorder %s32, 0
    %p414 = por %p412, %p413
    %p415 = scmp.ne.s32.totalorder %s407, %s409
    %p416 = scmp.eq.s32.totalorder %s37, 15
    %p417 = por %p415, %p416
    %p418 = scmp.ne.s32.totalorder %s409, %s410
    %p419 = scmp.eq.s32.totalorder %s37, 0
    %p420 = por %p418, %p419
    %p421 = scmp.ne.s32.totalorder %s409, %s410
    %p422 = scmp.eq.s32.totalorder %s38, 15
    %p423 = por %p421, %p422
    %p425 = scmp.ne.s32.totalorder %s410, %s424
    %p426 = scmp.eq.s32.totalorder %s38, 0
    %p427 = por %p425, %p426
    %s429 = sadd.s32 %s428, 1
    %p432 = scmp.eq.s32.totalorder %s32, 15
    %p433 = scmp.ne.s32.totalorder %s428, %s430
    %p434 = scmp.eq.s32.totalorder %s32, 0
    %p435 = por %p433, %p434
    %p436 = scmp.ne.s32.totalorder %s428, %s430
    %p437 = scmp.eq.s32.totalorder %s37, 15
    %p438 = por %p436, %p437
    %p439 = scmp.ne.s32.totalorder %s430, %s431
    %p440 = scmp.eq.s32.totalorder %s37, 0
    %p441 = por %p439, %p440
    %p442 = scmp.ne.s32.totalorder %s430, %s431
    %p443 = scmp.eq.s32.totalorder %s38, 15
    %p444 = por %p442, %p443
    %p446 = scmp.ne.s32.totalorder %s431, %s445
    %p447 = scmp.eq.s32.totalorder %s38, 0
    %p448 = por %p446, %p447
    %s450 = sadd.s32 %s449, 1
    %p453 = scmp.eq.s32.totalorder %s32, 15
    %p454 = scmp.ne.s32.totalorder %s449, %s451
    %p455 = scmp.eq.s32.totalorder %s32, 0
    %p456 = por %p454, %p455
    %p457 = scmp.ne.s32.totalorder %s449, %s451
    %p458 = scmp.eq.s32.totalorder %s37, 15
    %p459 = por %p457, %p458
    %p460 = scmp.ne.s32.totalorder %s451, %s452
    %p461 = scmp.eq.s32.totalorder %s37, 0
    %p462 = por %p460, %p461
    %p463 = scmp.ne.s32.totalorder %s451, %s452
    %p464 = scmp.eq.s32.totalorder %s38, 15
    %p465 = por %p463, %p464
    %p467 = scmp.ne.s32.totalorder %s452, %s466
    %p468 = scmp.eq.s32.totalorder %s38, 0
    %p469 = por %p467, %p468
    %s471 = sadd.s32 %s470, 1
    %p474 = scmp.eq.s32.totalorder %s32, 15
    %p475 = scmp.ne.s32.totalorder %s470, %s472
    %p476 = scmp.eq.s32.totalorder %s32, 0
    %p477 = por %p475, %p476
    %p478 = scmp.ne.s32.totalorder %s470, %s472
    %p479 = scmp.eq.s32.totalorder %s37, 15
    %p480 = por %p478, %p479
    %p481 = scmp.ne.s32.totalorder %s472, %s473
    %p482 = scmp.eq.s32.totalorder %s37, 0
    %p483 = por %p481, %p482
    %p484 = scmp.ne.s32.totalorder %s472, %s473
    %p485 = scmp.eq.s32.totalorder %s38, 15
    %p486 = por %p484, %p485
    %p488 = scmp.ne.s32.totalorder %s473, %s487
    %p489 = scmp.eq.s32.totalorder %s38, 0
    %p490 = por %p488, %p489
    %s492 = sadd.s32 %s491, 1
    %p495 = scmp.eq.s32.totalorder %s32, 15
    %p496 = scmp.ne.s32.totalorder %s491, %s493
    %p497 = scmp.eq.s32.totalorder %s32, 0
    %p498 = por %p496, %p497
    %p499 = scmp.ne.s32.totalorder %s491, %s493
    %p500 = scmp.eq.s32.totalorder %s37, 15
    %p501 = por %p499, %p500
    %p502 = scmp.ne.s32.totalorder %s493, %s494
    %p503 = scmp.eq.s32.totalorder %s37, 0
    %p504 = por %p502, %p503
    %p505 = scmp.ne.s32.totalorder %s493, %s494
    %p506 = scmp.eq.s32.totalorder %s38, 15
    %p507 = por %p505, %p506
    %p509 = scmp.ne.s32.totalorder %s494, %s508
    %p510 = scmp.eq.s32.totalorder %s38, 0
    %p511 = por %p509, %p510
    %s513 = sadd.s32 %s512, 1
    %p516 = scmp.eq.s32.totalorder %s32, 15
    %p517 = scmp.ne.s32.totalorder %s512, %s514
    %p518 = scmp.eq.s32.totalorder %s32, 0
    %p519 = por %p517, %p518
    %p520 = scmp.ne.s32.totalorder %s512, %s514
    %p521 = scmp.eq.s32.totalorder %s37, 15
    %p522 = por %p520, %p521
    %p523 = scmp.ne.s32.totalorder %s514, %s515
    %p524 = scmp.eq.s32.totalorder %s37, 0
    %p525 = por %p523, %p524
    %p526 = scmp.ne.s32.totalorder %s514, %s515
    %p527 = scmp.eq.s32.totalorder %s38, 15
    %p528 = por %p526, %p527
    %p530 = scmp.ne.s32.totalorder %s515, %s529
    %p531 = scmp.eq.s32.totalorder %s38, 0
    %p532 = por %p530, %p531
    %s534 = sadd.s32 %s533, 1
    %p537 = scmp.eq.s32.totalorder %s32, 15
    %p538 = scmp.ne.s32.totalorder %s533, %s535
    %p539 = scmp.eq.s32.totalorder %s32, 0
    %p540 = por %p538, %p539
    %p541 = scmp.ne.s32.totalorder %s533, %s535
    %p542 = scmp.eq.s32.totalorder %s37, 15
    %p543 = por %p541, %p542
    %p544 = scmp.ne.s32.totalorder %s535, %s536
    %p545 = scmp.eq.s32.totalorder %s37, 0
    %p546 = por %p544, %p545
    %p547 = scmp.ne.s32.totalorder %s535, %s536
    %p548 = scmp.eq.s32.totalorder %s38, 15
    %p549 = por %p547, %p548
    %p551 = scmp.ne.s32.totalorder %s536, %s550
    %p552 = scmp.eq.s32.totalorder %s38, 0
    %p553 = por %p551, %p552
    %s555 = sadd.s32 %s554, 1
    %p558 = scmp.eq.s32.totalorder %s32, 15
    %p559 = scmp.ne.s32.totalorder %s554, %s556
    %p560 = scmp.eq.s32.totalorder %s32, 0
    %p561 = por %p559, %p560
    %p562 = scmp.ne.s32.totalorder %s554, %s556
    %p563 = scmp.eq.s32.totalorder %s37, 15
    %p564 = por %p562, %p563
    %p565 = scmp.ne.s32.totalorder %s556, %s557
    %p566 = scmp.eq.s32.totalorder %s37, 0
    %p567 = por %p565, %p566
    %p568 = scmp.ne.s32.totalorder %s556, %s557
    %p569 = scmp.eq.s32.totalorder %s38, 15
    %p570 = por %p568, %p569
    %p572 = scmp.ne.s32.totalorder %s557, %s571
    %p573 = scmp.eq.s32.totalorder %s38, 0
    %p574 = por %p572, %p573
    %s576 = sadd.s32 %s575, 1
    %p579 = scmp.eq.s32.totalorder %s32, 15
    %p580 = scmp.ne.s32.totalorder %s575, %s577
    %p581 = scmp.eq.s32.totalorder %s32, 0
    %p582 = por %p580, %p581
    %p583 = scmp.ne.s32.totalorder %s575, %s577
    %p584 = scmp.eq.s32.totalorder %s37, 15
    %p585 = por %p583, %p584
    %p586 = scmp.ne.s32.totalorder %s577, %s578
    %p587 = scmp.eq.s32.totalorder %s37, 0
    %p588 = por %p586, %p587
    %p589 = scmp.ne.s32.totalorder %s577, %s578
    %p590 = scmp.eq.s32.totalorder %s38, 15
    %p591 = por %p589, %p590
    %p593 = scmp.ne.s32.totalorder %s578, %s592
    %p594 = scmp.eq.s32.totalorder %s38, 0
    %p595 = por %p593, %p594
    %s596 = ssub.s32 %s32, %s39
    %p597 = scmp.eq.s32.totalorder %s596, 0
    %s599 = sadd.s32 %s598, 1
    %s600 = scalar_select %p597, %s598, %s599
    %p603 = pneg %p597
    %p604 = scmp.eq.s32.totalorder %s32, 15
    %p605 = por %p603, %p604
    %p606 = scmp.ne.s32.totalorder %s598, %s601
    %p607 = scmp.eq.s32.totalorder %s32, 0
    %p608 = por %p606, %p607
    %p609 = scmp.ne.s32.totalorder %s598, %s601
    %p610 = scmp.eq.s32.totalorder %s37, 15
    %p611 = por %p609, %p610
    %p612 = scmp.ne.s32.totalorder %s601, %s602
    %p613 = scmp.eq.s32.totalorder %s37, 0
    %p614 = por %p612, %p613
    %p615 = scmp.ne.s32.totalorder %s601, %s602
    %p616 = scmp.eq.s32.totalorder %s38, 15
    %p617 = por %p615, %p616
    %p619 = scmp.ne.s32.totalorder %s602, %s618
    %p620 = scmp.eq.s32.totalorder %s38, 0
    %p621 = por %p619, %p620
    %p622 = scmp.le.s32.totalorder 1, %s32
    %p623 = scmp.lt.s32.totalorder %s32, 17
    %p624 = pnand %p622, %p623
    %p625 = pneg %p624
    // Predicated region
    $region9: #{_forward_impl.1} parent=5 // pred_check
      _
    $region10: #{_forward_impl.1} parent=5 // pred_check_branch
      %627 = sbr.rel (%p624) target = $region12
    $region11: #{_forward_impl.1} parent=5 // pred_region
      %s628 = ssub.s32 %s32, 1
      // Predicated region
      $region13: #{_forward_impl.1} parent=11 // pred_check
        %p629 = pneg %p105
      $region14: #{_forward_impl.1} parent=11 // pred_check_branch
        %631 = sbr.rel (%p629) target = $region16
      $region15: #{_forward_impl.1} parent=11 // pred_region
        _
      $region16: #{_forward_impl.1} parent=11 // pred_fallthru
        _
      // Predicated region
      $region17: #{_forward_impl.1} parent=11 // pred_check
        %p632 = pneg %p126
      $region18: #{_forward_impl.1} parent=11 // pred_check_branch
        %634 = sbr.rel (%p632) target = $region20
      $region19: #{_forward_impl.1} parent=11 // pred_region
        _
      $region20: #{_forward_impl.1} parent=11 // pred_fallthru
        _
      // Predicated region
      $region21: #{_forward_impl.1} parent=11 // pred_check
        %p635 = pneg %p147
      $region22: #{_forward_impl.1} parent=11 // pred_check_branch
        %637 = sbr.rel (%p635) target = $region24
      $region23: #{_forward_impl.1} parent=11 // pred_region
        _
      $region24: #{_forward_impl.1} parent=11 // pred_fallthru
        _
      // Predicated region
      $region25: #{_forward_impl.1} parent=11 // pred_check
        %p638 = pneg %p168
      $region26: #{_forward_impl.1} parent=11 // pred_check_branch
        %640 = sbr.rel (%p638) target = $region28
      $region27: #{_forward_impl.1} parent=11 // pred_region
        _
      $region28: #{_forward_impl.1} parent=11 // pred_fallthru
        _
      // Predicated region
      $region29: #{_forward_impl.1} parent=11 // pred_check
        %p641 = pneg %p189
      $region30: #{_forward_impl.1} parent=11 // pred_check_branch
        %643 = sbr.rel (%p641) target = $region32
      $region31: #{_forward_impl.1} parent=11 // pred_region
        _
      $region32: #{_forward_impl.1} parent=11 // pred_fallthru
        _
      // Predicated region
      $region33: #{_forward_impl.1} parent=11 // pred_check
        %p644 = pneg %p210
      $region34: #{_forward_impl.1} parent=11 // pred_check_branch
        %646 = sbr.rel (%p644) target = $region36
      $region35: #{_forward_impl.1} parent=11 // pred_region
        _
      $region36: #{_forward_impl.1} parent=11 // pred_fallthru
        _
      // Predicated region
      $region37: #{_forward_impl.1} parent=11 // pred_check
        %p647 = pneg %p231
      $region38: #{_forward_impl.1} parent=11 // pred_check_branch
        %649 = sbr.rel (%p647) target = $region40
      $region39: #{_forward_impl.1} parent=11 // pred_region
        _
      $region40: #{_forward_impl.1} parent=11 // pred_fallthru
        _
      // Predicated region
      $region41: #{_forward_impl.1} parent=11 // pred_check
        %p650 = pneg %p252
      $region42: #{_forward_impl.1} parent=11 // pred_check_branch
        %652 = sbr.rel (%p650) target = $region44
      $region43: #{_forward_impl.1} parent=11 // pred_region
        _
      $region44: #{_forward_impl.1} parent=11 // pred_fallthru
        _
      // Predicated region
      $region45: #{_forward_impl.1} parent=11 // pred_check
        %p653 = pneg %p273
      $region46: #{_forward_impl.1} parent=11 // pred_check_branch
        %655 = sbr.rel (%p653) target = $region48
      $region47: #{_forward_impl.1} parent=11 // pred_region
        _
      $region48: #{_forward_impl.1} parent=11 // pred_fallthru
        _
      // Predicated region
      $region49: #{_forward_impl.1} parent=11 // pred_check
        %p656 = pneg %p294
      $region50: #{_forward_impl.1} parent=11 // pred_check_branch
        %658 = sbr.rel (%p656) target = $region52
      $region51: #{_forward_impl.1} parent=11 // pred_region
        _
      $region52: #{_forward_impl.1} parent=11 // pred_fallthru
        _
      // Predicated region
      $region53: #{_forward_impl.1} parent=11 // pred_check
        %p659 = pneg %p315
      $region54: #{_forward_impl.1} parent=11 // pred_check_branch
        %661 = sbr.rel (%p659) target = $region56
      $region55: #{_forward_impl.1} parent=11 // pred_region
        _
      $region56: #{_forward_impl.1} parent=11 // pred_fallthru
        _
      // Predicated region
      $region57: #{_forward_impl.1} parent=11 // pred_check
        %p662 = pneg %p336
      $region58: #{_forward_impl.1} parent=11 // pred_check_branch
        %664 = sbr.rel (%p662) target = $region60
      $region59: #{_forward_impl.1} parent=11 // pred_region
        _
      $region60: #{_forward_impl.1} parent=11 // pred_fallthru
        _
      // Predicated region
      $region61: #{_forward_impl.1} parent=11 // pred_check
        %p665 = pneg %p357
      $region62: #{_forward_impl.1} parent=11 // pred_check_branch
        %667 = sbr.rel (%p665) target = $region64
      $region63: #{_forward_impl.1} parent=11 // pred_region
        _
      $region64: #{_forward_impl.1} parent=11 // pred_fallthru
        _
      // Predicated region
      $region65: #{_forward_impl.1} parent=11 // pred_check
        %p668 = pneg %p378
      $region66: #{_forward_impl.1} parent=11 // pred_check_branch
        %670 = sbr.rel (%p668) target = $region68
      $region67: #{_forward_impl.1} parent=11 // pred_region
        _
      $region68: #{_forward_impl.1} parent=11 // pred_fallthru
        _
      // Predicated region
      $region69: #{_forward_impl.1} parent=11 // pred_check
        %p671 = pneg %p399
      $region70: #{_forward_impl.1} parent=11 // pred_check_branch
        %673 = sbr.rel (%p671) target = $region72
      $region71: #{_forward_impl.1} parent=11 // pred_region
        _
      $region72: #{_forward_impl.1} parent=11 // pred_fallthru
        _
      // Predicated region
      $region73: #{_forward_impl.1} parent=11 // pred_check
        %p674 = pneg %p420
      $region74: #{_forward_impl.1} parent=11 // pred_check_branch
        %676 = sbr.rel (%p674) target = $region76
      $region75: #{_forward_impl.1} parent=11 // pred_region
        _
      $region76: #{_forward_impl.1} parent=11 // pred_fallthru
        _
      // Predicated region
      $region77: #{_forward_impl.1} parent=11 // pred_check
        %p677 = pneg %p441
      $region78: #{_forward_impl.1} parent=11 // pred_check_branch
        %679 = sbr.rel (%p677) target = $region80
      $region79: #{_forward_impl.1} parent=11 // pred_region
        _
      $region80: #{_forward_impl.1} parent=11 // pred_fallthru
        _
      // Predicated region
      $region81: #{_forward_impl.1} parent=11 // pred_check
        %p680 = pneg %p462
      $region82: #{_forward_impl.1} parent=11 // pred_check_branch
        %682 = sbr.rel (%p680) target = $region84
      $region83: #{_forward_impl.1} parent=11 // pred_region
        _
      $region84: #{_forward_impl.1} parent=11 // pred_fallthru
        _
      // Predicated region
      $region85: #{_forward_impl.1} parent=11 // pred_check
        %p683 = pneg %p483
      $region86: #{_forward_impl.1} parent=11 // pred_check_branch
        %685 = sbr.rel (%p683) target = $region88
      $region87: #{_forward_impl.1} parent=11 // pred_region
        _
      $region88: #{_forward_impl.1} parent=11 // pred_fallthru
        _
      // Predicated region
      $region89: #{_forward_impl.1} parent=11 // pred_check
        %p686 = pneg %p504
      $region90: #{_forward_impl.1} parent=11 // pred_check_branch
        %688 = sbr.rel (%p686) target = $region92
      $region91: #{_forward_impl.1} parent=11 // pred_region
        _
      $region92: #{_forward_impl.1} parent=11 // pred_fallthru
        _
      // Predicated region
      $region93: #{_forward_impl.1} parent=11 // pred_check
        %p689 = pneg %p525
      $region94: #{_forward_impl.1} parent=11 // pred_check_branch
        %691 = sbr.rel (%p689) target = $region96
      $region95: #{_forward_impl.1} parent=11 // pred_region
        _
      $region96: #{_forward_impl.1} parent=11 // pred_fallthru
        _
      // Predicated region
      $region97: #{_forward_impl.1} parent=11 // pred_check
        %p692 = pneg %p546
      $region98: #{_forward_impl.1} parent=11 // pred_check_branch
        %694 = sbr.rel (%p692) target = $region100
      $region99: #{_forward_impl.1} parent=11 // pred_region
        _
      $region100: #{_forward_impl.1} parent=11 // pred_fallthru
        _
      // Predicated region
      $region101: #{_forward_impl.1} parent=11 // pred_check
        %p695 = pneg %p567
      $region102: #{_forward_impl.1} parent=11 // pred_check_branch
        %697 = sbr.rel (%p695) target = $region104
      $region103: #{_forward_impl.1} parent=11 // pred_region
        _
      $region104: #{_forward_impl.1} parent=11 // pred_fallthru
        _
      // Predicated region
      $region105: #{_forward_impl.1} parent=11 // pred_check
        %p698 = pneg %p588
      $region106: #{_forward_impl.1} parent=11 // pred_check_branch
        %700 = sbr.rel (%p698) target = $region108
      $region107: #{_forward_impl.1} parent=11 // pred_region
        _
      $region108: #{_forward_impl.1} parent=11 // pred_fallthru
        _
    $region12: #{_forward_impl.1} parent=5 // pred_fallthru
      _
    %p701 = scmp.lt.s32.totalorder %s32, 16
    // Predicated region
    $region109: #{_forward_impl.1} parent=5 // pred_check
      %p702 = pneg %p701
    $region110: #{_forward_impl.1} parent=5 // pred_check_branch
      %704 = sbr.rel (%p702) target = $region112
    $region111: #{_forward_impl.1} parent=5 // pred_region
      // Predicated region
      $region113: #{_forward_impl.1} parent=111 // pred_check
        %p705 = pneg %p52
      $region114: #{_forward_impl.1} parent=111 // pred_check_branch
        %707 = sbr.rel (%p705) target = $region116
      $region115: #{_forward_impl.1} parent=111 // pred_region
        %s708 = smul.u32 64, %s32
        %p709 = scmp.lt.s32.totalorder %s708, 1023
        %s710 = scalar_select %p709, %s708, 1023
        %s711 = smul.addr %s710, 4
        %s712 = scalar_lea.vmem %s0, %s711
        %s713 = smul.u32 64, %s32
      $region116: #{_forward_impl.1} parent=111 // pred_fallthru
        _
      // Predicated region
      $region117: #{_forward_impl.1} parent=111 // pred_check
        %p714 = pneg %p78
      $region118: #{_forward_impl.1} parent=111 // pred_check_branch
        %716 = sbr.rel (%p714) target = $region120
      $region119: #{_forward_impl.1} parent=111 // pred_region
        %s717 = smul.u32 64, %s32
        %p718 = scmp.lt.s32.totalorder %s717, 1023
        %s719 = scalar_select %p718, %s717, 1023
        %s720 = smul.addr %s719, 4
        %s721 = scalar_lea.vmem %s1, %s720
        %s722 = smul.u32 64, %s32
      $region120: #{_forward_impl.1} parent=111 // pred_fallthru
        _
    $region112: #{_forward_impl.1} parent=5 // pred_fallthru
      _
    %p723 = scmp.le.s32.totalorder 1, %s32
    %p724 = scmp.lt.s32.totalorder %s32, 17
    %p725 = pnand %p723, %p724
    %p726 = pneg %p725
    // Predicated region
    $region121: #{_forward_impl.1} parent=5 // pred_check
      _
    $region122: #{_forward_impl.1} parent=5 // pred_check_branch
      %728 = sbr.rel (%p725) target = $region124
    $region123: #{_forward_impl.1} parent=5 // pred_region
      %s729 = ssub.s32 %s32, 1
      %s730 = smul.u32 64, %s37
      %p731 = scmp.lt.s32.totalorder %s730, 1023
      %s732 = scalar_select %p731, %s730, 1023
      %s733 = smul.addr %s732, 4
      %s734 = scalar_lea.vmem %s0, %s733
      %p735 = pneg %p58
      %p736 = pneg %p55
      %s737 = smul.u32 64, %s37
      %p738 = scmp.lt.s32.totalorder %s737, 1023
      %s739 = scalar_select %p738, %s737, 1023
      %s740 = smul.addr %s739, 4
      %s741 = scalar_lea.vmem %s1, %s740
      %p742 = pneg %p84
      %p743 = pneg %p81
      %p744 = pneg %p105
      %p745 = pneg %p102
      %p746 = pneg %p126
      %p747 = pneg %p123
      %p748 = pneg %p147
      %p749 = pneg %p144
      %p750 = pneg %p168
      %p751 = pneg %p165
      %p752 = pneg %p189
      %p753 = pneg %p186
      %p754 = pneg %p210
      %p755 = pneg %p207
      %p756 = pneg %p231
      %p757 = pneg %p228
      %p758 = pneg %p252
      %p759 = pneg %p249
      %p760 = pneg %p273
      %p761 = pneg %p270
      %p762 = pneg %p294
      %p763 = pneg %p291
      %p764 = pneg %p315
      %p765 = pneg %p312
      %p766 = pneg %p336
      %p767 = pneg %p333
      %p768 = pneg %p357
      %p769 = pneg %p354
      %p770 = pneg %p378
      %p771 = pneg %p375
      %p772 = pneg %p399
      %p773 = pneg %p396
      %p774 = pneg %p420
      %p775 = pneg %p417
      %p776 = pneg %p441
      %p777 = pneg %p438
      %p778 = pneg %p462
      %p779 = pneg %p459
      %p780 = pneg %p483
      %p781 = pneg %p480
      %p782 = pneg %p504
      %p783 = pneg %p501
      %p784 = pneg %p525
      %p785 = pneg %p522
      %p786 = pneg %p546
      %p787 = pneg %p543
      %p788 = pneg %p567
      %p789 = pneg %p564
      %p790 = pneg %p588
      %p791 = pneg %p585
      %p792 = pneg %p614
      %p793 = pneg %p611
      %s794 = smul.u32 64, %s37
      %p795 = scmp.lt.s32.totalorder %s794, 1023
      %s796 = scalar_select %p795, %s794, 1023
      %s797 = smul.addr %s796, 8
      %s798 = scalar_lea.vmem %s26, %s797
      %s799 = smul.u32 64, %s37
      %p800 = scmp.lt.s32.totalorder %s799, 1023
      %s801 = scalar_select %p800, %s799, 1023
      %s802 = smul.addr %s801, 4
      %s803 = scalar_lea.vmem %s0, %s802
      %s804 = smul.u32 64, %s37
      %s805 = smul.u32 64, %s37
      %p806 = scmp.lt.s32.totalorder %s805, 1023
      %s807 = scalar_select %p806, %s805, 1023
      %s808 = smul.addr %s807, 4
      %s809 = scalar_lea.vmem %s1, %s808
      %s810 = smul.u32 64, %s37
      %s811 = smul.u32 64, %s37
      %p812 = scmp.lt.s32.totalorder %s811, 1023
      %s813 = scalar_select %p812, %s811, 1023
      %s814 = smul.addr %s813, 8
      %s815 = scalar_lea.vmem %s26, %s814
      %s816 = smul.u32 64, %s37
      %v818 = vld [vmem:[%s803] sm:$0xf]
      %v819 = vld [vmem:[%s803 + $0x4] sm:$0xf]
      %v820 = vld [vmem:[%s803 + $0x8] sm:$0xf]
      %v821 = vld [vmem:[%s803 + $0xc] sm:$0xf]
      %v822 = vld [vmem:[%s803 + $0x10] sm:$0xf]
      %v823 = vld [vmem:[%s803 + $0x14] sm:$0xf]
      %v824 = vld [vmem:[%s803 + $0x18] sm:$0xf]
      %v825 = vld [vmem:[%s803 + $0x1c] sm:$0xf]
      %v826 = vld [vmem:[%s803 + $0x20] sm:$0xf]
      %v827 = vld [vmem:[%s803 + $0x24] sm:$0xf]
      %v828 = vld [vmem:[%s803 + $0x28] sm:$0xf]
      %v829 = vld [vmem:[%s803 + $0x2c] sm:$0xf]
      %v830 = vld [vmem:[%s803 + $0x30] sm:$0xf]
      %v831 = vld [vmem:[%s803 + $0x34] sm:$0xf]
      %v832 = vld [vmem:[%s803 + $0x38] sm:$0xf]
      %v833 = vld [vmem:[%s803 + $0x3c] sm:$0xf]
      %v834 = vld [vmem:[%s803 + $0x40] sm:$0xf]
      %v835 = vld [vmem:[%s803 + $0x44] sm:$0xf]
      %v836 = vld [vmem:[%s803 + $0x48] sm:$0xf]
      %v837 = vld [vmem:[%s803 + $0x4c] sm:$0xf]
      %v838 = vld [vmem:[%s803 + $0x50] sm:$0xf]
      %v839 = vld [vmem:[%s803 + $0x54] sm:$0xf]
      %v840 = vld [vmem:[%s803 + $0x58] sm:$0xf]
      %v841 = vld [vmem:[%s803 + $0x5c] sm:$0xf]
      %v842 = vld [vmem:[%s803 + $0x60] sm:$0xf]
      %v843 = vld [vmem:[%s803 + $0x64] sm:$0xf]
      %v844 = vld [vmem:[%s803 + $0x68] sm:$0xf]
      %v845 = vld [vmem:[%s803 + $0x6c] sm:$0xf]
      %v846 = vld [vmem:[%s803 + $0x70] sm:$0xf]
      %v847 = vld [vmem:[%s803 + $0x74] sm:$0xf]
      %v848 = vld [vmem:[%s803 + $0x78] sm:$0xf]
      %v849 = vld [vmem:[%s803 + $0x7c] sm:$0xf]
      %v850 = vld [vmem:[%s803 + $0x80] sm:$0xf]
      %v851 = vld [vmem:[%s803 + $0x84] sm:$0xf]
      %v852 = vld [vmem:[%s803 + $0x88] sm:$0xf]
      %v853 = vld [vmem:[%s803 + $0x8c] sm:$0xf]
      %v854 = vld [vmem:[%s803 + $0x90] sm:$0xf]
      %v855 = vld [vmem:[%s803 + $0x94] sm:$0xf]
      %v856 = vld [vmem:[%s803 + $0x98] sm:$0xf]
      %v857 = vld [vmem:[%s803 + $0x9c] sm:$0xf]
      %v858 = vld [vmem:[%s803 + $0xa0] sm:$0xf]
      %v859 = vld [vmem:[%s803 + $0xa4] sm:$0xf]
      %v860 = vld [vmem:[%s803 + $0xa8] sm:$0xf]
      %v861 = vld [vmem:[%s803 + $0xac] sm:$0xf]
      %v862 = vld [vmem:[%s803 + $0xb0] sm:$0xf]
      %v863 = vld [vmem:[%s803 + $0xb4] sm:$0xf]
      %v864 = vld [vmem:[%s803 + $0xb8] sm:$0xf]
      %v865 = vld [vmem:[%s803 + $0xbc] sm:$0xf]
      %v866 = vld [vmem:[%s803 + $0xc0] sm:$0xf]
      %v867 = vld [vmem:[%s803 + $0xc4] sm:$0xf]
      %v868 = vld [vmem:[%s803 + $0xc8] sm:$0xf]
      %v869 = vld [vmem:[%s803 + $0xcc] sm:$0xf]
      %v870 = vld [vmem:[%s803 + $0xd0] sm:$0xf]
      %v871 = vld [vmem:[%s803 + $0xd4] sm:$0xf]
      %v872 = vld [vmem:[%s803 + $0xd8] sm:$0xf]
      %v873 = vld [vmem:[%s803 + $0xdc] sm:$0xf]
      %v874 = vld [vmem:[%s803 + $0xe0] sm:$0xf]
      %v875 = vld [vmem:[%s803 + $0xe4] sm:$0xf]
      %v876 = vld [vmem:[%s803 + $0xe8] sm:$0xf]
      %v877 = vld [vmem:[%s803 + $0xec] sm:$0xf]
      %v878 = vld [vmem:[%s803 + $0xf0] sm:$0xf]
      %v879 = vld [vmem:[%s803 + $0xf4] sm:$0xf]
      %v880 = vld [vmem:[%s803 + $0xf8] sm:$0xf]
      %v881 = vld [vmem:[%s803 + $0xfc] sm:$0xf]
      %v882 = vld [vmem:[%s809] sm:$0xf]
      %v883 = vld [vmem:[%s809 + $0x4] sm:$0xf]
      %v884 = vld [vmem:[%s809 + $0x8] sm:$0xf]
      %v885 = vld [vmem:[%s809 + $0xc] sm:$0xf]
      %v886 = vld [vmem:[%s809 + $0x10] sm:$0xf]
      %v887 = vld [vmem:[%s809 + $0x14] sm:$0xf]
      %v888 = vld [vmem:[%s809 + $0x18] sm:$0xf]
      %v889 = vld [vmem:[%s809 + $0x1c] sm:$0xf]
      %v890 = vld [vmem:[%s809 + $0x20] sm:$0xf]
      %v891 = vld [vmem:[%s809 + $0x24] sm:$0xf]
      %v892 = vld [vmem:[%s809 + $0x28] sm:$0xf]
      %v893 = vld [vmem:[%s809 + $0x2c] sm:$0xf]
      %v894 = vld [vmem:[%s809 + $0x30] sm:$0xf]
      %v895 = vld [vmem:[%s809 + $0x34] sm:$0xf]
      %v896 = vld [vmem:[%s809 + $0x38] sm:$0xf]
      %v897 = vld [vmem:[%s809 + $0x3c] sm:$0xf]
      %v898 = vld [vmem:[%s809 + $0x40] sm:$0xf]
      %v899 = vld [vmem:[%s809 + $0x44] sm:$0xf]
      %v900 = vld [vmem:[%s809 + $0x48] sm:$0xf]
      %v901 = vld [vmem:[%s809 + $0x4c] sm:$0xf]
      %v902 = vld [vmem:[%s809 + $0x50] sm:$0xf]
      %v903 = vld [vmem:[%s809 + $0x54] sm:$0xf]
      %v904 = vld [vmem:[%s809 + $0x58] sm:$0xf]
      %v905 = vld [vmem:[%s809 + $0x5c] sm:$0xf]
      %v906 = vld [vmem:[%s809 + $0x60] sm:$0xf]
      %v907 = vld [vmem:[%s809 + $0x64] sm:$0xf]
      %v908 = vld [vmem:[%s809 + $0x68] sm:$0xf]
      %v909 = vld [vmem:[%s809 + $0x6c] sm:$0xf]
      %v910 = vld [vmem:[%s809 + $0x70] sm:$0xf]
      %v911 = vld [vmem:[%s809 + $0x74] sm:$0xf]
      %v912 = vld [vmem:[%s809 + $0x78] sm:$0xf]
      %v913 = vld [vmem:[%s809 + $0x7c] sm:$0xf]
      %v914 = vld [vmem:[%s809 + $0x80] sm:$0xf]
      %v915 = vld [vmem:[%s809 + $0x84] sm:$0xf]
      %v916 = vld [vmem:[%s809 + $0x88] sm:$0xf]
      %v917 = vld [vmem:[%s809 + $0x8c] sm:$0xf]
      %v918 = vld [vmem:[%s809 + $0x90] sm:$0xf]
      %v919 = vld [vmem:[%s809 + $0x94] sm:$0xf]
      %v920 = vld [vmem:[%s809 + $0x98] sm:$0xf]
      %v921 = vld [vmem:[%s809 + $0x9c] sm:$0xf]
      %v922 = vld [vmem:[%s809 + $0xa0] sm:$0xf]
      %v923 = vld [vmem:[%s809 + $0xa4] sm:$0xf]
      %v924 = vld [vmem:[%s809 + $0xa8] sm:$0xf]
      %v925 = vld [vmem:[%s809 + $0xac] sm:$0xf]
      %v926 = vld [vmem:[%s809 + $0xb0] sm:$0xf]
      %v927 = vld [vmem:[%s809 + $0xb4] sm:$0xf]
      %v928 = vld [vmem:[%s809 + $0xb8] sm:$0xf]
      %v929 = vld [vmem:[%s809 + $0xbc] sm:$0xf]
      %v930 = vld [vmem:[%s809 + $0xc0] sm:$0xf]
      %v931 = vld [vmem:[%s809 + $0xc4] sm:$0xf]
      %v932 = vld [vmem:[%s809 + $0xc8] sm:$0xf]
      %v933 = vld [vmem:[%s809 + $0xcc] sm:$0xf]
      %v934 = vld [vmem:[%s809 + $0xd0] sm:$0xf]
      %v935 = vld [vmem:[%s809 + $0xd4] sm:$0xf]
      %v936 = vld [vmem:[%s809 + $0xd8] sm:$0xf]
      %v937 = vld [vmem:[%s809 + $0xdc] sm:$0xf]
      %v938 = vld [vmem:[%s809 + $0xe0] sm:$0xf]
      %v939 = vld [vmem:[%s809 + $0xe4] sm:$0xf]
      %v940 = vld [vmem:[%s809 + $0xe8] sm:$0xf]
      %v941 = vld [vmem:[%s809 + $0xec] sm:$0xf]
      %v942 = vld [vmem:[%s809 + $0xf0] sm:$0xf]
      %v943 = vld [vmem:[%s809 + $0xf4] sm:$0xf]
      %v944 = vld [vmem:[%s809 + $0xf8] sm:$0xf]
      %v945 = vld [vmem:[%s809 + $0xfc] sm:$0xf]
      %v946 = vld [vmem:[%s2] sm:$0xff]
      %v947 = vld [vmem:[%s2 + $0x8] sm:$0xff]
      %v948 = vld [vmem:[%s2 + $0x10] sm:$0xff]
      %v949 = vld [vmem:[%s2 + $0x18] sm:$0xff]
      %v950 = vld [vmem:[%s2 + $0x20] sm:$0xff]
      %v951 = vld [vmem:[%s2 + $0x28] sm:$0xff]
      %v952 = vld [vmem:[%s2 + $0x30] sm:$0xff]
      %v953 = vld [vmem:[%s2 + $0x38] sm:$0xff]
      %v954 = vld [vmem:[%s3] sm:$0x3]
      %v956 = vlaneseq
      %v957 = vshrl.u32 %v956, 7
      %v958 = vsub.s32 0, %v957
      %v959 = vrot.slane %v954, %v958
      %v960 = vlaneseq
      %v961 = vshrl.u32 %v960, 7
      %v962 = vsub.s32 1, %v961
      %v963 = vrot.slane %v954, %v962
      %v1030 = vunpack.c.l.b16 %v818
      %v1031 = vunpack.c.l.b16 %v819
      %v1032 = vunpack.c.l.b16 %v820
      %v1033 = vunpack.c.l.b16 %v821
      %v1034 = vunpack.c.l.b16 %v822
      %v1035 = vunpack.c.l.b16 %v823
      %v1036 = vunpack.c.l.b16 %v824
      %v1037 = vunpack.c.l.b16 %v825
      %v1038 = vunpack.c.l.b16 %v826
      %v1039 = vunpack.c.l.b16 %v827
      %v1040 = vunpack.c.l.b16 %v828
      %v1041 = vunpack.c.l.b16 %v829
      %v1042 = vunpack.c.l.b16 %v830
      %v1043 = vunpack.c.l.b16 %v831
      %v1044 = vunpack.c.l.b16 %v832
      %v1045 = vunpack.c.l.b16 %v833
      %v1046 = vunpack.c.l.b16 %v834
      %v1047 = vunpack.c.l.b16 %v835
      %v1048 = vunpack.c.l.b16 %v836
      %v1049 = vunpack.c.l.b16 %v837
      %v1050 = vunpack.c.l.b16 %v838
      %v1051 = vunpack.c.l.b16 %v839
      %v1052 = vunpack.c.l.b16 %v840
      %v1053 = vunpack.c.l.b16 %v841
      %v1054 = vunpack.c.l.b16 %v842
      %v1055 = vunpack.c.l.b16 %v843
      %v1056 = vunpack.c.l.b16 %v844
      %v1057 = vunpack.c.l.b16 %v845
      %v1058 = vunpack.c.l.b16 %v846
      %v1059 = vunpack.c.l.b16 %v847
      %v1060 = vunpack.c.l.b16 %v848
      %v1061 = vunpack.c.l.b16 %v849
      %v1062 = vunpack.c.l.b16 %v850
      %v1063 = vunpack.c.l.b16 %v851
      %v1064 = vunpack.c.l.b16 %v852
      %v1065 = vunpack.c.l.b16 %v853
      %v1066 = vunpack.c.l.b16 %v854
      %v1067 = vunpack.c.l.b16 %v855
      %v1068 = vunpack.c.l.b16 %v856
      %v1069 = vunpack.c.l.b16 %v857
      %v1070 = vunpack.c.l.b16 %v858
      %v1071 = vunpack.c.l.b16 %v859
      %v1072 = vunpack.c.l.b16 %v860
      %v1073 = vunpack.c.l.b16 %v861
      %v1074 = vunpack.c.l.b16 %v862
      %v1075 = vunpack.c.l.b16 %v863
      %v1076 = vunpack.c.l.b16 %v864
      %v1077 = vunpack.c.l.b16 %v865
      %v1078 = vunpack.c.l.b16 %v866
      %v1079 = vunpack.c.l.b16 %v867
      %v1080 = vunpack.c.l.b16 %v868
      %v1081 = vunpack.c.l.b16 %v869
      %v1082 = vunpack.c.l.b16 %v870
      %v1083 = vunpack.c.l.b16 %v871
      %v1084 = vunpack.c.l.b16 %v872
      %v1085 = vunpack.c.l.b16 %v873
      %v1086 = vunpack.c.l.b16 %v874
      %v1087 = vunpack.c.l.b16 %v875
      %v1088 = vunpack.c.l.b16 %v876
      %v1089 = vunpack.c.l.b16 %v877
      %v1090 = vunpack.c.l.b16 %v878
      %v1091 = vunpack.c.l.b16 %v879
      %v1092 = vunpack.c.l.b16 %v880
      %v1093 = vunpack.c.l.b16 %v881
      %v1094 = vpack.c.b16 %v1031, %v1030
      %v1095 = vpack.c.b16 %v1033, %v1032
      %v1096 = vpack.c.b16 %v1035, %v1034
      %v1097 = vpack.c.b16 %v1037, %v1036
      %v1098 = vpack.c.b16 %v1039, %v1038
      %v1099 = vpack.c.b16 %v1041, %v1040
      %v1100 = vpack.c.b16 %v1043, %v1042
      %v1101 = vpack.c.b16 %v1045, %v1044
      %v1102 = vpack.c.b16 %v1047, %v1046
      %v1103 = vpack.c.b16 %v1049, %v1048
      %v1104 = vpack.c.b16 %v1051, %v1050
      %v1105 = vpack.c.b16 %v1053, %v1052
      %v1106 = vpack.c.b16 %v1055, %v1054
      %v1107 = vpack.c.b16 %v1057, %v1056
      %v1108 = vpack.c.b16 %v1059, %v1058
      %v1109 = vpack.c.b16 %v1061, %v1060
      %v1110 = vpack.c.b16 %v1063, %v1062
      %v1111 = vpack.c.b16 %v1065, %v1064
      %v1112 = vpack.c.b16 %v1067, %v1066
      %v1113 = vpack.c.b16 %v1069, %v1068
      %v1114 = vpack.c.b16 %v1071, %v1070
      %v1115 = vpack.c.b16 %v1073, %v1072
      %v1116 = vpack.c.b16 %v1075, %v1074
      %v1117 = vpack.c.b16 %v1077, %v1076
      %v1118 = vpack.c.b16 %v1079, %v1078
      %v1119 = vpack.c.b16 %v1081, %v1080
      %v1120 = vpack.c.b16 %v1083, %v1082
      %v1121 = vpack.c.b16 %v1085, %v1084
      %v1122 = vpack.c.b16 %v1087, %v1086
      %v1123 = vpack.c.b16 %v1089, %v1088
      %v1124 = vpack.c.b16 %v1091, %v1090
      %v1125 = vpack.c.b16 %v1093, %v1092
      %v1134 = vunpack.c.l.b16 %v946
      %v1135 = vunpack.c.h.b16 %v946
      %v1136 = vunpack.c.l.b16 %v947
      %v1137 = vunpack.c.h.b16 %v947
      %v1138 = vunpack.c.l.b16 %v948
      %v1139 = vunpack.c.h.b16 %v948
      %v1140 = vunpack.c.l.b16 %v949
      %v1141 = vunpack.c.h.b16 %v949
      %v1142 = vunpack.c.l.b16 %v950
      %v1143 = vunpack.c.h.b16 %v950
      %v1144 = vunpack.c.l.b16 %v951
      %v1145 = vunpack.c.h.b16 %v951
      %v1146 = vunpack.c.l.b16 %v952
      %v1147 = vunpack.c.h.b16 %v952
      %v1148 = vunpack.c.l.b16 %v953
      %v1149 = vunpack.c.h.b16 %v953
      %v1150 = vpack.c.b16 %v1136, %v1134
      %v1151 = vpack.c.b16 %v1137, %v1135
      %v1152 = vpack.c.b16 %v1140, %v1138
      %v1153 = vpack.c.b16 %v1141, %v1139
      %v1154 = vpack.c.b16 %v1144, %v1142
      %v1155 = vpack.c.b16 %v1145, %v1143
      %v1156 = vpack.c.b16 %v1148, %v1146
      %v1157 = vpack.c.b16 %v1149, %v1147
      %vm1166 = vcmask 523264
      %v1168 = vsel %vm1166, %v1094, 0
      %v1171 = vsel %vm1166, %v1095, 0
      %v1174 = vsel %vm1166, %v1096, 0
      %v1177 = vsel %vm1166, %v1097, 0
      %v1180 = vsel %vm1166, %v1098, 0
      %v1183 = vsel %vm1166, %v1099, 0
      %v1186 = vsel %vm1166, %v1100, 0
      %v1189 = vsel %vm1166, %v1101, 0
      %v1192 = vsel %vm1166, %v1102, 0
      %v1195 = vsel %vm1166, %v1103, 0
      %v1198 = vsel %vm1166, %v1104, 0
      %v1201 = vsel %vm1166, %v1105, 0
      %v1204 = vsel %vm1166, %v1106, 0
      %v1207 = vsel %vm1166, %v1107, 0
      %v1210 = vsel %vm1166, %v1108, 0
      %v1213 = vsel %vm1166, %v1109, 0
      %v1216 = vsel %vm1166, %v1110, 0
      %v1219 = vsel %vm1166, %v1111, 0
      %v1222 = vsel %vm1166, %v1112, 0
      %v1225 = vsel %vm1166, %v1113, 0
      %v1228 = vsel %vm1166, %v1114, 0
      %v1231 = vsel %vm1166, %v1115, 0
      %v1234 = vsel %vm1166, %v1116, 0
      %v1237 = vsel %vm1166, %v1117, 0
      %v1240 = vsel %vm1166, %v1118, 0
      %v1243 = vsel %vm1166, %v1119, 0
      %v1246 = vsel %vm1166, %v1120, 0
      %v1249 = vsel %vm1166, %v1121, 0
      %v1252 = vsel %vm1166, %v1122, 0
      %v1255 = vsel %vm1166, %v1123, 0
      %v1258 = vsel %vm1166, %v1124, 0
      %v1261 = vsel %vm1166, %v1125, 0
      %1263 = vmatprep.subr.bf16.mxu0 0
      %1264 = vmatpush1.bf16.msra.mxu0 0
      %1265 = vmatprep.subr.bf16.mxu0 0
      %1266 = vmatpush1.bf16.msra.mxu0 0
      %1267 = vmatprep.subr.bf16.mxu0 0
      %1268 = vmatpush1.bf16.msra.mxu0 0
      %1269 = vmatprep.subr.bf16.mxu0 0
      %1270 = vmatpush1.bf16.msra.mxu0 0
      %1271 = vmatprep.subr.bf16.mxu0 %v1157
      %1272 = vmatpush1.bf16.msra.mxu0 %v1156
      %1273 = vmatprep.subr.bf16.mxu0 %v1155
      %1274 = vmatpush1.bf16.msra.mxu0 %v1154
      %1275 = vmatprep.subr.bf16.mxu0 %v1153
      %1276 = vmatpush1.bf16.msra.mxu0 %v1152
      %1277 = vmatprep.subr.bf16.mxu0 %v1151
      %1278 = vmatpush1.bf16.msra.mxu0 %v1150
      %1279 = vmatprep.subr.bf16.mxu0 0
      %1280 = vmatpush2.bf16.msra.mxu0 0
      %1281 = vmatprep.subr.bf16.mxu0 0
      %1282 = vmatpush2.bf16.msra.mxu0 0
      %1283 = vmatprep.subr.bf16.mxu0 0
      %1284 = vmatpush2.bf16.msra.mxu0 0
      %1285 = vmatprep.subr.bf16.mxu0 0
      %1286 = vmatpush2.bf16.msra.mxu0 0
      %1287 = vmatprep.subr.bf16.mxu0 0
      %1288 = vmatpush2.bf16.msra.mxu0 0
      %1289 = vmatprep.subr.bf16.mxu0 0
      %1290 = vmatpush2.bf16.msra.mxu0 0
      %1291 = vmatprep.subr.bf16.mxu0 0
      %1292 = vmatpush2.bf16.msra.mxu0 0
      %1293 = vmatprep.subr.bf16.mxu0 0
      %1294 = vmatpush2.bf16.msra.mxu0 0
      %1295 = vmatprep.mubr.bf16.mxu0 0
      %1296 = vmatmul.mubr.bf16.gmra.mxu0 %v1168
      %v1297 = vpop.f32.mrf.mxu0
      %v1298 = vadd.f32 %v959, %v1297
      %v1299 = vpop.f32.mrf.mxu0
      %v1300 = vadd.f32 %v963, %v1299
      %v1301 = vpop.f32.mrf.mxu0
      %v1302 = vadd.f32 %v959, %v1301
      %v1303 = vpop.f32.mrf.mxu0
      %v1304 = vadd.f32 %v963, %v1303
      %1305 = vmatprep.mubr.bf16.mxu0 0
      %1306 = vmatmul.mubr.bf16.gmra.mxu0 %v1171
      %v1307 = vpop.f32.mrf.mxu0
      %v1308 = vadd.f32 %v959, %v1307
      %v1309 = vpop.f32.mrf.mxu0
      %v1310 = vadd.f32 %v963, %v1309
      %v1311 = vpop.f32.mrf.mxu0
      %v1312 = vadd.f32 %v959, %v1311
      %v1313 = vpop.f32.mrf.mxu0
      %v1314 = vadd.f32 %v963, %v1313
      %1315 = vmatprep.mubr.bf16.mxu0 0
      %1316 = vmatmul.mubr.bf16.gmra.mxu0 %v1174
      %v1317 = vpop.f32.mrf.mxu0
      %v1318 = vadd.f32 %v959, %v1317
      %v1319 = vpop.f32.mrf.mxu0
      %v1320 = vadd.f32 %v963, %v1319
      %v1321 = vpop.f32.mrf.mxu0
      %v1322 = vadd.f32 %v959, %v1321
      %v1323 = vpop.f32.mrf.mxu0
      %v1324 = vadd.f32 %v963, %v1323
      %1325 = vmatprep.mubr.bf16.mxu0 0
      %1326 = vmatmul.mubr.bf16.gmra.mxu0 %v1177
      %v1327 = vpop.f32.mrf.mxu0
      %v1328 = vadd.f32 %v959, %v1327
      %v1329 = vpop.f32.mrf.mxu0
      %v1330 = vadd.f32 %v963, %v1329
      %v1331 = vpop.f32.mrf.mxu0
      %v1332 = vadd.f32 %v959, %v1331
      %v1333 = vpop.f32.mrf.mxu0
      %v1334 = vadd.f32 %v963, %v1333
      %1335 = vmatprep.mubr.bf16.mxu0 0
      %1336 = vmatmul.mubr.bf16.gmra.mxu0 %v1180
      %v1337 = vpop.f32.mrf.mxu0
      %v1338 = vadd.f32 %v959, %v1337
      %v1339 = vpop.f32.mrf.mxu0
      %v1340 = vadd.f32 %v963, %v1339
      %v1341 = vpop.f32.mrf.mxu0
      %v1342 = vadd.f32 %v959, %v1341
      %v1343 = vpop.f32.mrf.mxu0
      %v1344 = vadd.f32 %v963, %v1343
      %1345 = vmatprep.mubr.bf16.mxu0 0
      %1346 = vmatmul.mubr.bf16.gmra.mxu0 %v1183
      %v1347 = vpop.f32.mrf.mxu0
      %v1348 = vadd.f32 %v959, %v1347
      %v1349 = vpop.f32.mrf.mxu0
      %v1350 = vadd.f32 %v963, %v1349
      %v1351 = vpop.f32.mrf.mxu0
      %v1352 = vadd.f32 %v959, %v1351
      %v1353 = vpop.f32.mrf.mxu0
      %v1354 = vadd.f32 %v963, %v1353
      %1355 = vmatprep.mubr.bf16.mxu0 0
      %1356 = vmatmul.mubr.bf16.gmra.mxu0 %v1186
      %v1357 = vpop.f32.mrf.mxu0
      %v1358 = vadd.f32 %v959, %v1357
      %v1359 = vpop.f32.mrf.mxu0
      %v1360 = vadd.f32 %v963, %v1359
      %v1361 = vpop.f32.mrf.mxu0
      %v1362 = vadd.f32 %v959, %v1361
      %v1363 = vpop.f32.mrf.mxu0
      %v1364 = vadd.f32 %v963, %v1363
      %1365 = vmatprep.mubr.bf16.mxu0 0
      %1366 = vmatmul.mubr.bf16.gmra.mxu0 %v1189
      %v1367 = vpop.f32.mrf.mxu0
      %v1368 = vadd.f32 %v959, %v1367
      %v1369 = vpop.f32.mrf.mxu0
      %v1370 = vadd.f32 %v963, %v1369
      %v1371 = vpop.f32.mrf.mxu0
      %v1372 = vadd.f32 %v959, %v1371
      %v1373 = vpop.f32.mrf.mxu0
      %v1374 = vadd.f32 %v963, %v1373
      %1375 = vmatprep.mubr.bf16.mxu0 0
      %1376 = vmatmul.mubr.bf16.gmra.mxu0 %v1192
      %v1377 = vpop.f32.mrf.mxu0
      %v1378 = vadd.f32 %v959, %v1377
      %v1379 = vpop.f32.mrf.mxu0
      %v1380 = vadd.f32 %v963, %v1379
      %v1381 = vpop.f32.mrf.mxu0
      %v1382 = vadd.f32 %v959, %v1381
      %v1383 = vpop.f32.mrf.mxu0
      %v1384 = vadd.f32 %v963, %v1383
      %1385 = vmatprep.mubr.bf16.mxu0 0
      %1386 = vmatmul.mubr.bf16.gmra.mxu0 %v1195
      %v1387 = vpop.f32.mrf.mxu0
      %v1388 = vadd.f32 %v959, %v1387
      %v1389 = vpop.f32.mrf.mxu0
      %v1390 = vadd.f32 %v963, %v1389
      %v1391 = vpop.f32.mrf.mxu0
      %v1392 = vadd.f32 %v959, %v1391
      %v1393 = vpop.f32.mrf.mxu0
      %v1394 = vadd.f32 %v963, %v1393
      %1395 = vmatprep.mubr.bf16.mxu0 0
      %1396 = vmatmul.mubr.bf16.gmra.mxu0 %v1198
      %v1397 = vpop.f32.mrf.mxu0
      %v1398 = vadd.f32 %v959, %v1397
      %v1399 = vpop.f32.mrf.mxu0
      %v1400 = vadd.f32 %v963, %v1399
      %v1401 = vpop.f32.mrf.mxu0
      %v1402 = vadd.f32 %v959, %v1401
      %v1403 = vpop.f32.mrf.mxu0
      %v1404 = vadd.f32 %v963, %v1403
      %1405 = vmatprep.mubr.bf16.mxu0 0
      %1406 = vmatmul.mubr.bf16.gmra.mxu0 %v1201
      %v1407 = vpop.f32.mrf.mxu0
      %v1408 = vadd.f32 %v959, %v1407
      %v1409 = vpop.f32.mrf.mxu0
      %v1410 = vadd.f32 %v963, %v1409
      %v1411 = vpop.f32.mrf.mxu0
      %v1412 = vadd.f32 %v959, %v1411
      %v1413 = vpop.f32.mrf.mxu0
      %v1414 = vadd.f32 %v963, %v1413
      %1415 = vmatprep.mubr.bf16.mxu0 0
      %1416 = vmatmul.mubr.bf16.gmra.mxu0 %v1204
      %v1417 = vpop.f32.mrf.mxu0
      %v1418 = vadd.f32 %v959, %v1417
      %v1419 = vpop.f32.mrf.mxu0
      %v1420 = vadd.f32 %v963, %v1419
      %v1421 = vpop.f32.mrf.mxu0
      %v1422 = vadd.f32 %v959, %v1421
      %v1423 = vpop.f32.mrf.mxu0
      %v1424 = vadd.f32 %v963, %v1423
      %1425 = vmatprep.mubr.bf16.mxu0 0
      %1426 = vmatmul.mubr.bf16.gmra.mxu0 %v1207
      %v1427 = vpop.f32.mrf.mxu0
      %v1428 = vadd.f32 %v959, %v1427
      %v1429 = vpop.f32.mrf.mxu0
      %v1430 = vadd.f32 %v963, %v1429
      %v1431 = vpop.f32.mrf.mxu0
      %v1432 = vadd.f32 %v959, %v1431
      %v1433 = vpop.f32.mrf.mxu0
      %v1434 = vadd.f32 %v963, %v1433
      %1435 = vmatprep.mubr.bf16.mxu0 0
      %1436 = vmatmul.mubr.bf16.gmra.mxu0 %v1210
      %v1437 = vpop.f32.mrf.mxu0
      %v1438 = vadd.f32 %v959, %v1437
      %v1439 = vpop.f32.mrf.mxu0
      %v1440 = vadd.f32 %v963, %v1439
      %v1441 = vpop.f32.mrf.mxu0
      %v1442 = vadd.f32 %v959, %v1441
      %v1443 = vpop.f32.mrf.mxu0
      %v1444 = vadd.f32 %v963, %v1443
      %1445 = vmatprep.mubr.bf16.mxu0 0
      %1446 = vmatmul.mubr.bf16.gmra.mxu0 %v1213
      %v1447 = vpop.f32.mrf.mxu0
      %v1448 = vadd.f32 %v959, %v1447
      %v1449 = vpop.f32.mrf.mxu0
      %v1450 = vadd.f32 %v963, %v1449
      %v1451 = vpop.f32.mrf.mxu0
      %v1452 = vadd.f32 %v959, %v1451
      %v1453 = vpop.f32.mrf.mxu0
      %v1454 = vadd.f32 %v963, %v1453
      %1455 = vmatprep.mubr.bf16.mxu0 0
      %1456 = vmatmul.mubr.bf16.gmra.mxu0 %v1216
      %v1457 = vpop.f32.mrf.mxu0
      %v1458 = vadd.f32 %v959, %v1457
      %v1459 = vpop.f32.mrf.mxu0
      %v1460 = vadd.f32 %v963, %v1459
      %v1461 = vpop.f32.mrf.mxu0
      %v1462 = vadd.f32 %v959, %v1461
      %v1463 = vpop.f32.mrf.mxu0
      %v1464 = vadd.f32 %v963, %v1463
      %1465 = vmatprep.mubr.bf16.mxu0 0
      %1466 = vmatmul.mubr.bf16.gmra.mxu0 %v1219
      %v1467 = vpop.f32.mrf.mxu0
      %v1468 = vadd.f32 %v959, %v1467
      %v1469 = vpop.f32.mrf.mxu0
      %v1470 = vadd.f32 %v963, %v1469
      %v1471 = vpop.f32.mrf.mxu0
      %v1472 = vadd.f32 %v959, %v1471
      %v1473 = vpop.f32.mrf.mxu0
      %v1474 = vadd.f32 %v963, %v1473
      %1475 = vmatprep.mubr.bf16.mxu0 0
      %1476 = vmatmul.mubr.bf16.gmra.mxu0 %v1222
      %v1477 = vpop.f32.mrf.mxu0
      %v1478 = vadd.f32 %v959, %v1477
      %v1479 = vpop.f32.mrf.mxu0
      %v1480 = vadd.f32 %v963, %v1479
      %v1481 = vpop.f32.mrf.mxu0
      %v1482 = vadd.f32 %v959, %v1481
      %v1483 = vpop.f32.mrf.mxu0
      %v1484 = vadd.f32 %v963, %v1483
      %1485 = vmatprep.mubr.bf16.mxu0 0
      %1486 = vmatmul.mubr.bf16.gmra.mxu0 %v1225
      %v1487 = vpop.f32.mrf.mxu0
      %v1488 = vadd.f32 %v959, %v1487
      %v1489 = vpop.f32.mrf.mxu0
      %v1490 = vadd.f32 %v963, %v1489
      %v1491 = vpop.f32.mrf.mxu0
      %v1492 = vadd.f32 %v959, %v1491
      %v1493 = vpop.f32.mrf.mxu0
      %v1494 = vadd.f32 %v963, %v1493
      %1495 = vmatprep.mubr.bf16.mxu0 0
      %1496 = vmatmul.mubr.bf16.gmra.mxu0 %v1228
      %v1497 = vpop.f32.mrf.mxu0
      %v1498 = vadd.f32 %v959, %v1497
      %v1499 = vpop.f32.mrf.mxu0
      %v1500 = vadd.f32 %v963, %v1499
      %v1501 = vpop.f32.mrf.mxu0
      %v1502 = vadd.f32 %v959, %v1501
      %v1503 = vpop.f32.mrf.mxu0
      %v1504 = vadd.f32 %v963, %v1503
      %1505 = vmatprep.mubr.bf16.mxu0 0
      %1506 = vmatmul.mubr.bf16.gmra.mxu0 %v1231
      %v1507 = vpop.f32.mrf.mxu0
      %v1508 = vadd.f32 %v959, %v1507
      %v1509 = vpop.f32.mrf.mxu0
      %v1510 = vadd.f32 %v963, %v1509
      %v1511 = vpop.f32.mrf.mxu0
      %v1512 = vadd.f32 %v959, %v1511
      %v1513 = vpop.f32.mrf.mxu0
      %v1514 = vadd.f32 %v963, %v1513
      %1515 = vmatprep.mubr.bf16.mxu0 0
      %1516 = vmatmul.mubr.bf16.gmra.mxu0 %v1234
      %v1517 = vpop.f32.mrf.mxu0
      %v1518 = vadd.f32 %v959, %v1517
      %v1519 = vpop.f32.mrf.mxu0
      %v1520 = vadd.f32 %v963, %v1519
      %v1521 = vpop.f32.mrf.mxu0
      %v1522 = vadd.f32 %v959, %v1521
      %v1523 = vpop.f32.mrf.mxu0
      %v1524 = vadd.f32 %v963, %v1523
      %1525 = vmatprep.mubr.bf16.mxu0 0
      %1526 = vmatmul.mubr.bf16.gmra.mxu0 %v1237
      %v1527 = vpop.f32.mrf.mxu0
      %v1528 = vadd.f32 %v959, %v1527
      %v1529 = vpop.f32.mrf.mxu0
      %v1530 = vadd.f32 %v963, %v1529
      %v1531 = vpop.f32.mrf.mxu0
      %v1532 = vadd.f32 %v959, %v1531
      %v1533 = vpop.f32.mrf.mxu0
      %v1534 = vadd.f32 %v963, %v1533
      %1535 = vmatprep.mubr.bf16.mxu0 0
      %1536 = vmatmul.mubr.bf16.gmra.mxu0 %v1240
      %v1537 = vpop.f32.mrf.mxu0
      %v1538 = vadd.f32 %v959, %v1537
      %v1539 = vpop.f32.mrf.mxu0
      %v1540 = vadd.f32 %v963, %v1539
      %v1541 = vpop.f32.mrf.mxu0
      %v1542 = vadd.f32 %v959, %v1541
      %v1543 = vpop.f32.mrf.mxu0
      %v1544 = vadd.f32 %v963, %v1543
      %1545 = vmatprep.mubr.bf16.mxu0 0
      %1546 = vmatmul.mubr.bf16.gmra.mxu0 %v1243
      %v1547 = vpop.f32.mrf.mxu0
      %v1548 = vadd.f32 %v959, %v1547
      %v1549 = vpop.f32.mrf.mxu0
      %v1550 = vadd.f32 %v963, %v1549
      %v1551 = vpop.f32.mrf.mxu0
      %v1552 = vadd.f32 %v959, %v1551
      %v1553 = vpop.f32.mrf.mxu0
      %v1554 = vadd.f32 %v963, %v1553
      %1555 = vmatprep.mubr.bf16.mxu0 0
      %1556 = vmatmul.mubr.bf16.gmra.mxu0 %v1246
      %v1557 = vpop.f32.mrf.mxu0
      %v1558 = vadd.f32 %v959, %v1557
      %v1559 = vpop.f32.mrf.mxu0
      %v1560 = vadd.f32 %v963, %v1559
      %v1561 = vpop.f32.mrf.mxu0
      %v1562 = vadd.f32 %v959, %v1561
      %v1563 = vpop.f32.mrf.mxu0
      %v1564 = vadd.f32 %v963, %v1563
      %1565 = vmatprep.mubr.bf16.mxu0 0
      %1566 = vmatmul.mubr.bf16.gmra.mxu0 %v1249
      %v1567 = vpop.f32.mrf.mxu0
      %v1568 = vadd.f32 %v959, %v1567
      %v1569 = vpop.f32.mrf.mxu0
      %v1570 = vadd.f32 %v963, %v1569
      %v1571 = vpop.f32.mrf.mxu0
      %v1572 = vadd.f32 %v959, %v1571
      %v1573 = vpop.f32.mrf.mxu0
      %v1574 = vadd.f32 %v963, %v1573
      %1575 = vmatprep.mubr.bf16.mxu0 0
      %1576 = vmatmul.mubr.bf16.gmra.mxu0 %v1252
      %v1577 = vpop.f32.mrf.mxu0
      %v1578 = vadd.f32 %v959, %v1577
      %v1579 = vpop.f32.mrf.mxu0
      %v1580 = vadd.f32 %v963, %v1579
      %v1581 = vpop.f32.mrf.mxu0
      %v1582 = vadd.f32 %v959, %v1581
      %v1583 = vpop.f32.mrf.mxu0
      %v1584 = vadd.f32 %v963, %v1583
      %1585 = vmatprep.mubr.bf16.mxu0 0
      %1586 = vmatmul.mubr.bf16.gmra.mxu0 %v1255
      %v1587 = vpop.f32.mrf.mxu0
      %v1588 = vadd.f32 %v959, %v1587
      %v1589 = vpop.f32.mrf.mxu0
      %v1590 = vadd.f32 %v963, %v1589
      %v1591 = vpop.f32.mrf.mxu0
      %v1592 = vadd.f32 %v959, %v1591
      %v1593 = vpop.f32.mrf.mxu0
      %v1594 = vadd.f32 %v963, %v1593
      %1595 = vmatprep.mubr.bf16.mxu0 0
      %1596 = vmatmul.mubr.bf16.gmra.mxu0 %v1258
      %v1597 = vpop.f32.mrf.mxu0
      %v1598 = vadd.f32 %v959, %v1597
      %v1599 = vpop.f32.mrf.mxu0
      %v1600 = vadd.f32 %v963, %v1599
      %v1601 = vpop.f32.mrf.mxu0
      %v1602 = vadd.f32 %v959, %v1601
      %v1603 = vpop.f32.mrf.mxu0
      %v1604 = vadd.f32 %v963, %v1603
      %1605 = vmatprep.mubr.bf16.mxu0 0
      %1606 = vmatmul.mubr.bf16.gmra.mxu0 %v1261
      %v1607 = vpop.f32.mrf.mxu0
      %v1608 = vadd.f32 %v959, %v1607
      %v1609 = vpop.f32.mrf.mxu0
      %v1610 = vadd.f32 %v963, %v1609
      %v1611 = vpop.f32.mrf.mxu0
      %v1612 = vadd.f32 %v959, %v1611
      %v1613 = vpop.f32.mrf.mxu0
      %v1614 = vadd.f32 %v963, %v1613
      %1615 = vdwg.mxu0
      %v1616 = vmax.f32 %v1298, 0.0
      %v1617 = vmax.f32 %v1300, 0.0
      %v1618 = vmax.f32 %v1302, 0.0
      %v1619 = vmax.f32 %v1304, 0.0
      %v1620 = vmax.f32 %v1308, 0.0
      %v1621 = vmax.f32 %v1310, 0.0
      %v1622 = vmax.f32 %v1312, 0.0
      %v1623 = vmax.f32 %v1314, 0.0
      %v1624 = vmax.f32 %v1318, 0.0
      %v1625 = vmax.f32 %v1320, 0.0
      %v1626 = vmax.f32 %v1322, 0.0
      %v1627 = vmax.f32 %v1324, 0.0
      %v1628 = vmax.f32 %v1328, 0.0
      %v1629 = vmax.f32 %v1330, 0.0
      %v1630 = vmax.f32 %v1332, 0.0
      %v1631 = vmax.f32 %v1334, 0.0
      %v1632 = vmax.f32 %v1338, 0.0
      %v1633 = vmax.f32 %v1340, 0.0
      %v1634 = vmax.f32 %v1342, 0.0
      %v1635 = vmax.f32 %v1344, 0.0
      %v1636 = vmax.f32 %v1348, 0.0
      %v1637 = vmax.f32 %v1350, 0.0
      %v1638 = vmax.f32 %v1352, 0.0
      %v1639 = vmax.f32 %v1354, 0.0
      %v1640 = vmax.f32 %v1358, 0.0
      %v1641 = vmax.f32 %v1360, 0.0
      %v1642 = vmax.f32 %v1362, 0.0
      %v1643 = vmax.f32 %v1364, 0.0
      %v1644 = vmax.f32 %v1368, 0.0
      %v1645 = vmax.f32 %v1370, 0.0
      %v1646 = vmax.f32 %v1372, 0.0
      %v1647 = vmax.f32 %v1374, 0.0
      %v1648 = vmax.f32 %v1378, 0.0
      %v1649 = vmax.f32 %v1380, 0.0
      %v1650 = vmax.f32 %v1382, 0.0
      %v1651 = vmax.f32 %v1384, 0.0
      %v1652 = vmax.f32 %v1388, 0.0
      %v1653 = vmax.f32 %v1390, 0.0
      %v1654 = vmax.f32 %v1392, 0.0
      %v1655 = vmax.f32 %v1394, 0.0
      %v1656 = vmax.f32 %v1398, 0.0
      %v1657 = vmax.f32 %v1400, 0.0
      %v1658 = vmax.f32 %v1402, 0.0
      %v1659 = vmax.f32 %v1404, 0.0
      %v1660 = vmax.f32 %v1408, 0.0
      %v1661 = vmax.f32 %v1410, 0.0
      %v1662 = vmax.f32 %v1412, 0.0
      %v1663 = vmax.f32 %v1414, 0.0
      %v1664 = vmax.f32 %v1418, 0.0
      %v1665 = vmax.f32 %v1420, 0.0
      %v1666 = vmax.f32 %v1422, 0.0
      %v1667 = vmax.f32 %v1424, 0.0
      %v1668 = vmax.f32 %v1428, 0.0
      %v1669 = vmax.f32 %v1430, 0.0
      %v1670 = vmax.f32 %v1432, 0.0
      %v1671 = vmax.f32 %v1434, 0.0
      %v1672 = vmax.f32 %v1438, 0.0
      %v1673 = vmax.f32 %v1440, 0.0
      %v1674 = vmax.f32 %v1442, 0.0
      %v1675 = vmax.f32 %v1444, 0.0
      %v1676 = vmax.f32 %v1448, 0.0
      %v1677 = vmax.f32 %v1450, 0.0
      %v1678 = vmax.f32 %v1452, 0.0
      %v1679 = vmax.f32 %v1454, 0.0
      %v1680 = vmax.f32 %v1458, 0.0
      %v1681 = vmax.f32 %v1460, 0.0
      %v1682 = vmax.f32 %v1462, 0.0
      %v1683 = vmax.f32 %v1464, 0.0
      %v1684 = vmax.f32 %v1468, 0.0
      %v1685 = vmax.f32 %v1470, 0.0
      %v1686 = vmax.f32 %v1472, 0.0
      %v1687 = vmax.f32 %v1474, 0.0
      %v1688 = vmax.f32 %v1478, 0.0
      %v1689 = vmax.f32 %v1480, 0.0
      %v1690 = vmax.f32 %v1482, 0.0
      %v1691 = vmax.f32 %v1484, 0.0
      %v1692 = vmax.f32 %v1488, 0.0
      %v1693 = vmax.f32 %v1490, 0.0
      %v1694 = vmax.f32 %v1492, 0.0
      %v1695 = vmax.f32 %v1494, 0.0
      %v1696 = vmax.f32 %v1498, 0.0
      %v1697 = vmax.f32 %v1500, 0.0
      %v1698 = vmax.f32 %v1502, 0.0
      %v1699 = vmax.f32 %v1504, 0.0
      %v1700 = vmax.f32 %v1508, 0.0
      %v1701 = vmax.f32 %v1510, 0.0
      %v1702 = vmax.f32 %v1512, 0.0
      %v1703 = vmax.f32 %v1514, 0.0
      %v1704 = vmax.f32 %v1518, 0.0
      %v1705 = vmax.f32 %v1520, 0.0
      %v1706 = vmax.f32 %v1522, 0.0
      %v1707 = vmax.f32 %v1524, 0.0
      %v1708 = vmax.f32 %v1528, 0.0
      %v1709 = vmax.f32 %v1530, 0.0
      %v1710 = vmax.f32 %v1532, 0.0
      %v1711 = vmax.f32 %v1534, 0.0
      %v1712 = vmax.f32 %v1538, 0.0
      %v1713 = vmax.f32 %v1540, 0.0
      %v1714 = vmax.f32 %v1542, 0.0
      %v1715 = vmax.f32 %v1544, 0.0
      %v1716 = vmax.f32 %v1548, 0.0
      %v1717 = vmax.f32 %v1550, 0.0
      %v1718 = vmax.f32 %v1552, 0.0
      %v1719 = vmax.f32 %v1554, 0.0
      %v1720 = vmax.f32 %v1558, 0.0
      %v1721 = vmax.f32 %v1560, 0.0
      %v1722 = vmax.f32 %v1562, 0.0
      %v1723 = vmax.f32 %v1564, 0.0
      %v1724 = vmax.f32 %v1568, 0.0
      %v1725 = vmax.f32 %v1570, 0.0
      %v1726 = vmax.f32 %v1572, 0.0
      %v1727 = vmax.f32 %v1574, 0.0
      %v1728 = vmax.f32 %v1578, 0.0
      %v1729 = vmax.f32 %v1580, 0.0
      %v1730 = vmax.f32 %v1582, 0.0
      %v1731 = vmax.f32 %v1584, 0.0
      %v1732 = vmax.f32 %v1588, 0.0
      %v1733 = vmax.f32 %v1590, 0.0
      %v1734 = vmax.f32 %v1592, 0.0
      %v1735 = vmax.f32 %v1594, 0.0
      %v1736 = vmax.f32 %v1598, 0.0
      %v1737 = vmax.f32 %v1600, 0.0
      %v1738 = vmax.f32 %v1602, 0.0
      %v1739 = vmax.f32 %v1604, 0.0
      %v1740 = vmax.f32 %v1608, 0.0
      %v1741 = vmax.f32 %v1610, 0.0
      %v1742 = vmax.f32 %v1612, 0.0
      %v1743 = vmax.f32 %v1614, 0.0
      %v1744 = vpack.c.bf16 %v1618, %v1616
      %v1745 = vpack.c.bf16 %v1619, %v1617
      %v1746 = vpack.c.bf16 %v1622, %v1620
      %v1747 = vpack.c.bf16 %v1623, %v1621
      %v1748 = vpack.c.bf16 %v1626, %v1624
      %v1749 = vpack.c.bf16 %v1627, %v1625
      %v1750 = vpack.c.bf16 %v1630, %v1628
      %v1751 = vpack.c.bf16 %v1631, %v1629
      %v1752 = vpack.c.bf16 %v1634, %v1632
      %v1753 = vpack.c.bf16 %v1635, %v1633
      %v1754 = vpack.c.bf16 %v1638, %v1636
      %v1755 = vpack.c.bf16 %v1639, %v1637
      %v1756 = vpack.c.bf16 %v1642, %v1640
      %v1757 = vpack.c.bf16 %v1643, %v1641
      %v1758 = vpack.c.bf16 %v1646, %v1644
      %v1759 = vpack.c.bf16 %v1647, %v1645
      %v1760 = vpack.c.bf16 %v1650, %v1648
      %v1761 = vpack.c.bf16 %v1651, %v1649
      %v1762 = vpack.c.bf16 %v1654, %v1652
      %v1763 = vpack.c.bf16 %v1655, %v1653
      %v1764 = vpack.c.bf16 %v1658, %v1656
      %v1765 = vpack.c.bf16 %v1659, %v1657
      %v1766 = vpack.c.bf16 %v1662, %v1660
      %v1767 = vpack.c.bf16 %v1663, %v1661
      %v1768 = vpack.c.bf16 %v1666, %v1664
      %v1769 = vpack.c.bf16 %v1667, %v1665
      %v1770 = vpack.c.bf16 %v1670, %v1668
      %v1771 = vpack.c.bf16 %v1671, %v1669
      %v1772 = vpack.c.bf16 %v1674, %v1672
      %v1773 = vpack.c.bf16 %v1675, %v1673
      %v1774 = vpack.c.bf16 %v1678, %v1676
      %v1775 = vpack.c.bf16 %v1679, %v1677
      %v1776 = vpack.c.bf16 %v1682, %v1680
      %v1777 = vpack.c.bf16 %v1683, %v1681
      %v1778 = vpack.c.bf16 %v1686, %v1684
      %v1779 = vpack.c.bf16 %v1687, %v1685
      %v1780 = vpack.c.bf16 %v1690, %v1688
      %v1781 = vpack.c.bf16 %v1691, %v1689
      %v1782 = vpack.c.bf16 %v1694, %v1692
      %v1783 = vpack.c.bf16 %v1695, %v1693
      %v1784 = vpack.c.bf16 %v1698, %v1696
      %v1785 = vpack.c.bf16 %v1699, %v1697
      %v1786 = vpack.c.bf16 %v1702, %v1700
      %v1787 = vpack.c.bf16 %v1703, %v1701
      %v1788 = vpack.c.bf16 %v1706, %v1704
      %v1789 = vpack.c.bf16 %v1707, %v1705
      %v1790 = vpack.c.bf16 %v1710, %v1708
      %v1791 = vpack.c.bf16 %v1711, %v1709
      %v1792 = vpack.c.bf16 %v1714, %v1712
      %v1793 = vpack.c.bf16 %v1715, %v1713
      %v1794 = vpack.c.bf16 %v1718, %v1716
      %v1795 = vpack.c.bf16 %v1719, %v1717
      %v1796 = vpack.c.bf16 %v1722, %v1720
      %v1797 = vpack.c.bf16 %v1723, %v1721
      %v1798 = vpack.c.bf16 %v1726, %v1724
      %v1799 = vpack.c.bf16 %v1727, %v1725
      %v1800 = vpack.c.bf16 %v1730, %v1728
      %v1801 = vpack.c.bf16 %v1731, %v1729
      %v1802 = vpack.c.bf16 %v1734, %v1732
      %v1803 = vpack.c.bf16 %v1735, %v1733
      %v1804 = vpack.c.bf16 %v1738, %v1736
      %v1805 = vpack.c.bf16 %v1739, %v1737
      %v1806 = vpack.c.bf16 %v1742, %v1740
      %v1807 = vpack.c.bf16 %v1743, %v1741
      %v1808 = vld [vmem:[%s4] sm:$0xff]
      %v1809 = vld [vmem:[%s4 + $0x8] sm:$0xff]
      %v1810 = vld [vmem:[%s4 + $0x10] sm:$0xff]
      %v1811 = vld [vmem:[%s4 + $0x18] sm:$0xff]
      %v1812 = vld [vmem:[%s4 + $0x20] sm:$0xff]
      %v1813 = vld [vmem:[%s4 + $0x28] sm:$0xff]
      %v1814 = vld [vmem:[%s4 + $0x30] sm:$0xff]
      %v1815 = vld [vmem:[%s4 + $0x38] sm:$0xff]
      %v1816 = vld [vmem:[%s4 + $0x40] sm:$0xff]
      %v1817 = vld [vmem:[%s4 + $0x48] sm:$0xff]
      %v1818 = vld [vmem:[%s4 + $0x50] sm:$0xff]
      %v1819 = vld [vmem:[%s4 + $0x58] sm:$0xff]
      %v1820 = vld [vmem:[%s4 + $0x60] sm:$0xff]
      %v1821 = vld [vmem:[%s4 + $0x68] sm:$0xff]
      %v1822 = vld [vmem:[%s4 + $0x70] sm:$0xff]
      %v1823 = vld [vmem:[%s4 + $0x78] sm:$0xff]
      %v1824 = vld [vmem:[%s4 + $0x80] sm:$0xff]
      %v1825 = vld [vmem:[%s4 + $0x88] sm:$0xff]
      %v1826 = vld [vmem:[%s4 + $0x90] sm:$0xff]
      %v1827 = vld [vmem:[%s4 + $0x98] sm:$0xff]
      %v1828 = vld [vmem:[%s4 + $0xa0] sm:$0xff]
      %v1829 = vld [vmem:[%s4 + $0xa8] sm:$0xff]
      %v1830 = vld [vmem:[%s4 + $0xb0] sm:$0xff]
      %v1831 = vld [vmem:[%s4 + $0xb8] sm:$0xff]
      %v1832 = vld [vmem:[%s4 + $0xc0] sm:$0xff]
      %v1833 = vld [vmem:[%s4 + $0xc8] sm:$0xff]
      %v1834 = vld [vmem:[%s4 + $0xd0] sm:$0xff]
      %v1835 = vld [vmem:[%s4 + $0xd8] sm:$0xff]
      %v1836 = vld [vmem:[%s4 + $0xe0] sm:$0xff]
      %v1837 = vld [vmem:[%s4 + $0xe8] sm:$0xff]
      %v1838 = vld [vmem:[%s4 + $0xf0] sm:$0xff]
      %v1839 = vld [vmem:[%s4 + $0xf8] sm:$0xff]
      %v1840 = vld [vmem:[%s5] sm:$0x3]
      %v1842 = vlaneseq
      %v1843 = vshrl.u32 %v1842, 7
      %v1844 = vsub.s32 0, %v1843
      %v1845 = vrot.slane %v1840, %v1844
      %v1846 = vlaneseq
      %v1847 = vshrl.u32 %v1846, 7
      %v1848 = vsub.s32 1, %v1847
      %v1849 = vrot.slane %v1840, %v1848
      %v1884 = vunpack.c.l.b16 %v1808
      %v1885 = vunpack.c.h.b16 %v1808
      %v1886 = vunpack.c.l.b16 %v1809
      %v1887 = vunpack.c.h.b16 %v1809
      %v1888 = vunpack.c.l.b16 %v1810
      %v1889 = vunpack.c.h.b16 %v1810
      %v1890 = vunpack.c.l.b16 %v1811
      %v1891 = vunpack.c.h.b16 %v1811
      %v1892 = vunpack.c.l.b16 %v1812
      %v1893 = vunpack.c.h.b16 %v1812
      %v1894 = vunpack.c.l.b16 %v1813
      %v1895 = vunpack.c.h.b16 %v1813
      %v1896 = vunpack.c.l.b16 %v1814
      %v1897 = vunpack.c.h.b16 %v1814
      %v1898 = vunpack.c.l.b16 %v1815
      %v1899 = vunpack.c.h.b16 %v1815
      %v1900 = vunpack.c.l.b16 %v1816
      %v1901 = vunpack.c.h.b16 %v1816
      %v1902 = vunpack.c.l.b16 %v1817
      %v1903 = vunpack.c.h.b16 %v1817
      %v1904 = vunpack.c.l.b16 %v1818
      %v1905 = vunpack.c.h.b16 %v1818
      %v1906 = vunpack.c.l.b16 %v1819
      %v1907 = vunpack.c.h.b16 %v1819
      %v1908 = vunpack.c.l.b16 %v1820
      %v1909 = vunpack.c.h.b16 %v1820
      %v1910 = vunpack.c.l.b16 %v1821
      %v1911 = vunpack.c.h.b16 %v1821
      %v1912 = vunpack.c.l.b16 %v1822
      %v1913 = vunpack.c.h.b16 %v1822
      %v1914 = vunpack.c.l.b16 %v1823
      %v1915 = vunpack.c.h.b16 %v1823
      %v1916 = vunpack.c.l.b16 %v1824
      %v1917 = vunpack.c.h.b16 %v1824
      %v1918 = vunpack.c.l.b16 %v1825
      %v1919 = vunpack.c.h.b16 %v1825
      %v1920 = vunpack.c.l.b16 %v1826
      %v1921 = vunpack.c.h.b16 %v1826
      %v1922 = vunpack.c.l.b16 %v1827
      %v1923 = vunpack.c.h.b16 %v1827
      %v1924 = vunpack.c.l.b16 %v1828
      %v1925 = vunpack.c.h.b16 %v1828
      %v1926 = vunpack.c.l.b16 %v1829
      %v1927 = vunpack.c.h.b16 %v1829
      %v1928 = vunpack.c.l.b16 %v1830
      %v1929 = vunpack.c.h.b16 %v1830
      %v1930 = vunpack.c.l.b16 %v1831
      %v1931 = vunpack.c.h.b16 %v1831
      %v1932 = vunpack.c.l.b16 %v1832
      %v1933 = vunpack.c.h.b16 %v1832
      %v1934 = vunpack.c.l.b16 %v1833
      %v1935 = vunpack.c.h.b16 %v1833
      %v1936 = vunpack.c.l.b16 %v1834
      %v1937 = vunpack.c.h.b16 %v1834
      %v1938 = vunpack.c.l.b16 %v1835
      %v1939 = vunpack.c.h.b16 %v1835
      %v1940 = vunpack.c.l.b16 %v1836
      %v1941 = vunpack.c.h.b16 %v1836
      %v1942 = vunpack.c.l.b16 %v1837
      %v1943 = vunpack.c.h.b16 %v1837
      %v1944 = vunpack.c.l.b16 %v1838
      %v1945 = vunpack.c.h.b16 %v1838
      %v1946 = vunpack.c.l.b16 %v1839
      %v1947 = vunpack.c.h.b16 %v1839
      %v1948 = vpack.c.b16 %v1886, %v1884
      %v1949 = vpack.c.b16 %v1887, %v1885
      %v1950 = vpack.c.b16 %v1890, %v1888
      %v1951 = vpack.c.b16 %v1891, %v1889
      %v1952 = vpack.c.b16 %v1894, %v1892
      %v1953 = vpack.c.b16 %v1895, %v1893
      %v1954 = vpack.c.b16 %v1898, %v1896
      %v1955 = vpack.c.b16 %v1899, %v1897
      %v1956 = vpack.c.b16 %v1902, %v1900
      %v1957 = vpack.c.b16 %v1903, %v1901
      %v1958 = vpack.c.b16 %v1906, %v1904
      %v1959 = vpack.c.b16 %v1907, %v1905
      %v1960 = vpack.c.b16 %v1910, %v1908
      %v1961 = vpack.c.b16 %v1911, %v1909
      %v1962 = vpack.c.b16 %v1914, %v1912
      %v1963 = vpack.c.b16 %v1915, %v1913
      %v1964 = vpack.c.b16 %v1918, %v1916
      %v1965 = vpack.c.b16 %v1919, %v1917
      %v1966 = vpack.c.b16 %v1922, %v1920
      %v1967 = vpack.c.b16 %v1923, %v1921
      %v1968 = vpack.c.b16 %v1926, %v1924
      %v1969 = vpack.c.b16 %v1927, %v1925
      %v1970 = vpack.c.b16 %v1930, %v1928
      %v1971 = vpack.c.b16 %v1931, %v1929
      %v1972 = vpack.c.b16 %v1934, %v1932
      %v1973 = vpack.c.b16 %v1935, %v1933
      %v1974 = vpack.c.b16 %v1938, %v1936
      %v1975 = vpack.c.b16 %v1939, %v1937
      %v1976 = vpack.c.b16 %v1942, %v1940
      %v1977 = vpack.c.b16 %v1943, %v1941
      %v1978 = vpack.c.b16 %v1946, %v1944
      %v1979 = vpack.c.b16 %v1947, %v1945
      %2012 = vmatprep.subr.bf16.mxu0 %v1963
      %2013 = vmatpush1.bf16.msra.mxu0 %v1962
      %2014 = vmatprep.subr.bf16.mxu0 %v1961
      %2015 = vmatpush1.bf16.msra.mxu0 %v1960
      %2016 = vmatprep.subr.bf16.mxu0 %v1959
      %2017 = vmatpush1.bf16.msra.mxu0 %v1958
      %2018 = vmatprep.subr.bf16.mxu0 %v1957
      %2019 = vmatpush1.bf16.msra.mxu0 %v1956
      %2020 = vmatprep.subr.bf16.mxu0 %v1955
      %2021 = vmatpush1.bf16.msra.mxu0 %v1954
      %2022 = vmatprep.subr.bf16.mxu0 %v1953
      %2023 = vmatpush1.bf16.msra.mxu0 %v1952
      %2024 = vmatprep.subr.bf16.mxu0 %v1951
      %2025 = vmatpush1.bf16.msra.mxu0 %v1950
      %2026 = vmatprep.subr.bf16.mxu0 %v1949
      %2027 = vmatpush1.bf16.msra.mxu0 %v1948
      %2028 = vmatprep.subr.bf16.mxu0 %v1979
      %2029 = vmatpush2.bf16.msra.mxu0 %v1978
      %2030 = vmatprep.subr.bf16.mxu0 %v1977
      %2031 = vmatpush2.bf16.msra.mxu0 %v1976
      %2032 = vmatprep.subr.bf16.mxu0 %v1975
      %2033 = vmatpush2.bf16.msra.mxu0 %v1974
      %2034 = vmatprep.subr.bf16.mxu0 %v1973
      %2035 = vmatpush2.bf16.msra.mxu0 %v1972
      %2036 = vmatprep.subr.bf16.mxu0 %v1971
      %2037 = vmatpush2.bf16.msra.mxu0 %v1970
      %2038 = vmatprep.subr.bf16.mxu0 %v1969
      %2039 = vmatpush2.bf16.msra.mxu0 %v1968
      %2040 = vmatprep.subr.bf16.mxu0 %v1967
      %2041 = vmatpush2.bf16.msra.mxu0 %v1966
      %2042 = vmatprep.subr.bf16.mxu0 %v1965
      %2043 = vmatpush2.bf16.msra.mxu0 %v1964
      %2044 = vmatprep.mubr.bf16.mxu0 %v1745
      %2045 = vmatmul.mubr.bf16.gmra.mxu0 %v1744
      %v2046 = vpop.f32.mrf.mxu0
      %v2047 = vadd.f32 %v1845, %v2046
      %v2048 = vpop.f32.mrf.mxu0
      %v2049 = vadd.f32 %v1849, %v2048
      %v2050 = vpop.f32.mrf.mxu0
      %v2051 = vadd.f32 %v1845, %v2050
      %v2052 = vpop.f32.mrf.mxu0
      %v2053 = vadd.f32 %v1849, %v2052
      %2054 = vmatprep.mubr.bf16.mxu0 %v1747
      %2055 = vmatmul.mubr.bf16.gmra.mxu0 %v1746
      %v2056 = vpop.f32.mrf.mxu0
      %v2057 = vadd.f32 %v1845, %v2056
      %v2058 = vpop.f32.mrf.mxu0
      %v2059 = vadd.f32 %v1849, %v2058
      %v2060 = vpop.f32.mrf.mxu0
      %v2061 = vadd.f32 %v1845, %v2060
      %v2062 = vpop.f32.mrf.mxu0
      %v2063 = vadd.f32 %v1849, %v2062
      %2064 = vmatprep.mubr.bf16.mxu0 %v1749
      %2065 = vmatmul.mubr.bf16.gmra.mxu0 %v1748
      %v2066 = vpop.f32.mrf.mxu0
      %v2067 = vadd.f32 %v1845, %v2066
      %v2068 = vpop.f32.mrf.mxu0
      %v2069 = vadd.f32 %v1849, %v2068
      %v2070 = vpop.f32.mrf.mxu0
      %v2071 = vadd.f32 %v1845, %v2070
      %v2072 = vpop.f32.mrf.mxu0
      %v2073 = vadd.f32 %v1849, %v2072
      %2074 = vmatprep.mubr.bf16.mxu0 %v1751
      %2075 = vmatmul.mubr.bf16.gmra.mxu0 %v1750
      %v2076 = vpop.f32.mrf.mxu0
      %v2077 = vadd.f32 %v1845, %v2076
      %v2078 = vpop.f32.mrf.mxu0
      %v2079 = vadd.f32 %v1849, %v2078
      %v2080 = vpop.f32.mrf.mxu0
      %v2081 = vadd.f32 %v1845, %v2080
      %v2082 = vpop.f32.mrf.mxu0
      %v2083 = vadd.f32 %v1849, %v2082
      %2084 = vmatprep.mubr.bf16.mxu0 %v1753
      %2085 = vmatmul.mubr.bf16.gmra.mxu0 %v1752
      %v2086 = vpop.f32.mrf.mxu0
      %v2087 = vadd.f32 %v1845, %v2086
      %v2088 = vpop.f32.mrf.mxu0
      %v2089 = vadd.f32 %v1849, %v2088
      %v2090 = vpop.f32.mrf.mxu0
      %v2091 = vadd.f32 %v1845, %v2090
      %v2092 = vpop.f32.mrf.mxu0
      %v2093 = vadd.f32 %v1849, %v2092
      %2094 = vmatprep.mubr.bf16.mxu0 %v1755
      %2095 = vmatmul.mubr.bf16.gmra.mxu0 %v1754
      %v2096 = vpop.f32.mrf.mxu0
      %v2097 = vadd.f32 %v1845, %v2096
      %v2098 = vpop.f32.mrf.mxu0
      %v2099 = vadd.f32 %v1849, %v2098
      %v2100 = vpop.f32.mrf.mxu0
      %v2101 = vadd.f32 %v1845, %v2100
      %v2102 = vpop.f32.mrf.mxu0
      %v2103 = vadd.f32 %v1849, %v2102
      %2104 = vmatprep.mubr.bf16.mxu0 %v1757
      %2105 = vmatmul.mubr.bf16.gmra.mxu0 %v1756
      %v2106 = vpop.f32.mrf.mxu0
      %v2107 = vadd.f32 %v1845, %v2106
      %v2108 = vpop.f32.mrf.mxu0
      %v2109 = vadd.f32 %v1849, %v2108
      %v2110 = vpop.f32.mrf.mxu0
      %v2111 = vadd.f32 %v1845, %v2110
      %v2112 = vpop.f32.mrf.mxu0
      %v2113 = vadd.f32 %v1849, %v2112
      %2114 = vmatprep.mubr.bf16.mxu0 %v1759
      %2115 = vmatmul.mubr.bf16.gmra.mxu0 %v1758
      %v2116 = vpop.f32.mrf.mxu0
      %v2117 = vadd.f32 %v1845, %v2116
      %v2118 = vpop.f32.mrf.mxu0
      %v2119 = vadd.f32 %v1849, %v2118
      %v2120 = vpop.f32.mrf.mxu0
      %v2121 = vadd.f32 %v1845, %v2120
      %v2122 = vpop.f32.mrf.mxu0
      %v2123 = vadd.f32 %v1849, %v2122
      %2124 = vmatprep.mubr.bf16.mxu0 %v1761
      %2125 = vmatmul.mubr.bf16.gmra.mxu0 %v1760
      %v2126 = vpop.f32.mrf.mxu0
      %v2127 = vadd.f32 %v1845, %v2126
      %v2128 = vpop.f32.mrf.mxu0
      %v2129 = vadd.f32 %v1849, %v2128
      %v2130 = vpop.f32.mrf.mxu0
      %v2131 = vadd.f32 %v1845, %v2130
      %v2132 = vpop.f32.mrf.mxu0
      %v2133 = vadd.f32 %v1849, %v2132
      %2134 = vmatprep.mubr.bf16.mxu0 %v1763
      %2135 = vmatmul.mubr.bf16.gmra.mxu0 %v1762
      %v2136 = vpop.f32.mrf.mxu0
      %v2137 = vadd.f32 %v1845, %v2136
      %v2138 = vpop.f32.mrf.mxu0
      %v2139 = vadd.f32 %v1849, %v2138
      %v2140 = vpop.f32.mrf.mxu0
      %v2141 = vadd.f32 %v1845, %v2140
      %v2142 = vpop.f32.mrf.mxu0
      %v2143 = vadd.f32 %v1849, %v2142
      %2144 = vmatprep.mubr.bf16.mxu0 %v1765
      %2145 = vmatmul.mubr.bf16.gmra.mxu0 %v1764
      %v2146 = vpop.f32.mrf.mxu0
      %v2147 = vadd.f32 %v1845, %v2146
      %v2148 = vpop.f32.mrf.mxu0
      %v2149 = vadd.f32 %v1849, %v2148
      %v2150 = vpop.f32.mrf.mxu0
      %v2151 = vadd.f32 %v1845, %v2150
      %v2152 = vpop.f32.mrf.mxu0
      %v2153 = vadd.f32 %v1849, %v2152
      %2154 = vmatprep.mubr.bf16.mxu0 %v1767
      %2155 = vmatmul.mubr.bf16.gmra.mxu0 %v1766
      %v2156 = vpop.f32.mrf.mxu0
      %v2157 = vadd.f32 %v1845, %v2156
      %v2158 = vpop.f32.mrf.mxu0
      %v2159 = vadd.f32 %v1849, %v2158
      %v2160 = vpop.f32.mrf.mxu0
      %v2161 = vadd.f32 %v1845, %v2160
      %v2162 = vpop.f32.mrf.mxu0
      %v2163 = vadd.f32 %v1849, %v2162
      %2164 = vmatprep.mubr.bf16.mxu0 %v1769
      %2165 = vmatmul.mubr.bf16.gmra.mxu0 %v1768
      %v2166 = vpop.f32.mrf.mxu0
      %v2167 = vadd.f32 %v1845, %v2166
      %v2168 = vpop.f32.mrf.mxu0
      %v2169 = vadd.f32 %v1849, %v2168
      %v2170 = vpop.f32.mrf.mxu0
      %v2171 = vadd.f32 %v1845, %v2170
      %v2172 = vpop.f32.mrf.mxu0
      %v2173 = vadd.f32 %v1849, %v2172
      %2174 = vmatprep.mubr.bf16.mxu0 %v1771
      %2175 = vmatmul.mubr.bf16.gmra.mxu0 %v1770
      %v2176 = vpop.f32.mrf.mxu0
      %v2177 = vadd.f32 %v1845, %v2176
      %v2178 = vpop.f32.mrf.mxu0
      %v2179 = vadd.f32 %v1849, %v2178
      %v2180 = vpop.f32.mrf.mxu0
      %v2181 = vadd.f32 %v1845, %v2180
      %v2182 = vpop.f32.mrf.mxu0
      %v2183 = vadd.f32 %v1849, %v2182
      %2184 = vmatprep.mubr.bf16.mxu0 %v1773
      %2185 = vmatmul.mubr.bf16.gmra.mxu0 %v1772
      %v2186 = vpop.f32.mrf.mxu0
      %v2187 = vadd.f32 %v1845, %v2186
      %v2188 = vpop.f32.mrf.mxu0
      %v2189 = vadd.f32 %v1849, %v2188
      %v2190 = vpop.f32.mrf.mxu0
      %v2191 = vadd.f32 %v1845, %v2190
      %v2192 = vpop.f32.mrf.mxu0
      %v2193 = vadd.f32 %v1849, %v2192
      %2194 = vmatprep.mubr.bf16.mxu0 %v1775
      %2195 = vmatmul.mubr.bf16.gmra.mxu0 %v1774
      %v2196 = vpop.f32.mrf.mxu0
      %v2197 = vadd.f32 %v1845, %v2196
      %v2198 = vpop.f32.mrf.mxu0
      %v2199 = vadd.f32 %v1849, %v2198
      %v2200 = vpop.f32.mrf.mxu0
      %v2201 = vadd.f32 %v1845, %v2200
      %v2202 = vpop.f32.mrf.mxu0
      %v2203 = vadd.f32 %v1849, %v2202
      %2204 = vmatprep.mubr.bf16.mxu0 %v1777
      %2205 = vmatmul.mubr.bf16.gmra.mxu0 %v1776
      %v2206 = vpop.f32.mrf.mxu0
      %v2207 = vadd.f32 %v1845, %v2206
      %v2208 = vpop.f32.mrf.mxu0
      %v2209 = vadd.f32 %v1849, %v2208
      %v2210 = vpop.f32.mrf.mxu0
      %v2211 = vadd.f32 %v1845, %v2210
      %v2212 = vpop.f32.mrf.mxu0
      %v2213 = vadd.f32 %v1849, %v2212
      %2214 = vmatprep.mubr.bf16.mxu0 %v1779
      %2215 = vmatmul.mubr.bf16.gmra.mxu0 %v1778
      %v2216 = vpop.f32.mrf.mxu0
      %v2217 = vadd.f32 %v1845, %v2216
      %v2218 = vpop.f32.mrf.mxu0
      %v2219 = vadd.f32 %v1849, %v2218
      %v2220 = vpop.f32.mrf.mxu0
      %v2221 = vadd.f32 %v1845, %v2220
      %v2222 = vpop.f32.mrf.mxu0
      %v2223 = vadd.f32 %v1849, %v2222
      %2224 = vmatprep.mubr.bf16.mxu0 %v1781
      %2225 = vmatmul.mubr.bf16.gmra.mxu0 %v1780
      %v2226 = vpop.f32.mrf.mxu0
      %v2227 = vadd.f32 %v1845, %v2226
      %v2228 = vpop.f32.mrf.mxu0
      %v2229 = vadd.f32 %v1849, %v2228
      %v2230 = vpop.f32.mrf.mxu0
      %v2231 = vadd.f32 %v1845, %v2230
      %v2232 = vpop.f32.mrf.mxu0
      %v2233 = vadd.f32 %v1849, %v2232
      %2234 = vmatprep.mubr.bf16.mxu0 %v1783
      %2235 = vmatmul.mubr.bf16.gmra.mxu0 %v1782
      %v2236 = vpop.f32.mrf.mxu0
      %v2237 = vadd.f32 %v1845, %v2236
      %v2238 = vpop.f32.mrf.mxu0
      %v2239 = vadd.f32 %v1849, %v2238
      %v2240 = vpop.f32.mrf.mxu0
      %v2241 = vadd.f32 %v1845, %v2240
      %v2242 = vpop.f32.mrf.mxu0
      %v2243 = vadd.f32 %v1849, %v2242
      %2244 = vmatprep.mubr.bf16.mxu0 %v1785
      %2245 = vmatmul.mubr.bf16.gmra.mxu0 %v1784
      %v2246 = vpop.f32.mrf.mxu0
      %v2247 = vadd.f32 %v1845, %v2246
      %v2248 = vpop.f32.mrf.mxu0
      %v2249 = vadd.f32 %v1849, %v2248
      %v2250 = vpop.f32.mrf.mxu0
      %v2251 = vadd.f32 %v1845, %v2250
      %v2252 = vpop.f32.mrf.mxu0
      %v2253 = vadd.f32 %v1849, %v2252
      %2254 = vmatprep.mubr.bf16.mxu0 %v1787
      %2255 = vmatmul.mubr.bf16.gmra.mxu0 %v1786
      %v2256 = vpop.f32.mrf.mxu0
      %v2257 = vadd.f32 %v1845, %v2256
      %v2258 = vpop.f32.mrf.mxu0
      %v2259 = vadd.f32 %v1849, %v2258
      %v2260 = vpop.f32.mrf.mxu0
      %v2261 = vadd.f32 %v1845, %v2260
      %v2262 = vpop.f32.mrf.mxu0
      %v2263 = vadd.f32 %v1849, %v2262
      %2264 = vmatprep.mubr.bf16.mxu0 %v1789
      %2265 = vmatmul.mubr.bf16.gmra.mxu0 %v1788
      %v2266 = vpop.f32.mrf.mxu0
      %v2267 = vadd.f32 %v1845, %v2266
      %v2268 = vpop.f32.mrf.mxu0
      %v2269 = vadd.f32 %v1849, %v2268
      %v2270 = vpop.f32.mrf.mxu0
      %v2271 = vadd.f32 %v1845, %v2270
      %v2272 = vpop.f32.mrf.mxu0
      %v2273 = vadd.f32 %v1849, %v2272
      %2274 = vmatprep.mubr.bf16.mxu0 %v1791
      %2275 = vmatmul.mubr.bf16.gmra.mxu0 %v1790
      %v2276 = vpop.f32.mrf.mxu0
      %v2277 = vadd.f32 %v1845, %v2276
      %v2278 = vpop.f32.mrf.mxu0
      %v2279 = vadd.f32 %v1849, %v2278
      %v2280 = vpop.f32.mrf.mxu0
      %v2281 = vadd.f32 %v1845, %v2280
      %v2282 = vpop.f32.mrf.mxu0
      %v2283 = vadd.f32 %v1849, %v2282
      %2284 = vmatprep.mubr.bf16.mxu0 %v1793
      %2285 = vmatmul.mubr.bf16.gmra.mxu0 %v1792
      %v2286 = vpop.f32.mrf.mxu0
      %v2287 = vadd.f32 %v1845, %v2286
      %v2288 = vpop.f32.mrf.mxu0
      %v2289 = vadd.f32 %v1849, %v2288
      %v2290 = vpop.f32.mrf.mxu0
      %v2291 = vadd.f32 %v1845, %v2290
      %v2292 = vpop.f32.mrf.mxu0
      %v2293 = vadd.f32 %v1849, %v2292
      %2294 = vmatprep.mubr.bf16.mxu0 %v1795
      %2295 = vmatmul.mubr.bf16.gmra.mxu0 %v1794
      %v2296 = vpop.f32.mrf.mxu0
      %v2297 = vadd.f32 %v1845, %v2296
      %v2298 = vpop.f32.mrf.mxu0
      %v2299 = vadd.f32 %v1849, %v2298
      %v2300 = vpop.f32.mrf.mxu0
      %v2301 = vadd.f32 %v1845, %v2300
      %v2302 = vpop.f32.mrf.mxu0
      %v2303 = vadd.f32 %v1849, %v2302
      %2304 = vmatprep.mubr.bf16.mxu0 %v1797
      %2305 = vmatmul.mubr.bf16.gmra.mxu0 %v1796
      %v2306 = vpop.f32.mrf.mxu0
      %v2307 = vadd.f32 %v1845, %v2306
      %v2308 = vpop.f32.mrf.mxu0
      %v2309 = vadd.f32 %v1849, %v2308
      %v2310 = vpop.f32.mrf.mxu0
      %v2311 = vadd.f32 %v1845, %v2310
      %v2312 = vpop.f32.mrf.mxu0
      %v2313 = vadd.f32 %v1849, %v2312
      %2314 = vmatprep.mubr.bf16.mxu0 %v1799
      %2315 = vmatmul.mubr.bf16.gmra.mxu0 %v1798
      %v2316 = vpop.f32.mrf.mxu0
      %v2317 = vadd.f32 %v1845, %v2316
      %v2318 = vpop.f32.mrf.mxu0
      %v2319 = vadd.f32 %v1849, %v2318
      %v2320 = vpop.f32.mrf.mxu0
      %v2321 = vadd.f32 %v1845, %v2320
      %v2322 = vpop.f32.mrf.mxu0
      %v2323 = vadd.f32 %v1849, %v2322
      %2324 = vmatprep.mubr.bf16.mxu0 %v1801
      %2325 = vmatmul.mubr.bf16.gmra.mxu0 %v1800
      %v2326 = vpop.f32.mrf.mxu0
      %v2327 = vadd.f32 %v1845, %v2326
      %v2328 = vpop.f32.mrf.mxu0
      %v2329 = vadd.f32 %v1849, %v2328
      %v2330 = vpop.f32.mrf.mxu0
      %v2331 = vadd.f32 %v1845, %v2330
      %v2332 = vpop.f32.mrf.mxu0
      %v2333 = vadd.f32 %v1849, %v2332
      %2334 = vmatprep.mubr.bf16.mxu0 %v1803
      %2335 = vmatmul.mubr.bf16.gmra.mxu0 %v1802
      %v2336 = vpop.f32.mrf.mxu0
      %v2337 = vadd.f32 %v1845, %v2336
      %v2338 = vpop.f32.mrf.mxu0
      %v2339 = vadd.f32 %v1849, %v2338
      %v2340 = vpop.f32.mrf.mxu0
      %v2341 = vadd.f32 %v1845, %v2340
      %v2342 = vpop.f32.mrf.mxu0
      %v2343 = vadd.f32 %v1849, %v2342
      %2344 = vmatprep.mubr.bf16.mxu0 %v1805
      %2345 = vmatmul.mubr.bf16.gmra.mxu0 %v1804
      %v2346 = vpop.f32.mrf.mxu0
      %v2347 = vadd.f32 %v1845, %v2346
      %v2348 = vpop.f32.mrf.mxu0
      %v2349 = vadd.f32 %v1849, %v2348
      %v2350 = vpop.f32.mrf.mxu0
      %v2351 = vadd.f32 %v1845, %v2350
      %v2352 = vpop.f32.mrf.mxu0
      %v2353 = vadd.f32 %v1849, %v2352
      %2354 = vmatprep.mubr.bf16.mxu0 %v1807
      %2355 = vmatmul.mubr.bf16.gmra.mxu0 %v1806
      %v2356 = vpop.f32.mrf.mxu0
      %v2357 = vadd.f32 %v1845, %v2356
      %v2358 = vpop.f32.mrf.mxu0
      %v2359 = vadd.f32 %v1849, %v2358
      %v2360 = vpop.f32.mrf.mxu0
      %v2361 = vadd.f32 %v1845, %v2360
      %v2362 = vpop.f32.mrf.mxu0
      %v2363 = vadd.f32 %v1849, %v2362
      %2364 = vdwg.mxu0
      %v2365 = vmax.f32 %v2047, 0.0
      %v2366 = vmax.f32 %v2049, 0.0
      %v2367 = vmax.f32 %v2051, 0.0
      %v2368 = vmax.f32 %v2053, 0.0
      %v2369 = vmax.f32 %v2057, 0.0
      %v2370 = vmax.f32 %v2059, 0.0
      %v2371 = vmax.f32 %v2061, 0.0
      %v2372 = vmax.f32 %v2063, 0.0
      %v2373 = vmax.f32 %v2067, 0.0
      %v2374 = vmax.f32 %v2069, 0.0
      %v2375 = vmax.f32 %v2071, 0.0
      %v2376 = vmax.f32 %v2073, 0.0
      %v2377 = vmax.f32 %v2077, 0.0
      %v2378 = vmax.f32 %v2079, 0.0
      %v2379 = vmax.f32 %v2081, 0.0
      %v2380 = vmax.f32 %v2083, 0.0
      %v2381 = vmax.f32 %v2087, 0.0
      %v2382 = vmax.f32 %v2089, 0.0
      %v2383 = vmax.f32 %v2091, 0.0
      %v2384 = vmax.f32 %v2093, 0.0
      %v2385 = vmax.f32 %v2097, 0.0
      %v2386 = vmax.f32 %v2099, 0.0
      %v2387 = vmax.f32 %v2101, 0.0
      %v2388 = vmax.f32 %v2103, 0.0
      %v2389 = vmax.f32 %v2107, 0.0
      %v2390 = vmax.f32 %v2109, 0.0
      %v2391 = vmax.f32 %v2111, 0.0
      %v2392 = vmax.f32 %v2113, 0.0
      %v2393 = vmax.f32 %v2117, 0.0
      %v2394 = vmax.f32 %v2119, 0.0
      %v2395 = vmax.f32 %v2121, 0.0
      %v2396 = vmax.f32 %v2123, 0.0
      %v2397 = vmax.f32 %v2127, 0.0
      %v2398 = vmax.f32 %v2129, 0.0
      %v2399 = vmax.f32 %v2131, 0.0
      %v2400 = vmax.f32 %v2133, 0.0
      %v2401 = vmax.f32 %v2137, 0.0
      %v2402 = vmax.f32 %v2139, 0.0
      %v2403 = vmax.f32 %v2141, 0.0
      %v2404 = vmax.f32 %v2143, 0.0
      %v2405 = vmax.f32 %v2147, 0.0
      %v2406 = vmax.f32 %v2149, 0.0
      %v2407 = vmax.f32 %v2151, 0.0
      %v2408 = vmax.f32 %v2153, 0.0
      %v2409 = vmax.f32 %v2157, 0.0
      %v2410 = vmax.f32 %v2159, 0.0
      %v2411 = vmax.f32 %v2161, 0.0
      %v2412 = vmax.f32 %v2163, 0.0
      %v2413 = vmax.f32 %v2167, 0.0
      %v2414 = vmax.f32 %v2169, 0.0
      %v2415 = vmax.f32 %v2171, 0.0
      %v2416 = vmax.f32 %v2173, 0.0
      %v2417 = vmax.f32 %v2177, 0.0
      %v2418 = vmax.f32 %v2179, 0.0
      %v2419 = vmax.f32 %v2181, 0.0
      %v2420 = vmax.f32 %v2183, 0.0
      %v2421 = vmax.f32 %v2187, 0.0
      %v2422 = vmax.f32 %v2189, 0.0
      %v2423 = vmax.f32 %v2191, 0.0
      %v2424 = vmax.f32 %v2193, 0.0
      %v2425 = vmax.f32 %v2197, 0.0
      %v2426 = vmax.f32 %v2199, 0.0
      %v2427 = vmax.f32 %v2201, 0.0
      %v2428 = vmax.f32 %v2203, 0.0
      %v2429 = vmax.f32 %v2207, 0.0
      %v2430 = vmax.f32 %v2209, 0.0
      %v2431 = vmax.f32 %v2211, 0.0
      %v2432 = vmax.f32 %v2213, 0.0
      %v2433 = vmax.f32 %v2217, 0.0
      %v2434 = vmax.f32 %v2219, 0.0
      %v2435 = vmax.f32 %v2221, 0.0
      %v2436 = vmax.f32 %v2223, 0.0
      %v2437 = vmax.f32 %v2227, 0.0
      %v2438 = vmax.f32 %v2229, 0.0
      %v2439 = vmax.f32 %v2231, 0.0
      %v2440 = vmax.f32 %v2233, 0.0
      %v2441 = vmax.f32 %v2237, 0.0
      %v2442 = vmax.f32 %v2239, 0.0
      %v2443 = vmax.f32 %v2241, 0.0
      %v2444 = vmax.f32 %v2243, 0.0
      %v2445 = vmax.f32 %v2247, 0.0
      %v2446 = vmax.f32 %v2249, 0.0
      %v2447 = vmax.f32 %v2251, 0.0
      %v2448 = vmax.f32 %v2253, 0.0
      %v2449 = vmax.f32 %v2257, 0.0
      %v2450 = vmax.f32 %v2259, 0.0
      %v2451 = vmax.f32 %v2261, 0.0
      %v2452 = vmax.f32 %v2263, 0.0
      %v2453 = vmax.f32 %v2267, 0.0
      %v2454 = vmax.f32 %v2269, 0.0
      %v2455 = vmax.f32 %v2271, 0.0
      %v2456 = vmax.f32 %v2273, 0.0
      %v2457 = vmax.f32 %v2277, 0.0
      %v2458 = vmax.f32 %v2279, 0.0
      %v2459 = vmax.f32 %v2281, 0.0
      %v2460 = vmax.f32 %v2283, 0.0
      %v2461 = vmax.f32 %v2287, 0.0
      %v2462 = vmax.f32 %v2289, 0.0
      %v2463 = vmax.f32 %v2291, 0.0
      %v2464 = vmax.f32 %v2293, 0.0
      %v2465 = vmax.f32 %v2297, 0.0
      %v2466 = vmax.f32 %v2299, 0.0
      %v2467 = vmax.f32 %v2301, 0.0
      %v2468 = vmax.f32 %v2303, 0.0
      %v2469 = vmax.f32 %v2307, 0.0
      %v2470 = vmax.f32 %v2309, 0.0
      %v2471 = vmax.f32 %v2311, 0.0
      %v2472 = vmax.f32 %v2313, 0.0
      %v2473 = vmax.f32 %v2317, 0.0
      %v2474 = vmax.f32 %v2319, 0.0
      %v2475 = vmax.f32 %v2321, 0.0
      %v2476 = vmax.f32 %v2323, 0.0
      %v2477 = vmax.f32 %v2327, 0.0
      %v2478 = vmax.f32 %v2329, 0.0
      %v2479 = vmax.f32 %v2331, 0.0
      %v2480 = vmax.f32 %v2333, 0.0
      %v2481 = vmax.f32 %v2337, 0.0
      %v2482 = vmax.f32 %v2339, 0.0
      %v2483 = vmax.f32 %v2341, 0.0
      %v2484 = vmax.f32 %v2343, 0.0
      %v2485 = vmax.f32 %v2347, 0.0
      %v2486 = vmax.f32 %v2349, 0.0
      %v2487 = vmax.f32 %v2351, 0.0
      %v2488 = vmax.f32 %v2353, 0.0
      %v2489 = vmax.f32 %v2357, 0.0
      %v2490 = vmax.f32 %v2359, 0.0
      %v2491 = vmax.f32 %v2361, 0.0
      %v2492 = vmax.f32 %v2363, 0.0
      %v2493 = vpack.c.bf16 %v2367, %v2365
      %v2494 = vpack.c.bf16 %v2368, %v2366
      %v2495 = vpack.c.bf16 %v2371, %v2369
      %v2496 = vpack.c.bf16 %v2372, %v2370
      %v2497 = vpack.c.bf16 %v2375, %v2373
      %v2498 = vpack.c.bf16 %v2376, %v2374
      %v2499 = vpack.c.bf16 %v2379, %v2377
      %v2500 = vpack.c.bf16 %v2380, %v2378
      %v2501 = vpack.c.bf16 %v2383, %v2381
      %v2502 = vpack.c.bf16 %v2384, %v2382
      %v2503 = vpack.c.bf16 %v2387, %v2385
      %v2504 = vpack.c.bf16 %v2388, %v2386
      %v2505 = vpack.c.bf16 %v2391, %v2389
      %v2506 = vpack.c.bf16 %v2392, %v2390
      %v2507 = vpack.c.bf16 %v2395, %v2393
      %v2508 = vpack.c.bf16 %v2396, %v2394
      %v2509 = vpack.c.bf16 %v2399, %v2397
      %v2510 = vpack.c.bf16 %v2400, %v2398
      %v2511 = vpack.c.bf16 %v2403, %v2401
      %v2512 = vpack.c.bf16 %v2404, %v2402
      %v2513 = vpack.c.bf16 %v2407, %v2405
      %v2514 = vpack.c.bf16 %v2408, %v2406
      %v2515 = vpack.c.bf16 %v2411, %v2409
      %v2516 = vpack.c.bf16 %v2412, %v2410
      %v2517 = vpack.c.bf16 %v2415, %v2413
      %v2518 = vpack.c.bf16 %v2416, %v2414
      %v2519 = vpack.c.bf16 %v2419, %v2417
      %v2520 = vpack.c.bf16 %v2420, %v2418
      %v2521 = vpack.c.bf16 %v2423, %v2421
      %v2522 = vpack.c.bf16 %v2424, %v2422
      %v2523 = vpack.c.bf16 %v2427, %v2425
      %v2524 = vpack.c.bf16 %v2428, %v2426
      %v2525 = vpack.c.bf16 %v2431, %v2429
      %v2526 = vpack.c.bf16 %v2432, %v2430
      %v2527 = vpack.c.bf16 %v2435, %v2433
      %v2528 = vpack.c.bf16 %v2436, %v2434
      %v2529 = vpack.c.bf16 %v2439, %v2437
      %v2530 = vpack.c.bf16 %v2440, %v2438
      %v2531 = vpack.c.bf16 %v2443, %v2441
      %v2532 = vpack.c.bf16 %v2444, %v2442
      %v2533 = vpack.c.bf16 %v2447, %v2445
      %v2534 = vpack.c.bf16 %v2448, %v2446
      %v2535 = vpack.c.bf16 %v2451, %v2449
      %v2536 = vpack.c.bf16 %v2452, %v2450
      %v2537 = vpack.c.bf16 %v2455, %v2453
      %v2538 = vpack.c.bf16 %v2456, %v2454
      %v2539 = vpack.c.bf16 %v2459, %v2457
      %v2540 = vpack.c.bf16 %v2460, %v2458
      %v2541 = vpack.c.bf16 %v2463, %v2461
      %v2542 = vpack.c.bf16 %v2464, %v2462
      %v2543 = vpack.c.bf16 %v2467, %v2465
      %v2544 = vpack.c.bf16 %v2468, %v2466
      %v2545 = vpack.c.bf16 %v2471, %v2469
      %v2546 = vpack.c.bf16 %v2472, %v2470
      %v2547 = vpack.c.bf16 %v2475, %v2473
      %v2548 = vpack.c.bf16 %v2476, %v2474
      %v2549 = vpack.c.bf16 %v2479, %v2477
      %v2550 = vpack.c.bf16 %v2480, %v2478
      %v2551 = vpack.c.bf16 %v2483, %v2481
      %v2552 = vpack.c.bf16 %v2484, %v2482
      %v2553 = vpack.c.bf16 %v2487, %v2485
      %v2554 = vpack.c.bf16 %v2488, %v2486
      %v2555 = vpack.c.bf16 %v2491, %v2489
      %v2556 = vpack.c.bf16 %v2492, %v2490
      %v2557 = vld [vmem:[%s6] sm:$0xff]
      %v2558 = vld [vmem:[%s6 + $0x8] sm:$0xff]
      %v2559 = vld [vmem:[%s6 + $0x10] sm:$0xff]
      %v2560 = vld [vmem:[%s6 + $0x18] sm:$0xff]
      %v2561 = vld [vmem:[%s6 + $0x20] sm:$0xff]
      %v2562 = vld [vmem:[%s6 + $0x28] sm:$0xff]
      %v2563 = vld [vmem:[%s6 + $0x30] sm:$0xff]
      %v2564 = vld [vmem:[%s6 + $0x38] sm:$0xff]
      %v2565 = vld [vmem:[%s6 + $0x40] sm:$0xff]
      %v2566 = vld [vmem:[%s6 + $0x48] sm:$0xff]
      %v2567 = vld [vmem:[%s6 + $0x50] sm:$0xff]
      %v2568 = vld [vmem:[%s6 + $0x58] sm:$0xff]
      %v2569 = vld [vmem:[%s6 + $0x60] sm:$0xff]
      %v2570 = vld [vmem:[%s6 + $0x68] sm:$0xff]
      %v2571 = vld [vmem:[%s6 + $0x70] sm:$0xff]
      %v2572 = vld [vmem:[%s6 + $0x78] sm:$0xff]
      %v2573 = vld [vmem:[%s6 + $0x80] sm:$0xff]
      %v2574 = vld [vmem:[%s6 + $0x88] sm:$0xff]
      %v2575 = vld [vmem:[%s6 + $0x90] sm:$0xff]
      %v2576 = vld [vmem:[%s6 + $0x98] sm:$0xff]
      %v2577 = vld [vmem:[%s6 + $0xa0] sm:$0xff]
      %v2578 = vld [vmem:[%s6 + $0xa8] sm:$0xff]
      %v2579 = vld [vmem:[%s6 + $0xb0] sm:$0xff]
      %v2580 = vld [vmem:[%s6 + $0xb8] sm:$0xff]
      %v2581 = vld [vmem:[%s6 + $0xc0] sm:$0xff]
      %v2582 = vld [vmem:[%s6 + $0xc8] sm:$0xff]
      %v2583 = vld [vmem:[%s6 + $0xd0] sm:$0xff]
      %v2584 = vld [vmem:[%s6 + $0xd8] sm:$0xff]
      %v2585 = vld [vmem:[%s6 + $0xe0] sm:$0xff]
      %v2586 = vld [vmem:[%s6 + $0xe8] sm:$0xff]
      %v2587 = vld [vmem:[%s6 + $0xf0] sm:$0xff]
      %v2588 = vld [vmem:[%s6 + $0xf8] sm:$0xff]
      %v2589 = vld [vmem:[%s7] sm:$0x3]
      %v2591 = vlaneseq
      %v2592 = vshrl.u32 %v2591, 7
      %v2593 = vsub.s32 0, %v2592
      %v2594 = vrot.slane %v2589, %v2593
      %v2595 = vlaneseq
      %v2596 = vshrl.u32 %v2595, 7
      %v2597 = vsub.s32 1, %v2596
      %v2598 = vrot.slane %v2589, %v2597
      %v2633 = vunpack.c.l.b16 %v2557
      %v2634 = vunpack.c.h.b16 %v2557
      %v2635 = vunpack.c.l.b16 %v2558
      %v2636 = vunpack.c.h.b16 %v2558
      %v2637 = vunpack.c.l.b16 %v2559
      %v2638 = vunpack.c.h.b16 %v2559
      %v2639 = vunpack.c.l.b16 %v2560
      %v2640 = vunpack.c.h.b16 %v2560
      %v2641 = vunpack.c.l.b16 %v2561
      %v2642 = vunpack.c.h.b16 %v2561
      %v2643 = vunpack.c.l.b16 %v2562
      %v2644 = vunpack.c.h.b16 %v2562
      %v2645 = vunpack.c.l.b16 %v2563
      %v2646 = vunpack.c.h.b16 %v2563
      %v2647 = vunpack.c.l.b16 %v2564
      %v2648 = vunpack.c.h.b16 %v2564
      %v2649 = vunpack.c.l.b16 %v2565
      %v2650 = vunpack.c.h.b16 %v2565
      %v2651 = vunpack.c.l.b16 %v2566
      %v2652 = vunpack.c.h.b16 %v2566
      %v2653 = vunpack.c.l.b16 %v2567
      %v2654 = vunpack.c.h.b16 %v2567
      %v2655 = vunpack.c.l.b16 %v2568
      %v2656 = vunpack.c.h.b16 %v2568
      %v2657 = vunpack.c.l.b16 %v2569
      %v2658 = vunpack.c.h.b16 %v2569
      %v2659 = vunpack.c.l.b16 %v2570
      %v2660 = vunpack.c.h.b16 %v2570
      %v2661 = vunpack.c.l.b16 %v2571
      %v2662 = vunpack.c.h.b16 %v2571
      %v2663 = vunpack.c.l.b16 %v2572
      %v2664 = vunpack.c.h.b16 %v2572
      %v2665 = vunpack.c.l.b16 %v2573
      %v2666 = vunpack.c.h.b16 %v2573
      %v2667 = vunpack.c.l.b16 %v2574
      %v2668 = vunpack.c.h.b16 %v2574
      %v2669 = vunpack.c.l.b16 %v2575
      %v2670 = vunpack.c.h.b16 %v2575
      %v2671 = vunpack.c.l.b16 %v2576
      %v2672 = vunpack.c.h.b16 %v2576
      %v2673 = vunpack.c.l.b16 %v2577
      %v2674 = vunpack.c.h.b16 %v2577
      %v2675 = vunpack.c.l.b16 %v2578
      %v2676 = vunpack.c.h.b16 %v2578
      %v2677 = vunpack.c.l.b16 %v2579
      %v2678 = vunpack.c.h.b16 %v2579
      %v2679 = vunpack.c.l.b16 %v2580
      %v2680 = vunpack.c.h.b16 %v2580
      %v2681 = vunpack.c.l.b16 %v2581
      %v2682 = vunpack.c.h.b16 %v2581
      %v2683 = vunpack.c.l.b16 %v2582
      %v2684 = vunpack.c.h.b16 %v2582
      %v2685 = vunpack.c.l.b16 %v2583
      %v2686 = vunpack.c.h.b16 %v2583
      %v2687 = vunpack.c.l.b16 %v2584
      %v2688 = vunpack.c.h.b16 %v2584
      %v2689 = vunpack.c.l.b16 %v2585
      %v2690 = vunpack.c.h.b16 %v2585
      %v2691 = vunpack.c.l.b16 %v2586
      %v2692 = vunpack.c.h.b16 %v2586
      %v2693 = vunpack.c.l.b16 %v2587
      %v2694 = vunpack.c.h.b16 %v2587
      %v2695 = vunpack.c.l.b16 %v2588
      %v2696 = vunpack.c.h.b16 %v2588
      %v2697 = vpack.c.b16 %v2635, %v2633
      %v2698 = vpack.c.b16 %v2636, %v2634
      %v2699 = vpack.c.b16 %v2639, %v2637
      %v2700 = vpack.c.b16 %v2640, %v2638
      %v2701 = vpack.c.b16 %v2643, %v2641
      %v2702 = vpack.c.b16 %v2644, %v2642
      %v2703 = vpack.c.b16 %v2647, %v2645
      %v2704 = vpack.c.b16 %v2648, %v2646
      %v2705 = vpack.c.b16 %v2651, %v2649
      %v2706 = vpack.c.b16 %v2652, %v2650
      %v2707 = vpack.c.b16 %v2655, %v2653
      %v2708 = vpack.c.b16 %v2656, %v2654
      %v2709 = vpack.c.b16 %v2659, %v2657
      %v2710 = vpack.c.b16 %v2660, %v2658
      %v2711 = vpack.c.b16 %v2663, %v2661
      %v2712 = vpack.c.b16 %v2664, %v2662
      %v2713 = vpack.c.b16 %v2667, %v2665
      %v2714 = vpack.c.b16 %v2668, %v2666
      %v2715 = vpack.c.b16 %v2671, %v2669
      %v2716 = vpack.c.b16 %v2672, %v2670
      %v2717 = vpack.c.b16 %v2675, %v2673
      %v2718 = vpack.c.b16 %v2676, %v2674
      %v2719 = vpack.c.b16 %v2679, %v2677
      %v2720 = vpack.c.b16 %v2680, %v2678
      %v2721 = vpack.c.b16 %v2683, %v2681
      %v2722 = vpack.c.b16 %v2684, %v2682
      %v2723 = vpack.c.b16 %v2687, %v2685
      %v2724 = vpack.c.b16 %v2688, %v2686
      %v2725 = vpack.c.b16 %v2691, %v2689
      %v2726 = vpack.c.b16 %v2692, %v2690
      %v2727 = vpack.c.b16 %v2695, %v2693
      %v2728 = vpack.c.b16 %v2696, %v2694
      %2761 = vmatprep.subr.bf16.mxu0 %v2712
      %2762 = vmatpush1.bf16.msra.mxu0 %v2711
      %2763 = vmatprep.subr.bf16.mxu0 %v2710
      %2764 = vmatpush1.bf16.msra.mxu0 %v2709
      %2765 = vmatprep.subr.bf16.mxu0 %v2708
      %2766 = vmatpush1.bf16.msra.mxu0 %v2707
      %2767 = vmatprep.subr.bf16.mxu0 %v2706
      %2768 = vmatpush1.bf16.msra.mxu0 %v2705
      %2769 = vmatprep.subr.bf16.mxu0 %v2704
      %2770 = vmatpush1.bf16.msra.mxu0 %v2703
      %2771 = vmatprep.subr.bf16.mxu0 %v2702
      %2772 = vmatpush1.bf16.msra.mxu0 %v2701
      %2773 = vmatprep.subr.bf16.mxu0 %v2700
      %2774 = vmatpush1.bf16.msra.mxu0 %v2699
      %2775 = vmatprep.subr.bf16.mxu0 %v2698
      %2776 = vmatpush1.bf16.msra.mxu0 %v2697
      %2777 = vmatprep.subr.bf16.mxu0 %v2728
      %2778 = vmatpush2.bf16.msra.mxu0 %v2727
      %2779 = vmatprep.subr.bf16.mxu0 %v2726
      %2780 = vmatpush2.bf16.msra.mxu0 %v2725
      %2781 = vmatprep.subr.bf16.mxu0 %v2724
      %2782 = vmatpush2.bf16.msra.mxu0 %v2723
      %2783 = vmatprep.subr.bf16.mxu0 %v2722
      %2784 = vmatpush2.bf16.msra.mxu0 %v2721
      %2785 = vmatprep.subr.bf16.mxu0 %v2720
      %2786 = vmatpush2.bf16.msra.mxu0 %v2719
      %2787 = vmatprep.subr.bf16.mxu0 %v2718
      %2788 = vmatpush2.bf16.msra.mxu0 %v2717
      %2789 = vmatprep.subr.bf16.mxu0 %v2716
      %2790 = vmatpush2.bf16.msra.mxu0 %v2715
      %2791 = vmatprep.subr.bf16.mxu0 %v2714
      %2792 = vmatpush2.bf16.msra.mxu0 %v2713
      %2793 = vmatprep.mubr.bf16.mxu0 %v2494
      %2794 = vmatmul.mubr.bf16.gmra.mxu0 %v2493
      %v2795 = vpop.f32.mrf.mxu0
      %v2796 = vadd.f32 %v2594, %v2795
      %v2797 = vpop.f32.mrf.mxu0
      %v2798 = vadd.f32 %v2598, %v2797
      %v2799 = vpop.f32.mrf.mxu0
      %v2800 = vadd.f32 %v2594, %v2799
      %v2801 = vpop.f32.mrf.mxu0
      %v2802 = vadd.f32 %v2598, %v2801
      %2803 = vmatprep.mubr.bf16.mxu0 %v2496
      %2804 = vmatmul.mubr.bf16.gmra.mxu0 %v2495
      %v2805 = vpop.f32.mrf.mxu0
      %v2806 = vadd.f32 %v2594, %v2805
      %v2807 = vpop.f32.mrf.mxu0
      %v2808 = vadd.f32 %v2598, %v2807
      %v2809 = vpop.f32.mrf.mxu0
      %v2810 = vadd.f32 %v2594, %v2809
      %v2811 = vpop.f32.mrf.mxu0
      %v2812 = vadd.f32 %v2598, %v2811
      %2813 = vmatprep.mubr.bf16.mxu0 %v2498
      %2814 = vmatmul.mubr.bf16.gmra.mxu0 %v2497
      %v2815 = vpop.f32.mrf.mxu0
      %v2816 = vadd.f32 %v2594, %v2815
      %v2817 = vpop.f32.mrf.mxu0
      %v2818 = vadd.f32 %v2598, %v2817
      %v2819 = vpop.f32.mrf.mxu0
      %v2820 = vadd.f32 %v2594, %v2819
      %v2821 = vpop.f32.mrf.mxu0
      %v2822 = vadd.f32 %v2598, %v2821
      %2823 = vmatprep.mubr.bf16.mxu0 %v2500
      %2824 = vmatmul.mubr.bf16.gmra.mxu0 %v2499
      %v2825 = vpop.f32.mrf.mxu0
      %v2826 = vadd.f32 %v2594, %v2825
      %v2827 = vpop.f32.mrf.mxu0
      %v2828 = vadd.f32 %v2598, %v2827
      %v2829 = vpop.f32.mrf.mxu0
      %v2830 = vadd.f32 %v2594, %v2829
      %v2831 = vpop.f32.mrf.mxu0
      %v2832 = vadd.f32 %v2598, %v2831
      %2833 = vmatprep.mubr.bf16.mxu0 %v2502
      %2834 = vmatmul.mubr.bf16.gmra.mxu0 %v2501
      %v2835 = vpop.f32.mrf.mxu0
      %v2836 = vadd.f32 %v2594, %v2835
      %v2837 = vpop.f32.mrf.mxu0
      %v2838 = vadd.f32 %v2598, %v2837
      %v2839 = vpop.f32.mrf.mxu0
      %v2840 = vadd.f32 %v2594, %v2839
      %v2841 = vpop.f32.mrf.mxu0
      %v2842 = vadd.f32 %v2598, %v2841
      %2843 = vmatprep.mubr.bf16.mxu0 %v2504
      %2844 = vmatmul.mubr.bf16.gmra.mxu0 %v2503
      %v2845 = vpop.f32.mrf.mxu0
      %v2846 = vadd.f32 %v2594, %v2845
      %v2847 = vpop.f32.mrf.mxu0
      %v2848 = vadd.f32 %v2598, %v2847
      %v2849 = vpop.f32.mrf.mxu0
      %v2850 = vadd.f32 %v2594, %v2849
      %v2851 = vpop.f32.mrf.mxu0
      %v2852 = vadd.f32 %v2598, %v2851
      %2853 = vmatprep.mubr.bf16.mxu0 %v2506
      %2854 = vmatmul.mubr.bf16.gmra.mxu0 %v2505
      %v2855 = vpop.f32.mrf.mxu0
      %v2856 = vadd.f32 %v2594, %v2855
      %v2857 = vpop.f32.mrf.mxu0
      %v2858 = vadd.f32 %v2598, %v2857
      %v2859 = vpop.f32.mrf.mxu0
      %v2860 = vadd.f32 %v2594, %v2859
      %v2861 = vpop.f32.mrf.mxu0
      %v2862 = vadd.f32 %v2598, %v2861
      %2863 = vmatprep.mubr.bf16.mxu0 %v2508
      %2864 = vmatmul.mubr.bf16.gmra.mxu0 %v2507
      %v2865 = vpop.f32.mrf.mxu0
      %v2866 = vadd.f32 %v2594, %v2865
      %v2867 = vpop.f32.mrf.mxu0
      %v2868 = vadd.f32 %v2598, %v2867
      %v2869 = vpop.f32.mrf.mxu0
      %v2870 = vadd.f32 %v2594, %v2869
      %v2871 = vpop.f32.mrf.mxu0
      %v2872 = vadd.f32 %v2598, %v2871
      %2873 = vmatprep.mubr.bf16.mxu0 %v2510
      %2874 = vmatmul.mubr.bf16.gmra.mxu0 %v2509
      %v2875 = vpop.f32.mrf.mxu0
      %v2876 = vadd.f32 %v2594, %v2875
      %v2877 = vpop.f32.mrf.mxu0
      %v2878 = vadd.f32 %v2598, %v2877
      %v2879 = vpop.f32.mrf.mxu0
      %v2880 = vadd.f32 %v2594, %v2879
      %v2881 = vpop.f32.mrf.mxu0
      %v2882 = vadd.f32 %v2598, %v2881
      %2883 = vmatprep.mubr.bf16.mxu0 %v2512
      %2884 = vmatmul.mubr.bf16.gmra.mxu0 %v2511
      %v2885 = vpop.f32.mrf.mxu0
      %v2886 = vadd.f32 %v2594, %v2885
      %v2887 = vpop.f32.mrf.mxu0
      %v2888 = vadd.f32 %v2598, %v2887
      %v2889 = vpop.f32.mrf.mxu0
      %v2890 = vadd.f32 %v2594, %v2889
      %v2891 = vpop.f32.mrf.mxu0
      %v2892 = vadd.f32 %v2598, %v2891
      %2893 = vmatprep.mubr.bf16.mxu0 %v2514
      %2894 = vmatmul.mubr.bf16.gmra.mxu0 %v2513
      %v2895 = vpop.f32.mrf.mxu0
      %v2896 = vadd.f32 %v2594, %v2895
      %v2897 = vpop.f32.mrf.mxu0
      %v2898 = vadd.f32 %v2598, %v2897
      %v2899 = vpop.f32.mrf.mxu0
      %v2900 = vadd.f32 %v2594, %v2899
      %v2901 = vpop.f32.mrf.mxu0
      %v2902 = vadd.f32 %v2598, %v2901
      %2903 = vmatprep.mubr.bf16.mxu0 %v2516
      %2904 = vmatmul.mubr.bf16.gmra.mxu0 %v2515
      %v2905 = vpop.f32.mrf.mxu0
      %v2906 = vadd.f32 %v2594, %v2905
      %v2907 = vpop.f32.mrf.mxu0
      %v2908 = vadd.f32 %v2598, %v2907
      %v2909 = vpop.f32.mrf.mxu0
      %v2910 = vadd.f32 %v2594, %v2909
      %v2911 = vpop.f32.mrf.mxu0
      %v2912 = vadd.f32 %v2598, %v2911
      %2913 = vmatprep.mubr.bf16.mxu0 %v2518
      %2914 = vmatmul.mubr.bf16.gmra.mxu0 %v2517
      %v2915 = vpop.f32.mrf.mxu0
      %v2916 = vadd.f32 %v2594, %v2915
      %v2917 = vpop.f32.mrf.mxu0
      %v2918 = vadd.f32 %v2598, %v2917
      %v2919 = vpop.f32.mrf.mxu0
      %v2920 = vadd.f32 %v2594, %v2919
      %v2921 = vpop.f32.mrf.mxu0
      %v2922 = vadd.f32 %v2598, %v2921
      %2923 = vmatprep.mubr.bf16.mxu0 %v2520
      %2924 = vmatmul.mubr.bf16.gmra.mxu0 %v2519
      %v2925 = vpop.f32.mrf.mxu0
      %v2926 = vadd.f32 %v2594, %v2925
      %v2927 = vpop.f32.mrf.mxu0
      %v2928 = vadd.f32 %v2598, %v2927
      %v2929 = vpop.f32.mrf.mxu0
      %v2930 = vadd.f32 %v2594, %v2929
      %v2931 = vpop.f32.mrf.mxu0
      %v2932 = vadd.f32 %v2598, %v2931
      %2933 = vmatprep.mubr.bf16.mxu0 %v2522
      %2934 = vmatmul.mubr.bf16.gmra.mxu0 %v2521
      %v2935 = vpop.f32.mrf.mxu0
      %v2936 = vadd.f32 %v2594, %v2935
      %v2937 = vpop.f32.mrf.mxu0
      %v2938 = vadd.f32 %v2598, %v2937
      %v2939 = vpop.f32.mrf.mxu0
      %v2940 = vadd.f32 %v2594, %v2939
      %v2941 = vpop.f32.mrf.mxu0
      %v2942 = vadd.f32 %v2598, %v2941
      %2943 = vmatprep.mubr.bf16.mxu0 %v2524
      %2944 = vmatmul.mubr.bf16.gmra.mxu0 %v2523
      %v2945 = vpop.f32.mrf.mxu0
      %v2946 = vadd.f32 %v2594, %v2945
      %v2947 = vpop.f32.mrf.mxu0
      %v2948 = vadd.f32 %v2598, %v2947
      %v2949 = vpop.f32.mrf.mxu0
      %v2950 = vadd.f32 %v2594, %v2949
      %v2951 = vpop.f32.mrf.mxu0
      %v2952 = vadd.f32 %v2598, %v2951
      %2953 = vmatprep.mubr.bf16.mxu0 %v2526
      %2954 = vmatmul.mubr.bf16.gmra.mxu0 %v2525
      %v2955 = vpop.f32.mrf.mxu0
      %v2956 = vadd.f32 %v2594, %v2955
      %v2957 = vpop.f32.mrf.mxu0
      %v2958 = vadd.f32 %v2598, %v2957
      %v2959 = vpop.f32.mrf.mxu0
      %v2960 = vadd.f32 %v2594, %v2959
      %v2961 = vpop.f32.mrf.mxu0
      %v2962 = vadd.f32 %v2598, %v2961
      %2963 = vmatprep.mubr.bf16.mxu0 %v2528
      %2964 = vmatmul.mubr.bf16.gmra.mxu0 %v2527
      %v2965 = vpop.f32.mrf.mxu0
      %v2966 = vadd.f32 %v2594, %v2965
      %v2967 = vpop.f32.mrf.mxu0
      %v2968 = vadd.f32 %v2598, %v2967
      %v2969 = vpop.f32.mrf.mxu0
      %v2970 = vadd.f32 %v2594, %v2969
      %v2971 = vpop.f32.mrf.mxu0
      %v2972 = vadd.f32 %v2598, %v2971
      %2973 = vmatprep.mubr.bf16.mxu0 %v2530
      %2974 = vmatmul.mubr.bf16.gmra.mxu0 %v2529
      %v2975 = vpop.f32.mrf.mxu0
      %v2976 = vadd.f32 %v2594, %v2975
      %v2977 = vpop.f32.mrf.mxu0
      %v2978 = vadd.f32 %v2598, %v2977
      %v2979 = vpop.f32.mrf.mxu0
      %v2980 = vadd.f32 %v2594, %v2979
      %v2981 = vpop.f32.mrf.mxu0
      %v2982 = vadd.f32 %v2598, %v2981
      %2983 = vmatprep.mubr.bf16.mxu0 %v2532
      %2984 = vmatmul.mubr.bf16.gmra.mxu0 %v2531
      %v2985 = vpop.f32.mrf.mxu0
      %v2986 = vadd.f32 %v2594, %v2985
      %v2987 = vpop.f32.mrf.mxu0
      %v2988 = vadd.f32 %v2598, %v2987
      %v2989 = vpop.f32.mrf.mxu0
      %v2990 = vadd.f32 %v2594, %v2989
      %v2991 = vpop.f32.mrf.mxu0
      %v2992 = vadd.f32 %v2598, %v2991
      %2993 = vmatprep.mubr.bf16.mxu0 %v2534
      %2994 = vmatmul.mubr.bf16.gmra.mxu0 %v2533
      %v2995 = vpop.f32.mrf.mxu0
      %v2996 = vadd.f32 %v2594, %v2995
      %v2997 = vpop.f32.mrf.mxu0
      %v2998 = vadd.f32 %v2598, %v2997
      %v2999 = vpop.f32.mrf.mxu0
      %v3000 = vadd.f32 %v2594, %v2999
      %v3001 = vpop.f32.mrf.mxu0
      %v3002 = vadd.f32 %v2598, %v3001
      %3003 = vmatprep.mubr.bf16.mxu0 %v2536
      %3004 = vmatmul.mubr.bf16.gmra.mxu0 %v2535
      %v3005 = vpop.f32.mrf.mxu0
      %v3006 = vadd.f32 %v2594, %v3005
      %v3007 = vpop.f32.mrf.mxu0
      %v3008 = vadd.f32 %v2598, %v3007
      %v3009 = vpop.f32.mrf.mxu0
      %v3010 = vadd.f32 %v2594, %v3009
      %v3011 = vpop.f32.mrf.mxu0
      %v3012 = vadd.f32 %v2598, %v3011
      %3013 = vmatprep.mubr.bf16.mxu0 %v2538
      %3014 = vmatmul.mubr.bf16.gmra.mxu0 %v2537
      %v3015 = vpop.f32.mrf.mxu0
      %v3016 = vadd.f32 %v2594, %v3015
      %v3017 = vpop.f32.mrf.mxu0
      %v3018 = vadd.f32 %v2598, %v3017
      %v3019 = vpop.f32.mrf.mxu0
      %v3020 = vadd.f32 %v2594, %v3019
      %v3021 = vpop.f32.mrf.mxu0
      %v3022 = vadd.f32 %v2598, %v3021
      %3023 = vmatprep.mubr.bf16.mxu0 %v2540
      %3024 = vmatmul.mubr.bf16.gmra.mxu0 %v2539
      %v3025 = vpop.f32.mrf.mxu0
      %v3026 = vadd.f32 %v2594, %v3025
      %v3027 = vpop.f32.mrf.mxu0
      %v3028 = vadd.f32 %v2598, %v3027
      %v3029 = vpop.f32.mrf.mxu0
      %v3030 = vadd.f32 %v2594, %v3029
      %v3031 = vpop.f32.mrf.mxu0
      %v3032 = vadd.f32 %v2598, %v3031
      %3033 = vmatprep.mubr.bf16.mxu0 %v2542
      %3034 = vmatmul.mubr.bf16.gmra.mxu0 %v2541
      %v3035 = vpop.f32.mrf.mxu0
      %v3036 = vadd.f32 %v2594, %v3035
      %v3037 = vpop.f32.mrf.mxu0
      %v3038 = vadd.f32 %v2598, %v3037
      %v3039 = vpop.f32.mrf.mxu0
      %v3040 = vadd.f32 %v2594, %v3039
      %v3041 = vpop.f32.mrf.mxu0
      %v3042 = vadd.f32 %v2598, %v3041
      %3043 = vmatprep.mubr.bf16.mxu0 %v2544
      %3044 = vmatmul.mubr.bf16.gmra.mxu0 %v2543
      %v3045 = vpop.f32.mrf.mxu0
      %v3046 = vadd.f32 %v2594, %v3045
      %v3047 = vpop.f32.mrf.mxu0
      %v3048 = vadd.f32 %v2598, %v3047
      %v3049 = vpop.f32.mrf.mxu0
      %v3050 = vadd.f32 %v2594, %v3049
      %v3051 = vpop.f32.mrf.mxu0
      %v3052 = vadd.f32 %v2598, %v3051
      %3053 = vmatprep.mubr.bf16.mxu0 %v2546
      %3054 = vmatmul.mubr.bf16.gmra.mxu0 %v2545
      %v3055 = vpop.f32.mrf.mxu0
      %v3056 = vadd.f32 %v2594, %v3055
      %v3057 = vpop.f32.mrf.mxu0
      %v3058 = vadd.f32 %v2598, %v3057
      %v3059 = vpop.f32.mrf.mxu0
      %v3060 = vadd.f32 %v2594, %v3059
      %v3061 = vpop.f32.mrf.mxu0
      %v3062 = vadd.f32 %v2598, %v3061
      %3063 = vmatprep.mubr.bf16.mxu0 %v2548
      %3064 = vmatmul.mubr.bf16.gmra.mxu0 %v2547
      %v3065 = vpop.f32.mrf.mxu0
      %v3066 = vadd.f32 %v2594, %v3065
      %v3067 = vpop.f32.mrf.mxu0
      %v3068 = vadd.f32 %v2598, %v3067
      %v3069 = vpop.f32.mrf.mxu0
      %v3070 = vadd.f32 %v2594, %v3069
      %v3071 = vpop.f32.mrf.mxu0
      %v3072 = vadd.f32 %v2598, %v3071
      %3073 = vmatprep.mubr.bf16.mxu0 %v2550
      %3074 = vmatmul.mubr.bf16.gmra.mxu0 %v2549
      %v3075 = vpop.f32.mrf.mxu0
      %v3076 = vadd.f32 %v2594, %v3075
      %v3077 = vpop.f32.mrf.mxu0
      %v3078 = vadd.f32 %v2598, %v3077
      %v3079 = vpop.f32.mrf.mxu0
      %v3080 = vadd.f32 %v2594, %v3079
      %v3081 = vpop.f32.mrf.mxu0
      %v3082 = vadd.f32 %v2598, %v3081
      %3083 = vmatprep.mubr.bf16.mxu0 %v2552
      %3084 = vmatmul.mubr.bf16.gmra.mxu0 %v2551
      %v3085 = vpop.f32.mrf.mxu0
      %v3086 = vadd.f32 %v2594, %v3085
      %v3087 = vpop.f32.mrf.mxu0
      %v3088 = vadd.f32 %v2598, %v3087
      %v3089 = vpop.f32.mrf.mxu0
      %v3090 = vadd.f32 %v2594, %v3089
      %v3091 = vpop.f32.mrf.mxu0
      %v3092 = vadd.f32 %v2598, %v3091
      %3093 = vmatprep.mubr.bf16.mxu0 %v2554
      %3094 = vmatmul.mubr.bf16.gmra.mxu0 %v2553
      %v3095 = vpop.f32.mrf.mxu0
      %v3096 = vadd.f32 %v2594, %v3095
      %v3097 = vpop.f32.mrf.mxu0
      %v3098 = vadd.f32 %v2598, %v3097
      %v3099 = vpop.f32.mrf.mxu0
      %v3100 = vadd.f32 %v2594, %v3099
      %v3101 = vpop.f32.mrf.mxu0
      %v3102 = vadd.f32 %v2598, %v3101
      %3103 = vmatprep.mubr.bf16.mxu0 %v2556
      %3104 = vmatmul.mubr.bf16.gmra.mxu0 %v2555
      %v3105 = vpop.f32.mrf.mxu0
      %v3106 = vadd.f32 %v2594, %v3105
      %v3107 = vpop.f32.mrf.mxu0
      %v3108 = vadd.f32 %v2598, %v3107
      %v3109 = vpop.f32.mrf.mxu0
      %v3110 = vadd.f32 %v2594, %v3109
      %v3111 = vpop.f32.mrf.mxu0
      %v3112 = vadd.f32 %v2598, %v3111
      %3113 = vdwg.mxu0
      %v3114 = vmax.f32 %v2796, 0.0
      %v3115 = vmax.f32 %v2798, 0.0
      %v3116 = vmax.f32 %v2800, 0.0
      %v3117 = vmax.f32 %v2802, 0.0
      %v3118 = vmax.f32 %v2806, 0.0
      %v3119 = vmax.f32 %v2808, 0.0
      %v3120 = vmax.f32 %v2810, 0.0
      %v3121 = vmax.f32 %v2812, 0.0
      %v3122 = vmax.f32 %v2816, 0.0
      %v3123 = vmax.f32 %v2818, 0.0
      %v3124 = vmax.f32 %v2820, 0.0
      %v3125 = vmax.f32 %v2822, 0.0
      %v3126 = vmax.f32 %v2826, 0.0
      %v3127 = vmax.f32 %v2828, 0.0
      %v3128 = vmax.f32 %v2830, 0.0
      %v3129 = vmax.f32 %v2832, 0.0
      %v3130 = vmax.f32 %v2836, 0.0
      %v3131 = vmax.f32 %v2838, 0.0
      %v3132 = vmax.f32 %v2840, 0.0
      %v3133 = vmax.f32 %v2842, 0.0
      %v3134 = vmax.f32 %v2846, 0.0
      %v3135 = vmax.f32 %v2848, 0.0
      %v3136 = vmax.f32 %v2850, 0.0
      %v3137 = vmax.f32 %v2852, 0.0
      %v3138 = vmax.f32 %v2856, 0.0
      %v3139 = vmax.f32 %v2858, 0.0
      %v3140 = vmax.f32 %v2860, 0.0
      %v3141 = vmax.f32 %v2862, 0.0
      %v3142 = vmax.f32 %v2866, 0.0
      %v3143 = vmax.f32 %v2868, 0.0
      %v3144 = vmax.f32 %v2870, 0.0
      %v3145 = vmax.f32 %v2872, 0.0
      %v3146 = vmax.f32 %v2876, 0.0
      %v3147 = vmax.f32 %v2878, 0.0
      %v3148 = vmax.f32 %v2880, 0.0
      %v3149 = vmax.f32 %v2882, 0.0
      %v3150 = vmax.f32 %v2886, 0.0
      %v3151 = vmax.f32 %v2888, 0.0
      %v3152 = vmax.f32 %v2890, 0.0
      %v3153 = vmax.f32 %v2892, 0.0
      %v3154 = vmax.f32 %v2896, 0.0
      %v3155 = vmax.f32 %v2898, 0.0
      %v3156 = vmax.f32 %v2900, 0.0
      %v3157 = vmax.f32 %v2902, 0.0
      %v3158 = vmax.f32 %v2906, 0.0
      %v3159 = vmax.f32 %v2908, 0.0
      %v3160 = vmax.f32 %v2910, 0.0
      %v3161 = vmax.f32 %v2912, 0.0
      %v3162 = vmax.f32 %v2916, 0.0
      %v3163 = vmax.f32 %v2918, 0.0
      %v3164 = vmax.f32 %v2920, 0.0
      %v3165 = vmax.f32 %v2922, 0.0
      %v3166 = vmax.f32 %v2926, 0.0
      %v3167 = vmax.f32 %v2928, 0.0
      %v3168 = vmax.f32 %v2930, 0.0
      %v3169 = vmax.f32 %v2932, 0.0
      %v3170 = vmax.f32 %v2936, 0.0
      %v3171 = vmax.f32 %v2938, 0.0
      %v3172 = vmax.f32 %v2940, 0.0
      %v3173 = vmax.f32 %v2942, 0.0
      %v3174 = vmax.f32 %v2946, 0.0
      %v3175 = vmax.f32 %v2948, 0.0
      %v3176 = vmax.f32 %v2950, 0.0
      %v3177 = vmax.f32 %v2952, 0.0
      %v3178 = vmax.f32 %v2956, 0.0
      %v3179 = vmax.f32 %v2958, 0.0
      %v3180 = vmax.f32 %v2960, 0.0
      %v3181 = vmax.f32 %v2962, 0.0
      %v3182 = vmax.f32 %v2966, 0.0
      %v3183 = vmax.f32 %v2968, 0.0
      %v3184 = vmax.f32 %v2970, 0.0
      %v3185 = vmax.f32 %v2972, 0.0
      %v3186 = vmax.f32 %v2976, 0.0
      %v3187 = vmax.f32 %v2978, 0.0
      %v3188 = vmax.f32 %v2980, 0.0
      %v3189 = vmax.f32 %v2982, 0.0
      %v3190 = vmax.f32 %v2986, 0.0
      %v3191 = vmax.f32 %v2988, 0.0
      %v3192 = vmax.f32 %v2990, 0.0
      %v3193 = vmax.f32 %v2992, 0.0
      %v3194 = vmax.f32 %v2996, 0.0
      %v3195 = vmax.f32 %v2998, 0.0
      %v3196 = vmax.f32 %v3000, 0.0
      %v3197 = vmax.f32 %v3002, 0.0
      %v3198 = vmax.f32 %v3006, 0.0
      %v3199 = vmax.f32 %v3008, 0.0
      %v3200 = vmax.f32 %v3010, 0.0
      %v3201 = vmax.f32 %v3012, 0.0
      %v3202 = vmax.f32 %v3016, 0.0
      %v3203 = vmax.f32 %v3018, 0.0
      %v3204 = vmax.f32 %v3020, 0.0
      %v3205 = vmax.f32 %v3022, 0.0
      %v3206 = vmax.f32 %v3026, 0.0
      %v3207 = vmax.f32 %v3028, 0.0
      %v3208 = vmax.f32 %v3030, 0.0
      %v3209 = vmax.f32 %v3032, 0.0
      %v3210 = vmax.f32 %v3036, 0.0
      %v3211 = vmax.f32 %v3038, 0.0
      %v3212 = vmax.f32 %v3040, 0.0
      %v3213 = vmax.f32 %v3042, 0.0
      %v3214 = vmax.f32 %v3046, 0.0
      %v3215 = vmax.f32 %v3048, 0.0
      %v3216 = vmax.f32 %v3050, 0.0
      %v3217 = vmax.f32 %v3052, 0.0
      %v3218 = vmax.f32 %v3056, 0.0
      %v3219 = vmax.f32 %v3058, 0.0
      %v3220 = vmax.f32 %v3060, 0.0
      %v3221 = vmax.f32 %v3062, 0.0
      %v3222 = vmax.f32 %v3066, 0.0
      %v3223 = vmax.f32 %v3068, 0.0
      %v3224 = vmax.f32 %v3070, 0.0
      %v3225 = vmax.f32 %v3072, 0.0
      %v3226 = vmax.f32 %v3076, 0.0
      %v3227 = vmax.f32 %v3078, 0.0
      %v3228 = vmax.f32 %v3080, 0.0
      %v3229 = vmax.f32 %v3082, 0.0
      %v3230 = vmax.f32 %v3086, 0.0
      %v3231 = vmax.f32 %v3088, 0.0
      %v3232 = vmax.f32 %v3090, 0.0
      %v3233 = vmax.f32 %v3092, 0.0
      %v3234 = vmax.f32 %v3096, 0.0
      %v3235 = vmax.f32 %v3098, 0.0
      %v3236 = vmax.f32 %v3100, 0.0
      %v3237 = vmax.f32 %v3102, 0.0
      %v3238 = vmax.f32 %v3106, 0.0
      %v3239 = vmax.f32 %v3108, 0.0
      %v3240 = vmax.f32 %v3110, 0.0
      %v3241 = vmax.f32 %v3112, 0.0
      %v3242 = vpack.c.bf16 %v3116, %v3114
      %v3243 = vpack.c.bf16 %v3117, %v3115
      %v3244 = vpack.c.bf16 %v3120, %v3118
      %v3245 = vpack.c.bf16 %v3121, %v3119
      %v3246 = vpack.c.bf16 %v3124, %v3122
      %v3247 = vpack.c.bf16 %v3125, %v3123
      %v3248 = vpack.c.bf16 %v3128, %v3126
      %v3249 = vpack.c.bf16 %v3129, %v3127
      %v3250 = vpack.c.bf16 %v3132, %v3130
      %v3251 = vpack.c.bf16 %v3133, %v3131
      %v3252 = vpack.c.bf16 %v3136, %v3134
      %v3253 = vpack.c.bf16 %v3137, %v3135
      %v3254 = vpack.c.bf16 %v3140, %v3138
      %v3255 = vpack.c.bf16 %v3141, %v3139
      %v3256 = vpack.c.bf16 %v3144, %v3142
      %v3257 = vpack.c.bf16 %v3145, %v3143
      %v3258 = vpack.c.bf16 %v3148, %v3146
      %v3259 = vpack.c.bf16 %v3149, %v3147
      %v3260 = vpack.c.bf16 %v3152, %v3150
      %v3261 = vpack.c.bf16 %v3153, %v3151
      %v3262 = vpack.c.bf16 %v3156, %v3154
      %v3263 = vpack.c.bf16 %v3157, %v3155
      %v3264 = vpack.c.bf16 %v3160, %v3158
      %v3265 = vpack.c.bf16 %v3161, %v3159
      %v3266 = vpack.c.bf16 %v3164, %v3162
      %v3267 = vpack.c.bf16 %v3165, %v3163
      %v3268 = vpack.c.bf16 %v3168, %v3166
      %v3269 = vpack.c.bf16 %v3169, %v3167
      %v3270 = vpack.c.bf16 %v3172, %v3170
      %v3271 = vpack.c.bf16 %v3173, %v3171
      %v3272 = vpack.c.bf16 %v3176, %v3174
      %v3273 = vpack.c.bf16 %v3177, %v3175
      %v3274 = vpack.c.bf16 %v3180, %v3178
      %v3275 = vpack.c.bf16 %v3181, %v3179
      %v3276 = vpack.c.bf16 %v3184, %v3182
      %v3277 = vpack.c.bf16 %v3185, %v3183
      %v3278 = vpack.c.bf16 %v3188, %v3186
      %v3279 = vpack.c.bf16 %v3189, %v3187
      %v3280 = vpack.c.bf16 %v3192, %v3190
      %v3281 = vpack.c.bf16 %v3193, %v3191
      %v3282 = vpack.c.bf16 %v3196, %v3194
      %v3283 = vpack.c.bf16 %v3197, %v3195
      %v3284 = vpack.c.bf16 %v3200, %v3198
      %v3285 = vpack.c.bf16 %v3201, %v3199
      %v3286 = vpack.c.bf16 %v3204, %v3202
      %v3287 = vpack.c.bf16 %v3205, %v3203
      %v3288 = vpack.c.bf16 %v3208, %v3206
      %v3289 = vpack.c.bf16 %v3209, %v3207
      %v3290 = vpack.c.bf16 %v3212, %v3210
      %v3291 = vpack.c.bf16 %v3213, %v3211
      %v3292 = vpack.c.bf16 %v3216, %v3214
      %v3293 = vpack.c.bf16 %v3217, %v3215
      %v3294 = vpack.c.bf16 %v3220, %v3218
      %v3295 = vpack.c.bf16 %v3221, %v3219
      %v3296 = vpack.c.bf16 %v3224, %v3222
      %v3297 = vpack.c.bf16 %v3225, %v3223
      %v3298 = vpack.c.bf16 %v3228, %v3226
      %v3299 = vpack.c.bf16 %v3229, %v3227
      %v3300 = vpack.c.bf16 %v3232, %v3230
      %v3301 = vpack.c.bf16 %v3233, %v3231
      %v3302 = vpack.c.bf16 %v3236, %v3234
      %v3303 = vpack.c.bf16 %v3237, %v3235
      %v3304 = vpack.c.bf16 %v3240, %v3238
      %v3305 = vpack.c.bf16 %v3241, %v3239
      %v3306 = vld [vmem:[%s8] sm:$0xff]
      %v3307 = vld [vmem:[%s8 + $0x8] sm:$0xff]
      %v3308 = vld [vmem:[%s8 + $0x10] sm:$0xff]
      %v3309 = vld [vmem:[%s8 + $0x18] sm:$0xff]
      %v3310 = vld [vmem:[%s8 + $0x20] sm:$0xff]
      %v3311 = vld [vmem:[%s8 + $0x28] sm:$0xff]
      %v3312 = vld [vmem:[%s8 + $0x30] sm:$0xff]
      %v3313 = vld [vmem:[%s8 + $0x38] sm:$0xff]
      %v3314 = vld [vmem:[%s8 + $0x40] sm:$0xff]
      %v3315 = vld [vmem:[%s8 + $0x48] sm:$0xff]
      %v3316 = vld [vmem:[%s8 + $0x50] sm:$0xff]
      %v3317 = vld [vmem:[%s8 + $0x58] sm:$0xff]
      %v3318 = vld [vmem:[%s8 + $0x60] sm:$0xff]
      %v3319 = vld [vmem:[%s8 + $0x68] sm:$0xff]
      %v3320 = vld [vmem:[%s8 + $0x70] sm:$0xff]
      %v3321 = vld [vmem:[%s8 + $0x78] sm:$0xff]
      %v3322 = vld [vmem:[%s8 + $0x80] sm:$0xff]
      %v3323 = vld [vmem:[%s8 + $0x88] sm:$0xff]
      %v3324 = vld [vmem:[%s8 + $0x90] sm:$0xff]
      %v3325 = vld [vmem:[%s8 + $0x98] sm:$0xff]
      %v3326 = vld [vmem:[%s8 + $0xa0] sm:$0xff]
      %v3327 = vld [vmem:[%s8 + $0xa8] sm:$0xff]
      %v3328 = vld [vmem:[%s8 + $0xb0] sm:$0xff]
      %v3329 = vld [vmem:[%s8 + $0xb8] sm:$0xff]
      %v3330 = vld [vmem:[%s8 + $0xc0] sm:$0xff]
      %v3331 = vld [vmem:[%s8 + $0xc8] sm:$0xff]
      %v3332 = vld [vmem:[%s8 + $0xd0] sm:$0xff]
      %v3333 = vld [vmem:[%s8 + $0xd8] sm:$0xff]
      %v3334 = vld [vmem:[%s8 + $0xe0] sm:$0xff]
      %v3335 = vld [vmem:[%s8 + $0xe8] sm:$0xff]
      %v3336 = vld [vmem:[%s8 + $0xf0] sm:$0xff]
      %v3337 = vld [vmem:[%s8 + $0xf8] sm:$0xff]
      %v3338 = vld [vmem:[%s9] sm:$0x3]
      %v3340 = vlaneseq
      %v3341 = vshrl.u32 %v3340, 7
      %v3342 = vsub.s32 0, %v3341
      %v3343 = vrot.slane %v3338, %v3342
      %v3344 = vlaneseq
      %v3345 = vshrl.u32 %v3344, 7
      %v3346 = vsub.s32 1, %v3345
      %v3347 = vrot.slane %v3338, %v3346
      %v3382 = vunpack.c.l.b16 %v3306
      %v3383 = vunpack.c.h.b16 %v3306
      %v3384 = vunpack.c.l.b16 %v3307
      %v3385 = vunpack.c.h.b16 %v3307
      %v3386 = vunpack.c.l.b16 %v3308
      %v3387 = vunpack.c.h.b16 %v3308
      %v3388 = vunpack.c.l.b16 %v3309
      %v3389 = vunpack.c.h.b16 %v3309
      %v3390 = vunpack.c.l.b16 %v3310
      %v3391 = vunpack.c.h.b16 %v3310
      %v3392 = vunpack.c.l.b16 %v3311
      %v3393 = vunpack.c.h.b16 %v3311
      %v3394 = vunpack.c.l.b16 %v3312
      %v3395 = vunpack.c.h.b16 %v3312
      %v3396 = vunpack.c.l.b16 %v3313
      %v3397 = vunpack.c.h.b16 %v3313
      %v3398 = vunpack.c.l.b16 %v3314
      %v3399 = vunpack.c.h.b16 %v3314
      %v3400 = vunpack.c.l.b16 %v3315
      %v3401 = vunpack.c.h.b16 %v3315
      %v3402 = vunpack.c.l.b16 %v3316
      %v3403 = vunpack.c.h.b16 %v3316
      %v3404 = vunpack.c.l.b16 %v3317
      %v3405 = vunpack.c.h.b16 %v3317
      %v3406 = vunpack.c.l.b16 %v3318
      %v3407 = vunpack.c.h.b16 %v3318
      %v3408 = vunpack.c.l.b16 %v3319
      %v3409 = vunpack.c.h.b16 %v3319
      %v3410 = vunpack.c.l.b16 %v3320
      %v3411 = vunpack.c.h.b16 %v3320
      %v3412 = vunpack.c.l.b16 %v3321
      %v3413 = vunpack.c.h.b16 %v3321
      %v3414 = vunpack.c.l.b16 %v3322
      %v3415 = vunpack.c.h.b16 %v3322
      %v3416 = vunpack.c.l.b16 %v3323
      %v3417 = vunpack.c.h.b16 %v3323
      %v3418 = vunpack.c.l.b16 %v3324
      %v3419 = vunpack.c.h.b16 %v3324
      %v3420 = vunpack.c.l.b16 %v3325
      %v3421 = vunpack.c.h.b16 %v3325
      %v3422 = vunpack.c.l.b16 %v3326
      %v3423 = vunpack.c.h.b16 %v3326
      %v3424 = vunpack.c.l.b16 %v3327
      %v3425 = vunpack.c.h.b16 %v3327
      %v3426 = vunpack.c.l.b16 %v3328
      %v3427 = vunpack.c.h.b16 %v3328
      %v3428 = vunpack.c.l.b16 %v3329
      %v3429 = vunpack.c.h.b16 %v3329
      %v3430 = vunpack.c.l.b16 %v3330
      %v3431 = vunpack.c.h.b16 %v3330
      %v3432 = vunpack.c.l.b16 %v3331
      %v3433 = vunpack.c.h.b16 %v3331
      %v3434 = vunpack.c.l.b16 %v3332
      %v3435 = vunpack.c.h.b16 %v3332
      %v3436 = vunpack.c.l.b16 %v3333
      %v3437 = vunpack.c.h.b16 %v3333
      %v3438 = vunpack.c.l.b16 %v3334
      %v3439 = vunpack.c.h.b16 %v3334
      %v3440 = vunpack.c.l.b16 %v3335
      %v3441 = vunpack.c.h.b16 %v3335
      %v3442 = vunpack.c.l.b16 %v3336
      %v3443 = vunpack.c.h.b16 %v3336
      %v3444 = vunpack.c.l.b16 %v3337
      %v3445 = vunpack.c.h.b16 %v3337
      %v3446 = vpack.c.b16 %v3384, %v3382
      %v3447 = vpack.c.b16 %v3385, %v3383
      %v3448 = vpack.c.b16 %v3388, %v3386
      %v3449 = vpack.c.b16 %v3389, %v3387
      %v3450 = vpack.c.b16 %v3392, %v3390
      %v3451 = vpack.c.b16 %v3393, %v3391
      %v3452 = vpack.c.b16 %v3396, %v3394
      %v3453 = vpack.c.b16 %v3397, %v3395
      %v3454 = vpack.c.b16 %v3400, %v3398
      %v3455 = vpack.c.b16 %v3401, %v3399
      %v3456 = vpack.c.b16 %v3404, %v3402
      %v3457 = vpack.c.b16 %v3405, %v3403
      %v3458 = vpack.c.b16 %v3408, %v3406
      %v3459 = vpack.c.b16 %v3409, %v3407
      %v3460 = vpack.c.b16 %v3412, %v3410
      %v3461 = vpack.c.b16 %v3413, %v3411
      %v3462 = vpack.c.b16 %v3416, %v3414
      %v3463 = vpack.c.b16 %v3417, %v3415
      %v3464 = vpack.c.b16 %v3420, %v3418
      %v3465 = vpack.c.b16 %v3421, %v3419
      %v3466 = vpack.c.b16 %v3424, %v3422
      %v3467 = vpack.c.b16 %v3425, %v3423
      %v3468 = vpack.c.b16 %v3428, %v3426
      %v3469 = vpack.c.b16 %v3429, %v3427
      %v3470 = vpack.c.b16 %v3432, %v3430
      %v3471 = vpack.c.b16 %v3433, %v3431
      %v3472 = vpack.c.b16 %v3436, %v3434
      %v3473 = vpack.c.b16 %v3437, %v3435
      %v3474 = vpack.c.b16 %v3440, %v3438
      %v3475 = vpack.c.b16 %v3441, %v3439
      %v3476 = vpack.c.b16 %v3444, %v3442
      %v3477 = vpack.c.b16 %v3445, %v3443
      %3510 = vmatprep.subr.bf16.mxu0 %v3461
      %3511 = vmatpush1.bf16.msra.mxu0 %v3460
      %3512 = vmatprep.subr.bf16.mxu0 %v3459
      %3513 = vmatpush1.bf16.msra.mxu0 %v3458
      %3514 = vmatprep.subr.bf16.mxu0 %v3457
      %3515 = vmatpush1.bf16.msra.mxu0 %v3456
      %3516 = vmatprep.subr.bf16.mxu0 %v3455
      %3517 = vmatpush1.bf16.msra.mxu0 %v3454
      %3518 = vmatprep.subr.bf16.mxu0 %v3453
      %3519 = vmatpush1.bf16.msra.mxu0 %v3452
      %3520 = vmatprep.subr.bf16.mxu0 %v3451
      %3521 = vmatpush1.bf16.msra.mxu0 %v3450
      %3522 = vmatprep.subr.bf16.mxu0 %v3449
      %3523 = vmatpush1.bf16.msra.mxu0 %v3448
      %3524 = vmatprep.subr.bf16.mxu0 %v3447
      %3525 = vmatpush1.bf16.msra.mxu0 %v3446
      %3526 = vmatprep.subr.bf16.mxu0 %v3477
      %3527 = vmatpush2.bf16.msra.mxu0 %v3476
      %3528 = vmatprep.subr.bf16.mxu0 %v3475
      %3529 = vmatpush2.bf16.msra.mxu0 %v3474
      %3530 = vmatprep.subr.bf16.mxu0 %v3473
      %3531 = vmatpush2.bf16.msra.mxu0 %v3472
      %3532 = vmatprep.subr.bf16.mxu0 %v3471
      %3533 = vmatpush2.bf16.msra.mxu0 %v3470
      %3534 = vmatprep.subr.bf16.mxu0 %v3469
      %3535 = vmatpush2.bf16.msra.mxu0 %v3468
      %3536 = vmatprep.subr.bf16.mxu0 %v3467
      %3537 = vmatpush2.bf16.msra.mxu0 %v3466
      %3538 = vmatprep.subr.bf16.mxu0 %v3465
      %3539 = vmatpush2.bf16.msra.mxu0 %v3464
      %3540 = vmatprep.subr.bf16.mxu0 %v3463
      %3541 = vmatpush2.bf16.msra.mxu0 %v3462
      %3542 = vmatprep.mubr.bf16.mxu0 %v3243
      %3543 = vmatmul.mubr.bf16.gmra.mxu0 %v3242
      %v3544 = vpop.f32.mrf.mxu0
      %v3545 = vadd.f32 %v3343, %v3544
      %v3546 = vpop.f32.mrf.mxu0
      %v3547 = vadd.f32 %v3347, %v3546
      %v3548 = vpop.f32.mrf.mxu0
      %v3549 = vadd.f32 %v3343, %v3548
      %v3550 = vpop.f32.mrf.mxu0
      %v3551 = vadd.f32 %v3347, %v3550
      %3552 = vmatprep.mubr.bf16.mxu0 %v3245
      %3553 = vmatmul.mubr.bf16.gmra.mxu0 %v3244
      %v3554 = vpop.f32.mrf.mxu0
      %v3555 = vadd.f32 %v3343, %v3554
      %v3556 = vpop.f32.mrf.mxu0
      %v3557 = vadd.f32 %v3347, %v3556
      %v3558 = vpop.f32.mrf.mxu0
      %v3559 = vadd.f32 %v3343, %v3558
      %v3560 = vpop.f32.mrf.mxu0
      %v3561 = vadd.f32 %v3347, %v3560
      %3562 = vmatprep.mubr.bf16.mxu0 %v3247
      %3563 = vmatmul.mubr.bf16.gmra.mxu0 %v3246
      %v3564 = vpop.f32.mrf.mxu0
      %v3565 = vadd.f32 %v3343, %v3564
      %v3566 = vpop.f32.mrf.mxu0
      %v3567 = vadd.f32 %v3347, %v3566
      %v3568 = vpop.f32.mrf.mxu0
      %v3569 = vadd.f32 %v3343, %v3568
      %v3570 = vpop.f32.mrf.mxu0
      %v3571 = vadd.f32 %v3347, %v3570
      %3572 = vmatprep.mubr.bf16.mxu0 %v3249
      %3573 = vmatmul.mubr.bf16.gmra.mxu0 %v3248
      %v3574 = vpop.f32.mrf.mxu0
      %v3575 = vadd.f32 %v3343, %v3574
      %v3576 = vpop.f32.mrf.mxu0
      %v3577 = vadd.f32 %v3347, %v3576
      %v3578 = vpop.f32.mrf.mxu0
      %v3579 = vadd.f32 %v3343, %v3578
      %v3580 = vpop.f32.mrf.mxu0
      %v3581 = vadd.f32 %v3347, %v3580
      %3582 = vmatprep.mubr.bf16.mxu0 %v3251
      %3583 = vmatmul.mubr.bf16.gmra.mxu0 %v3250
      %v3584 = vpop.f32.mrf.mxu0
      %v3585 = vadd.f32 %v3343, %v3584
      %v3586 = vpop.f32.mrf.mxu0
      %v3587 = vadd.f32 %v3347, %v3586
      %v3588 = vpop.f32.mrf.mxu0
      %v3589 = vadd.f32 %v3343, %v3588
      %v3590 = vpop.f32.mrf.mxu0
      %v3591 = vadd.f32 %v3347, %v3590
      %3592 = vmatprep.mubr.bf16.mxu0 %v3253
      %3593 = vmatmul.mubr.bf16.gmra.mxu0 %v3252
      %v3594 = vpop.f32.mrf.mxu0
      %v3595 = vadd.f32 %v3343, %v3594
      %v3596 = vpop.f32.mrf.mxu0
      %v3597 = vadd.f32 %v3347, %v3596
      %v3598 = vpop.f32.mrf.mxu0
      %v3599 = vadd.f32 %v3343, %v3598
      %v3600 = vpop.f32.mrf.mxu0
      %v3601 = vadd.f32 %v3347, %v3600
      %3602 = vmatprep.mubr.bf16.mxu0 %v3255
      %3603 = vmatmul.mubr.bf16.gmra.mxu0 %v3254
      %v3604 = vpop.f32.mrf.mxu0
      %v3605 = vadd.f32 %v3343, %v3604
      %v3606 = vpop.f32.mrf.mxu0
      %v3607 = vadd.f32 %v3347, %v3606
      %v3608 = vpop.f32.mrf.mxu0
      %v3609 = vadd.f32 %v3343, %v3608
      %v3610 = vpop.f32.mrf.mxu0
      %v3611 = vadd.f32 %v3347, %v3610
      %3612 = vmatprep.mubr.bf16.mxu0 %v3257
      %3613 = vmatmul.mubr.bf16.gmra.mxu0 %v3256
      %v3614 = vpop.f32.mrf.mxu0
      %v3615 = vadd.f32 %v3343, %v3614
      %v3616 = vpop.f32.mrf.mxu0
      %v3617 = vadd.f32 %v3347, %v3616
      %v3618 = vpop.f32.mrf.mxu0
      %v3619 = vadd.f32 %v3343, %v3618
      %v3620 = vpop.f32.mrf.mxu0
      %v3621 = vadd.f32 %v3347, %v3620
      %3622 = vmatprep.mubr.bf16.mxu0 %v3259
      %3623 = vmatmul.mubr.bf16.gmra.mxu0 %v3258
      %v3624 = vpop.f32.mrf.mxu0
      %v3625 = vadd.f32 %v3343, %v3624
      %v3626 = vpop.f32.mrf.mxu0
      %v3627 = vadd.f32 %v3347, %v3626
      %v3628 = vpop.f32.mrf.mxu0
      %v3629 = vadd.f32 %v3343, %v3628
      %v3630 = vpop.f32.mrf.mxu0
      %v3631 = vadd.f32 %v3347, %v3630
      %3632 = vmatprep.mubr.bf16.mxu0 %v3261
      %3633 = vmatmul.mubr.bf16.gmra.mxu0 %v3260
      %v3634 = vpop.f32.mrf.mxu0
      %v3635 = vadd.f32 %v3343, %v3634
      %v3636 = vpop.f32.mrf.mxu0
      %v3637 = vadd.f32 %v3347, %v3636
      %v3638 = vpop.f32.mrf.mxu0
      %v3639 = vadd.f32 %v3343, %v3638
      %v3640 = vpop.f32.mrf.mxu0
      %v3641 = vadd.f32 %v3347, %v3640
      %3642 = vmatprep.mubr.bf16.mxu0 %v3263
      %3643 = vmatmul.mubr.bf16.gmra.mxu0 %v3262
      %v3644 = vpop.f32.mrf.mxu0
      %v3645 = vadd.f32 %v3343, %v3644
      %v3646 = vpop.f32.mrf.mxu0
      %v3647 = vadd.f32 %v3347, %v3646
      %v3648 = vpop.f32.mrf.mxu0
      %v3649 = vadd.f32 %v3343, %v3648
      %v3650 = vpop.f32.mrf.mxu0
      %v3651 = vadd.f32 %v3347, %v3650
      %3652 = vmatprep.mubr.bf16.mxu0 %v3265
      %3653 = vmatmul.mubr.bf16.gmra.mxu0 %v3264
      %v3654 = vpop.f32.mrf.mxu0
      %v3655 = vadd.f32 %v3343, %v3654
      %v3656 = vpop.f32.mrf.mxu0
      %v3657 = vadd.f32 %v3347, %v3656
      %v3658 = vpop.f32.mrf.mxu0
      %v3659 = vadd.f32 %v3343, %v3658
      %v3660 = vpop.f32.mrf.mxu0
      %v3661 = vadd.f32 %v3347, %v3660
      %3662 = vmatprep.mubr.bf16.mxu0 %v3267
      %3663 = vmatmul.mubr.bf16.gmra.mxu0 %v3266
      %v3664 = vpop.f32.mrf.mxu0
      %v3665 = vadd.f32 %v3343, %v3664
      %v3666 = vpop.f32.mrf.mxu0
      %v3667 = vadd.f32 %v3347, %v3666
      %v3668 = vpop.f32.mrf.mxu0
      %v3669 = vadd.f32 %v3343, %v3668
      %v3670 = vpop.f32.mrf.mxu0
      %v3671 = vadd.f32 %v3347, %v3670
      %3672 = vmatprep.mubr.bf16.mxu0 %v3269
      %3673 = vmatmul.mubr.bf16.gmra.mxu0 %v3268
      %v3674 = vpop.f32.mrf.mxu0
      %v3675 = vadd.f32 %v3343, %v3674
      %v3676 = vpop.f32.mrf.mxu0
      %v3677 = vadd.f32 %v3347, %v3676
      %v3678 = vpop.f32.mrf.mxu0
      %v3679 = vadd.f32 %v3343, %v3678
      %v3680 = vpop.f32.mrf.mxu0
      %v3681 = vadd.f32 %v3347, %v3680
      %3682 = vmatprep.mubr.bf16.mxu0 %v3271
      %3683 = vmatmul.mubr.bf16.gmra.mxu0 %v3270
      %v3684 = vpop.f32.mrf.mxu0
      %v3685 = vadd.f32 %v3343, %v3684
      %v3686 = vpop.f32.mrf.mxu0
      %v3687 = vadd.f32 %v3347, %v3686
      %v3688 = vpop.f32.mrf.mxu0
      %v3689 = vadd.f32 %v3343, %v3688
      %v3690 = vpop.f32.mrf.mxu0
      %v3691 = vadd.f32 %v3347, %v3690
      %3692 = vmatprep.mubr.bf16.mxu0 %v3273
      %3693 = vmatmul.mubr.bf16.gmra.mxu0 %v3272
      %v3694 = vpop.f32.mrf.mxu0
      %v3695 = vadd.f32 %v3343, %v3694
      %v3696 = vpop.f32.mrf.mxu0
      %v3697 = vadd.f32 %v3347, %v3696
      %v3698 = vpop.f32.mrf.mxu0
      %v3699 = vadd.f32 %v3343, %v3698
      %v3700 = vpop.f32.mrf.mxu0
      %v3701 = vadd.f32 %v3347, %v3700
      %3702 = vmatprep.mubr.bf16.mxu0 %v3275
      %3703 = vmatmul.mubr.bf16.gmra.mxu0 %v3274
      %v3704 = vpop.f32.mrf.mxu0
      %v3705 = vadd.f32 %v3343, %v3704
      %v3706 = vpop.f32.mrf.mxu0
      %v3707 = vadd.f32 %v3347, %v3706
      %v3708 = vpop.f32.mrf.mxu0
      %v3709 = vadd.f32 %v3343, %v3708
      %v3710 = vpop.f32.mrf.mxu0
      %v3711 = vadd.f32 %v3347, %v3710
      %3712 = vmatprep.mubr.bf16.mxu0 %v3277
      %3713 = vmatmul.mubr.bf16.gmra.mxu0 %v3276
      %v3714 = vpop.f32.mrf.mxu0
      %v3715 = vadd.f32 %v3343, %v3714
      %v3716 = vpop.f32.mrf.mxu0
      %v3717 = vadd.f32 %v3347, %v3716
      %v3718 = vpop.f32.mrf.mxu0
      %v3719 = vadd.f32 %v3343, %v3718
      %v3720 = vpop.f32.mrf.mxu0
      %v3721 = vadd.f32 %v3347, %v3720
      %3722 = vmatprep.mubr.bf16.mxu0 %v3279
      %3723 = vmatmul.mubr.bf16.gmra.mxu0 %v3278
      %v3724 = vpop.f32.mrf.mxu0
      %v3725 = vadd.f32 %v3343, %v3724
      %v3726 = vpop.f32.mrf.mxu0
      %v3727 = vadd.f32 %v3347, %v3726
      %v3728 = vpop.f32.mrf.mxu0
      %v3729 = vadd.f32 %v3343, %v3728
      %v3730 = vpop.f32.mrf.mxu0
      %v3731 = vadd.f32 %v3347, %v3730
      %3732 = vmatprep.mubr.bf16.mxu0 %v3281
      %3733 = vmatmul.mubr.bf16.gmra.mxu0 %v3280
      %v3734 = vpop.f32.mrf.mxu0
      %v3735 = vadd.f32 %v3343, %v3734
      %v3736 = vpop.f32.mrf.mxu0
      %v3737 = vadd.f32 %v3347, %v3736
      %v3738 = vpop.f32.mrf.mxu0
      %v3739 = vadd.f32 %v3343, %v3738
      %v3740 = vpop.f32.mrf.mxu0
      %v3741 = vadd.f32 %v3347, %v3740
      %3742 = vmatprep.mubr.bf16.mxu0 %v3283
      %3743 = vmatmul.mubr.bf16.gmra.mxu0 %v3282
      %v3744 = vpop.f32.mrf.mxu0
      %v3745 = vadd.f32 %v3343, %v3744
      %v3746 = vpop.f32.mrf.mxu0
      %v3747 = vadd.f32 %v3347, %v3746
      %v3748 = vpop.f32.mrf.mxu0
      %v3749 = vadd.f32 %v3343, %v3748
      %v3750 = vpop.f32.mrf.mxu0
      %v3751 = vadd.f32 %v3347, %v3750
      %3752 = vmatprep.mubr.bf16.mxu0 %v3285
      %3753 = vmatmul.mubr.bf16.gmra.mxu0 %v3284
      %v3754 = vpop.f32.mrf.mxu0
      %v3755 = vadd.f32 %v3343, %v3754
      %v3756 = vpop.f32.mrf.mxu0
      %v3757 = vadd.f32 %v3347, %v3756
      %v3758 = vpop.f32.mrf.mxu0
      %v3759 = vadd.f32 %v3343, %v3758
      %v3760 = vpop.f32.mrf.mxu0
      %v3761 = vadd.f32 %v3347, %v3760
      %3762 = vmatprep.mubr.bf16.mxu0 %v3287
      %3763 = vmatmul.mubr.bf16.gmra.mxu0 %v3286
      %v3764 = vpop.f32.mrf.mxu0
      %v3765 = vadd.f32 %v3343, %v3764
      %v3766 = vpop.f32.mrf.mxu0
      %v3767 = vadd.f32 %v3347, %v3766
      %v3768 = vpop.f32.mrf.mxu0
      %v3769 = vadd.f32 %v3343, %v3768
      %v3770 = vpop.f32.mrf.mxu0
      %v3771 = vadd.f32 %v3347, %v3770
      %3772 = vmatprep.mubr.bf16.mxu0 %v3289
      %3773 = vmatmul.mubr.bf16.gmra.mxu0 %v3288
      %v3774 = vpop.f32.mrf.mxu0
      %v3775 = vadd.f32 %v3343, %v3774
      %v3776 = vpop.f32.mrf.mxu0
      %v3777 = vadd.f32 %v3347, %v3776
      %v3778 = vpop.f32.mrf.mxu0
      %v3779 = vadd.f32 %v3343, %v3778
      %v3780 = vpop.f32.mrf.mxu0
      %v3781 = vadd.f32 %v3347, %v3780
      %3782 = vmatprep.mubr.bf16.mxu0 %v3291
      %3783 = vmatmul.mubr.bf16.gmra.mxu0 %v3290
      %v3784 = vpop.f32.mrf.mxu0
      %v3785 = vadd.f32 %v3343, %v3784
      %v3786 = vpop.f32.mrf.mxu0
      %v3787 = vadd.f32 %v3347, %v3786
      %v3788 = vpop.f32.mrf.mxu0
      %v3789 = vadd.f32 %v3343, %v3788
      %v3790 = vpop.f32.mrf.mxu0
      %v3791 = vadd.f32 %v3347, %v3790
      %3792 = vmatprep.mubr.bf16.mxu0 %v3293
      %3793 = vmatmul.mubr.bf16.gmra.mxu0 %v3292
      %v3794 = vpop.f32.mrf.mxu0
      %v3795 = vadd.f32 %v3343, %v3794
      %v3796 = vpop.f32.mrf.mxu0
      %v3797 = vadd.f32 %v3347, %v3796
      %v3798 = vpop.f32.mrf.mxu0
      %v3799 = vadd.f32 %v3343, %v3798
      %v3800 = vpop.f32.mrf.mxu0
      %v3801 = vadd.f32 %v3347, %v3800
      %3802 = vmatprep.mubr.bf16.mxu0 %v3295
      %3803 = vmatmul.mubr.bf16.gmra.mxu0 %v3294
      %v3804 = vpop.f32.mrf.mxu0
      %v3805 = vadd.f32 %v3343, %v3804
      %v3806 = vpop.f32.mrf.mxu0
      %v3807 = vadd.f32 %v3347, %v3806
      %v3808 = vpop.f32.mrf.mxu0
      %v3809 = vadd.f32 %v3343, %v3808
      %v3810 = vpop.f32.mrf.mxu0
      %v3811 = vadd.f32 %v3347, %v3810
      %3812 = vmatprep.mubr.bf16.mxu0 %v3297
      %3813 = vmatmul.mubr.bf16.gmra.mxu0 %v3296
      %v3814 = vpop.f32.mrf.mxu0
      %v3815 = vadd.f32 %v3343, %v3814
      %v3816 = vpop.f32.mrf.mxu0
      %v3817 = vadd.f32 %v3347, %v3816
      %v3818 = vpop.f32.mrf.mxu0
      %v3819 = vadd.f32 %v3343, %v3818
      %v3820 = vpop.f32.mrf.mxu0
      %v3821 = vadd.f32 %v3347, %v3820
      %3822 = vmatprep.mubr.bf16.mxu0 %v3299
      %3823 = vmatmul.mubr.bf16.gmra.mxu0 %v3298
      %v3824 = vpop.f32.mrf.mxu0
      %v3825 = vadd.f32 %v3343, %v3824
      %v3826 = vpop.f32.mrf.mxu0
      %v3827 = vadd.f32 %v3347, %v3826
      %v3828 = vpop.f32.mrf.mxu0
      %v3829 = vadd.f32 %v3343, %v3828
      %v3830 = vpop.f32.mrf.mxu0
      %v3831 = vadd.f32 %v3347, %v3830
      %3832 = vmatprep.mubr.bf16.mxu0 %v3301
      %3833 = vmatmul.mubr.bf16.gmra.mxu0 %v3300
      %v3834 = vpop.f32.mrf.mxu0
      %v3835 = vadd.f32 %v3343, %v3834
      %v3836 = vpop.f32.mrf.mxu0
      %v3837 = vadd.f32 %v3347, %v3836
      %v3838 = vpop.f32.mrf.mxu0
      %v3839 = vadd.f32 %v3343, %v3838
      %v3840 = vpop.f32.mrf.mxu0
      %v3841 = vadd.f32 %v3347, %v3840
      %3842 = vmatprep.mubr.bf16.mxu0 %v3303
      %3843 = vmatmul.mubr.bf16.gmra.mxu0 %v3302
      %v3844 = vpop.f32.mrf.mxu0
      %v3845 = vadd.f32 %v3343, %v3844
      %v3846 = vpop.f32.mrf.mxu0
      %v3847 = vadd.f32 %v3347, %v3846
      %v3848 = vpop.f32.mrf.mxu0
      %v3849 = vadd.f32 %v3343, %v3848
      %v3850 = vpop.f32.mrf.mxu0
      %v3851 = vadd.f32 %v3347, %v3850
      %3852 = vmatprep.mubr.bf16.mxu0 %v3305
      %3853 = vmatmul.mubr.bf16.gmra.mxu0 %v3304
      %v3854 = vpop.f32.mrf.mxu0
      %v3855 = vadd.f32 %v3343, %v3854
      %v3856 = vpop.f32.mrf.mxu0
      %v3857 = vadd.f32 %v3347, %v3856
      %v3858 = vpop.f32.mrf.mxu0
      %v3859 = vadd.f32 %v3343, %v3858
      %v3860 = vpop.f32.mrf.mxu0
      %v3861 = vadd.f32 %v3347, %v3860
      %3862 = vdwg.mxu0
      %v3863 = vmax.f32 %v3545, 0.0
      %v3864 = vmax.f32 %v3547, 0.0
      %v3865 = vmax.f32 %v3549, 0.0
      %v3866 = vmax.f32 %v3551, 0.0
      %v3867 = vmax.f32 %v3555, 0.0
      %v3868 = vmax.f32 %v3557, 0.0
      %v3869 = vmax.f32 %v3559, 0.0
      %v3870 = vmax.f32 %v3561, 0.0
      %v3871 = vmax.f32 %v3565, 0.0
      %v3872 = vmax.f32 %v3567, 0.0
      %v3873 = vmax.f32 %v3569, 0.0
      %v3874 = vmax.f32 %v3571, 0.0
      %v3875 = vmax.f32 %v3575, 0.0
      %v3876 = vmax.f32 %v3577, 0.0
      %v3877 = vmax.f32 %v3579, 0.0
      %v3878 = vmax.f32 %v3581, 0.0
      %v3879 = vmax.f32 %v3585, 0.0
      %v3880 = vmax.f32 %v3587, 0.0
      %v3881 = vmax.f32 %v3589, 0.0
      %v3882 = vmax.f32 %v3591, 0.0
      %v3883 = vmax.f32 %v3595, 0.0
      %v3884 = vmax.f32 %v3597, 0.0
      %v3885 = vmax.f32 %v3599, 0.0
      %v3886 = vmax.f32 %v3601, 0.0
      %v3887 = vmax.f32 %v3605, 0.0
      %v3888 = vmax.f32 %v3607, 0.0
      %v3889 = vmax.f32 %v3609, 0.0
      %v3890 = vmax.f32 %v3611, 0.0
      %v3891 = vmax.f32 %v3615, 0.0
      %v3892 = vmax.f32 %v3617, 0.0
      %v3893 = vmax.f32 %v3619, 0.0
      %v3894 = vmax.f32 %v3621, 0.0
      %v3895 = vmax.f32 %v3625, 0.0
      %v3896 = vmax.f32 %v3627, 0.0
      %v3897 = vmax.f32 %v3629, 0.0
      %v3898 = vmax.f32 %v3631, 0.0
      %v3899 = vmax.f32 %v3635, 0.0
      %v3900 = vmax.f32 %v3637, 0.0
      %v3901 = vmax.f32 %v3639, 0.0
      %v3902 = vmax.f32 %v3641, 0.0
      %v3903 = vmax.f32 %v3645, 0.0
      %v3904 = vmax.f32 %v3647, 0.0
      %v3905 = vmax.f32 %v3649, 0.0
      %v3906 = vmax.f32 %v3651, 0.0
      %v3907 = vmax.f32 %v3655, 0.0
      %v3908 = vmax.f32 %v3657, 0.0
      %v3909 = vmax.f32 %v3659, 0.0
      %v3910 = vmax.f32 %v3661, 0.0
      %v3911 = vmax.f32 %v3665, 0.0
      %v3912 = vmax.f32 %v3667, 0.0
      %v3913 = vmax.f32 %v3669, 0.0
      %v3914 = vmax.f32 %v3671, 0.0
      %v3915 = vmax.f32 %v3675, 0.0
      %v3916 = vmax.f32 %v3677, 0.0
      %v3917 = vmax.f32 %v3679, 0.0
      %v3918 = vmax.f32 %v3681, 0.0
      %v3919 = vmax.f32 %v3685, 0.0
      %v3920 = vmax.f32 %v3687, 0.0
      %v3921 = vmax.f32 %v3689, 0.0
      %v3922 = vmax.f32 %v3691, 0.0
      %v3923 = vmax.f32 %v3695, 0.0
      %v3924 = vmax.f32 %v3697, 0.0
      %v3925 = vmax.f32 %v3699, 0.0
      %v3926 = vmax.f32 %v3701, 0.0
      %v3927 = vmax.f32 %v3705, 0.0
      %v3928 = vmax.f32 %v3707, 0.0
      %v3929 = vmax.f32 %v3709, 0.0
      %v3930 = vmax.f32 %v3711, 0.0
      %v3931 = vmax.f32 %v3715, 0.0
      %v3932 = vmax.f32 %v3717, 0.0
      %v3933 = vmax.f32 %v3719, 0.0
      %v3934 = vmax.f32 %v3721, 0.0
      %v3935 = vmax.f32 %v3725, 0.0
      %v3936 = vmax.f32 %v3727, 0.0
      %v3937 = vmax.f32 %v3729, 0.0
      %v3938 = vmax.f32 %v3731, 0.0
      %v3939 = vmax.f32 %v3735, 0.0
      %v3940 = vmax.f32 %v3737, 0.0
      %v3941 = vmax.f32 %v3739, 0.0
      %v3942 = vmax.f32 %v3741, 0.0
      %v3943 = vmax.f32 %v3745, 0.0
      %v3944 = vmax.f32 %v3747, 0.0
      %v3945 = vmax.f32 %v3749, 0.0
      %v3946 = vmax.f32 %v3751, 0.0
      %v3947 = vmax.f32 %v3755, 0.0
      %v3948 = vmax.f32 %v3757, 0.0
      %v3949 = vmax.f32 %v3759, 0.0
      %v3950 = vmax.f32 %v3761, 0.0
      %v3951 = vmax.f32 %v3765, 0.0
      %v3952 = vmax.f32 %v3767, 0.0
      %v3953 = vmax.f32 %v3769, 0.0
      %v3954 = vmax.f32 %v3771, 0.0
      %v3955 = vmax.f32 %v3775, 0.0
      %v3956 = vmax.f32 %v3777, 0.0
      %v3957 = vmax.f32 %v3779, 0.0
      %v3958 = vmax.f32 %v3781, 0.0
      %v3959 = vmax.f32 %v3785, 0.0
      %v3960 = vmax.f32 %v3787, 0.0
      %v3961 = vmax.f32 %v3789, 0.0
      %v3962 = vmax.f32 %v3791, 0.0
      %v3963 = vmax.f32 %v3795, 0.0
      %v3964 = vmax.f32 %v3797, 0.0
      %v3965 = vmax.f32 %v3799, 0.0
      %v3966 = vmax.f32 %v3801, 0.0
      %v3967 = vmax.f32 %v3805, 0.0
      %v3968 = vmax.f32 %v3807, 0.0
      %v3969 = vmax.f32 %v3809, 0.0
      %v3970 = vmax.f32 %v3811, 0.0
      %v3971 = vmax.f32 %v3815, 0.0
      %v3972 = vmax.f32 %v3817, 0.0
      %v3973 = vmax.f32 %v3819, 0.0
      %v3974 = vmax.f32 %v3821, 0.0
      %v3975 = vmax.f32 %v3825, 0.0
      %v3976 = vmax.f32 %v3827, 0.0
      %v3977 = vmax.f32 %v3829, 0.0
      %v3978 = vmax.f32 %v3831, 0.0
      %v3979 = vmax.f32 %v3835, 0.0
      %v3980 = vmax.f32 %v3837, 0.0
      %v3981 = vmax.f32 %v3839, 0.0
      %v3982 = vmax.f32 %v3841, 0.0
      %v3983 = vmax.f32 %v3845, 0.0
      %v3984 = vmax.f32 %v3847, 0.0
      %v3985 = vmax.f32 %v3849, 0.0
      %v3986 = vmax.f32 %v3851, 0.0
      %v3987 = vmax.f32 %v3855, 0.0
      %v3988 = vmax.f32 %v3857, 0.0
      %v3989 = vmax.f32 %v3859, 0.0
      %v3990 = vmax.f32 %v3861, 0.0
      %v3991 = vpack.c.bf16 %v3865, %v3863
      %v3992 = vpack.c.bf16 %v3866, %v3864
      %v3993 = vpack.c.bf16 %v3869, %v3867
      %v3994 = vpack.c.bf16 %v3870, %v3868
      %v3995 = vpack.c.bf16 %v3873, %v3871
      %v3996 = vpack.c.bf16 %v3874, %v3872
      %v3997 = vpack.c.bf16 %v3877, %v3875
      %v3998 = vpack.c.bf16 %v3878, %v3876
      %v3999 = vpack.c.bf16 %v3881, %v3879
      %v4000 = vpack.c.bf16 %v3882, %v3880
      %v4001 = vpack.c.bf16 %v3885, %v3883
      %v4002 = vpack.c.bf16 %v3886, %v3884
      %v4003 = vpack.c.bf16 %v3889, %v3887
      %v4004 = vpack.c.bf16 %v3890, %v3888
      %v4005 = vpack.c.bf16 %v3893, %v3891
      %v4006 = vpack.c.bf16 %v3894, %v3892
      %v4007 = vpack.c.bf16 %v3897, %v3895
      %v4008 = vpack.c.bf16 %v3898, %v3896
      %v4009 = vpack.c.bf16 %v3901, %v3899
      %v4010 = vpack.c.bf16 %v3902, %v3900
      %v4011 = vpack.c.bf16 %v3905, %v3903
      %v4012 = vpack.c.bf16 %v3906, %v3904
      %v4013 = vpack.c.bf16 %v3909, %v3907
      %v4014 = vpack.c.bf16 %v3910, %v3908
      %v4015 = vpack.c.bf16 %v3913, %v3911
      %v4016 = vpack.c.bf16 %v3914, %v3912
      %v4017 = vpack.c.bf16 %v3917, %v3915
      %v4018 = vpack.c.bf16 %v3918, %v3916
      %v4019 = vpack.c.bf16 %v3921, %v3919
      %v4020 = vpack.c.bf16 %v3922, %v3920
      %v4021 = vpack.c.bf16 %v3925, %v3923
      %v4022 = vpack.c.bf16 %v3926, %v3924
      %v4023 = vpack.c.bf16 %v3929, %v3927
      %v4024 = vpack.c.bf16 %v3930, %v3928
      %v4025 = vpack.c.bf16 %v3933, %v3931
      %v4026 = vpack.c.bf16 %v3934, %v3932
      %v4027 = vpack.c.bf16 %v3937, %v3935
      %v4028 = vpack.c.bf16 %v3938, %v3936
      %v4029 = vpack.c.bf16 %v3941, %v3939
      %v4030 = vpack.c.bf16 %v3942, %v3940
      %v4031 = vpack.c.bf16 %v3945, %v3943
      %v4032 = vpack.c.bf16 %v3946, %v3944
      %v4033 = vpack.c.bf16 %v3949, %v3947
      %v4034 = vpack.c.bf16 %v3950, %v3948
      %v4035 = vpack.c.bf16 %v3953, %v3951
      %v4036 = vpack.c.bf16 %v3954, %v3952
      %v4037 = vpack.c.bf16 %v3957, %v3955
      %v4038 = vpack.c.bf16 %v3958, %v3956
      %v4039 = vpack.c.bf16 %v3961, %v3959
      %v4040 = vpack.c.bf16 %v3962, %v3960
      %v4041 = vpack.c.bf16 %v3965, %v3963
      %v4042 = vpack.c.bf16 %v3966, %v3964
      %v4043 = vpack.c.bf16 %v3969, %v3967
      %v4044 = vpack.c.bf16 %v3970, %v3968
      %v4045 = vpack.c.bf16 %v3973, %v3971
      %v4046 = vpack.c.bf16 %v3974, %v3972
      %v4047 = vpack.c.bf16 %v3977, %v3975
      %v4048 = vpack.c.bf16 %v3978, %v3976
      %v4049 = vpack.c.bf16 %v3981, %v3979
      %v4050 = vpack.c.bf16 %v3982, %v3980
      %v4051 = vpack.c.bf16 %v3985, %v3983
      %v4052 = vpack.c.bf16 %v3986, %v3984
      %v4053 = vpack.c.bf16 %v3989, %v3987
      %v4054 = vpack.c.bf16 %v3990, %v3988
      %v4055 = vld [vmem:[%s10] sm:$0xff]
      %v4056 = vld [vmem:[%s10 + $0x8] sm:$0xff]
      %v4057 = vld [vmem:[%s10 + $0x10] sm:$0xff]
      %v4058 = vld [vmem:[%s10 + $0x18] sm:$0xff]
      %v4059 = vld [vmem:[%s10 + $0x20] sm:$0xff]
      %v4060 = vld [vmem:[%s10 + $0x28] sm:$0xff]
      %v4061 = vld [vmem:[%s10 + $0x30] sm:$0xff]
      %v4062 = vld [vmem:[%s10 + $0x38] sm:$0xff]
      %v4063 = vld [vmem:[%s10 + $0x40] sm:$0xff]
      %v4064 = vld [vmem:[%s10 + $0x48] sm:$0xff]
      %v4065 = vld [vmem:[%s10 + $0x50] sm:$0xff]
      %v4066 = vld [vmem:[%s10 + $0x58] sm:$0xff]
      %v4067 = vld [vmem:[%s10 + $0x60] sm:$0xff]
      %v4068 = vld [vmem:[%s10 + $0x68] sm:$0xff]
      %v4069 = vld [vmem:[%s10 + $0x70] sm:$0xff]
      %v4070 = vld [vmem:[%s10 + $0x78] sm:$0xff]
      %v4071 = vld [vmem:[%s10 + $0x80] sm:$0xff]
      %v4072 = vld [vmem:[%s10 + $0x88] sm:$0xff]
      %v4073 = vld [vmem:[%s10 + $0x90] sm:$0xff]
      %v4074 = vld [vmem:[%s10 + $0x98] sm:$0xff]
      %v4075 = vld [vmem:[%s10 + $0xa0] sm:$0xff]
      %v4076 = vld [vmem:[%s10 + $0xa8] sm:$0xff]
      %v4077 = vld [vmem:[%s10 + $0xb0] sm:$0xff]
      %v4078 = vld [vmem:[%s10 + $0xb8] sm:$0xff]
      %v4079 = vld [vmem:[%s10 + $0xc0] sm:$0xff]
      %v4080 = vld [vmem:[%s10 + $0xc8] sm:$0xff]
      %v4081 = vld [vmem:[%s10 + $0xd0] sm:$0xff]
      %v4082 = vld [vmem:[%s10 + $0xd8] sm:$0xff]
      %v4083 = vld [vmem:[%s10 + $0xe0] sm:$0xff]
      %v4084 = vld [vmem:[%s10 + $0xe8] sm:$0xff]
      %v4085 = vld [vmem:[%s10 + $0xf0] sm:$0xff]
      %v4086 = vld [vmem:[%s10 + $0xf8] sm:$0xff]
      %v4087 = vld [vmem:[%s11] sm:$0x3]
      %v4089 = vlaneseq
      %v4090 = vshrl.u32 %v4089, 7
      %v4091 = vsub.s32 0, %v4090
      %v4092 = vrot.slane %v4087, %v4091
      %v4093 = vlaneseq
      %v4094 = vshrl.u32 %v4093, 7
      %v4095 = vsub.s32 1, %v4094
      %v4096 = vrot.slane %v4087, %v4095
      %v4131 = vunpack.c.l.b16 %v4055
      %v4132 = vunpack.c.h.b16 %v4055
      %v4133 = vunpack.c.l.b16 %v4056
      %v4134 = vunpack.c.h.b16 %v4056
      %v4135 = vunpack.c.l.b16 %v4057
      %v4136 = vunpack.c.h.b16 %v4057
      %v4137 = vunpack.c.l.b16 %v4058
      %v4138 = vunpack.c.h.b16 %v4058
      %v4139 = vunpack.c.l.b16 %v4059
      %v4140 = vunpack.c.h.b16 %v4059
      %v4141 = vunpack.c.l.b16 %v4060
      %v4142 = vunpack.c.h.b16 %v4060
      %v4143 = vunpack.c.l.b16 %v4061
      %v4144 = vunpack.c.h.b16 %v4061
      %v4145 = vunpack.c.l.b16 %v4062
      %v4146 = vunpack.c.h.b16 %v4062
      %v4147 = vunpack.c.l.b16 %v4063
      %v4148 = vunpack.c.h.b16 %v4063
      %v4149 = vunpack.c.l.b16 %v4064
      %v4150 = vunpack.c.h.b16 %v4064
      %v4151 = vunpack.c.l.b16 %v4065
      %v4152 = vunpack.c.h.b16 %v4065
      %v4153 = vunpack.c.l.b16 %v4066
      %v4154 = vunpack.c.h.b16 %v4066
      %v4155 = vunpack.c.l.b16 %v4067
      %v4156 = vunpack.c.h.b16 %v4067
      %v4157 = vunpack.c.l.b16 %v4068
      %v4158 = vunpack.c.h.b16 %v4068
      %v4159 = vunpack.c.l.b16 %v4069
      %v4160 = vunpack.c.h.b16 %v4069
      %v4161 = vunpack.c.l.b16 %v4070
      %v4162 = vunpack.c.h.b16 %v4070
      %v4163 = vunpack.c.l.b16 %v4071
      %v4164 = vunpack.c.h.b16 %v4071
      %v4165 = vunpack.c.l.b16 %v4072
      %v4166 = vunpack.c.h.b16 %v4072
      %v4167 = vunpack.c.l.b16 %v4073
      %v4168 = vunpack.c.h.b16 %v4073
      %v4169 = vunpack.c.l.b16 %v4074
      %v4170 = vunpack.c.h.b16 %v4074
      %v4171 = vunpack.c.l.b16 %v4075
      %v4172 = vunpack.c.h.b16 %v4075
      %v4173 = vunpack.c.l.b16 %v4076
      %v4174 = vunpack.c.h.b16 %v4076
      %v4175 = vunpack.c.l.b16 %v4077
      %v4176 = vunpack.c.h.b16 %v4077
      %v4177 = vunpack.c.l.b16 %v4078
      %v4178 = vunpack.c.h.b16 %v4078
      %v4179 = vunpack.c.l.b16 %v4079
      %v4180 = vunpack.c.h.b16 %v4079
      %v4181 = vunpack.c.l.b16 %v4080
      %v4182 = vunpack.c.h.b16 %v4080
      %v4183 = vunpack.c.l.b16 %v4081
      %v4184 = vunpack.c.h.b16 %v4081
      %v4185 = vunpack.c.l.b16 %v4082
      %v4186 = vunpack.c.h.b16 %v4082
      %v4187 = vunpack.c.l.b16 %v4083
      %v4188 = vunpack.c.h.b16 %v4083
      %v4189 = vunpack.c.l.b16 %v4084
      %v4190 = vunpack.c.h.b16 %v4084
      %v4191 = vunpack.c.l.b16 %v4085
      %v4192 = vunpack.c.h.b16 %v4085
      %v4193 = vunpack.c.l.b16 %v4086
      %v4194 = vunpack.c.h.b16 %v4086
      %v4195 = vpack.c.b16 %v4133, %v4131
      %v4196 = vpack.c.b16 %v4134, %v4132
      %v4197 = vpack.c.b16 %v4137, %v4135
      %v4198 = vpack.c.b16 %v4138, %v4136
      %v4199 = vpack.c.b16 %v4141, %v4139
      %v4200 = vpack.c.b16 %v4142, %v4140
      %v4201 = vpack.c.b16 %v4145, %v4143
      %v4202 = vpack.c.b16 %v4146, %v4144
      %v4203 = vpack.c.b16 %v4149, %v4147
      %v4204 = vpack.c.b16 %v4150, %v4148
      %v4205 = vpack.c.b16 %v4153, %v4151
      %v4206 = vpack.c.b16 %v4154, %v4152
      %v4207 = vpack.c.b16 %v4157, %v4155
      %v4208 = vpack.c.b16 %v4158, %v4156
      %v4209 = vpack.c.b16 %v4161, %v4159
      %v4210 = vpack.c.b16 %v4162, %v4160
      %v4211 = vpack.c.b16 %v4165, %v4163
      %v4212 = vpack.c.b16 %v4166, %v4164
      %v4213 = vpack.c.b16 %v4169, %v4167
      %v4214 = vpack.c.b16 %v4170, %v4168
      %v4215 = vpack.c.b16 %v4173, %v4171
      %v4216 = vpack.c.b16 %v4174, %v4172
      %v4217 = vpack.c.b16 %v4177, %v4175
      %v4218 = vpack.c.b16 %v4178, %v4176
      %v4219 = vpack.c.b16 %v4181, %v4179
      %v4220 = vpack.c.b16 %v4182, %v4180
      %v4221 = vpack.c.b16 %v4185, %v4183
      %v4222 = vpack.c.b16 %v4186, %v4184
      %v4223 = vpack.c.b16 %v4189, %v4187
      %v4224 = vpack.c.b16 %v4190, %v4188
      %v4225 = vpack.c.b16 %v4193, %v4191
      %v4226 = vpack.c.b16 %v4194, %v4192
      %4259 = vmatprep.subr.bf16.mxu0 %v4210
      %4260 = vmatpush1.bf16.msra.mxu0 %v4209
      %4261 = vmatprep.subr.bf16.mxu0 %v4208
      %4262 = vmatpush1.bf16.msra.mxu0 %v4207
      %4263 = vmatprep.subr.bf16.mxu0 %v4206
      %4264 = vmatpush1.bf16.msra.mxu0 %v4205
      %4265 = vmatprep.subr.bf16.mxu0 %v4204
      %4266 = vmatpush1.bf16.msra.mxu0 %v4203
      %4267 = vmatprep.subr.bf16.mxu0 %v4202
      %4268 = vmatpush1.bf16.msra.mxu0 %v4201
      %4269 = vmatprep.subr.bf16.mxu0 %v4200
      %4270 = vmatpush1.bf16.msra.mxu0 %v4199
      %4271 = vmatprep.subr.bf16.mxu0 %v4198
      %4272 = vmatpush1.bf16.msra.mxu0 %v4197
      %4273 = vmatprep.subr.bf16.mxu0 %v4196
      %4274 = vmatpush1.bf16.msra.mxu0 %v4195
      %4275 = vmatprep.subr.bf16.mxu0 %v4226
      %4276 = vmatpush2.bf16.msra.mxu0 %v4225
      %4277 = vmatprep.subr.bf16.mxu0 %v4224
      %4278 = vmatpush2.bf16.msra.mxu0 %v4223
      %4279 = vmatprep.subr.bf16.mxu0 %v4222
      %4280 = vmatpush2.bf16.msra.mxu0 %v4221
      %4281 = vmatprep.subr.bf16.mxu0 %v4220
      %4282 = vmatpush2.bf16.msra.mxu0 %v4219
      %4283 = vmatprep.subr.bf16.mxu0 %v4218
      %4284 = vmatpush2.bf16.msra.mxu0 %v4217
      %4285 = vmatprep.subr.bf16.mxu0 %v4216
      %4286 = vmatpush2.bf16.msra.mxu0 %v4215
      %4287 = vmatprep.subr.bf16.mxu0 %v4214
      %4288 = vmatpush2.bf16.msra.mxu0 %v4213
      %4289 = vmatprep.subr.bf16.mxu0 %v4212
      %4290 = vmatpush2.bf16.msra.mxu0 %v4211
      %4291 = vmatprep.mubr.bf16.mxu0 %v3992
      %4292 = vmatmul.mubr.bf16.gmra.mxu0 %v3991
      %v4293 = vpop.f32.mrf.mxu0
      %v4294 = vadd.f32 %v4092, %v4293
      %v4295 = vpop.f32.mrf.mxu0
      %v4296 = vadd.f32 %v4096, %v4295
      %v4297 = vpop.f32.mrf.mxu0
      %v4298 = vadd.f32 %v4092, %v4297
      %v4299 = vpop.f32.mrf.mxu0
      %v4300 = vadd.f32 %v4096, %v4299
      %4301 = vmatprep.mubr.bf16.mxu0 %v3994
      %4302 = vmatmul.mubr.bf16.gmra.mxu0 %v3993
      %v4303 = vpop.f32.mrf.mxu0
      %v4304 = vadd.f32 %v4092, %v4303
      %v4305 = vpop.f32.mrf.mxu0
      %v4306 = vadd.f32 %v4096, %v4305
      %v4307 = vpop.f32.mrf.mxu0
      %v4308 = vadd.f32 %v4092, %v4307
      %v4309 = vpop.f32.mrf.mxu0
      %v4310 = vadd.f32 %v4096, %v4309
      %4311 = vmatprep.mubr.bf16.mxu0 %v3996
      %4312 = vmatmul.mubr.bf16.gmra.mxu0 %v3995
      %v4313 = vpop.f32.mrf.mxu0
      %v4314 = vadd.f32 %v4092, %v4313
      %v4315 = vpop.f32.mrf.mxu0
      %v4316 = vadd.f32 %v4096, %v4315
      %v4317 = vpop.f32.mrf.mxu0
      %v4318 = vadd.f32 %v4092, %v4317
      %v4319 = vpop.f32.mrf.mxu0
      %v4320 = vadd.f32 %v4096, %v4319
      %4321 = vmatprep.mubr.bf16.mxu0 %v3998
      %4322 = vmatmul.mubr.bf16.gmra.mxu0 %v3997
      %v4323 = vpop.f32.mrf.mxu0
      %v4324 = vadd.f32 %v4092, %v4323
      %v4325 = vpop.f32.mrf.mxu0
      %v4326 = vadd.f32 %v4096, %v4325
      %v4327 = vpop.f32.mrf.mxu0
      %v4328 = vadd.f32 %v4092, %v4327
      %v4329 = vpop.f32.mrf.mxu0
      %v4330 = vadd.f32 %v4096, %v4329
      %4331 = vmatprep.mubr.bf16.mxu0 %v4000
      %4332 = vmatmul.mubr.bf16.gmra.mxu0 %v3999
      %v4333 = vpop.f32.mrf.mxu0
      %v4334 = vadd.f32 %v4092, %v4333
      %v4335 = vpop.f32.mrf.mxu0
      %v4336 = vadd.f32 %v4096, %v4335
      %v4337 = vpop.f32.mrf.mxu0
      %v4338 = vadd.f32 %v4092, %v4337
      %v4339 = vpop.f32.mrf.mxu0
      %v4340 = vadd.f32 %v4096, %v4339
      %4341 = vmatprep.mubr.bf16.mxu0 %v4002
      %4342 = vmatmul.mubr.bf16.gmra.mxu0 %v4001
      %v4343 = vpop.f32.mrf.mxu0
      %v4344 = vadd.f32 %v4092, %v4343
      %v4345 = vpop.f32.mrf.mxu0
      %v4346 = vadd.f32 %v4096, %v4345
      %v4347 = vpop.f32.mrf.mxu0
      %v4348 = vadd.f32 %v4092, %v4347
      %v4349 = vpop.f32.mrf.mxu0
      %v4350 = vadd.f32 %v4096, %v4349
      %4351 = vmatprep.mubr.bf16.mxu0 %v4004
      %4352 = vmatmul.mubr.bf16.gmra.mxu0 %v4003
      %v4353 = vpop.f32.mrf.mxu0
      %v4354 = vadd.f32 %v4092, %v4353
      %v4355 = vpop.f32.mrf.mxu0
      %v4356 = vadd.f32 %v4096, %v4355
      %v4357 = vpop.f32.mrf.mxu0
      %v4358 = vadd.f32 %v4092, %v4357
      %v4359 = vpop.f32.mrf.mxu0
      %v4360 = vadd.f32 %v4096, %v4359
      %4361 = vmatprep.mubr.bf16.mxu0 %v4006
      %4362 = vmatmul.mubr.bf16.gmra.mxu0 %v4005
      %v4363 = vpop.f32.mrf.mxu0
      %v4364 = vadd.f32 %v4092, %v4363
      %v4365 = vpop.f32.mrf.mxu0
      %v4366 = vadd.f32 %v4096, %v4365
      %v4367 = vpop.f32.mrf.mxu0
      %v4368 = vadd.f32 %v4092, %v4367
      %v4369 = vpop.f32.mrf.mxu0
      %v4370 = vadd.f32 %v4096, %v4369
      %4371 = vmatprep.mubr.bf16.mxu0 %v4008
      %4372 = vmatmul.mubr.bf16.gmra.mxu0 %v4007
      %v4373 = vpop.f32.mrf.mxu0
      %v4374 = vadd.f32 %v4092, %v4373
      %v4375 = vpop.f32.mrf.mxu0
      %v4376 = vadd.f32 %v4096, %v4375
      %v4377 = vpop.f32.mrf.mxu0
      %v4378 = vadd.f32 %v4092, %v4377
      %v4379 = vpop.f32.mrf.mxu0
      %v4380 = vadd.f32 %v4096, %v4379
      %4381 = vmatprep.mubr.bf16.mxu0 %v4010
      %4382 = vmatmul.mubr.bf16.gmra.mxu0 %v4009
      %v4383 = vpop.f32.mrf.mxu0
      %v4384 = vadd.f32 %v4092, %v4383
      %v4385 = vpop.f32.mrf.mxu0
      %v4386 = vadd.f32 %v4096, %v4385
      %v4387 = vpop.f32.mrf.mxu0
      %v4388 = vadd.f32 %v4092, %v4387
      %v4389 = vpop.f32.mrf.mxu0
      %v4390 = vadd.f32 %v4096, %v4389
      %4391 = vmatprep.mubr.bf16.mxu0 %v4012
      %4392 = vmatmul.mubr.bf16.gmra.mxu0 %v4011
      %v4393 = vpop.f32.mrf.mxu0
      %v4394 = vadd.f32 %v4092, %v4393
      %v4395 = vpop.f32.mrf.mxu0
      %v4396 = vadd.f32 %v4096, %v4395
      %v4397 = vpop.f32.mrf.mxu0
      %v4398 = vadd.f32 %v4092, %v4397
      %v4399 = vpop.f32.mrf.mxu0
      %v4400 = vadd.f32 %v4096, %v4399
      %4401 = vmatprep.mubr.bf16.mxu0 %v4014
      %4402 = vmatmul.mubr.bf16.gmra.mxu0 %v4013
      %v4403 = vpop.f32.mrf.mxu0
      %v4404 = vadd.f32 %v4092, %v4403
      %v4405 = vpop.f32.mrf.mxu0
      %v4406 = vadd.f32 %v4096, %v4405
      %v4407 = vpop.f32.mrf.mxu0
      %v4408 = vadd.f32 %v4092, %v4407
      %v4409 = vpop.f32.mrf.mxu0
      %v4410 = vadd.f32 %v4096, %v4409
      %4411 = vmatprep.mubr.bf16.mxu0 %v4016
      %4412 = vmatmul.mubr.bf16.gmra.mxu0 %v4015
      %v4413 = vpop.f32.mrf.mxu0
      %v4414 = vadd.f32 %v4092, %v4413
      %v4415 = vpop.f32.mrf.mxu0
      %v4416 = vadd.f32 %v4096, %v4415
      %v4417 = vpop.f32.mrf.mxu0
      %v4418 = vadd.f32 %v4092, %v4417
      %v4419 = vpop.f32.mrf.mxu0
      %v4420 = vadd.f32 %v4096, %v4419
      %4421 = vmatprep.mubr.bf16.mxu0 %v4018
      %4422 = vmatmul.mubr.bf16.gmra.mxu0 %v4017
      %v4423 = vpop.f32.mrf.mxu0
      %v4424 = vadd.f32 %v4092, %v4423
      %v4425 = vpop.f32.mrf.mxu0
      %v4426 = vadd.f32 %v4096, %v4425
      %v4427 = vpop.f32.mrf.mxu0
      %v4428 = vadd.f32 %v4092, %v4427
      %v4429 = vpop.f32.mrf.mxu0
      %v4430 = vadd.f32 %v4096, %v4429
      %4431 = vmatprep.mubr.bf16.mxu0 %v4020
      %4432 = vmatmul.mubr.bf16.gmra.mxu0 %v4019
      %v4433 = vpop.f32.mrf.mxu0
      %v4434 = vadd.f32 %v4092, %v4433
      %v4435 = vpop.f32.mrf.mxu0
      %v4436 = vadd.f32 %v4096, %v4435
      %v4437 = vpop.f32.mrf.mxu0
      %v4438 = vadd.f32 %v4092, %v4437
      %v4439 = vpop.f32.mrf.mxu0
      %v4440 = vadd.f32 %v4096, %v4439
      %4441 = vmatprep.mubr.bf16.mxu0 %v4022
      %4442 = vmatmul.mubr.bf16.gmra.mxu0 %v4021
      %v4443 = vpop.f32.mrf.mxu0
      %v4444 = vadd.f32 %v4092, %v4443
      %v4445 = vpop.f32.mrf.mxu0
      %v4446 = vadd.f32 %v4096, %v4445
      %v4447 = vpop.f32.mrf.mxu0
      %v4448 = vadd.f32 %v4092, %v4447
      %v4449 = vpop.f32.mrf.mxu0
      %v4450 = vadd.f32 %v4096, %v4449
      %4451 = vmatprep.mubr.bf16.mxu0 %v4024
      %4452 = vmatmul.mubr.bf16.gmra.mxu0 %v4023
      %v4453 = vpop.f32.mrf.mxu0
      %v4454 = vadd.f32 %v4092, %v4453
      %v4455 = vpop.f32.mrf.mxu0
      %v4456 = vadd.f32 %v4096, %v4455
      %v4457 = vpop.f32.mrf.mxu0
      %v4458 = vadd.f32 %v4092, %v4457
      %v4459 = vpop.f32.mrf.mxu0
      %v4460 = vadd.f32 %v4096, %v4459
      %4461 = vmatprep.mubr.bf16.mxu0 %v4026
      %4462 = vmatmul.mubr.bf16.gmra.mxu0 %v4025
      %v4463 = vpop.f32.mrf.mxu0
      %v4464 = vadd.f32 %v4092, %v4463
      %v4465 = vpop.f32.mrf.mxu0
      %v4466 = vadd.f32 %v4096, %v4465
      %v4467 = vpop.f32.mrf.mxu0
      %v4468 = vadd.f32 %v4092, %v4467
      %v4469 = vpop.f32.mrf.mxu0
      %v4470 = vadd.f32 %v4096, %v4469
      %4471 = vmatprep.mubr.bf16.mxu0 %v4028
      %4472 = vmatmul.mubr.bf16.gmra.mxu0 %v4027
      %v4473 = vpop.f32.mrf.mxu0
      %v4474 = vadd.f32 %v4092, %v4473
      %v4475 = vpop.f32.mrf.mxu0
      %v4476 = vadd.f32 %v4096, %v4475
      %v4477 = vpop.f32.mrf.mxu0
      %v4478 = vadd.f32 %v4092, %v4477
      %v4479 = vpop.f32.mrf.mxu0
      %v4480 = vadd.f32 %v4096, %v4479
      %4481 = vmatprep.mubr.bf16.mxu0 %v4030
      %4482 = vmatmul.mubr.bf16.gmra.mxu0 %v4029
      %v4483 = vpop.f32.mrf.mxu0
      %v4484 = vadd.f32 %v4092, %v4483
      %v4485 = vpop.f32.mrf.mxu0
      %v4486 = vadd.f32 %v4096, %v4485
      %v4487 = vpop.f32.mrf.mxu0
      %v4488 = vadd.f32 %v4092, %v4487
      %v4489 = vpop.f32.mrf.mxu0
      %v4490 = vadd.f32 %v4096, %v4489
      %4491 = vmatprep.mubr.bf16.mxu0 %v4032
      %4492 = vmatmul.mubr.bf16.gmra.mxu0 %v4031
      %v4493 = vpop.f32.mrf.mxu0
      %v4494 = vadd.f32 %v4092, %v4493
      %v4495 = vpop.f32.mrf.mxu0
      %v4496 = vadd.f32 %v4096, %v4495
      %v4497 = vpop.f32.mrf.mxu0
      %v4498 = vadd.f32 %v4092, %v4497
      %v4499 = vpop.f32.mrf.mxu0
      %v4500 = vadd.f32 %v4096, %v4499
      %4501 = vmatprep.mubr.bf16.mxu0 %v4034
      %4502 = vmatmul.mubr.bf16.gmra.mxu0 %v4033
      %v4503 = vpop.f32.mrf.mxu0
      %v4504 = vadd.f32 %v4092, %v4503
      %v4505 = vpop.f32.mrf.mxu0
      %v4506 = vadd.f32 %v4096, %v4505
      %v4507 = vpop.f32.mrf.mxu0
      %v4508 = vadd.f32 %v4092, %v4507
      %v4509 = vpop.f32.mrf.mxu0
      %v4510 = vadd.f32 %v4096, %v4509
      %4511 = vmatprep.mubr.bf16.mxu0 %v4036
      %4512 = vmatmul.mubr.bf16.gmra.mxu0 %v4035
      %v4513 = vpop.f32.mrf.mxu0
      %v4514 = vadd.f32 %v4092, %v4513
      %v4515 = vpop.f32.mrf.mxu0
      %v4516 = vadd.f32 %v4096, %v4515
      %v4517 = vpop.f32.mrf.mxu0
      %v4518 = vadd.f32 %v4092, %v4517
      %v4519 = vpop.f32.mrf.mxu0
      %v4520 = vadd.f32 %v4096, %v4519
      %4521 = vmatprep.mubr.bf16.mxu0 %v4038
      %4522 = vmatmul.mubr.bf16.gmra.mxu0 %v4037
      %v4523 = vpop.f32.mrf.mxu0
      %v4524 = vadd.f32 %v4092, %v4523
      %v4525 = vpop.f32.mrf.mxu0
      %v4526 = vadd.f32 %v4096, %v4525
      %v4527 = vpop.f32.mrf.mxu0
      %v4528 = vadd.f32 %v4092, %v4527
      %v4529 = vpop.f32.mrf.mxu0
      %v4530 = vadd.f32 %v4096, %v4529
      %4531 = vmatprep.mubr.bf16.mxu0 %v4040
      %4532 = vmatmul.mubr.bf16.gmra.mxu0 %v4039
      %v4533 = vpop.f32.mrf.mxu0
      %v4534 = vadd.f32 %v4092, %v4533
      %v4535 = vpop.f32.mrf.mxu0
      %v4536 = vadd.f32 %v4096, %v4535
      %v4537 = vpop.f32.mrf.mxu0
      %v4538 = vadd.f32 %v4092, %v4537
      %v4539 = vpop.f32.mrf.mxu0
      %v4540 = vadd.f32 %v4096, %v4539
      %4541 = vmatprep.mubr.bf16.mxu0 %v4042
      %4542 = vmatmul.mubr.bf16.gmra.mxu0 %v4041
      %v4543 = vpop.f32.mrf.mxu0
      %v4544 = vadd.f32 %v4092, %v4543
      %v4545 = vpop.f32.mrf.mxu0
      %v4546 = vadd.f32 %v4096, %v4545
      %v4547 = vpop.f32.mrf.mxu0
      %v4548 = vadd.f32 %v4092, %v4547
      %v4549 = vpop.f32.mrf.mxu0
      %v4550 = vadd.f32 %v4096, %v4549
      %4551 = vmatprep.mubr.bf16.mxu0 %v4044
      %4552 = vmatmul.mubr.bf16.gmra.mxu0 %v4043
      %v4553 = vpop.f32.mrf.mxu0
      %v4554 = vadd.f32 %v4092, %v4553
      %v4555 = vpop.f32.mrf.mxu0
      %v4556 = vadd.f32 %v4096, %v4555
      %v4557 = vpop.f32.mrf.mxu0
      %v4558 = vadd.f32 %v4092, %v4557
      %v4559 = vpop.f32.mrf.mxu0
      %v4560 = vadd.f32 %v4096, %v4559
      %4561 = vmatprep.mubr.bf16.mxu0 %v4046
      %4562 = vmatmul.mubr.bf16.gmra.mxu0 %v4045
      %v4563 = vpop.f32.mrf.mxu0
      %v4564 = vadd.f32 %v4092, %v4563
      %v4565 = vpop.f32.mrf.mxu0
      %v4566 = vadd.f32 %v4096, %v4565
      %v4567 = vpop.f32.mrf.mxu0
      %v4568 = vadd.f32 %v4092, %v4567
      %v4569 = vpop.f32.mrf.mxu0
      %v4570 = vadd.f32 %v4096, %v4569
      %4571 = vmatprep.mubr.bf16.mxu0 %v4048
      %4572 = vmatmul.mubr.bf16.gmra.mxu0 %v4047
      %v4573 = vpop.f32.mrf.mxu0
      %v4574 = vadd.f32 %v4092, %v4573
      %v4575 = vpop.f32.mrf.mxu0
      %v4576 = vadd.f32 %v4096, %v4575
      %v4577 = vpop.f32.mrf.mxu0
      %v4578 = vadd.f32 %v4092, %v4577
      %v4579 = vpop.f32.mrf.mxu0
      %v4580 = vadd.f32 %v4096, %v4579
      %4581 = vmatprep.mubr.bf16.mxu0 %v4050
      %4582 = vmatmul.mubr.bf16.gmra.mxu0 %v4049
      %v4583 = vpop.f32.mrf.mxu0
      %v4584 = vadd.f32 %v4092, %v4583
      %v4585 = vpop.f32.mrf.mxu0
      %v4586 = vadd.f32 %v4096, %v4585
      %v4587 = vpop.f32.mrf.mxu0
      %v4588 = vadd.f32 %v4092, %v4587
      %v4589 = vpop.f32.mrf.mxu0
      %v4590 = vadd.f32 %v4096, %v4589
      %4591 = vmatprep.mubr.bf16.mxu0 %v4052
      %4592 = vmatmul.mubr.bf16.gmra.mxu0 %v4051
      %v4593 = vpop.f32.mrf.mxu0
      %v4594 = vadd.f32 %v4092, %v4593
      %v4595 = vpop.f32.mrf.mxu0
      %v4596 = vadd.f32 %v4096, %v4595
      %v4597 = vpop.f32.mrf.mxu0
      %v4598 = vadd.f32 %v4092, %v4597
      %v4599 = vpop.f32.mrf.mxu0
      %v4600 = vadd.f32 %v4096, %v4599
      %4601 = vmatprep.mubr.bf16.mxu0 %v4054
      %4602 = vmatmul.mubr.bf16.gmra.mxu0 %v4053
      %v4603 = vpop.f32.mrf.mxu0
      %v4604 = vadd.f32 %v4092, %v4603
      %v4605 = vpop.f32.mrf.mxu0
      %v4606 = vadd.f32 %v4096, %v4605
      %v4607 = vpop.f32.mrf.mxu0
      %v4608 = vadd.f32 %v4092, %v4607
      %v4609 = vpop.f32.mrf.mxu0
      %v4610 = vadd.f32 %v4096, %v4609
      %4611 = vdwg.mxu0
      %v4612 = vmax.f32 %v4294, 0.0
      %v4613 = vmax.f32 %v4296, 0.0
      %v4614 = vmax.f32 %v4298, 0.0
      %v4615 = vmax.f32 %v4300, 0.0
      %v4616 = vmax.f32 %v4304, 0.0
      %v4617 = vmax.f32 %v4306, 0.0
      %v4618 = vmax.f32 %v4308, 0.0
      %v4619 = vmax.f32 %v4310, 0.0
      %v4620 = vmax.f32 %v4314, 0.0
      %v4621 = vmax.f32 %v4316, 0.0
      %v4622 = vmax.f32 %v4318, 0.0
      %v4623 = vmax.f32 %v4320, 0.0
      %v4624 = vmax.f32 %v4324, 0.0
      %v4625 = vmax.f32 %v4326, 0.0
      %v4626 = vmax.f32 %v4328, 0.0
      %v4627 = vmax.f32 %v4330, 0.0
      %v4628 = vmax.f32 %v4334, 0.0
      %v4629 = vmax.f32 %v4336, 0.0
      %v4630 = vmax.f32 %v4338, 0.0
      %v4631 = vmax.f32 %v4340, 0.0
      %v4632 = vmax.f32 %v4344, 0.0
      %v4633 = vmax.f32 %v4346, 0.0
      %v4634 = vmax.f32 %v4348, 0.0
      %v4635 = vmax.f32 %v4350, 0.0
      %v4636 = vmax.f32 %v4354, 0.0
      %v4637 = vmax.f32 %v4356, 0.0
      %v4638 = vmax.f32 %v4358, 0.0
      %v4639 = vmax.f32 %v4360, 0.0
      %v4640 = vmax.f32 %v4364, 0.0
      %v4641 = vmax.f32 %v4366, 0.0
      %v4642 = vmax.f32 %v4368, 0.0
      %v4643 = vmax.f32 %v4370, 0.0
      %v4644 = vmax.f32 %v4374, 0.0
      %v4645 = vmax.f32 %v4376, 0.0
      %v4646 = vmax.f32 %v4378, 0.0
      %v4647 = vmax.f32 %v4380, 0.0
      %v4648 = vmax.f32 %v4384, 0.0
      %v4649 = vmax.f32 %v4386, 0.0
      %v4650 = vmax.f32 %v4388, 0.0
      %v4651 = vmax.f32 %v4390, 0.0
      %v4652 = vmax.f32 %v4394, 0.0
      %v4653 = vmax.f32 %v4396, 0.0
      %v4654 = vmax.f32 %v4398, 0.0
      %v4655 = vmax.f32 %v4400, 0.0
      %v4656 = vmax.f32 %v4404, 0.0
      %v4657 = vmax.f32 %v4406, 0.0
      %v4658 = vmax.f32 %v4408, 0.0
      %v4659 = vmax.f32 %v4410, 0.0
      %v4660 = vmax.f32 %v4414, 0.0
      %v4661 = vmax.f32 %v4416, 0.0
      %v4662 = vmax.f32 %v4418, 0.0
      %v4663 = vmax.f32 %v4420, 0.0
      %v4664 = vmax.f32 %v4424, 0.0
      %v4665 = vmax.f32 %v4426, 0.0
      %v4666 = vmax.f32 %v4428, 0.0
      %v4667 = vmax.f32 %v4430, 0.0
      %v4668 = vmax.f32 %v4434, 0.0
      %v4669 = vmax.f32 %v4436, 0.0
      %v4670 = vmax.f32 %v4438, 0.0
      %v4671 = vmax.f32 %v4440, 0.0
      %v4672 = vmax.f32 %v4444, 0.0
      %v4673 = vmax.f32 %v4446, 0.0
      %v4674 = vmax.f32 %v4448, 0.0
      %v4675 = vmax.f32 %v4450, 0.0
      %v4676 = vmax.f32 %v4454, 0.0
      %v4677 = vmax.f32 %v4456, 0.0
      %v4678 = vmax.f32 %v4458, 0.0
      %v4679 = vmax.f32 %v4460, 0.0
      %v4680 = vmax.f32 %v4464, 0.0
      %v4681 = vmax.f32 %v4466, 0.0
      %v4682 = vmax.f32 %v4468, 0.0
      %v4683 = vmax.f32 %v4470, 0.0
      %v4684 = vmax.f32 %v4474, 0.0
      %v4685 = vmax.f32 %v4476, 0.0
      %v4686 = vmax.f32 %v4478, 0.0
      %v4687 = vmax.f32 %v4480, 0.0
      %v4688 = vmax.f32 %v4484, 0.0
      %v4689 = vmax.f32 %v4486, 0.0
      %v4690 = vmax.f32 %v4488, 0.0
      %v4691 = vmax.f32 %v4490, 0.0
      %v4692 = vmax.f32 %v4494, 0.0
      %v4693 = vmax.f32 %v4496, 0.0
      %v4694 = vmax.f32 %v4498, 0.0
      %v4695 = vmax.f32 %v4500, 0.0
      %v4696 = vmax.f32 %v4504, 0.0
      %v4697 = vmax.f32 %v4506, 0.0
      %v4698 = vmax.f32 %v4508, 0.0
      %v4699 = vmax.f32 %v4510, 0.0
      %v4700 = vmax.f32 %v4514, 0.0
      %v4701 = vmax.f32 %v4516, 0.0
      %v4702 = vmax.f32 %v4518, 0.0
      %v4703 = vmax.f32 %v4520, 0.0
      %v4704 = vmax.f32 %v4524, 0.0
      %v4705 = vmax.f32 %v4526, 0.0
      %v4706 = vmax.f32 %v4528, 0.0
      %v4707 = vmax.f32 %v4530, 0.0
      %v4708 = vmax.f32 %v4534, 0.0
      %v4709 = vmax.f32 %v4536, 0.0
      %v4710 = vmax.f32 %v4538, 0.0
      %v4711 = vmax.f32 %v4540, 0.0
      %v4712 = vmax.f32 %v4544, 0.0
      %v4713 = vmax.f32 %v4546, 0.0
      %v4714 = vmax.f32 %v4548, 0.0
      %v4715 = vmax.f32 %v4550, 0.0
      %v4716 = vmax.f32 %v4554, 0.0
      %v4717 = vmax.f32 %v4556, 0.0
      %v4718 = vmax.f32 %v4558, 0.0
      %v4719 = vmax.f32 %v4560, 0.0
      %v4720 = vmax.f32 %v4564, 0.0
      %v4721 = vmax.f32 %v4566, 0.0
      %v4722 = vmax.f32 %v4568, 0.0
      %v4723 = vmax.f32 %v4570, 0.0
      %v4724 = vmax.f32 %v4574, 0.0
      %v4725 = vmax.f32 %v4576, 0.0
      %v4726 = vmax.f32 %v4578, 0.0
      %v4727 = vmax.f32 %v4580, 0.0
      %v4728 = vmax.f32 %v4584, 0.0
      %v4729 = vmax.f32 %v4586, 0.0
      %v4730 = vmax.f32 %v4588, 0.0
      %v4731 = vmax.f32 %v4590, 0.0
      %v4732 = vmax.f32 %v4594, 0.0
      %v4733 = vmax.f32 %v4596, 0.0
      %v4734 = vmax.f32 %v4598, 0.0
      %v4735 = vmax.f32 %v4600, 0.0
      %v4736 = vmax.f32 %v4604, 0.0
      %v4737 = vmax.f32 %v4606, 0.0
      %v4738 = vmax.f32 %v4608, 0.0
      %v4739 = vmax.f32 %v4610, 0.0
      %v4740 = vpack.c.bf16 %v4614, %v4612
      %v4741 = vpack.c.bf16 %v4615, %v4613
      %v4742 = vpack.c.bf16 %v4618, %v4616
      %v4743 = vpack.c.bf16 %v4619, %v4617
      %v4744 = vpack.c.bf16 %v4622, %v4620
      %v4745 = vpack.c.bf16 %v4623, %v4621
      %v4746 = vpack.c.bf16 %v4626, %v4624
      %v4747 = vpack.c.bf16 %v4627, %v4625
      %v4748 = vpack.c.bf16 %v4630, %v4628
      %v4749 = vpack.c.bf16 %v4631, %v4629
      %v4750 = vpack.c.bf16 %v4634, %v4632
      %v4751 = vpack.c.bf16 %v4635, %v4633
      %v4752 = vpack.c.bf16 %v4638, %v4636
      %v4753 = vpack.c.bf16 %v4639, %v4637
      %v4754 = vpack.c.bf16 %v4642, %v4640
      %v4755 = vpack.c.bf16 %v4643, %v4641
      %v4756 = vpack.c.bf16 %v4646, %v4644
      %v4757 = vpack.c.bf16 %v4647, %v4645
      %v4758 = vpack.c.bf16 %v4650, %v4648
      %v4759 = vpack.c.bf16 %v4651, %v4649
      %v4760 = vpack.c.bf16 %v4654, %v4652
      %v4761 = vpack.c.bf16 %v4655, %v4653
      %v4762 = vpack.c.bf16 %v4658, %v4656
      %v4763 = vpack.c.bf16 %v4659, %v4657
      %v4764 = vpack.c.bf16 %v4662, %v4660
      %v4765 = vpack.c.bf16 %v4663, %v4661
      %v4766 = vpack.c.bf16 %v4666, %v4664
      %v4767 = vpack.c.bf16 %v4667, %v4665
      %v4768 = vpack.c.bf16 %v4670, %v4668
      %v4769 = vpack.c.bf16 %v4671, %v4669
      %v4770 = vpack.c.bf16 %v4674, %v4672
      %v4771 = vpack.c.bf16 %v4675, %v4673
      %v4772 = vpack.c.bf16 %v4678, %v4676
      %v4773 = vpack.c.bf16 %v4679, %v4677
      %v4774 = vpack.c.bf16 %v4682, %v4680
      %v4775 = vpack.c.bf16 %v4683, %v4681
      %v4776 = vpack.c.bf16 %v4686, %v4684
      %v4777 = vpack.c.bf16 %v4687, %v4685
      %v4778 = vpack.c.bf16 %v4690, %v4688
      %v4779 = vpack.c.bf16 %v4691, %v4689
      %v4780 = vpack.c.bf16 %v4694, %v4692
      %v4781 = vpack.c.bf16 %v4695, %v4693
      %v4782 = vpack.c.bf16 %v4698, %v4696
      %v4783 = vpack.c.bf16 %v4699, %v4697
      %v4784 = vpack.c.bf16 %v4702, %v4700
      %v4785 = vpack.c.bf16 %v4703, %v4701
      %v4786 = vpack.c.bf16 %v4706, %v4704
      %v4787 = vpack.c.bf16 %v4707, %v4705
      %v4788 = vpack.c.bf16 %v4710, %v4708
      %v4789 = vpack.c.bf16 %v4711, %v4709
      %v4790 = vpack.c.bf16 %v4714, %v4712
      %v4791 = vpack.c.bf16 %v4715, %v4713
      %v4792 = vpack.c.bf16 %v4718, %v4716
      %v4793 = vpack.c.bf16 %v4719, %v4717
      %v4794 = vpack.c.bf16 %v4722, %v4720
      %v4795 = vpack.c.bf16 %v4723, %v4721
      %v4796 = vpack.c.bf16 %v4726, %v4724
      %v4797 = vpack.c.bf16 %v4727, %v4725
      %v4798 = vpack.c.bf16 %v4730, %v4728
      %v4799 = vpack.c.bf16 %v4731, %v4729
      %v4800 = vpack.c.bf16 %v4734, %v4732
      %v4801 = vpack.c.bf16 %v4735, %v4733
      %v4802 = vpack.c.bf16 %v4738, %v4736
      %v4803 = vpack.c.bf16 %v4739, %v4737
      %v4804 = vld [vmem:[%s12] sm:$0xff]
      %v4805 = vld [vmem:[%s12 + $0x8] sm:$0xff]
      %v4806 = vld [vmem:[%s12 + $0x10] sm:$0xff]
      %v4807 = vld [vmem:[%s12 + $0x18] sm:$0xff]
      %v4808 = vld [vmem:[%s12 + $0x20] sm:$0xff]
      %v4809 = vld [vmem:[%s12 + $0x28] sm:$0xff]
      %v4810 = vld [vmem:[%s12 + $0x30] sm:$0xff]
      %v4811 = vld [vmem:[%s12 + $0x38] sm:$0xff]
      %v4812 = vld [vmem:[%s12 + $0x40] sm:$0xff]
      %v4813 = vld [vmem:[%s12 + $0x48] sm:$0xff]
      %v4814 = vld [vmem:[%s12 + $0x50] sm:$0xff]
      %v4815 = vld [vmem:[%s12 + $0x58] sm:$0xff]
      %v4816 = vld [vmem:[%s12 + $0x60] sm:$0xff]
      %v4817 = vld [vmem:[%s12 + $0x68] sm:$0xff]
      %v4818 = vld [vmem:[%s12 + $0x70] sm:$0xff]
      %v4819 = vld [vmem:[%s12 + $0x78] sm:$0xff]
      %v4820 = vld [vmem:[%s12 + $0x80] sm:$0xff]
      %v4821 = vld [vmem:[%s12 + $0x88] sm:$0xff]
      %v4822 = vld [vmem:[%s12 + $0x90] sm:$0xff]
      %v4823 = vld [vmem:[%s12 + $0x98] sm:$0xff]
      %v4824 = vld [vmem:[%s12 + $0xa0] sm:$0xff]
      %v4825 = vld [vmem:[%s12 + $0xa8] sm:$0xff]
      %v4826 = vld [vmem:[%s12 + $0xb0] sm:$0xff]
      %v4827 = vld [vmem:[%s12 + $0xb8] sm:$0xff]
      %v4828 = vld [vmem:[%s12 + $0xc0] sm:$0xff]
      %v4829 = vld [vmem:[%s12 + $0xc8] sm:$0xff]
      %v4830 = vld [vmem:[%s12 + $0xd0] sm:$0xff]
      %v4831 = vld [vmem:[%s12 + $0xd8] sm:$0xff]
      %v4832 = vld [vmem:[%s12 + $0xe0] sm:$0xff]
      %v4833 = vld [vmem:[%s12 + $0xe8] sm:$0xff]
      %v4834 = vld [vmem:[%s12 + $0xf0] sm:$0xff]
      %v4835 = vld [vmem:[%s12 + $0xf8] sm:$0xff]
      %v4836 = vld [vmem:[%s13] sm:$0x3]
      %v4838 = vlaneseq
      %v4839 = vshrl.u32 %v4838, 7
      %v4840 = vsub.s32 0, %v4839
      %v4841 = vrot.slane %v4836, %v4840
      %v4842 = vlaneseq
      %v4843 = vshrl.u32 %v4842, 7
      %v4844 = vsub.s32 1, %v4843
      %v4845 = vrot.slane %v4836, %v4844
      %v4880 = vunpack.c.l.b16 %v4804
      %v4881 = vunpack.c.h.b16 %v4804
      %v4882 = vunpack.c.l.b16 %v4805
      %v4883 = vunpack.c.h.b16 %v4805
      %v4884 = vunpack.c.l.b16 %v4806
      %v4885 = vunpack.c.h.b16 %v4806
      %v4886 = vunpack.c.l.b16 %v4807
      %v4887 = vunpack.c.h.b16 %v4807
      %v4888 = vunpack.c.l.b16 %v4808
      %v4889 = vunpack.c.h.b16 %v4808
      %v4890 = vunpack.c.l.b16 %v4809
      %v4891 = vunpack.c.h.b16 %v4809
      %v4892 = vunpack.c.l.b16 %v4810
      %v4893 = vunpack.c.h.b16 %v4810
      %v4894 = vunpack.c.l.b16 %v4811
      %v4895 = vunpack.c.h.b16 %v4811
      %v4896 = vunpack.c.l.b16 %v4812
      %v4897 = vunpack.c.h.b16 %v4812
      %v4898 = vunpack.c.l.b16 %v4813
      %v4899 = vunpack.c.h.b16 %v4813
      %v4900 = vunpack.c.l.b16 %v4814
      %v4901 = vunpack.c.h.b16 %v4814
      %v4902 = vunpack.c.l.b16 %v4815
      %v4903 = vunpack.c.h.b16 %v4815
      %v4904 = vunpack.c.l.b16 %v4816
      %v4905 = vunpack.c.h.b16 %v4816
      %v4906 = vunpack.c.l.b16 %v4817
      %v4907 = vunpack.c.h.b16 %v4817
      %v4908 = vunpack.c.l.b16 %v4818
      %v4909 = vunpack.c.h.b16 %v4818
      %v4910 = vunpack.c.l.b16 %v4819
      %v4911 = vunpack.c.h.b16 %v4819
      %v4912 = vunpack.c.l.b16 %v4820
      %v4913 = vunpack.c.h.b16 %v4820
      %v4914 = vunpack.c.l.b16 %v4821
      %v4915 = vunpack.c.h.b16 %v4821
      %v4916 = vunpack.c.l.b16 %v4822
      %v4917 = vunpack.c.h.b16 %v4822
      %v4918 = vunpack.c.l.b16 %v4823
      %v4919 = vunpack.c.h.b16 %v4823
      %v4920 = vunpack.c.l.b16 %v4824
      %v4921 = vunpack.c.h.b16 %v4824
      %v4922 = vunpack.c.l.b16 %v4825
      %v4923 = vunpack.c.h.b16 %v4825
      %v4924 = vunpack.c.l.b16 %v4826
      %v4925 = vunpack.c.h.b16 %v4826
      %v4926 = vunpack.c.l.b16 %v4827
      %v4927 = vunpack.c.h.b16 %v4827
      %v4928 = vunpack.c.l.b16 %v4828
      %v4929 = vunpack.c.h.b16 %v4828
      %v4930 = vunpack.c.l.b16 %v4829
      %v4931 = vunpack.c.h.b16 %v4829
      %v4932 = vunpack.c.l.b16 %v4830
      %v4933 = vunpack.c.h.b16 %v4830
      %v4934 = vunpack.c.l.b16 %v4831
      %v4935 = vunpack.c.h.b16 %v4831
      %v4936 = vunpack.c.l.b16 %v4832
      %v4937 = vunpack.c.h.b16 %v4832
      %v4938 = vunpack.c.l.b16 %v4833
      %v4939 = vunpack.c.h.b16 %v4833
      %v4940 = vunpack.c.l.b16 %v4834
      %v4941 = vunpack.c.h.b16 %v4834
      %v4942 = vunpack.c.l.b16 %v4835
      %v4943 = vunpack.c.h.b16 %v4835
      %v4944 = vpack.c.b16 %v4882, %v4880
      %v4945 = vpack.c.b16 %v4883, %v4881
      %v4946 = vpack.c.b16 %v4886, %v4884
      %v4947 = vpack.c.b16 %v4887, %v4885
      %v4948 = vpack.c.b16 %v4890, %v4888
      %v4949 = vpack.c.b16 %v4891, %v4889
      %v4950 = vpack.c.b16 %v4894, %v4892
      %v4951 = vpack.c.b16 %v4895, %v4893
      %v4952 = vpack.c.b16 %v4898, %v4896
      %v4953 = vpack.c.b16 %v4899, %v4897
      %v4954 = vpack.c.b16 %v4902, %v4900
      %v4955 = vpack.c.b16 %v4903, %v4901
      %v4956 = vpack.c.b16 %v4906, %v4904
      %v4957 = vpack.c.b16 %v4907, %v4905
      %v4958 = vpack.c.b16 %v4910, %v4908
      %v4959 = vpack.c.b16 %v4911, %v4909
      %v4960 = vpack.c.b16 %v4914, %v4912
      %v4961 = vpack.c.b16 %v4915, %v4913
      %v4962 = vpack.c.b16 %v4918, %v4916
      %v4963 = vpack.c.b16 %v4919, %v4917
      %v4964 = vpack.c.b16 %v4922, %v4920
      %v4965 = vpack.c.b16 %v4923, %v4921
      %v4966 = vpack.c.b16 %v4926, %v4924
      %v4967 = vpack.c.b16 %v4927, %v4925
      %v4968 = vpack.c.b16 %v4930, %v4928
      %v4969 = vpack.c.b16 %v4931, %v4929
      %v4970 = vpack.c.b16 %v4934, %v4932
      %v4971 = vpack.c.b16 %v4935, %v4933
      %v4972 = vpack.c.b16 %v4938, %v4936
      %v4973 = vpack.c.b16 %v4939, %v4937
      %v4974 = vpack.c.b16 %v4942, %v4940
      %v4975 = vpack.c.b16 %v4943, %v4941
      %5008 = vmatprep.subr.bf16.mxu0 %v4959
      %5009 = vmatpush1.bf16.msra.mxu0 %v4958
      %5010 = vmatprep.subr.bf16.mxu0 %v4957
      %5011 = vmatpush1.bf16.msra.mxu0 %v4956
      %5012 = vmatprep.subr.bf16.mxu0 %v4955
      %5013 = vmatpush1.bf16.msra.mxu0 %v4954
      %5014 = vmatprep.subr.bf16.mxu0 %v4953
      %5015 = vmatpush1.bf16.msra.mxu0 %v4952
      %5016 = vmatprep.subr.bf16.mxu0 %v4951
      %5017 = vmatpush1.bf16.msra.mxu0 %v4950
      %5018 = vmatprep.subr.bf16.mxu0 %v4949
      %5019 = vmatpush1.bf16.msra.mxu0 %v4948
      %5020 = vmatprep.subr.bf16.mxu0 %v4947
      %5021 = vmatpush1.bf16.msra.mxu0 %v4946
      %5022 = vmatprep.subr.bf16.mxu0 %v4945
      %5023 = vmatpush1.bf16.msra.mxu0 %v4944
      %5024 = vmatprep.subr.bf16.mxu0 %v4975
      %5025 = vmatpush2.bf16.msra.mxu0 %v4974
      %5026 = vmatprep.subr.bf16.mxu0 %v4973
      %5027 = vmatpush2.bf16.msra.mxu0 %v4972
      %5028 = vmatprep.subr.bf16.mxu0 %v4971
      %5029 = vmatpush2.bf16.msra.mxu0 %v4970
      %5030 = vmatprep.subr.bf16.mxu0 %v4969
      %5031 = vmatpush2.bf16.msra.mxu0 %v4968
      %5032 = vmatprep.subr.bf16.mxu0 %v4967
      %5033 = vmatpush2.bf16.msra.mxu0 %v4966
      %5034 = vmatprep.subr.bf16.mxu0 %v4965
      %5035 = vmatpush2.bf16.msra.mxu0 %v4964
      %5036 = vmatprep.subr.bf16.mxu0 %v4963
      %5037 = vmatpush2.bf16.msra.mxu0 %v4962
      %5038 = vmatprep.subr.bf16.mxu0 %v4961
      %5039 = vmatpush2.bf16.msra.mxu0 %v4960
      %5040 = vmatprep.mubr.bf16.mxu0 %v4741
      %5041 = vmatmul.mubr.bf16.gmra.mxu0 %v4740
      %v5042 = vpop.f32.mrf.mxu0
      %v5043 = vadd.f32 %v4841, %v5042
      %v5044 = vpop.f32.mrf.mxu0
      %v5045 = vadd.f32 %v4845, %v5044
      %v5046 = vpop.f32.mrf.mxu0
      %v5047 = vadd.f32 %v4841, %v5046
      %v5048 = vpop.f32.mrf.mxu0
      %v5049 = vadd.f32 %v4845, %v5048
      %5050 = vmatprep.mubr.bf16.mxu0 %v4743
      %5051 = vmatmul.mubr.bf16.gmra.mxu0 %v4742
      %v5052 = vpop.f32.mrf.mxu0
      %v5053 = vadd.f32 %v4841, %v5052
      %v5054 = vpop.f32.mrf.mxu0
      %v5055 = vadd.f32 %v4845, %v5054
      %v5056 = vpop.f32.mrf.mxu0
      %v5057 = vadd.f32 %v4841, %v5056
      %v5058 = vpop.f32.mrf.mxu0
      %v5059 = vadd.f32 %v4845, %v5058
      %5060 = vmatprep.mubr.bf16.mxu0 %v4745
      %5061 = vmatmul.mubr.bf16.gmra.mxu0 %v4744
      %v5062 = vpop.f32.mrf.mxu0
      %v5063 = vadd.f32 %v4841, %v5062
      %v5064 = vpop.f32.mrf.mxu0
      %v5065 = vadd.f32 %v4845, %v5064
      %v5066 = vpop.f32.mrf.mxu0
      %v5067 = vadd.f32 %v4841, %v5066
      %v5068 = vpop.f32.mrf.mxu0
      %v5069 = vadd.f32 %v4845, %v5068
      %5070 = vmatprep.mubr.bf16.mxu0 %v4747
      %5071 = vmatmul.mubr.bf16.gmra.mxu0 %v4746
      %v5072 = vpop.f32.mrf.mxu0
      %v5073 = vadd.f32 %v4841, %v5072
      %v5074 = vpop.f32.mrf.mxu0
      %v5075 = vadd.f32 %v4845, %v5074
      %v5076 = vpop.f32.mrf.mxu0
      %v5077 = vadd.f32 %v4841, %v5076
      %v5078 = vpop.f32.mrf.mxu0
      %v5079 = vadd.f32 %v4845, %v5078
      %5080 = vmatprep.mubr.bf16.mxu0 %v4749
      %5081 = vmatmul.mubr.bf16.gmra.mxu0 %v4748
      %v5082 = vpop.f32.mrf.mxu0
      %v5083 = vadd.f32 %v4841, %v5082
      %v5084 = vpop.f32.mrf.mxu0
      %v5085 = vadd.f32 %v4845, %v5084
      %v5086 = vpop.f32.mrf.mxu0
      %v5087 = vadd.f32 %v4841, %v5086
      %v5088 = vpop.f32.mrf.mxu0
      %v5089 = vadd.f32 %v4845, %v5088
      %5090 = vmatprep.mubr.bf16.mxu0 %v4751
      %5091 = vmatmul.mubr.bf16.gmra.mxu0 %v4750
      %v5092 = vpop.f32.mrf.mxu0
      %v5093 = vadd.f32 %v4841, %v5092
      %v5094 = vpop.f32.mrf.mxu0
      %v5095 = vadd.f32 %v4845, %v5094
      %v5096 = vpop.f32.mrf.mxu0
      %v5097 = vadd.f32 %v4841, %v5096
      %v5098 = vpop.f32.mrf.mxu0
      %v5099 = vadd.f32 %v4845, %v5098
      %5100 = vmatprep.mubr.bf16.mxu0 %v4753
      %5101 = vmatmul.mubr.bf16.gmra.mxu0 %v4752
      %v5102 = vpop.f32.mrf.mxu0
      %v5103 = vadd.f32 %v4841, %v5102
      %v5104 = vpop.f32.mrf.mxu0
      %v5105 = vadd.f32 %v4845, %v5104
      %v5106 = vpop.f32.mrf.mxu0
      %v5107 = vadd.f32 %v4841, %v5106
      %v5108 = vpop.f32.mrf.mxu0
      %v5109 = vadd.f32 %v4845, %v5108
      %5110 = vmatprep.mubr.bf16.mxu0 %v4755
      %5111 = vmatmul.mubr.bf16.gmra.mxu0 %v4754
      %v5112 = vpop.f32.mrf.mxu0
      %v5113 = vadd.f32 %v4841, %v5112
      %v5114 = vpop.f32.mrf.mxu0
      %v5115 = vadd.f32 %v4845, %v5114
      %v5116 = vpop.f32.mrf.mxu0
      %v5117 = vadd.f32 %v4841, %v5116
      %v5118 = vpop.f32.mrf.mxu0
      %v5119 = vadd.f32 %v4845, %v5118
      %5120 = vmatprep.mubr.bf16.mxu0 %v4757
      %5121 = vmatmul.mubr.bf16.gmra.mxu0 %v4756
      %v5122 = vpop.f32.mrf.mxu0
      %v5123 = vadd.f32 %v4841, %v5122
      %v5124 = vpop.f32.mrf.mxu0
      %v5125 = vadd.f32 %v4845, %v5124
      %v5126 = vpop.f32.mrf.mxu0
      %v5127 = vadd.f32 %v4841, %v5126
      %v5128 = vpop.f32.mrf.mxu0
      %v5129 = vadd.f32 %v4845, %v5128
      %5130 = vmatprep.mubr.bf16.mxu0 %v4759
      %5131 = vmatmul.mubr.bf16.gmra.mxu0 %v4758
      %v5132 = vpop.f32.mrf.mxu0
      %v5133 = vadd.f32 %v4841, %v5132
      %v5134 = vpop.f32.mrf.mxu0
      %v5135 = vadd.f32 %v4845, %v5134
      %v5136 = vpop.f32.mrf.mxu0
      %v5137 = vadd.f32 %v4841, %v5136
      %v5138 = vpop.f32.mrf.mxu0
      %v5139 = vadd.f32 %v4845, %v5138
      %5140 = vmatprep.mubr.bf16.mxu0 %v4761
      %5141 = vmatmul.mubr.bf16.gmra.mxu0 %v4760
      %v5142 = vpop.f32.mrf.mxu0
      %v5143 = vadd.f32 %v4841, %v5142
      %v5144 = vpop.f32.mrf.mxu0
      %v5145 = vadd.f32 %v4845, %v5144
      %v5146 = vpop.f32.mrf.mxu0
      %v5147 = vadd.f32 %v4841, %v5146
      %v5148 = vpop.f32.mrf.mxu0
      %v5149 = vadd.f32 %v4845, %v5148
      %5150 = vmatprep.mubr.bf16.mxu0 %v4763
      %5151 = vmatmul.mubr.bf16.gmra.mxu0 %v4762
      %v5152 = vpop.f32.mrf.mxu0
      %v5153 = vadd.f32 %v4841, %v5152
      %v5154 = vpop.f32.mrf.mxu0
      %v5155 = vadd.f32 %v4845, %v5154
      %v5156 = vpop.f32.mrf.mxu0
      %v5157 = vadd.f32 %v4841, %v5156
      %v5158 = vpop.f32.mrf.mxu0
      %v5159 = vadd.f32 %v4845, %v5158
      %5160 = vmatprep.mubr.bf16.mxu0 %v4765
      %5161 = vmatmul.mubr.bf16.gmra.mxu0 %v4764
      %v5162 = vpop.f32.mrf.mxu0
      %v5163 = vadd.f32 %v4841, %v5162
      %v5164 = vpop.f32.mrf.mxu0
      %v5165 = vadd.f32 %v4845, %v5164
      %v5166 = vpop.f32.mrf.mxu0
      %v5167 = vadd.f32 %v4841, %v5166
      %v5168 = vpop.f32.mrf.mxu0
      %v5169 = vadd.f32 %v4845, %v5168
      %5170 = vmatprep.mubr.bf16.mxu0 %v4767
      %5171 = vmatmul.mubr.bf16.gmra.mxu0 %v4766
      %v5172 = vpop.f32.mrf.mxu0
      %v5173 = vadd.f32 %v4841, %v5172
      %v5174 = vpop.f32.mrf.mxu0
      %v5175 = vadd.f32 %v4845, %v5174
      %v5176 = vpop.f32.mrf.mxu0
      %v5177 = vadd.f32 %v4841, %v5176
      %v5178 = vpop.f32.mrf.mxu0
      %v5179 = vadd.f32 %v4845, %v5178
      %5180 = vmatprep.mubr.bf16.mxu0 %v4769
      %5181 = vmatmul.mubr.bf16.gmra.mxu0 %v4768
      %v5182 = vpop.f32.mrf.mxu0
      %v5183 = vadd.f32 %v4841, %v5182
      %v5184 = vpop.f32.mrf.mxu0
      %v5185 = vadd.f32 %v4845, %v5184
      %v5186 = vpop.f32.mrf.mxu0
      %v5187 = vadd.f32 %v4841, %v5186
      %v5188 = vpop.f32.mrf.mxu0
      %v5189 = vadd.f32 %v4845, %v5188
      %5190 = vmatprep.mubr.bf16.mxu0 %v4771
      %5191 = vmatmul.mubr.bf16.gmra.mxu0 %v4770
      %v5192 = vpop.f32.mrf.mxu0
      %v5193 = vadd.f32 %v4841, %v5192
      %v5194 = vpop.f32.mrf.mxu0
      %v5195 = vadd.f32 %v4845, %v5194
      %v5196 = vpop.f32.mrf.mxu0
      %v5197 = vadd.f32 %v4841, %v5196
      %v5198 = vpop.f32.mrf.mxu0
      %v5199 = vadd.f32 %v4845, %v5198
      %5200 = vmatprep.mubr.bf16.mxu0 %v4773
      %5201 = vmatmul.mubr.bf16.gmra.mxu0 %v4772
      %v5202 = vpop.f32.mrf.mxu0
      %v5203 = vadd.f32 %v4841, %v5202
      %v5204 = vpop.f32.mrf.mxu0
      %v5205 = vadd.f32 %v4845, %v5204
      %v5206 = vpop.f32.mrf.mxu0
      %v5207 = vadd.f32 %v4841, %v5206
      %v5208 = vpop.f32.mrf.mxu0
      %v5209 = vadd.f32 %v4845, %v5208
      %5210 = vmatprep.mubr.bf16.mxu0 %v4775
      %5211 = vmatmul.mubr.bf16.gmra.mxu0 %v4774
      %v5212 = vpop.f32.mrf.mxu0
      %v5213 = vadd.f32 %v4841, %v5212
      %v5214 = vpop.f32.mrf.mxu0
      %v5215 = vadd.f32 %v4845, %v5214
      %v5216 = vpop.f32.mrf.mxu0
      %v5217 = vadd.f32 %v4841, %v5216
      %v5218 = vpop.f32.mrf.mxu0
      %v5219 = vadd.f32 %v4845, %v5218
      %5220 = vmatprep.mubr.bf16.mxu0 %v4777
      %5221 = vmatmul.mubr.bf16.gmra.mxu0 %v4776
      %v5222 = vpop.f32.mrf.mxu0
      %v5223 = vadd.f32 %v4841, %v5222
      %v5224 = vpop.f32.mrf.mxu0
      %v5225 = vadd.f32 %v4845, %v5224
      %v5226 = vpop.f32.mrf.mxu0
      %v5227 = vadd.f32 %v4841, %v5226
      %v5228 = vpop.f32.mrf.mxu0
      %v5229 = vadd.f32 %v4845, %v5228
      %5230 = vmatprep.mubr.bf16.mxu0 %v4779
      %5231 = vmatmul.mubr.bf16.gmra.mxu0 %v4778
      %v5232 = vpop.f32.mrf.mxu0
      %v5233 = vadd.f32 %v4841, %v5232
      %v5234 = vpop.f32.mrf.mxu0
      %v5235 = vadd.f32 %v4845, %v5234
      %v5236 = vpop.f32.mrf.mxu0
      %v5237 = vadd.f32 %v4841, %v5236
      %v5238 = vpop.f32.mrf.mxu0
      %v5239 = vadd.f32 %v4845, %v5238
      %5240 = vmatprep.mubr.bf16.mxu0 %v4781
      %5241 = vmatmul.mubr.bf16.gmra.mxu0 %v4780
      %v5242 = vpop.f32.mrf.mxu0
      %v5243 = vadd.f32 %v4841, %v5242
      %v5244 = vpop.f32.mrf.mxu0
      %v5245 = vadd.f32 %v4845, %v5244
      %v5246 = vpop.f32.mrf.mxu0
      %v5247 = vadd.f32 %v4841, %v5246
      %v5248 = vpop.f32.mrf.mxu0
      %v5249 = vadd.f32 %v4845, %v5248
      %5250 = vmatprep.mubr.bf16.mxu0 %v4783
      %5251 = vmatmul.mubr.bf16.gmra.mxu0 %v4782
      %v5252 = vpop.f32.mrf.mxu0
      %v5253 = vadd.f32 %v4841, %v5252
      %v5254 = vpop.f32.mrf.mxu0
      %v5255 = vadd.f32 %v4845, %v5254
      %v5256 = vpop.f32.mrf.mxu0
      %v5257 = vadd.f32 %v4841, %v5256
      %v5258 = vpop.f32.mrf.mxu0
      %v5259 = vadd.f32 %v4845, %v5258
      %5260 = vmatprep.mubr.bf16.mxu0 %v4785
      %5261 = vmatmul.mubr.bf16.gmra.mxu0 %v4784
      %v5262 = vpop.f32.mrf.mxu0
      %v5263 = vadd.f32 %v4841, %v5262
      %v5264 = vpop.f32.mrf.mxu0
      %v5265 = vadd.f32 %v4845, %v5264
      %v5266 = vpop.f32.mrf.mxu0
      %v5267 = vadd.f32 %v4841, %v5266
      %v5268 = vpop.f32.mrf.mxu0
      %v5269 = vadd.f32 %v4845, %v5268
      %5270 = vmatprep.mubr.bf16.mxu0 %v4787
      %5271 = vmatmul.mubr.bf16.gmra.mxu0 %v4786
      %v5272 = vpop.f32.mrf.mxu0
      %v5273 = vadd.f32 %v4841, %v5272
      %v5274 = vpop.f32.mrf.mxu0
      %v5275 = vadd.f32 %v4845, %v5274
      %v5276 = vpop.f32.mrf.mxu0
      %v5277 = vadd.f32 %v4841, %v5276
      %v5278 = vpop.f32.mrf.mxu0
      %v5279 = vadd.f32 %v4845, %v5278
      %5280 = vmatprep.mubr.bf16.mxu0 %v4789
      %5281 = vmatmul.mubr.bf16.gmra.mxu0 %v4788
      %v5282 = vpop.f32.mrf.mxu0
      %v5283 = vadd.f32 %v4841, %v5282
      %v5284 = vpop.f32.mrf.mxu0
      %v5285 = vadd.f32 %v4845, %v5284
      %v5286 = vpop.f32.mrf.mxu0
      %v5287 = vadd.f32 %v4841, %v5286
      %v5288 = vpop.f32.mrf.mxu0
      %v5289 = vadd.f32 %v4845, %v5288
      %5290 = vmatprep.mubr.bf16.mxu0 %v4791
      %5291 = vmatmul.mubr.bf16.gmra.mxu0 %v4790
      %v5292 = vpop.f32.mrf.mxu0
      %v5293 = vadd.f32 %v4841, %v5292
      %v5294 = vpop.f32.mrf.mxu0
      %v5295 = vadd.f32 %v4845, %v5294
      %v5296 = vpop.f32.mrf.mxu0
      %v5297 = vadd.f32 %v4841, %v5296
      %v5298 = vpop.f32.mrf.mxu0
      %v5299 = vadd.f32 %v4845, %v5298
      %5300 = vmatprep.mubr.bf16.mxu0 %v4793
      %5301 = vmatmul.mubr.bf16.gmra.mxu0 %v4792
      %v5302 = vpop.f32.mrf.mxu0
      %v5303 = vadd.f32 %v4841, %v5302
      %v5304 = vpop.f32.mrf.mxu0
      %v5305 = vadd.f32 %v4845, %v5304
      %v5306 = vpop.f32.mrf.mxu0
      %v5307 = vadd.f32 %v4841, %v5306
      %v5308 = vpop.f32.mrf.mxu0
      %v5309 = vadd.f32 %v4845, %v5308
      %5310 = vmatprep.mubr.bf16.mxu0 %v4795
      %5311 = vmatmul.mubr.bf16.gmra.mxu0 %v4794
      %v5312 = vpop.f32.mrf.mxu0
      %v5313 = vadd.f32 %v4841, %v5312
      %v5314 = vpop.f32.mrf.mxu0
      %v5315 = vadd.f32 %v4845, %v5314
      %v5316 = vpop.f32.mrf.mxu0
      %v5317 = vadd.f32 %v4841, %v5316
      %v5318 = vpop.f32.mrf.mxu0
      %v5319 = vadd.f32 %v4845, %v5318
      %5320 = vmatprep.mubr.bf16.mxu0 %v4797
      %5321 = vmatmul.mubr.bf16.gmra.mxu0 %v4796
      %v5322 = vpop.f32.mrf.mxu0
      %v5323 = vadd.f32 %v4841, %v5322
      %v5324 = vpop.f32.mrf.mxu0
      %v5325 = vadd.f32 %v4845, %v5324
      %v5326 = vpop.f32.mrf.mxu0
      %v5327 = vadd.f32 %v4841, %v5326
      %v5328 = vpop.f32.mrf.mxu0
      %v5329 = vadd.f32 %v4845, %v5328
      %5330 = vmatprep.mubr.bf16.mxu0 %v4799
      %5331 = vmatmul.mubr.bf16.gmra.mxu0 %v4798
      %v5332 = vpop.f32.mrf.mxu0
      %v5333 = vadd.f32 %v4841, %v5332
      %v5334 = vpop.f32.mrf.mxu0
      %v5335 = vadd.f32 %v4845, %v5334
      %v5336 = vpop.f32.mrf.mxu0
      %v5337 = vadd.f32 %v4841, %v5336
      %v5338 = vpop.f32.mrf.mxu0
      %v5339 = vadd.f32 %v4845, %v5338
      %5340 = vmatprep.mubr.bf16.mxu0 %v4801
      %5341 = vmatmul.mubr.bf16.gmra.mxu0 %v4800
      %v5342 = vpop.f32.mrf.mxu0
      %v5343 = vadd.f32 %v4841, %v5342
      %v5344 = vpop.f32.mrf.mxu0
      %v5345 = vadd.f32 %v4845, %v5344
      %v5346 = vpop.f32.mrf.mxu0
      %v5347 = vadd.f32 %v4841, %v5346
      %v5348 = vpop.f32.mrf.mxu0
      %v5349 = vadd.f32 %v4845, %v5348
      %5350 = vmatprep.mubr.bf16.mxu0 %v4803
      %5351 = vmatmul.mubr.bf16.gmra.mxu0 %v4802
      %v5352 = vpop.f32.mrf.mxu0
      %v5353 = vadd.f32 %v4841, %v5352
      %v5354 = vpop.f32.mrf.mxu0
      %v5355 = vadd.f32 %v4845, %v5354
      %v5356 = vpop.f32.mrf.mxu0
      %v5357 = vadd.f32 %v4841, %v5356
      %v5358 = vpop.f32.mrf.mxu0
      %v5359 = vadd.f32 %v4845, %v5358
      %5360 = vdwg.mxu0
      %v5361 = vld [vmem:[%s18] sm:$0xff]
      %v5362 = vld [vmem:[%s18 + $0x8] sm:$0xff]
      %v5363 = vld [vmem:[%s18 + $0x10] sm:$0xff]
      %v5364 = vld [vmem:[%s18 + $0x18] sm:$0xff]
      %v5365 = vld [vmem:[%s18 + $0x20] sm:$0xff]
      %v5366 = vld [vmem:[%s18 + $0x28] sm:$0xff]
      %v5367 = vld [vmem:[%s18 + $0x30] sm:$0xff]
      %v5368 = vld [vmem:[%s18 + $0x38] sm:$0xff]
      %v5377 = vunpack.c.l.b16 %v5361
      %v5378 = vunpack.c.h.b16 %v5361
      %v5379 = vunpack.c.l.b16 %v5362
      %v5380 = vunpack.c.h.b16 %v5362
      %v5381 = vunpack.c.l.b16 %v5363
      %v5382 = vunpack.c.h.b16 %v5363
      %v5383 = vunpack.c.l.b16 %v5364
      %v5384 = vunpack.c.h.b16 %v5364
      %v5385 = vunpack.c.l.b16 %v5365
      %v5386 = vunpack.c.h.b16 %v5365
      %v5387 = vunpack.c.l.b16 %v5366
      %v5388 = vunpack.c.h.b16 %v5366
      %v5389 = vunpack.c.l.b16 %v5367
      %v5390 = vunpack.c.h.b16 %v5367
      %v5391 = vunpack.c.l.b16 %v5368
      %v5392 = vunpack.c.h.b16 %v5368
      %v5393 = vpack.c.b16 %v5379, %v5377
      %v5394 = vpack.c.b16 %v5380, %v5378
      %v5395 = vpack.c.b16 %v5383, %v5381
      %v5396 = vpack.c.b16 %v5384, %v5382
      %v5397 = vpack.c.b16 %v5387, %v5385
      %v5398 = vpack.c.b16 %v5388, %v5386
      %v5399 = vpack.c.b16 %v5391, %v5389
      %v5400 = vpack.c.b16 %v5392, %v5390
      %5409 = vmatprep.subr.bf16.mxu0 0
      %5410 = vmatpush1.bf16.msra.mxu0 0
      %5411 = vmatprep.subr.bf16.mxu0 0
      %5412 = vmatpush1.bf16.msra.mxu0 0
      %5413 = vmatprep.subr.bf16.mxu0 0
      %5414 = vmatpush1.bf16.msra.mxu0 0
      %5415 = vmatprep.subr.bf16.mxu0 0
      %5416 = vmatpush1.bf16.msra.mxu0 0
      %5417 = vmatprep.subr.bf16.mxu0 %v5400
      %5418 = vmatpush1.bf16.msra.mxu0 %v5399
      %5419 = vmatprep.subr.bf16.mxu0 %v5398
      %5420 = vmatpush1.bf16.msra.mxu0 %v5397
      %5421 = vmatprep.subr.bf16.mxu0 %v5396
      %5422 = vmatpush1.bf16.msra.mxu0 %v5395
      %5423 = vmatprep.subr.bf16.mxu0 %v5394
      %5424 = vmatpush1.bf16.msra.mxu0 %v5393
      %5425 = vmatprep.subr.bf16.mxu0 0
      %5426 = vmatpush2.bf16.msra.mxu0 0
      %5427 = vmatprep.subr.bf16.mxu0 0
      %5428 = vmatpush2.bf16.msra.mxu0 0
      %5429 = vmatprep.subr.bf16.mxu0 0
      %5430 = vmatpush2.bf16.msra.mxu0 0
      %5431 = vmatprep.subr.bf16.mxu0 0
      %5432 = vmatpush2.bf16.msra.mxu0 0
      %5433 = vmatprep.subr.bf16.mxu0 0
      %5434 = vmatpush2.bf16.msra.mxu0 0
      %5435 = vmatprep.subr.bf16.mxu0 0
      %5436 = vmatpush2.bf16.msra.mxu0 0
      %5437 = vmatprep.subr.bf16.mxu0 0
      %5438 = vmatpush2.bf16.msra.mxu0 0
      %5439 = vmatprep.subr.bf16.mxu0 0
      %5440 = vmatpush2.bf16.msra.mxu0 0
      %5441 = vmatprep.mubr.bf16.mxu0 0
      %5442 = vmatmul.mubr.bf16.gmra.mxu0 %v1168
      %v5443 = vpop.f32.mrf.mxu0
      %v5444 = vadd.f32 0.0, %v5443
      %v5445 = vpop.f32.mrf.mxu0
      %v5446 = vadd.f32 0.0, %v5445
      %v5447 = vpop.f32.mrf.mxu0
      %v5448 = vadd.f32 0.0, %v5447
      %v5449 = vpop.f32.mrf.mxu0
      %v5450 = vadd.f32 0.0, %v5449
      %5451 = vmatprep.mubr.bf16.mxu0 0
      %5452 = vmatmul.mubr.bf16.gmra.mxu0 %v1171
      %v5453 = vpop.f32.mrf.mxu0
      %v5454 = vadd.f32 0.0, %v5453
      %v5455 = vpop.f32.mrf.mxu0
      %v5456 = vadd.f32 0.0, %v5455
      %v5457 = vpop.f32.mrf.mxu0
      %v5458 = vadd.f32 0.0, %v5457
      %v5459 = vpop.f32.mrf.mxu0
      %v5460 = vadd.f32 0.0, %v5459
      %5461 = vmatprep.mubr.bf16.mxu0 0
      %5462 = vmatmul.mubr.bf16.gmra.mxu0 %v1174
      %v5463 = vpop.f32.mrf.mxu0
      %v5464 = vadd.f32 0.0, %v5463
      %v5465 = vpop.f32.mrf.mxu0
      %v5466 = vadd.f32 0.0, %v5465
      %v5467 = vpop.f32.mrf.mxu0
      %v5468 = vadd.f32 0.0, %v5467
      %v5469 = vpop.f32.mrf.mxu0
      %v5470 = vadd.f32 0.0, %v5469
      %5471 = vmatprep.mubr.bf16.mxu0 0
      %5472 = vmatmul.mubr.bf16.gmra.mxu0 %v1177
      %v5473 = vpop.f32.mrf.mxu0
      %v5474 = vadd.f32 0.0, %v5473
      %v5475 = vpop.f32.mrf.mxu0
      %v5476 = vadd.f32 0.0, %v5475
      %v5477 = vpop.f32.mrf.mxu0
      %v5478 = vadd.f32 0.0, %v5477
      %v5479 = vpop.f32.mrf.mxu0
      %v5480 = vadd.f32 0.0, %v5479
      %5481 = vmatprep.mubr.bf16.mxu0 0
      %5482 = vmatmul.mubr.bf16.gmra.mxu0 %v1180
      %v5483 = vpop.f32.mrf.mxu0
      %v5484 = vadd.f32 0.0, %v5483
      %v5485 = vpop.f32.mrf.mxu0
      %v5486 = vadd.f32 0.0, %v5485
      %v5487 = vpop.f32.mrf.mxu0
      %v5488 = vadd.f32 0.0, %v5487
      %v5489 = vpop.f32.mrf.mxu0
      %v5490 = vadd.f32 0.0, %v5489
      %5491 = vmatprep.mubr.bf16.mxu0 0
      %5492 = vmatmul.mubr.bf16.gmra.mxu0 %v1183
      %v5493 = vpop.f32.mrf.mxu0
      %v5494 = vadd.f32 0.0, %v5493
      %v5495 = vpop.f32.mrf.mxu0
      %v5496 = vadd.f32 0.0, %v5495
      %v5497 = vpop.f32.mrf.mxu0
      %v5498 = vadd.f32 0.0, %v5497
      %v5499 = vpop.f32.mrf.mxu0
      %v5500 = vadd.f32 0.0, %v5499
      %5501 = vmatprep.mubr.bf16.mxu0 0
      %5502 = vmatmul.mubr.bf16.gmra.mxu0 %v1186
      %v5503 = vpop.f32.mrf.mxu0
      %v5504 = vadd.f32 0.0, %v5503
      %v5505 = vpop.f32.mrf.mxu0
      %v5506 = vadd.f32 0.0, %v5505
      %v5507 = vpop.f32.mrf.mxu0
      %v5508 = vadd.f32 0.0, %v5507
      %v5509 = vpop.f32.mrf.mxu0
      %v5510 = vadd.f32 0.0, %v5509
      %5511 = vmatprep.mubr.bf16.mxu0 0
      %5512 = vmatmul.mubr.bf16.gmra.mxu0 %v1189
      %v5513 = vpop.f32.mrf.mxu0
      %v5514 = vadd.f32 0.0, %v5513
      %v5515 = vpop.f32.mrf.mxu0
      %v5516 = vadd.f32 0.0, %v5515
      %v5517 = vpop.f32.mrf.mxu0
      %v5518 = vadd.f32 0.0, %v5517
      %v5519 = vpop.f32.mrf.mxu0
      %v5520 = vadd.f32 0.0, %v5519
      %5521 = vmatprep.mubr.bf16.mxu0 0
      %5522 = vmatmul.mubr.bf16.gmra.mxu0 %v1192
      %v5523 = vpop.f32.mrf.mxu0
      %v5524 = vadd.f32 0.0, %v5523
      %v5525 = vpop.f32.mrf.mxu0
      %v5526 = vadd.f32 0.0, %v5525
      %v5527 = vpop.f32.mrf.mxu0
      %v5528 = vadd.f32 0.0, %v5527
      %v5529 = vpop.f32.mrf.mxu0
      %v5530 = vadd.f32 0.0, %v5529
      %5531 = vmatprep.mubr.bf16.mxu0 0
      %5532 = vmatmul.mubr.bf16.gmra.mxu0 %v1195
      %v5533 = vpop.f32.mrf.mxu0
      %v5534 = vadd.f32 0.0, %v5533
      %v5535 = vpop.f32.mrf.mxu0
      %v5536 = vadd.f32 0.0, %v5535
      %v5537 = vpop.f32.mrf.mxu0
      %v5538 = vadd.f32 0.0, %v5537
      %v5539 = vpop.f32.mrf.mxu0
      %v5540 = vadd.f32 0.0, %v5539
      %5541 = vmatprep.mubr.bf16.mxu0 0
      %5542 = vmatmul.mubr.bf16.gmra.mxu0 %v1198
      %v5543 = vpop.f32.mrf.mxu0
      %v5544 = vadd.f32 0.0, %v5543
      %v5545 = vpop.f32.mrf.mxu0
      %v5546 = vadd.f32 0.0, %v5545
      %v5547 = vpop.f32.mrf.mxu0
      %v5548 = vadd.f32 0.0, %v5547
      %v5549 = vpop.f32.mrf.mxu0
      %v5550 = vadd.f32 0.0, %v5549
      %5551 = vmatprep.mubr.bf16.mxu0 0
      %5552 = vmatmul.mubr.bf16.gmra.mxu0 %v1201
      %v5553 = vpop.f32.mrf.mxu0
      %v5554 = vadd.f32 0.0, %v5553
      %v5555 = vpop.f32.mrf.mxu0
      %v5556 = vadd.f32 0.0, %v5555
      %v5557 = vpop.f32.mrf.mxu0
      %v5558 = vadd.f32 0.0, %v5557
      %v5559 = vpop.f32.mrf.mxu0
      %v5560 = vadd.f32 0.0, %v5559
      %5561 = vmatprep.mubr.bf16.mxu0 0
      %5562 = vmatmul.mubr.bf16.gmra.mxu0 %v1204
      %v5563 = vpop.f32.mrf.mxu0
      %v5564 = vadd.f32 0.0, %v5563
      %v5565 = vpop.f32.mrf.mxu0
      %v5566 = vadd.f32 0.0, %v5565
      %v5567 = vpop.f32.mrf.mxu0
      %v5568 = vadd.f32 0.0, %v5567
      %v5569 = vpop.f32.mrf.mxu0
      %v5570 = vadd.f32 0.0, %v5569
      %5571 = vmatprep.mubr.bf16.mxu0 0
      %5572 = vmatmul.mubr.bf16.gmra.mxu0 %v1207
      %v5573 = vpop.f32.mrf.mxu0
      %v5574 = vadd.f32 0.0, %v5573
      %v5575 = vpop.f32.mrf.mxu0
      %v5576 = vadd.f32 0.0, %v5575
      %v5577 = vpop.f32.mrf.mxu0
      %v5578 = vadd.f32 0.0, %v5577
      %v5579 = vpop.f32.mrf.mxu0
      %v5580 = vadd.f32 0.0, %v5579
      %5581 = vmatprep.mubr.bf16.mxu0 0
      %5582 = vmatmul.mubr.bf16.gmra.mxu0 %v1210
      %v5583 = vpop.f32.mrf.mxu0
      %v5584 = vadd.f32 0.0, %v5583
      %v5585 = vpop.f32.mrf.mxu0
      %v5586 = vadd.f32 0.0, %v5585
      %v5587 = vpop.f32.mrf.mxu0
      %v5588 = vadd.f32 0.0, %v5587
      %v5589 = vpop.f32.mrf.mxu0
      %v5590 = vadd.f32 0.0, %v5589
      %5591 = vmatprep.mubr.bf16.mxu0 0
      %5592 = vmatmul.mubr.bf16.gmra.mxu0 %v1213
      %v5593 = vpop.f32.mrf.mxu0
      %v5594 = vadd.f32 0.0, %v5593
      %v5595 = vpop.f32.mrf.mxu0
      %v5596 = vadd.f32 0.0, %v5595
      %v5597 = vpop.f32.mrf.mxu0
      %v5598 = vadd.f32 0.0, %v5597
      %v5599 = vpop.f32.mrf.mxu0
      %v5600 = vadd.f32 0.0, %v5599
      %5601 = vmatprep.mubr.bf16.mxu0 0
      %5602 = vmatmul.mubr.bf16.gmra.mxu0 %v1216
      %v5603 = vpop.f32.mrf.mxu0
      %v5604 = vadd.f32 0.0, %v5603
      %v5605 = vpop.f32.mrf.mxu0
      %v5606 = vadd.f32 0.0, %v5605
      %v5607 = vpop.f32.mrf.mxu0
      %v5608 = vadd.f32 0.0, %v5607
      %v5609 = vpop.f32.mrf.mxu0
      %v5610 = vadd.f32 0.0, %v5609
      %5611 = vmatprep.mubr.bf16.mxu0 0
      %5612 = vmatmul.mubr.bf16.gmra.mxu0 %v1219
      %v5613 = vpop.f32.mrf.mxu0
      %v5614 = vadd.f32 0.0, %v5613
      %v5615 = vpop.f32.mrf.mxu0
      %v5616 = vadd.f32 0.0, %v5615
      %v5617 = vpop.f32.mrf.mxu0
      %v5618 = vadd.f32 0.0, %v5617
      %v5619 = vpop.f32.mrf.mxu0
      %v5620 = vadd.f32 0.0, %v5619
      %5621 = vmatprep.mubr.bf16.mxu0 0
      %5622 = vmatmul.mubr.bf16.gmra.mxu0 %v1222
      %v5623 = vpop.f32.mrf.mxu0
      %v5624 = vadd.f32 0.0, %v5623
      %v5625 = vpop.f32.mrf.mxu0
      %v5626 = vadd.f32 0.0, %v5625
      %v5627 = vpop.f32.mrf.mxu0
      %v5628 = vadd.f32 0.0, %v5627
      %v5629 = vpop.f32.mrf.mxu0
      %v5630 = vadd.f32 0.0, %v5629
      %5631 = vmatprep.mubr.bf16.mxu0 0
      %5632 = vmatmul.mubr.bf16.gmra.mxu0 %v1225
      %v5633 = vpop.f32.mrf.mxu0
      %v5634 = vadd.f32 0.0, %v5633
      %v5635 = vpop.f32.mrf.mxu0
      %v5636 = vadd.f32 0.0, %v5635
      %v5637 = vpop.f32.mrf.mxu0
      %v5638 = vadd.f32 0.0, %v5637
      %v5639 = vpop.f32.mrf.mxu0
      %v5640 = vadd.f32 0.0, %v5639
      %5641 = vmatprep.mubr.bf16.mxu0 0
      %5642 = vmatmul.mubr.bf16.gmra.mxu0 %v1228
      %v5643 = vpop.f32.mrf.mxu0
      %v5644 = vadd.f32 0.0, %v5643
      %v5645 = vpop.f32.mrf.mxu0
      %v5646 = vadd.f32 0.0, %v5645
      %v5647 = vpop.f32.mrf.mxu0
      %v5648 = vadd.f32 0.0, %v5647
      %v5649 = vpop.f32.mrf.mxu0
      %v5650 = vadd.f32 0.0, %v5649
      %5651 = vmatprep.mubr.bf16.mxu0 0
      %5652 = vmatmul.mubr.bf16.gmra.mxu0 %v1231
      %v5653 = vpop.f32.mrf.mxu0
      %v5654 = vadd.f32 0.0, %v5653
      %v5655 = vpop.f32.mrf.mxu0
      %v5656 = vadd.f32 0.0, %v5655
      %v5657 = vpop.f32.mrf.mxu0
      %v5658 = vadd.f32 0.0, %v5657
      %v5659 = vpop.f32.mrf.mxu0
      %v5660 = vadd.f32 0.0, %v5659
      %5661 = vmatprep.mubr.bf16.mxu0 0
      %5662 = vmatmul.mubr.bf16.gmra.mxu0 %v1234
      %v5663 = vpop.f32.mrf.mxu0
      %v5664 = vadd.f32 0.0, %v5663
      %v5665 = vpop.f32.mrf.mxu0
      %v5666 = vadd.f32 0.0, %v5665
      %v5667 = vpop.f32.mrf.mxu0
      %v5668 = vadd.f32 0.0, %v5667
      %v5669 = vpop.f32.mrf.mxu0
      %v5670 = vadd.f32 0.0, %v5669
      %5671 = vmatprep.mubr.bf16.mxu0 0
      %5672 = vmatmul.mubr.bf16.gmra.mxu0 %v1237
      %v5673 = vpop.f32.mrf.mxu0
      %v5674 = vadd.f32 0.0, %v5673
      %v5675 = vpop.f32.mrf.mxu0
      %v5676 = vadd.f32 0.0, %v5675
      %v5677 = vpop.f32.mrf.mxu0
      %v5678 = vadd.f32 0.0, %v5677
      %v5679 = vpop.f32.mrf.mxu0
      %v5680 = vadd.f32 0.0, %v5679
      %5681 = vmatprep.mubr.bf16.mxu0 0
      %5682 = vmatmul.mubr.bf16.gmra.mxu0 %v1240
      %v5683 = vpop.f32.mrf.mxu0
      %v5684 = vadd.f32 0.0, %v5683
      %v5685 = vpop.f32.mrf.mxu0
      %v5686 = vadd.f32 0.0, %v5685
      %v5687 = vpop.f32.mrf.mxu0
      %v5688 = vadd.f32 0.0, %v5687
      %v5689 = vpop.f32.mrf.mxu0
      %v5690 = vadd.f32 0.0, %v5689
      %5691 = vmatprep.mubr.bf16.mxu0 0
      %5692 = vmatmul.mubr.bf16.gmra.mxu0 %v1243
      %v5693 = vpop.f32.mrf.mxu0
      %v5694 = vadd.f32 0.0, %v5693
      %v5695 = vpop.f32.mrf.mxu0
      %v5696 = vadd.f32 0.0, %v5695
      %v5697 = vpop.f32.mrf.mxu0
      %v5698 = vadd.f32 0.0, %v5697
      %v5699 = vpop.f32.mrf.mxu0
      %v5700 = vadd.f32 0.0, %v5699
      %5701 = vmatprep.mubr.bf16.mxu0 0
      %5702 = vmatmul.mubr.bf16.gmra.mxu0 %v1246
      %v5703 = vpop.f32.mrf.mxu0
      %v5704 = vadd.f32 0.0, %v5703
      %v5705 = vpop.f32.mrf.mxu0
      %v5706 = vadd.f32 0.0, %v5705
      %v5707 = vpop.f32.mrf.mxu0
      %v5708 = vadd.f32 0.0, %v5707
      %v5709 = vpop.f32.mrf.mxu0
      %v5710 = vadd.f32 0.0, %v5709
      %5711 = vmatprep.mubr.bf16.mxu0 0
      %5712 = vmatmul.mubr.bf16.gmra.mxu0 %v1249
      %v5713 = vpop.f32.mrf.mxu0
      %v5714 = vadd.f32 0.0, %v5713
      %v5715 = vpop.f32.mrf.mxu0
      %v5716 = vadd.f32 0.0, %v5715
      %v5717 = vpop.f32.mrf.mxu0
      %v5718 = vadd.f32 0.0, %v5717
      %v5719 = vpop.f32.mrf.mxu0
      %v5720 = vadd.f32 0.0, %v5719
      %5721 = vmatprep.mubr.bf16.mxu0 0
      %5722 = vmatmul.mubr.bf16.gmra.mxu0 %v1252
      %v5723 = vpop.f32.mrf.mxu0
      %v5724 = vadd.f32 0.0, %v5723
      %v5725 = vpop.f32.mrf.mxu0
      %v5726 = vadd.f32 0.0, %v5725
      %v5727 = vpop.f32.mrf.mxu0
      %v5728 = vadd.f32 0.0, %v5727
      %v5729 = vpop.f32.mrf.mxu0
      %v5730 = vadd.f32 0.0, %v5729
      %5731 = vmatprep.mubr.bf16.mxu0 0
      %5732 = vmatmul.mubr.bf16.gmra.mxu0 %v1255
      %v5733 = vpop.f32.mrf.mxu0
      %v5734 = vadd.f32 0.0, %v5733
      %v5735 = vpop.f32.mrf.mxu0
      %v5736 = vadd.f32 0.0, %v5735
      %v5737 = vpop.f32.mrf.mxu0
      %v5738 = vadd.f32 0.0, %v5737
      %v5739 = vpop.f32.mrf.mxu0
      %v5740 = vadd.f32 0.0, %v5739
      %5741 = vmatprep.mubr.bf16.mxu0 0
      %5742 = vmatmul.mubr.bf16.gmra.mxu0 %v1258
      %v5743 = vpop.f32.mrf.mxu0
      %v5744 = vadd.f32 0.0, %v5743
      %v5745 = vpop.f32.mrf.mxu0
      %v5746 = vadd.f32 0.0, %v5745
      %v5747 = vpop.f32.mrf.mxu0
      %v5748 = vadd.f32 0.0, %v5747
      %v5749 = vpop.f32.mrf.mxu0
      %v5750 = vadd.f32 0.0, %v5749
      %5751 = vmatprep.mubr.bf16.mxu0 0
      %5752 = vmatmul.mubr.bf16.gmra.mxu0 %v1261
      %v5753 = vpop.f32.mrf.mxu0
      %v5754 = vadd.f32 0.0, %v5753
      %v5755 = vpop.f32.mrf.mxu0
      %v5756 = vadd.f32 0.0, %v5755
      %v5757 = vpop.f32.mrf.mxu0
      %v5758 = vadd.f32 0.0, %v5757
      %v5759 = vpop.f32.mrf.mxu0
      %v5760 = vadd.f32 0.0, %v5759
      %5761 = vdwg.mxu0
      %v5762 = vadd.f32 %v5043, %v5444
      %v5763 = vadd.f32 %v5045, %v5446
      %v5764 = vadd.f32 %v5047, %v5448
      %v5765 = vadd.f32 %v5049, %v5450
      %v5766 = vadd.f32 %v5053, %v5454
      %v5767 = vadd.f32 %v5055, %v5456
      %v5768 = vadd.f32 %v5057, %v5458
      %v5769 = vadd.f32 %v5059, %v5460
      %v5770 = vadd.f32 %v5063, %v5464
      %v5771 = vadd.f32 %v5065, %v5466
      %v5772 = vadd.f32 %v5067, %v5468
      %v5773 = vadd.f32 %v5069, %v5470
      %v5774 = vadd.f32 %v5073, %v5474
      %v5775 = vadd.f32 %v5075, %v5476
      %v5776 = vadd.f32 %v5077, %v5478
      %v5777 = vadd.f32 %v5079, %v5480
      %v5778 = vadd.f32 %v5083, %v5484
      %v5779 = vadd.f32 %v5085, %v5486
      %v5780 = vadd.f32 %v5087, %v5488
      %v5781 = vadd.f32 %v5089, %v5490
      %v5782 = vadd.f32 %v5093, %v5494
      %v5783 = vadd.f32 %v5095, %v5496
      %v5784 = vadd.f32 %v5097, %v5498
      %v5785 = vadd.f32 %v5099, %v5500
      %v5786 = vadd.f32 %v5103, %v5504
      %v5787 = vadd.f32 %v5105, %v5506
      %v5788 = vadd.f32 %v5107, %v5508
      %v5789 = vadd.f32 %v5109, %v5510
      %v5790 = vadd.f32 %v5113, %v5514
      %v5791 = vadd.f32 %v5115, %v5516
      %v5792 = vadd.f32 %v5117, %v5518
      %v5793 = vadd.f32 %v5119, %v5520
      %v5794 = vadd.f32 %v5123, %v5524
      %v5795 = vadd.f32 %v5125, %v5526
      %v5796 = vadd.f32 %v5127, %v5528
      %v5797 = vadd.f32 %v5129, %v5530
      %v5798 = vadd.f32 %v5133, %v5534
      %v5799 = vadd.f32 %v5135, %v5536
      %v5800 = vadd.f32 %v5137, %v5538
      %v5801 = vadd.f32 %v5139, %v5540
      %v5802 = vadd.f32 %v5143, %v5544
      %v5803 = vadd.f32 %v5145, %v5546
      %v5804 = vadd.f32 %v5147, %v5548
      %v5805 = vadd.f32 %v5149, %v5550
      %v5806 = vadd.f32 %v5153, %v5554
      %v5807 = vadd.f32 %v5155, %v5556
      %v5808 = vadd.f32 %v5157, %v5558
      %v5809 = vadd.f32 %v5159, %v5560
      %v5810 = vadd.f32 %v5163, %v5564
      %v5811 = vadd.f32 %v5165, %v5566
      %v5812 = vadd.f32 %v5167, %v5568
      %v5813 = vadd.f32 %v5169, %v5570
      %v5814 = vadd.f32 %v5173, %v5574
      %v5815 = vadd.f32 %v5175, %v5576
      %v5816 = vadd.f32 %v5177, %v5578
      %v5817 = vadd.f32 %v5179, %v5580
      %v5818 = vadd.f32 %v5183, %v5584
      %v5819 = vadd.f32 %v5185, %v5586
      %v5820 = vadd.f32 %v5187, %v5588
      %v5821 = vadd.f32 %v5189, %v5590
      %v5822 = vadd.f32 %v5193, %v5594
      %v5823 = vadd.f32 %v5195, %v5596
      %v5824 = vadd.f32 %v5197, %v5598
      %v5825 = vadd.f32 %v5199, %v5600
      %v5826 = vadd.f32 %v5203, %v5604
      %v5827 = vadd.f32 %v5205, %v5606
      %v5828 = vadd.f32 %v5207, %v5608
      %v5829 = vadd.f32 %v5209, %v5610
      %v5830 = vadd.f32 %v5213, %v5614
      %v5831 = vadd.f32 %v5215, %v5616
      %v5832 = vadd.f32 %v5217, %v5618
      %v5833 = vadd.f32 %v5219, %v5620
      %v5834 = vadd.f32 %v5223, %v5624
      %v5835 = vadd.f32 %v5225, %v5626
      %v5836 = vadd.f32 %v5227, %v5628
      %v5837 = vadd.f32 %v5229, %v5630
      %v5838 = vadd.f32 %v5233, %v5634
      %v5839 = vadd.f32 %v5235, %v5636
      %v5840 = vadd.f32 %v5237, %v5638
      %v5841 = vadd.f32 %v5239, %v5640
      %v5842 = vadd.f32 %v5243, %v5644
      %v5843 = vadd.f32 %v5245, %v5646
      %v5844 = vadd.f32 %v5247, %v5648
      %v5845 = vadd.f32 %v5249, %v5650
      %v5846 = vadd.f32 %v5253, %v5654
      %v5847 = vadd.f32 %v5255, %v5656
      %v5848 = vadd.f32 %v5257, %v5658
      %v5849 = vadd.f32 %v5259, %v5660
      %v5850 = vadd.f32 %v5263, %v5664
      %v5851 = vadd.f32 %v5265, %v5666
      %v5852 = vadd.f32 %v5267, %v5668
      %v5853 = vadd.f32 %v5269, %v5670
      %v5854 = vadd.f32 %v5273, %v5674
      %v5855 = vadd.f32 %v5275, %v5676
      %v5856 = vadd.f32 %v5277, %v5678
      %v5857 = vadd.f32 %v5279, %v5680
      %v5858 = vadd.f32 %v5283, %v5684
      %v5859 = vadd.f32 %v5285, %v5686
      %v5860 = vadd.f32 %v5287, %v5688
      %v5861 = vadd.f32 %v5289, %v5690
      %v5862 = vadd.f32 %v5293, %v5694
      %v5863 = vadd.f32 %v5295, %v5696
      %v5864 = vadd.f32 %v5297, %v5698
      %v5865 = vadd.f32 %v5299, %v5700
      %v5866 = vadd.f32 %v5303, %v5704
      %v5867 = vadd.f32 %v5305, %v5706
      %v5868 = vadd.f32 %v5307, %v5708
      %v5869 = vadd.f32 %v5309, %v5710
      %v5870 = vadd.f32 %v5313, %v5714
      %v5871 = vadd.f32 %v5315, %v5716
      %v5872 = vadd.f32 %v5317, %v5718
      %v5873 = vadd.f32 %v5319, %v5720
      %v5874 = vadd.f32 %v5323, %v5724
      %v5875 = vadd.f32 %v5325, %v5726
      %v5876 = vadd.f32 %v5327, %v5728
      %v5877 = vadd.f32 %v5329, %v5730
      %v5878 = vadd.f32 %v5333, %v5734
      %v5879 = vadd.f32 %v5335, %v5736
      %v5880 = vadd.f32 %v5337, %v5738
      %v5881 = vadd.f32 %v5339, %v5740
      %v5882 = vadd.f32 %v5343, %v5744
      %v5883 = vadd.f32 %v5345, %v5746
      %v5884 = vadd.f32 %v5347, %v5748
      %v5885 = vadd.f32 %v5349, %v5750
      %v5886 = vadd.f32 %v5353, %v5754
      %v5887 = vadd.f32 %v5355, %v5756
      %v5888 = vadd.f32 %v5357, %v5758
      %v5889 = vadd.f32 %v5359, %v5760
      %v5890 = vmax.f32 %v5762, 0.0
      %v5891 = vmax.f32 %v5763, 0.0
      %v5892 = vmax.f32 %v5764, 0.0
      %v5893 = vmax.f32 %v5765, 0.0
      %v5894 = vmax.f32 %v5766, 0.0
      %v5895 = vmax.f32 %v5767, 0.0
      %v5896 = vmax.f32 %v5768, 0.0
      %v5897 = vmax.f32 %v5769, 0.0
      %v5898 = vmax.f32 %v5770, 0.0
      %v5899 = vmax.f32 %v5771, 0.0
      %v5900 = vmax.f32 %v5772, 0.0
      %v5901 = vmax.f32 %v5773, 0.0
      %v5902 = vmax.f32 %v5774, 0.0
      %v5903 = vmax.f32 %v5775, 0.0
      %v5904 = vmax.f32 %v5776, 0.0
      %v5905 = vmax.f32 %v5777, 0.0
      %v5906 = vmax.f32 %v5778, 0.0
      %v5907 = vmax.f32 %v5779, 0.0
      %v5908 = vmax.f32 %v5780, 0.0
      %v5909 = vmax.f32 %v5781, 0.0
      %v5910 = vmax.f32 %v5782, 0.0
      %v5911 = vmax.f32 %v5783, 0.0
      %v5912 = vmax.f32 %v5784, 0.0
      %v5913 = vmax.f32 %v5785, 0.0
      %v5914 = vmax.f32 %v5786, 0.0
      %v5915 = vmax.f32 %v5787, 0.0
      %v5916 = vmax.f32 %v5788, 0.0
      %v5917 = vmax.f32 %v5789, 0.0
      %v5918 = vmax.f32 %v5790, 0.0
      %v5919 = vmax.f32 %v5791, 0.0
      %v5920 = vmax.f32 %v5792, 0.0
      %v5921 = vmax.f32 %v5793, 0.0
      %v5922 = vmax.f32 %v5794, 0.0
      %v5923 = vmax.f32 %v5795, 0.0
      %v5924 = vmax.f32 %v5796, 0.0
      %v5925 = vmax.f32 %v5797, 0.0
      %v5926 = vmax.f32 %v5798, 0.0
      %v5927 = vmax.f32 %v5799, 0.0
      %v5928 = vmax.f32 %v5800, 0.0
      %v5929 = vmax.f32 %v5801, 0.0
      %v5930 = vmax.f32 %v5802, 0.0
      %v5931 = vmax.f32 %v5803, 0.0
      %v5932 = vmax.f32 %v5804, 0.0
      %v5933 = vmax.f32 %v5805, 0.0
      %v5934 = vmax.f32 %v5806, 0.0
      %v5935 = vmax.f32 %v5807, 0.0
      %v5936 = vmax.f32 %v5808, 0.0
      %v5937 = vmax.f32 %v5809, 0.0
      %v5938 = vmax.f32 %v5810, 0.0
      %v5939 = vmax.f32 %v5811, 0.0
      %v5940 = vmax.f32 %v5812, 0.0
      %v5941 = vmax.f32 %v5813, 0.0
      %v5942 = vmax.f32 %v5814, 0.0
      %v5943 = vmax.f32 %v5815, 0.0
      %v5944 = vmax.f32 %v5816, 0.0
      %v5945 = vmax.f32 %v5817, 0.0
      %v5946 = vmax.f32 %v5818, 0.0
      %v5947 = vmax.f32 %v5819, 0.0
      %v5948 = vmax.f32 %v5820, 0.0
      %v5949 = vmax.f32 %v5821, 0.0
      %v5950 = vmax.f32 %v5822, 0.0
      %v5951 = vmax.f32 %v5823, 0.0
      %v5952 = vmax.f32 %v5824, 0.0
      %v5953 = vmax.f32 %v5825, 0.0
      %v5954 = vmax.f32 %v5826, 0.0
      %v5955 = vmax.f32 %v5827, 0.0
      %v5956 = vmax.f32 %v5828, 0.0
      %v5957 = vmax.f32 %v5829, 0.0
      %v5958 = vmax.f32 %v5830, 0.0
      %v5959 = vmax.f32 %v5831, 0.0
      %v5960 = vmax.f32 %v5832, 0.0
      %v5961 = vmax.f32 %v5833, 0.0
      %v5962 = vmax.f32 %v5834, 0.0
      %v5963 = vmax.f32 %v5835, 0.0
      %v5964 = vmax.f32 %v5836, 0.0
      %v5965 = vmax.f32 %v5837, 0.0
      %v5966 = vmax.f32 %v5838, 0.0
      %v5967 = vmax.f32 %v5839, 0.0
      %v5968 = vmax.f32 %v5840, 0.0
      %v5969 = vmax.f32 %v5841, 0.0
      %v5970 = vmax.f32 %v5842, 0.0
      %v5971 = vmax.f32 %v5843, 0.0
      %v5972 = vmax.f32 %v5844, 0.0
      %v5973 = vmax.f32 %v5845, 0.0
      %v5974 = vmax.f32 %v5846, 0.0
      %v5975 = vmax.f32 %v5847, 0.0
      %v5976 = vmax.f32 %v5848, 0.0
      %v5977 = vmax.f32 %v5849, 0.0
      %v5978 = vmax.f32 %v5850, 0.0
      %v5979 = vmax.f32 %v5851, 0.0
      %v5980 = vmax.f32 %v5852, 0.0
      %v5981 = vmax.f32 %v5853, 0.0
      %v5982 = vmax.f32 %v5854, 0.0
      %v5983 = vmax.f32 %v5855, 0.0
      %v5984 = vmax.f32 %v5856, 0.0
      %v5985 = vmax.f32 %v5857, 0.0
      %v5986 = vmax.f32 %v5858, 0.0
      %v5987 = vmax.f32 %v5859, 0.0
      %v5988 = vmax.f32 %v5860, 0.0
      %v5989 = vmax.f32 %v5861, 0.0
      %v5990 = vmax.f32 %v5862, 0.0
      %v5991 = vmax.f32 %v5863, 0.0
      %v5992 = vmax.f32 %v5864, 0.0
      %v5993 = vmax.f32 %v5865, 0.0
      %v5994 = vmax.f32 %v5866, 0.0
      %v5995 = vmax.f32 %v5867, 0.0
      %v5996 = vmax.f32 %v5868, 0.0
      %v5997 = vmax.f32 %v5869, 0.0
      %v5998 = vmax.f32 %v5870, 0.0
      %v5999 = vmax.f32 %v5871, 0.0
      %v6000 = vmax.f32 %v5872, 0.0
      %v6001 = vmax.f32 %v5873, 0.0
      %v6002 = vmax.f32 %v5874, 0.0
      %v6003 = vmax.f32 %v5875, 0.0
      %v6004 = vmax.f32 %v5876, 0.0
      %v6005 = vmax.f32 %v5877, 0.0
      %v6006 = vmax.f32 %v5878, 0.0
      %v6007 = vmax.f32 %v5879, 0.0
      %v6008 = vmax.f32 %v5880, 0.0
      %v6009 = vmax.f32 %v5881, 0.0
      %v6010 = vmax.f32 %v5882, 0.0
      %v6011 = vmax.f32 %v5883, 0.0
      %v6012 = vmax.f32 %v5884, 0.0
      %v6013 = vmax.f32 %v5885, 0.0
      %v6014 = vmax.f32 %v5886, 0.0
      %v6015 = vmax.f32 %v5887, 0.0
      %v6016 = vmax.f32 %v5888, 0.0
      %v6017 = vmax.f32 %v5889, 0.0
      %v6018 = vpack.c.bf16 %v5892, %v5890
      %v6019 = vpack.c.bf16 %v5893, %v5891
      %v6020 = vpack.c.bf16 %v5896, %v5894
      %v6021 = vpack.c.bf16 %v5897, %v5895
      %v6022 = vpack.c.bf16 %v5900, %v5898
      %v6023 = vpack.c.bf16 %v5901, %v5899
      %v6024 = vpack.c.bf16 %v5904, %v5902
      %v6025 = vpack.c.bf16 %v5905, %v5903
      %v6026 = vpack.c.bf16 %v5908, %v5906
      %v6027 = vpack.c.bf16 %v5909, %v5907
      %v6028 = vpack.c.bf16 %v5912, %v5910
      %v6029 = vpack.c.bf16 %v5913, %v5911
      %v6030 = vpack.c.bf16 %v5916, %v5914
      %v6031 = vpack.c.bf16 %v5917, %v5915
      %v6032 = vpack.c.bf16 %v5920, %v5918
      %v6033 = vpack.c.bf16 %v5921, %v5919
      %v6034 = vpack.c.bf16 %v5924, %v5922
      %v6035 = vpack.c.bf16 %v5925, %v5923
      %v6036 = vpack.c.bf16 %v5928, %v5926
      %v6037 = vpack.c.bf16 %v5929, %v5927
      %v6038 = vpack.c.bf16 %v5932, %v5930
      %v6039 = vpack.c.bf16 %v5933, %v5931
      %v6040 = vpack.c.bf16 %v5936, %v5934
      %v6041 = vpack.c.bf16 %v5937, %v5935
      %v6042 = vpack.c.bf16 %v5940, %v5938
      %v6043 = vpack.c.bf16 %v5941, %v5939
      %v6044 = vpack.c.bf16 %v5944, %v5942
      %v6045 = vpack.c.bf16 %v5945, %v5943
      %v6046 = vpack.c.bf16 %v5948, %v5946
      %v6047 = vpack.c.bf16 %v5949, %v5947
      %v6048 = vpack.c.bf16 %v5952, %v5950
      %v6049 = vpack.c.bf16 %v5953, %v5951
      %v6050 = vpack.c.bf16 %v5956, %v5954
      %v6051 = vpack.c.bf16 %v5957, %v5955
      %v6052 = vpack.c.bf16 %v5960, %v5958
      %v6053 = vpack.c.bf16 %v5961, %v5959
      %v6054 = vpack.c.bf16 %v5964, %v5962
      %v6055 = vpack.c.bf16 %v5965, %v5963
      %v6056 = vpack.c.bf16 %v5968, %v5966
      %v6057 = vpack.c.bf16 %v5969, %v5967
      %v6058 = vpack.c.bf16 %v5972, %v5970
      %v6059 = vpack.c.bf16 %v5973, %v5971
      %v6060 = vpack.c.bf16 %v5976, %v5974
      %v6061 = vpack.c.bf16 %v5977, %v5975
      %v6062 = vpack.c.bf16 %v5980, %v5978
      %v6063 = vpack.c.bf16 %v5981, %v5979
      %v6064 = vpack.c.bf16 %v5984, %v5982
      %v6065 = vpack.c.bf16 %v5985, %v5983
      %v6066 = vpack.c.bf16 %v5988, %v5986
      %v6067 = vpack.c.bf16 %v5989, %v5987
      %v6068 = vpack.c.bf16 %v5992, %v5990
      %v6069 = vpack.c.bf16 %v5993, %v5991
      %v6070 = vpack.c.bf16 %v5996, %v5994
      %v6071 = vpack.c.bf16 %v5997, %v5995
      %v6072 = vpack.c.bf16 %v6000, %v5998
      %v6073 = vpack.c.bf16 %v6001, %v5999
      %v6074 = vpack.c.bf16 %v6004, %v6002
      %v6075 = vpack.c.bf16 %v6005, %v6003
      %v6076 = vpack.c.bf16 %v6008, %v6006
      %v6077 = vpack.c.bf16 %v6009, %v6007
      %v6078 = vpack.c.bf16 %v6012, %v6010
      %v6079 = vpack.c.bf16 %v6013, %v6011
      %v6080 = vpack.c.bf16 %v6016, %v6014
      %v6081 = vpack.c.bf16 %v6017, %v6015
      %v6082 = vld [vmem:[%s14] sm:$0xff]
      %v6083 = vld [vmem:[%s14 + $0x8] sm:$0xff]
      %v6084 = vld [vmem:[%s14 + $0x10] sm:$0xff]
      %v6085 = vld [vmem:[%s14 + $0x18] sm:$0xff]
      %v6086 = vld [vmem:[%s14 + $0x20] sm:$0xff]
      %v6087 = vld [vmem:[%s14 + $0x28] sm:$0xff]
      %v6088 = vld [vmem:[%s14 + $0x30] sm:$0xff]
      %v6089 = vld [vmem:[%s14 + $0x38] sm:$0xff]
      %v6090 = vld [vmem:[%s14 + $0x40] sm:$0xff]
      %v6091 = vld [vmem:[%s14 + $0x48] sm:$0xff]
      %v6092 = vld [vmem:[%s14 + $0x50] sm:$0xff]
      %v6093 = vld [vmem:[%s14 + $0x58] sm:$0xff]
      %v6094 = vld [vmem:[%s14 + $0x60] sm:$0xff]
      %v6095 = vld [vmem:[%s14 + $0x68] sm:$0xff]
      %v6096 = vld [vmem:[%s14 + $0x70] sm:$0xff]
      %v6097 = vld [vmem:[%s14 + $0x78] sm:$0xff]
      %v6098 = vld [vmem:[%s14 + $0x80] sm:$0xff]
      %v6099 = vld [vmem:[%s14 + $0x88] sm:$0xff]
      %v6100 = vld [vmem:[%s14 + $0x90] sm:$0xff]
      %v6101 = vld [vmem:[%s14 + $0x98] sm:$0xff]
      %v6102 = vld [vmem:[%s14 + $0xa0] sm:$0xff]
      %v6103 = vld [vmem:[%s14 + $0xa8] sm:$0xff]
      %v6104 = vld [vmem:[%s14 + $0xb0] sm:$0xff]
      %v6105 = vld [vmem:[%s14 + $0xb8] sm:$0xff]
      %v6106 = vld [vmem:[%s14 + $0xc0] sm:$0xff]
      %v6107 = vld [vmem:[%s14 + $0xc8] sm:$0xff]
      %v6108 = vld [vmem:[%s14 + $0xd0] sm:$0xff]
      %v6109 = vld [vmem:[%s14 + $0xd8] sm:$0xff]
      %v6110 = vld [vmem:[%s14 + $0xe0] sm:$0xff]
      %v6111 = vld [vmem:[%s14 + $0xe8] sm:$0xff]
      %v6112 = vld [vmem:[%s14 + $0xf0] sm:$0xff]
      %v6113 = vld [vmem:[%s14 + $0xf8] sm:$0xff]
      %v6114 = vld [vmem:[%s15] sm:$0x3]
      %v6116 = vlaneseq
      %v6117 = vshrl.u32 %v6116, 7
      %v6118 = vsub.s32 0, %v6117
      %v6119 = vrot.slane %v6114, %v6118
      %v6120 = vlaneseq
      %v6121 = vshrl.u32 %v6120, 7
      %v6122 = vsub.s32 1, %v6121
      %v6123 = vrot.slane %v6114, %v6122
      %v6158 = vunpack.c.l.b16 %v6082
      %v6159 = vunpack.c.h.b16 %v6082
      %v6160 = vunpack.c.l.b16 %v6083
      %v6161 = vunpack.c.h.b16 %v6083
      %v6162 = vunpack.c.l.b16 %v6084
      %v6163 = vunpack.c.h.b16 %v6084
      %v6164 = vunpack.c.l.b16 %v6085
      %v6165 = vunpack.c.h.b16 %v6085
      %v6166 = vunpack.c.l.b16 %v6086
      %v6167 = vunpack.c.h.b16 %v6086
      %v6168 = vunpack.c.l.b16 %v6087
      %v6169 = vunpack.c.h.b16 %v6087
      %v6170 = vunpack.c.l.b16 %v6088
      %v6171 = vunpack.c.h.b16 %v6088
      %v6172 = vunpack.c.l.b16 %v6089
      %v6173 = vunpack.c.h.b16 %v6089
      %v6174 = vunpack.c.l.b16 %v6090
      %v6175 = vunpack.c.h.b16 %v6090
      %v6176 = vunpack.c.l.b16 %v6091
      %v6177 = vunpack.c.h.b16 %v6091
      %v6178 = vunpack.c.l.b16 %v6092
      %v6179 = vunpack.c.h.b16 %v6092
      %v6180 = vunpack.c.l.b16 %v6093
      %v6181 = vunpack.c.h.b16 %v6093
      %v6182 = vunpack.c.l.b16 %v6094
      %v6183 = vunpack.c.h.b16 %v6094
      %v6184 = vunpack.c.l.b16 %v6095
      %v6185 = vunpack.c.h.b16 %v6095
      %v6186 = vunpack.c.l.b16 %v6096
      %v6187 = vunpack.c.h.b16 %v6096
      %v6188 = vunpack.c.l.b16 %v6097
      %v6189 = vunpack.c.h.b16 %v6097
      %v6190 = vunpack.c.l.b16 %v6098
      %v6191 = vunpack.c.h.b16 %v6098
      %v6192 = vunpack.c.l.b16 %v6099
      %v6193 = vunpack.c.h.b16 %v6099
      %v6194 = vunpack.c.l.b16 %v6100
      %v6195 = vunpack.c.h.b16 %v6100
      %v6196 = vunpack.c.l.b16 %v6101
      %v6197 = vunpack.c.h.b16 %v6101
      %v6198 = vunpack.c.l.b16 %v6102
      %v6199 = vunpack.c.h.b16 %v6102
      %v6200 = vunpack.c.l.b16 %v6103
      %v6201 = vunpack.c.h.b16 %v6103
      %v6202 = vunpack.c.l.b16 %v6104
      %v6203 = vunpack.c.h.b16 %v6104
      %v6204 = vunpack.c.l.b16 %v6105
      %v6205 = vunpack.c.h.b16 %v6105
      %v6206 = vunpack.c.l.b16 %v6106
      %v6207 = vunpack.c.h.b16 %v6106
      %v6208 = vunpack.c.l.b16 %v6107
      %v6209 = vunpack.c.h.b16 %v6107
      %v6210 = vunpack.c.l.b16 %v6108
      %v6211 = vunpack.c.h.b16 %v6108
      %v6212 = vunpack.c.l.b16 %v6109
      %v6213 = vunpack.c.h.b16 %v6109
      %v6214 = vunpack.c.l.b16 %v6110
      %v6215 = vunpack.c.h.b16 %v6110
      %v6216 = vunpack.c.l.b16 %v6111
      %v6217 = vunpack.c.h.b16 %v6111
      %v6218 = vunpack.c.l.b16 %v6112
      %v6219 = vunpack.c.h.b16 %v6112
      %v6220 = vunpack.c.l.b16 %v6113
      %v6221 = vunpack.c.h.b16 %v6113
      %v6222 = vpack.c.b16 %v6160, %v6158
      %v6223 = vpack.c.b16 %v6161, %v6159
      %v6224 = vpack.c.b16 %v6164, %v6162
      %v6225 = vpack.c.b16 %v6165, %v6163
      %v6226 = vpack.c.b16 %v6168, %v6166
      %v6227 = vpack.c.b16 %v6169, %v6167
      %v6228 = vpack.c.b16 %v6172, %v6170
      %v6229 = vpack.c.b16 %v6173, %v6171
      %v6230 = vpack.c.b16 %v6176, %v6174
      %v6231 = vpack.c.b16 %v6177, %v6175
      %v6232 = vpack.c.b16 %v6180, %v6178
      %v6233 = vpack.c.b16 %v6181, %v6179
      %v6234 = vpack.c.b16 %v6184, %v6182
      %v6235 = vpack.c.b16 %v6185, %v6183
      %v6236 = vpack.c.b16 %v6188, %v6186
      %v6237 = vpack.c.b16 %v6189, %v6187
      %v6238 = vpack.c.b16 %v6192, %v6190
      %v6239 = vpack.c.b16 %v6193, %v6191
      %v6240 = vpack.c.b16 %v6196, %v6194
      %v6241 = vpack.c.b16 %v6197, %v6195
      %v6242 = vpack.c.b16 %v6200, %v6198
      %v6243 = vpack.c.b16 %v6201, %v6199
      %v6244 = vpack.c.b16 %v6204, %v6202
      %v6245 = vpack.c.b16 %v6205, %v6203
      %v6246 = vpack.c.b16 %v6208, %v6206
      %v6247 = vpack.c.b16 %v6209, %v6207
      %v6248 = vpack.c.b16 %v6212, %v6210
      %v6249 = vpack.c.b16 %v6213, %v6211
      %v6250 = vpack.c.b16 %v6216, %v6214
      %v6251 = vpack.c.b16 %v6217, %v6215
      %v6252 = vpack.c.b16 %v6220, %v6218
      %v6253 = vpack.c.b16 %v6221, %v6219
      %6286 = vmatprep.subr.bf16.mxu0 %v6237
      %6287 = vmatpush1.bf16.msra.mxu0 %v6236
      %6288 = vmatprep.subr.bf16.mxu0 %v6235
      %6289 = vmatpush1.bf16.msra.mxu0 %v6234
      %6290 = vmatprep.subr.bf16.mxu0 %v6233
      %6291 = vmatpush1.bf16.msra.mxu0 %v6232
      %6292 = vmatprep.subr.bf16.mxu0 %v6231
      %6293 = vmatpush1.bf16.msra.mxu0 %v6230
      %6294 = vmatprep.subr.bf16.mxu0 %v6229
      %6295 = vmatpush1.bf16.msra.mxu0 %v6228
      %6296 = vmatprep.subr.bf16.mxu0 %v6227
      %6297 = vmatpush1.bf16.msra.mxu0 %v6226
      %6298 = vmatprep.subr.bf16.mxu0 %v6225
      %6299 = vmatpush1.bf16.msra.mxu0 %v6224
      %6300 = vmatprep.subr.bf16.mxu0 %v6223
      %6301 = vmatpush1.bf16.msra.mxu0 %v6222
      %6302 = vmatprep.subr.bf16.mxu0 %v6253
      %6303 = vmatpush2.bf16.msra.mxu0 %v6252
      %6304 = vmatprep.subr.bf16.mxu0 %v6251
      %6305 = vmatpush2.bf16.msra.mxu0 %v6250
      %6306 = vmatprep.subr.bf16.mxu0 %v6249
      %6307 = vmatpush2.bf16.msra.mxu0 %v6248
      %6308 = vmatprep.subr.bf16.mxu0 %v6247
      %6309 = vmatpush2.bf16.msra.mxu0 %v6246
      %6310 = vmatprep.subr.bf16.mxu0 %v6245
      %6311 = vmatpush2.bf16.msra.mxu0 %v6244
      %6312 = vmatprep.subr.bf16.mxu0 %v6243
      %6313 = vmatpush2.bf16.msra.mxu0 %v6242
      %6314 = vmatprep.subr.bf16.mxu0 %v6241
      %6315 = vmatpush2.bf16.msra.mxu0 %v6240
      %6316 = vmatprep.subr.bf16.mxu0 %v6239
      %6317 = vmatpush2.bf16.msra.mxu0 %v6238
      %6318 = vmatprep.mubr.bf16.mxu0 %v6019
      %6319 = vmatmul.mubr.bf16.gmra.mxu0 %v6018
      %v6320 = vpop.f32.mrf.mxu0
      %v6321 = vadd.f32 %v6119, %v6320
      %v6322 = vpop.f32.mrf.mxu0
      %v6323 = vadd.f32 %v6123, %v6322
      %v6324 = vpop.f32.mrf.mxu0
      %v6325 = vadd.f32 %v6119, %v6324
      %v6326 = vpop.f32.mrf.mxu0
      %v6327 = vadd.f32 %v6123, %v6326
      %6328 = vmatprep.mubr.bf16.mxu0 %v6021
      %6329 = vmatmul.mubr.bf16.gmra.mxu0 %v6020
      %v6330 = vpop.f32.mrf.mxu0
      %v6331 = vadd.f32 %v6119, %v6330
      %v6332 = vpop.f32.mrf.mxu0
      %v6333 = vadd.f32 %v6123, %v6332
      %v6334 = vpop.f32.mrf.mxu0
      %v6335 = vadd.f32 %v6119, %v6334
      %v6336 = vpop.f32.mrf.mxu0
      %v6337 = vadd.f32 %v6123, %v6336
      %6338 = vmatprep.mubr.bf16.mxu0 %v6023
      %6339 = vmatmul.mubr.bf16.gmra.mxu0 %v6022
      %v6340 = vpop.f32.mrf.mxu0
      %v6341 = vadd.f32 %v6119, %v6340
      %v6342 = vpop.f32.mrf.mxu0
      %v6343 = vadd.f32 %v6123, %v6342
      %v6344 = vpop.f32.mrf.mxu0
      %v6345 = vadd.f32 %v6119, %v6344
      %v6346 = vpop.f32.mrf.mxu0
      %v6347 = vadd.f32 %v6123, %v6346
      %6348 = vmatprep.mubr.bf16.mxu0 %v6025
      %6349 = vmatmul.mubr.bf16.gmra.mxu0 %v6024
      %v6350 = vpop.f32.mrf.mxu0
      %v6351 = vadd.f32 %v6119, %v6350
      %v6352 = vpop.f32.mrf.mxu0
      %v6353 = vadd.f32 %v6123, %v6352
      %v6354 = vpop.f32.mrf.mxu0
      %v6355 = vadd.f32 %v6119, %v6354
      %v6356 = vpop.f32.mrf.mxu0
      %v6357 = vadd.f32 %v6123, %v6356
      %6358 = vmatprep.mubr.bf16.mxu0 %v6027
      %6359 = vmatmul.mubr.bf16.gmra.mxu0 %v6026
      %v6360 = vpop.f32.mrf.mxu0
      %v6361 = vadd.f32 %v6119, %v6360
      %v6362 = vpop.f32.mrf.mxu0
      %v6363 = vadd.f32 %v6123, %v6362
      %v6364 = vpop.f32.mrf.mxu0
      %v6365 = vadd.f32 %v6119, %v6364
      %v6366 = vpop.f32.mrf.mxu0
      %v6367 = vadd.f32 %v6123, %v6366
      %6368 = vmatprep.mubr.bf16.mxu0 %v6029
      %6369 = vmatmul.mubr.bf16.gmra.mxu0 %v6028
      %v6370 = vpop.f32.mrf.mxu0
      %v6371 = vadd.f32 %v6119, %v6370
      %v6372 = vpop.f32.mrf.mxu0
      %v6373 = vadd.f32 %v6123, %v6372
      %v6374 = vpop.f32.mrf.mxu0
      %v6375 = vadd.f32 %v6119, %v6374
      %v6376 = vpop.f32.mrf.mxu0
      %v6377 = vadd.f32 %v6123, %v6376
      %6378 = vmatprep.mubr.bf16.mxu0 %v6031
      %6379 = vmatmul.mubr.bf16.gmra.mxu0 %v6030
      %v6380 = vpop.f32.mrf.mxu0
      %v6381 = vadd.f32 %v6119, %v6380
      %v6382 = vpop.f32.mrf.mxu0
      %v6383 = vadd.f32 %v6123, %v6382
      %v6384 = vpop.f32.mrf.mxu0
      %v6385 = vadd.f32 %v6119, %v6384
      %v6386 = vpop.f32.mrf.mxu0
      %v6387 = vadd.f32 %v6123, %v6386
      %6388 = vmatprep.mubr.bf16.mxu0 %v6033
      %6389 = vmatmul.mubr.bf16.gmra.mxu0 %v6032
      %v6390 = vpop.f32.mrf.mxu0
      %v6391 = vadd.f32 %v6119, %v6390
      %v6392 = vpop.f32.mrf.mxu0
      %v6393 = vadd.f32 %v6123, %v6392
      %v6394 = vpop.f32.mrf.mxu0
      %v6395 = vadd.f32 %v6119, %v6394
      %v6396 = vpop.f32.mrf.mxu0
      %v6397 = vadd.f32 %v6123, %v6396
      %6398 = vmatprep.mubr.bf16.mxu0 %v6035
      %6399 = vmatmul.mubr.bf16.gmra.mxu0 %v6034
      %v6400 = vpop.f32.mrf.mxu0
      %v6401 = vadd.f32 %v6119, %v6400
      %v6402 = vpop.f32.mrf.mxu0
      %v6403 = vadd.f32 %v6123, %v6402
      %v6404 = vpop.f32.mrf.mxu0
      %v6405 = vadd.f32 %v6119, %v6404
      %v6406 = vpop.f32.mrf.mxu0
      %v6407 = vadd.f32 %v6123, %v6406
      %6408 = vmatprep.mubr.bf16.mxu0 %v6037
      %6409 = vmatmul.mubr.bf16.gmra.mxu0 %v6036
      %v6410 = vpop.f32.mrf.mxu0
      %v6411 = vadd.f32 %v6119, %v6410
      %v6412 = vpop.f32.mrf.mxu0
      %v6413 = vadd.f32 %v6123, %v6412
      %v6414 = vpop.f32.mrf.mxu0
      %v6415 = vadd.f32 %v6119, %v6414
      %v6416 = vpop.f32.mrf.mxu0
      %v6417 = vadd.f32 %v6123, %v6416
      %6418 = vmatprep.mubr.bf16.mxu0 %v6039
      %6419 = vmatmul.mubr.bf16.gmra.mxu0 %v6038
      %v6420 = vpop.f32.mrf.mxu0
      %v6421 = vadd.f32 %v6119, %v6420
      %v6422 = vpop.f32.mrf.mxu0
      %v6423 = vadd.f32 %v6123, %v6422
      %v6424 = vpop.f32.mrf.mxu0
      %v6425 = vadd.f32 %v6119, %v6424
      %v6426 = vpop.f32.mrf.mxu0
      %v6427 = vadd.f32 %v6123, %v6426
      %6428 = vmatprep.mubr.bf16.mxu0 %v6041
      %6429 = vmatmul.mubr.bf16.gmra.mxu0 %v6040
      %v6430 = vpop.f32.mrf.mxu0
      %v6431 = vadd.f32 %v6119, %v6430
      %v6432 = vpop.f32.mrf.mxu0
      %v6433 = vadd.f32 %v6123, %v6432
      %v6434 = vpop.f32.mrf.mxu0
      %v6435 = vadd.f32 %v6119, %v6434
      %v6436 = vpop.f32.mrf.mxu0
      %v6437 = vadd.f32 %v6123, %v6436
      %6438 = vmatprep.mubr.bf16.mxu0 %v6043
      %6439 = vmatmul.mubr.bf16.gmra.mxu0 %v6042
      %v6440 = vpop.f32.mrf.mxu0
      %v6441 = vadd.f32 %v6119, %v6440
      %v6442 = vpop.f32.mrf.mxu0
      %v6443 = vadd.f32 %v6123, %v6442
      %v6444 = vpop.f32.mrf.mxu0
      %v6445 = vadd.f32 %v6119, %v6444
      %v6446 = vpop.f32.mrf.mxu0
      %v6447 = vadd.f32 %v6123, %v6446
      %6448 = vmatprep.mubr.bf16.mxu0 %v6045
      %6449 = vmatmul.mubr.bf16.gmra.mxu0 %v6044
      %v6450 = vpop.f32.mrf.mxu0
      %v6451 = vadd.f32 %v6119, %v6450
      %v6452 = vpop.f32.mrf.mxu0
      %v6453 = vadd.f32 %v6123, %v6452
      %v6454 = vpop.f32.mrf.mxu0
      %v6455 = vadd.f32 %v6119, %v6454
      %v6456 = vpop.f32.mrf.mxu0
      %v6457 = vadd.f32 %v6123, %v6456
      %6458 = vmatprep.mubr.bf16.mxu0 %v6047
      %6459 = vmatmul.mubr.bf16.gmra.mxu0 %v6046
      %v6460 = vpop.f32.mrf.mxu0
      %v6461 = vadd.f32 %v6119, %v6460
      %v6462 = vpop.f32.mrf.mxu0
      %v6463 = vadd.f32 %v6123, %v6462
      %v6464 = vpop.f32.mrf.mxu0
      %v6465 = vadd.f32 %v6119, %v6464
      %v6466 = vpop.f32.mrf.mxu0
      %v6467 = vadd.f32 %v6123, %v6466
      %6468 = vmatprep.mubr.bf16.mxu0 %v6049
      %6469 = vmatmul.mubr.bf16.gmra.mxu0 %v6048
      %v6470 = vpop.f32.mrf.mxu0
      %v6471 = vadd.f32 %v6119, %v6470
      %v6472 = vpop.f32.mrf.mxu0
      %v6473 = vadd.f32 %v6123, %v6472
      %v6474 = vpop.f32.mrf.mxu0
      %v6475 = vadd.f32 %v6119, %v6474
      %v6476 = vpop.f32.mrf.mxu0
      %v6477 = vadd.f32 %v6123, %v6476
      %6478 = vmatprep.mubr.bf16.mxu0 %v6051
      %6479 = vmatmul.mubr.bf16.gmra.mxu0 %v6050
      %v6480 = vpop.f32.mrf.mxu0
      %v6481 = vadd.f32 %v6119, %v6480
      %v6482 = vpop.f32.mrf.mxu0
      %v6483 = vadd.f32 %v6123, %v6482
      %v6484 = vpop.f32.mrf.mxu0
      %v6485 = vadd.f32 %v6119, %v6484
      %v6486 = vpop.f32.mrf.mxu0
      %v6487 = vadd.f32 %v6123, %v6486
      %6488 = vmatprep.mubr.bf16.mxu0 %v6053
      %6489 = vmatmul.mubr.bf16.gmra.mxu0 %v6052
      %v6490 = vpop.f32.mrf.mxu0
      %v6491 = vadd.f32 %v6119, %v6490
      %v6492 = vpop.f32.mrf.mxu0
      %v6493 = vadd.f32 %v6123, %v6492
      %v6494 = vpop.f32.mrf.mxu0
      %v6495 = vadd.f32 %v6119, %v6494
      %v6496 = vpop.f32.mrf.mxu0
      %v6497 = vadd.f32 %v6123, %v6496
      %6498 = vmatprep.mubr.bf16.mxu0 %v6055
      %6499 = vmatmul.mubr.bf16.gmra.mxu0 %v6054
      %v6500 = vpop.f32.mrf.mxu0
      %v6501 = vadd.f32 %v6119, %v6500
      %v6502 = vpop.f32.mrf.mxu0
      %v6503 = vadd.f32 %v6123, %v6502
      %v6504 = vpop.f32.mrf.mxu0
      %v6505 = vadd.f32 %v6119, %v6504
      %v6506 = vpop.f32.mrf.mxu0
      %v6507 = vadd.f32 %v6123, %v6506
      %6508 = vmatprep.mubr.bf16.mxu0 %v6057
      %6509 = vmatmul.mubr.bf16.gmra.mxu0 %v6056
      %v6510 = vpop.f32.mrf.mxu0
      %v6511 = vadd.f32 %v6119, %v6510
      %v6512 = vpop.f32.mrf.mxu0
      %v6513 = vadd.f32 %v6123, %v6512
      %v6514 = vpop.f32.mrf.mxu0
      %v6515 = vadd.f32 %v6119, %v6514
      %v6516 = vpop.f32.mrf.mxu0
      %v6517 = vadd.f32 %v6123, %v6516
      %6518 = vmatprep.mubr.bf16.mxu0 %v6059
      %6519 = vmatmul.mubr.bf16.gmra.mxu0 %v6058
      %v6520 = vpop.f32.mrf.mxu0
      %v6521 = vadd.f32 %v6119, %v6520
      %v6522 = vpop.f32.mrf.mxu0
      %v6523 = vadd.f32 %v6123, %v6522
      %v6524 = vpop.f32.mrf.mxu0
      %v6525 = vadd.f32 %v6119, %v6524
      %v6526 = vpop.f32.mrf.mxu0
      %v6527 = vadd.f32 %v6123, %v6526
      %6528 = vmatprep.mubr.bf16.mxu0 %v6061
      %6529 = vmatmul.mubr.bf16.gmra.mxu0 %v6060
      %v6530 = vpop.f32.mrf.mxu0
      %v6531 = vadd.f32 %v6119, %v6530
      %v6532 = vpop.f32.mrf.mxu0
      %v6533 = vadd.f32 %v6123, %v6532
      %v6534 = vpop.f32.mrf.mxu0
      %v6535 = vadd.f32 %v6119, %v6534
      %v6536 = vpop.f32.mrf.mxu0
      %v6537 = vadd.f32 %v6123, %v6536
      %6538 = vmatprep.mubr.bf16.mxu0 %v6063
      %6539 = vmatmul.mubr.bf16.gmra.mxu0 %v6062
      %v6540 = vpop.f32.mrf.mxu0
      %v6541 = vadd.f32 %v6119, %v6540
      %v6542 = vpop.f32.mrf.mxu0
      %v6543 = vadd.f32 %v6123, %v6542
      %v6544 = vpop.f32.mrf.mxu0
      %v6545 = vadd.f32 %v6119, %v6544
      %v6546 = vpop.f32.mrf.mxu0
      %v6547 = vadd.f32 %v6123, %v6546
      %6548 = vmatprep.mubr.bf16.mxu0 %v6065
      %6549 = vmatmul.mubr.bf16.gmra.mxu0 %v6064
      %v6550 = vpop.f32.mrf.mxu0
      %v6551 = vadd.f32 %v6119, %v6550
      %v6552 = vpop.f32.mrf.mxu0
      %v6553 = vadd.f32 %v6123, %v6552
      %v6554 = vpop.f32.mrf.mxu0
      %v6555 = vadd.f32 %v6119, %v6554
      %v6556 = vpop.f32.mrf.mxu0
      %v6557 = vadd.f32 %v6123, %v6556
      %6558 = vmatprep.mubr.bf16.mxu0 %v6067
      %6559 = vmatmul.mubr.bf16.gmra.mxu0 %v6066
      %v6560 = vpop.f32.mrf.mxu0
      %v6561 = vadd.f32 %v6119, %v6560
      %v6562 = vpop.f32.mrf.mxu0
      %v6563 = vadd.f32 %v6123, %v6562
      %v6564 = vpop.f32.mrf.mxu0
      %v6565 = vadd.f32 %v6119, %v6564
      %v6566 = vpop.f32.mrf.mxu0
      %v6567 = vadd.f32 %v6123, %v6566
      %6568 = vmatprep.mubr.bf16.mxu0 %v6069
      %6569 = vmatmul.mubr.bf16.gmra.mxu0 %v6068
      %v6570 = vpop.f32.mrf.mxu0
      %v6571 = vadd.f32 %v6119, %v6570
      %v6572 = vpop.f32.mrf.mxu0
      %v6573 = vadd.f32 %v6123, %v6572
      %v6574 = vpop.f32.mrf.mxu0
      %v6575 = vadd.f32 %v6119, %v6574
      %v6576 = vpop.f32.mrf.mxu0
      %v6577 = vadd.f32 %v6123, %v6576
      %6578 = vmatprep.mubr.bf16.mxu0 %v6071
      %6579 = vmatmul.mubr.bf16.gmra.mxu0 %v6070
      %v6580 = vpop.f32.mrf.mxu0
      %v6581 = vadd.f32 %v6119, %v6580
      %v6582 = vpop.f32.mrf.mxu0
      %v6583 = vadd.f32 %v6123, %v6582
      %v6584 = vpop.f32.mrf.mxu0
      %v6585 = vadd.f32 %v6119, %v6584
      %v6586 = vpop.f32.mrf.mxu0
      %v6587 = vadd.f32 %v6123, %v6586
      %6588 = vmatprep.mubr.bf16.mxu0 %v6073
      %6589 = vmatmul.mubr.bf16.gmra.mxu0 %v6072
      %v6590 = vpop.f32.mrf.mxu0
      %v6591 = vadd.f32 %v6119, %v6590
      %v6592 = vpop.f32.mrf.mxu0
      %v6593 = vadd.f32 %v6123, %v6592
      %v6594 = vpop.f32.mrf.mxu0
      %v6595 = vadd.f32 %v6119, %v6594
      %v6596 = vpop.f32.mrf.mxu0
      %v6597 = vadd.f32 %v6123, %v6596
      %6598 = vmatprep.mubr.bf16.mxu0 %v6075
      %6599 = vmatmul.mubr.bf16.gmra.mxu0 %v6074
      %v6600 = vpop.f32.mrf.mxu0
      %v6601 = vadd.f32 %v6119, %v6600
      %v6602 = vpop.f32.mrf.mxu0
      %v6603 = vadd.f32 %v6123, %v6602
      %v6604 = vpop.f32.mrf.mxu0
      %v6605 = vadd.f32 %v6119, %v6604
      %v6606 = vpop.f32.mrf.mxu0
      %v6607 = vadd.f32 %v6123, %v6606
      %6608 = vmatprep.mubr.bf16.mxu0 %v6077
      %6609 = vmatmul.mubr.bf16.gmra.mxu0 %v6076
      %v6610 = vpop.f32.mrf.mxu0
      %v6611 = vadd.f32 %v6119, %v6610
      %v6612 = vpop.f32.mrf.mxu0
      %v6613 = vadd.f32 %v6123, %v6612
      %v6614 = vpop.f32.mrf.mxu0
      %v6615 = vadd.f32 %v6119, %v6614
      %v6616 = vpop.f32.mrf.mxu0
      %v6617 = vadd.f32 %v6123, %v6616
      %6618 = vmatprep.mubr.bf16.mxu0 %v6079
      %6619 = vmatmul.mubr.bf16.gmra.mxu0 %v6078
      %v6620 = vpop.f32.mrf.mxu0
      %v6621 = vadd.f32 %v6119, %v6620
      %v6622 = vpop.f32.mrf.mxu0
      %v6623 = vadd.f32 %v6123, %v6622
      %v6624 = vpop.f32.mrf.mxu0
      %v6625 = vadd.f32 %v6119, %v6624
      %v6626 = vpop.f32.mrf.mxu0
      %v6627 = vadd.f32 %v6123, %v6626
      %6628 = vmatprep.mubr.bf16.mxu0 %v6081
      %6629 = vmatmul.mubr.bf16.gmra.mxu0 %v6080
      %v6630 = vpop.f32.mrf.mxu0
      %v6631 = vadd.f32 %v6119, %v6630
      %v6632 = vpop.f32.mrf.mxu0
      %v6633 = vadd.f32 %v6123, %v6632
      %v6634 = vpop.f32.mrf.mxu0
      %v6635 = vadd.f32 %v6119, %v6634
      %v6636 = vpop.f32.mrf.mxu0
      %v6637 = vadd.f32 %v6123, %v6636
      %6638 = vdwg.mxu0
      %v6639 = vmax.f32 %v6321, 0.0
      %v6640 = vmax.f32 %v6323, 0.0
      %v6641 = vmax.f32 %v6325, 0.0
      %v6642 = vmax.f32 %v6327, 0.0
      %v6643 = vmax.f32 %v6331, 0.0
      %v6644 = vmax.f32 %v6333, 0.0
      %v6645 = vmax.f32 %v6335, 0.0
      %v6646 = vmax.f32 %v6337, 0.0
      %v6647 = vmax.f32 %v6341, 0.0
      %v6648 = vmax.f32 %v6343, 0.0
      %v6649 = vmax.f32 %v6345, 0.0
      %v6650 = vmax.f32 %v6347, 0.0
      %v6651 = vmax.f32 %v6351, 0.0
      %v6652 = vmax.f32 %v6353, 0.0
      %v6653 = vmax.f32 %v6355, 0.0
      %v6654 = vmax.f32 %v6357, 0.0
      %v6655 = vmax.f32 %v6361, 0.0
      %v6656 = vmax.f32 %v6363, 0.0
      %v6657 = vmax.f32 %v6365, 0.0
      %v6658 = vmax.f32 %v6367, 0.0
      %v6659 = vmax.f32 %v6371, 0.0
      %v6660 = vmax.f32 %v6373, 0.0
      %v6661 = vmax.f32 %v6375, 0.0
      %v6662 = vmax.f32 %v6377, 0.0
      %v6663 = vmax.f32 %v6381, 0.0
      %v6664 = vmax.f32 %v6383, 0.0
      %v6665 = vmax.f32 %v6385, 0.0
      %v6666 = vmax.f32 %v6387, 0.0
      %v6667 = vmax.f32 %v6391, 0.0
      %v6668 = vmax.f32 %v6393, 0.0
      %v6669 = vmax.f32 %v6395, 0.0
      %v6670 = vmax.f32 %v6397, 0.0
      %v6671 = vmax.f32 %v6401, 0.0
      %v6672 = vmax.f32 %v6403, 0.0
      %v6673 = vmax.f32 %v6405, 0.0
      %v6674 = vmax.f32 %v6407, 0.0
      %v6675 = vmax.f32 %v6411, 0.0
      %v6676 = vmax.f32 %v6413, 0.0
      %v6677 = vmax.f32 %v6415, 0.0
      %v6678 = vmax.f32 %v6417, 0.0
      %v6679 = vmax.f32 %v6421, 0.0
      %v6680 = vmax.f32 %v6423, 0.0
      %v6681 = vmax.f32 %v6425, 0.0
      %v6682 = vmax.f32 %v6427, 0.0
      %v6683 = vmax.f32 %v6431, 0.0
      %v6684 = vmax.f32 %v6433, 0.0
      %v6685 = vmax.f32 %v6435, 0.0
      %v6686 = vmax.f32 %v6437, 0.0
      %v6687 = vmax.f32 %v6441, 0.0
      %v6688 = vmax.f32 %v6443, 0.0
      %v6689 = vmax.f32 %v6445, 0.0
      %v6690 = vmax.f32 %v6447, 0.0
      %v6691 = vmax.f32 %v6451, 0.0
      %v6692 = vmax.f32 %v6453, 0.0
      %v6693 = vmax.f32 %v6455, 0.0
      %v6694 = vmax.f32 %v6457, 0.0
      %v6695 = vmax.f32 %v6461, 0.0
      %v6696 = vmax.f32 %v6463, 0.0
      %v6697 = vmax.f32 %v6465, 0.0
      %v6698 = vmax.f32 %v6467, 0.0
      %v6699 = vmax.f32 %v6471, 0.0
      %v6700 = vmax.f32 %v6473, 0.0
      %v6701 = vmax.f32 %v6475, 0.0
      %v6702 = vmax.f32 %v6477, 0.0
      %v6703 = vmax.f32 %v6481, 0.0
      %v6704 = vmax.f32 %v6483, 0.0
      %v6705 = vmax.f32 %v6485, 0.0
      %v6706 = vmax.f32 %v6487, 0.0
      %v6707 = vmax.f32 %v6491, 0.0
      %v6708 = vmax.f32 %v6493, 0.0
      %v6709 = vmax.f32 %v6495, 0.0
      %v6710 = vmax.f32 %v6497, 0.0
      %v6711 = vmax.f32 %v6501, 0.0
      %v6712 = vmax.f32 %v6503, 0.0
      %v6713 = vmax.f32 %v6505, 0.0
      %v6714 = vmax.f32 %v6507, 0.0
      %v6715 = vmax.f32 %v6511, 0.0
      %v6716 = vmax.f32 %v6513, 0.0
      %v6717 = vmax.f32 %v6515, 0.0
      %v6718 = vmax.f32 %v6517, 0.0
      %v6719 = vmax.f32 %v6521, 0.0
      %v6720 = vmax.f32 %v6523, 0.0
      %v6721 = vmax.f32 %v6525, 0.0
      %v6722 = vmax.f32 %v6527, 0.0
      %v6723 = vmax.f32 %v6531, 0.0
      %v6724 = vmax.f32 %v6533, 0.0
      %v6725 = vmax.f32 %v6535, 0.0
      %v6726 = vmax.f32 %v6537, 0.0
      %v6727 = vmax.f32 %v6541, 0.0
      %v6728 = vmax.f32 %v6543, 0.0
      %v6729 = vmax.f32 %v6545, 0.0
      %v6730 = vmax.f32 %v6547, 0.0
      %v6731 = vmax.f32 %v6551, 0.0
      %v6732 = vmax.f32 %v6553, 0.0
      %v6733 = vmax.f32 %v6555, 0.0
      %v6734 = vmax.f32 %v6557, 0.0
      %v6735 = vmax.f32 %v6561, 0.0
      %v6736 = vmax.f32 %v6563, 0.0
      %v6737 = vmax.f32 %v6565, 0.0
      %v6738 = vmax.f32 %v6567, 0.0
      %v6739 = vmax.f32 %v6571, 0.0
      %v6740 = vmax.f32 %v6573, 0.0
      %v6741 = vmax.f32 %v6575, 0.0
      %v6742 = vmax.f32 %v6577, 0.0
      %v6743 = vmax.f32 %v6581, 0.0
      %v6744 = vmax.f32 %v6583, 0.0
      %v6745 = vmax.f32 %v6585, 0.0
      %v6746 = vmax.f32 %v6587, 0.0
      %v6747 = vmax.f32 %v6591, 0.0
      %v6748 = vmax.f32 %v6593, 0.0
      %v6749 = vmax.f32 %v6595, 0.0
      %v6750 = vmax.f32 %v6597, 0.0
      %v6751 = vmax.f32 %v6601, 0.0
      %v6752 = vmax.f32 %v6603, 0.0
      %v6753 = vmax.f32 %v6605, 0.0
      %v6754 = vmax.f32 %v6607, 0.0
      %v6755 = vmax.f32 %v6611, 0.0
      %v6756 = vmax.f32 %v6613, 0.0
      %v6757 = vmax.f32 %v6615, 0.0
      %v6758 = vmax.f32 %v6617, 0.0
      %v6759 = vmax.f32 %v6621, 0.0
      %v6760 = vmax.f32 %v6623, 0.0
      %v6761 = vmax.f32 %v6625, 0.0
      %v6762 = vmax.f32 %v6627, 0.0
      %v6763 = vmax.f32 %v6631, 0.0
      %v6764 = vmax.f32 %v6633, 0.0
      %v6765 = vmax.f32 %v6635, 0.0
      %v6766 = vmax.f32 %v6637, 0.0
      %v6767 = vpack.c.bf16 %v6641, %v6639
      %v6768 = vpack.c.bf16 %v6642, %v6640
      %v6769 = vpack.c.bf16 %v6645, %v6643
      %v6770 = vpack.c.bf16 %v6646, %v6644
      %v6771 = vpack.c.bf16 %v6649, %v6647
      %v6772 = vpack.c.bf16 %v6650, %v6648
      %v6773 = vpack.c.bf16 %v6653, %v6651
      %v6774 = vpack.c.bf16 %v6654, %v6652
      %v6775 = vpack.c.bf16 %v6657, %v6655
      %v6776 = vpack.c.bf16 %v6658, %v6656
      %v6777 = vpack.c.bf16 %v6661, %v6659
      %v6778 = vpack.c.bf16 %v6662, %v6660
      %v6779 = vpack.c.bf16 %v6665, %v6663
      %v6780 = vpack.c.bf16 %v6666, %v6664
      %v6781 = vpack.c.bf16 %v6669, %v6667
      %v6782 = vpack.c.bf16 %v6670, %v6668
      %v6783 = vpack.c.bf16 %v6673, %v6671
      %v6784 = vpack.c.bf16 %v6674, %v6672
      %v6785 = vpack.c.bf16 %v6677, %v6675
      %v6786 = vpack.c.bf16 %v6678, %v6676
      %v6787 = vpack.c.bf16 %v6681, %v6679
      %v6788 = vpack.c.bf16 %v6682, %v6680
      %v6789 = vpack.c.bf16 %v6685, %v6683
      %v6790 = vpack.c.bf16 %v6686, %v6684
      %v6791 = vpack.c.bf16 %v6689, %v6687
      %v6792 = vpack.c.bf16 %v6690, %v6688
      %v6793 = vpack.c.bf16 %v6693, %v6691
      %v6794 = vpack.c.bf16 %v6694, %v6692
      %v6795 = vpack.c.bf16 %v6697, %v6695
      %v6796 = vpack.c.bf16 %v6698, %v6696
      %v6797 = vpack.c.bf16 %v6701, %v6699
      %v6798 = vpack.c.bf16 %v6702, %v6700
      %v6799 = vpack.c.bf16 %v6705, %v6703
      %v6800 = vpack.c.bf16 %v6706, %v6704
      %v6801 = vpack.c.bf16 %v6709, %v6707
      %v6802 = vpack.c.bf16 %v6710, %v6708
      %v6803 = vpack.c.bf16 %v6713, %v6711
      %v6804 = vpack.c.bf16 %v6714, %v6712
      %v6805 = vpack.c.bf16 %v6717, %v6715
      %v6806 = vpack.c.bf16 %v6718, %v6716
      %v6807 = vpack.c.bf16 %v6721, %v6719
      %v6808 = vpack.c.bf16 %v6722, %v6720
      %v6809 = vpack.c.bf16 %v6725, %v6723
      %v6810 = vpack.c.bf16 %v6726, %v6724
      %v6811 = vpack.c.bf16 %v6729, %v6727
      %v6812 = vpack.c.bf16 %v6730, %v6728
      %v6813 = vpack.c.bf16 %v6733, %v6731
      %v6814 = vpack.c.bf16 %v6734, %v6732
      %v6815 = vpack.c.bf16 %v6737, %v6735
      %v6816 = vpack.c.bf16 %v6738, %v6736
      %v6817 = vpack.c.bf16 %v6741, %v6739
      %v6818 = vpack.c.bf16 %v6742, %v6740
      %v6819 = vpack.c.bf16 %v6745, %v6743
      %v6820 = vpack.c.bf16 %v6746, %v6744
      %v6821 = vpack.c.bf16 %v6749, %v6747
      %v6822 = vpack.c.bf16 %v6750, %v6748
      %v6823 = vpack.c.bf16 %v6753, %v6751
      %v6824 = vpack.c.bf16 %v6754, %v6752
      %v6825 = vpack.c.bf16 %v6757, %v6755
      %v6826 = vpack.c.bf16 %v6758, %v6756
      %v6827 = vpack.c.bf16 %v6761, %v6759
      %v6828 = vpack.c.bf16 %v6762, %v6760
      %v6829 = vpack.c.bf16 %v6765, %v6763
      %v6830 = vpack.c.bf16 %v6766, %v6764
      %v6831 = vld [vmem:[%s16] sm:$0xff]
      %v6832 = vld [vmem:[%s16 + $0x8] sm:$0xff]
      %v6833 = vld [vmem:[%s16 + $0x10] sm:$0xff]
      %v6834 = vld [vmem:[%s16 + $0x18] sm:$0xff]
      %v6835 = vld [vmem:[%s16 + $0x20] sm:$0xff]
      %v6836 = vld [vmem:[%s16 + $0x28] sm:$0xff]
      %v6837 = vld [vmem:[%s16 + $0x30] sm:$0xff]
      %v6838 = vld [vmem:[%s16 + $0x38] sm:$0xff]
      %v6839 = vld [vmem:[%s16 + $0x40] sm:$0xff]
      %v6840 = vld [vmem:[%s16 + $0x48] sm:$0xff]
      %v6841 = vld [vmem:[%s16 + $0x50] sm:$0xff]
      %v6842 = vld [vmem:[%s16 + $0x58] sm:$0xff]
      %v6843 = vld [vmem:[%s16 + $0x60] sm:$0xff]
      %v6844 = vld [vmem:[%s16 + $0x68] sm:$0xff]
      %v6845 = vld [vmem:[%s16 + $0x70] sm:$0xff]
      %v6846 = vld [vmem:[%s16 + $0x78] sm:$0xff]
      %v6847 = vld [vmem:[%s16 + $0x80] sm:$0xff]
      %v6848 = vld [vmem:[%s16 + $0x88] sm:$0xff]
      %v6849 = vld [vmem:[%s16 + $0x90] sm:$0xff]
      %v6850 = vld [vmem:[%s16 + $0x98] sm:$0xff]
      %v6851 = vld [vmem:[%s16 + $0xa0] sm:$0xff]
      %v6852 = vld [vmem:[%s16 + $0xa8] sm:$0xff]
      %v6853 = vld [vmem:[%s16 + $0xb0] sm:$0xff]
      %v6854 = vld [vmem:[%s16 + $0xb8] sm:$0xff]
      %v6855 = vld [vmem:[%s16 + $0xc0] sm:$0xff]
      %v6856 = vld [vmem:[%s16 + $0xc8] sm:$0xff]
      %v6857 = vld [vmem:[%s16 + $0xd0] sm:$0xff]
      %v6858 = vld [vmem:[%s16 + $0xd8] sm:$0xff]
      %v6859 = vld [vmem:[%s16 + $0xe0] sm:$0xff]
      %v6860 = vld [vmem:[%s16 + $0xe8] sm:$0xff]
      %v6861 = vld [vmem:[%s16 + $0xf0] sm:$0xff]
      %v6862 = vld [vmem:[%s16 + $0xf8] sm:$0xff]
      %v6863 = vld [vmem:[%s17] sm:$0x3]
      %v6865 = vlaneseq
      %v6866 = vshrl.u32 %v6865, 7
      %v6867 = vsub.s32 0, %v6866
      %v6868 = vrot.slane %v6863, %v6867
      %v6869 = vlaneseq
      %v6870 = vshrl.u32 %v6869, 7
      %v6871 = vsub.s32 1, %v6870
      %v6872 = vrot.slane %v6863, %v6871
      %v6907 = vunpack.c.l.b16 %v6831
      %v6908 = vunpack.c.h.b16 %v6831
      %v6909 = vunpack.c.l.b16 %v6832
      %v6910 = vunpack.c.h.b16 %v6832
      %v6911 = vunpack.c.l.b16 %v6833
      %v6912 = vunpack.c.h.b16 %v6833
      %v6913 = vunpack.c.l.b16 %v6834
      %v6914 = vunpack.c.h.b16 %v6834
      %v6915 = vunpack.c.l.b16 %v6835
      %v6916 = vunpack.c.h.b16 %v6835
      %v6917 = vunpack.c.l.b16 %v6836
      %v6918 = vunpack.c.h.b16 %v6836
      %v6919 = vunpack.c.l.b16 %v6837
      %v6920 = vunpack.c.h.b16 %v6837
      %v6921 = vunpack.c.l.b16 %v6838
      %v6922 = vunpack.c.h.b16 %v6838
      %v6923 = vunpack.c.l.b16 %v6839
      %v6924 = vunpack.c.h.b16 %v6839
      %v6925 = vunpack.c.l.b16 %v6840
      %v6926 = vunpack.c.h.b16 %v6840
      %v6927 = vunpack.c.l.b16 %v6841
      %v6928 = vunpack.c.h.b16 %v6841
      %v6929 = vunpack.c.l.b16 %v6842
      %v6930 = vunpack.c.h.b16 %v6842
      %v6931 = vunpack.c.l.b16 %v6843
      %v6932 = vunpack.c.h.b16 %v6843
      %v6933 = vunpack.c.l.b16 %v6844
      %v6934 = vunpack.c.h.b16 %v6844
      %v6935 = vunpack.c.l.b16 %v6845
      %v6936 = vunpack.c.h.b16 %v6845
      %v6937 = vunpack.c.l.b16 %v6846
      %v6938 = vunpack.c.h.b16 %v6846
      %v6939 = vunpack.c.l.b16 %v6847
      %v6940 = vunpack.c.h.b16 %v6847
      %v6941 = vunpack.c.l.b16 %v6848
      %v6942 = vunpack.c.h.b16 %v6848
      %v6943 = vunpack.c.l.b16 %v6849
      %v6944 = vunpack.c.h.b16 %v6849
      %v6945 = vunpack.c.l.b16 %v6850
      %v6946 = vunpack.c.h.b16 %v6850
      %v6947 = vunpack.c.l.b16 %v6851
      %v6948 = vunpack.c.h.b16 %v6851
      %v6949 = vunpack.c.l.b16 %v6852
      %v6950 = vunpack.c.h.b16 %v6852
      %v6951 = vunpack.c.l.b16 %v6853
      %v6952 = vunpack.c.h.b16 %v6853
      %v6953 = vunpack.c.l.b16 %v6854
      %v6954 = vunpack.c.h.b16 %v6854
      %v6955 = vunpack.c.l.b16 %v6855
      %v6956 = vunpack.c.h.b16 %v6855
      %v6957 = vunpack.c.l.b16 %v6856
      %v6958 = vunpack.c.h.b16 %v6856
      %v6959 = vunpack.c.l.b16 %v6857
      %v6960 = vunpack.c.h.b16 %v6857
      %v6961 = vunpack.c.l.b16 %v6858
      %v6962 = vunpack.c.h.b16 %v6858
      %v6963 = vunpack.c.l.b16 %v6859
      %v6964 = vunpack.c.h.b16 %v6859
      %v6965 = vunpack.c.l.b16 %v6860
      %v6966 = vunpack.c.h.b16 %v6860
      %v6967 = vunpack.c.l.b16 %v6861
      %v6968 = vunpack.c.h.b16 %v6861
      %v6969 = vunpack.c.l.b16 %v6862
      %v6970 = vunpack.c.h.b16 %v6862
      %v6971 = vpack.c.b16 %v6909, %v6907
      %v6972 = vpack.c.b16 %v6910, %v6908
      %v6973 = vpack.c.b16 %v6913, %v6911
      %v6974 = vpack.c.b16 %v6914, %v6912
      %v6975 = vpack.c.b16 %v6917, %v6915
      %v6976 = vpack.c.b16 %v6918, %v6916
      %v6977 = vpack.c.b16 %v6921, %v6919
      %v6978 = vpack.c.b16 %v6922, %v6920
      %v6979 = vpack.c.b16 %v6925, %v6923
      %v6980 = vpack.c.b16 %v6926, %v6924
      %v6981 = vpack.c.b16 %v6929, %v6927
      %v6982 = vpack.c.b16 %v6930, %v6928
      %v6983 = vpack.c.b16 %v6933, %v6931
      %v6984 = vpack.c.b16 %v6934, %v6932
      %v6985 = vpack.c.b16 %v6937, %v6935
      %v6986 = vpack.c.b16 %v6938, %v6936
      %v6987 = vpack.c.b16 %v6941, %v6939
      %v6988 = vpack.c.b16 %v6942, %v6940
      %v6989 = vpack.c.b16 %v6945, %v6943
      %v6990 = vpack.c.b16 %v6946, %v6944
      %v6991 = vpack.c.b16 %v6949, %v6947
      %v6992 = vpack.c.b16 %v6950, %v6948
      %v6993 = vpack.c.b16 %v6953, %v6951
      %v6994 = vpack.c.b16 %v6954, %v6952
      %v6995 = vpack.c.b16 %v6957, %v6955
      %v6996 = vpack.c.b16 %v6958, %v6956
      %v6997 = vpack.c.b16 %v6961, %v6959
      %v6998 = vpack.c.b16 %v6962, %v6960
      %v6999 = vpack.c.b16 %v6965, %v6963
      %v7000 = vpack.c.b16 %v6966, %v6964
      %v7001 = vpack.c.b16 %v6969, %v6967
      %v7002 = vpack.c.b16 %v6970, %v6968
      %7035 = vmatprep.subr.bf16.mxu0 %v6986
      %7036 = vmatpush1.bf16.msra.mxu0 %v6985
      %7037 = vmatprep.subr.bf16.mxu0 %v6984
      %7038 = vmatpush1.bf16.msra.mxu0 %v6983
      %7039 = vmatprep.subr.bf16.mxu0 %v6982
      %7040 = vmatpush1.bf16.msra.mxu0 %v6981
      %7041 = vmatprep.subr.bf16.mxu0 %v6980
      %7042 = vmatpush1.bf16.msra.mxu0 %v6979
      %7043 = vmatprep.subr.bf16.mxu0 %v6978
      %7044 = vmatpush1.bf16.msra.mxu0 %v6977
      %7045 = vmatprep.subr.bf16.mxu0 %v6976
      %7046 = vmatpush1.bf16.msra.mxu0 %v6975
      %7047 = vmatprep.subr.bf16.mxu0 %v6974
      %7048 = vmatpush1.bf16.msra.mxu0 %v6973
      %7049 = vmatprep.subr.bf16.mxu0 %v6972
      %7050 = vmatpush1.bf16.msra.mxu0 %v6971
      %7051 = vmatprep.subr.bf16.mxu0 %v7002
      %7052 = vmatpush2.bf16.msra.mxu0 %v7001
      %7053 = vmatprep.subr.bf16.mxu0 %v7000
      %7054 = vmatpush2.bf16.msra.mxu0 %v6999
      %7055 = vmatprep.subr.bf16.mxu0 %v6998
      %7056 = vmatpush2.bf16.msra.mxu0 %v6997
      %7057 = vmatprep.subr.bf16.mxu0 %v6996
      %7058 = vmatpush2.bf16.msra.mxu0 %v6995
      %7059 = vmatprep.subr.bf16.mxu0 %v6994
      %7060 = vmatpush2.bf16.msra.mxu0 %v6993
      %7061 = vmatprep.subr.bf16.mxu0 %v6992
      %7062 = vmatpush2.bf16.msra.mxu0 %v6991
      %7063 = vmatprep.subr.bf16.mxu0 %v6990
      %7064 = vmatpush2.bf16.msra.mxu0 %v6989
      %7065 = vmatprep.subr.bf16.mxu0 %v6988
      %7066 = vmatpush2.bf16.msra.mxu0 %v6987
      %7067 = vmatprep.mubr.bf16.mxu0 %v6768
      %7068 = vmatmul.mubr.bf16.gmra.mxu0 %v6767
      %v7069 = vpop.f32.mrf.mxu0
      %v7070 = vadd.f32 %v6868, %v7069
      %v7071 = vpop.f32.mrf.mxu0
      %v7072 = vadd.f32 %v6872, %v7071
      %v7073 = vpop.f32.mrf.mxu0
      %v7074 = vadd.f32 %v6868, %v7073
      %v7075 = vpop.f32.mrf.mxu0
      %v7076 = vadd.f32 %v6872, %v7075
      %7077 = vmatprep.mubr.bf16.mxu0 %v6770
      %7078 = vmatmul.mubr.bf16.gmra.mxu0 %v6769
      %v7079 = vpop.f32.mrf.mxu0
      %v7080 = vadd.f32 %v6868, %v7079
      %v7081 = vpop.f32.mrf.mxu0
      %v7082 = vadd.f32 %v6872, %v7081
      %v7083 = vpop.f32.mrf.mxu0
      %v7084 = vadd.f32 %v6868, %v7083
      %v7085 = vpop.f32.mrf.mxu0
      %v7086 = vadd.f32 %v6872, %v7085
      %7087 = vmatprep.mubr.bf16.mxu0 %v6772
      %7088 = vmatmul.mubr.bf16.gmra.mxu0 %v6771
      %v7089 = vpop.f32.mrf.mxu0
      %v7090 = vadd.f32 %v6868, %v7089
      %v7091 = vpop.f32.mrf.mxu0
      %v7092 = vadd.f32 %v6872, %v7091
      %v7093 = vpop.f32.mrf.mxu0
      %v7094 = vadd.f32 %v6868, %v7093
      %v7095 = vpop.f32.mrf.mxu0
      %v7096 = vadd.f32 %v6872, %v7095
      %7097 = vmatprep.mubr.bf16.mxu0 %v6774
      %7098 = vmatmul.mubr.bf16.gmra.mxu0 %v6773
      %v7099 = vpop.f32.mrf.mxu0
      %v7100 = vadd.f32 %v6868, %v7099
      %v7101 = vpop.f32.mrf.mxu0
      %v7102 = vadd.f32 %v6872, %v7101
      %v7103 = vpop.f32.mrf.mxu0
      %v7104 = vadd.f32 %v6868, %v7103
      %v7105 = vpop.f32.mrf.mxu0
      %v7106 = vadd.f32 %v6872, %v7105
      %7107 = vmatprep.mubr.bf16.mxu0 %v6776
      %7108 = vmatmul.mubr.bf16.gmra.mxu0 %v6775
      %v7109 = vpop.f32.mrf.mxu0
      %v7110 = vadd.f32 %v6868, %v7109
      %v7111 = vpop.f32.mrf.mxu0
      %v7112 = vadd.f32 %v6872, %v7111
      %v7113 = vpop.f32.mrf.mxu0
      %v7114 = vadd.f32 %v6868, %v7113
      %v7115 = vpop.f32.mrf.mxu0
      %v7116 = vadd.f32 %v6872, %v7115
      %7117 = vmatprep.mubr.bf16.mxu0 %v6778
      %7118 = vmatmul.mubr.bf16.gmra.mxu0 %v6777
      %v7119 = vpop.f32.mrf.mxu0
      %v7120 = vadd.f32 %v6868, %v7119
      %v7121 = vpop.f32.mrf.mxu0
      %v7122 = vadd.f32 %v6872, %v7121
      %v7123 = vpop.f32.mrf.mxu0
      %v7124 = vadd.f32 %v6868, %v7123
      %v7125 = vpop.f32.mrf.mxu0
      %v7126 = vadd.f32 %v6872, %v7125
      %7127 = vmatprep.mubr.bf16.mxu0 %v6780
      %7128 = vmatmul.mubr.bf16.gmra.mxu0 %v6779
      %v7129 = vpop.f32.mrf.mxu0
      %v7130 = vadd.f32 %v6868, %v7129
      %v7131 = vpop.f32.mrf.mxu0
      %v7132 = vadd.f32 %v6872, %v7131
      %v7133 = vpop.f32.mrf.mxu0
      %v7134 = vadd.f32 %v6868, %v7133
      %v7135 = vpop.f32.mrf.mxu0
      %v7136 = vadd.f32 %v6872, %v7135
      %7137 = vmatprep.mubr.bf16.mxu0 %v6782
      %7138 = vmatmul.mubr.bf16.gmra.mxu0 %v6781
      %v7139 = vpop.f32.mrf.mxu0
      %v7140 = vadd.f32 %v6868, %v7139
      %v7141 = vpop.f32.mrf.mxu0
      %v7142 = vadd.f32 %v6872, %v7141
      %v7143 = vpop.f32.mrf.mxu0
      %v7144 = vadd.f32 %v6868, %v7143
      %v7145 = vpop.f32.mrf.mxu0
      %v7146 = vadd.f32 %v6872, %v7145
      %7147 = vmatprep.mubr.bf16.mxu0 %v6784
      %7148 = vmatmul.mubr.bf16.gmra.mxu0 %v6783
      %v7149 = vpop.f32.mrf.mxu0
      %v7150 = vadd.f32 %v6868, %v7149
      %v7151 = vpop.f32.mrf.mxu0
      %v7152 = vadd.f32 %v6872, %v7151
      %v7153 = vpop.f32.mrf.mxu0
      %v7154 = vadd.f32 %v6868, %v7153
      %v7155 = vpop.f32.mrf.mxu0
      %v7156 = vadd.f32 %v6872, %v7155
      %7157 = vmatprep.mubr.bf16.mxu0 %v6786
      %7158 = vmatmul.mubr.bf16.gmra.mxu0 %v6785
      %v7159 = vpop.f32.mrf.mxu0
      %v7160 = vadd.f32 %v6868, %v7159
      %v7161 = vpop.f32.mrf.mxu0
      %v7162 = vadd.f32 %v6872, %v7161
      %v7163 = vpop.f32.mrf.mxu0
      %v7164 = vadd.f32 %v6868, %v7163
      %v7165 = vpop.f32.mrf.mxu0
      %v7166 = vadd.f32 %v6872, %v7165
      %7167 = vmatprep.mubr.bf16.mxu0 %v6788
      %7168 = vmatmul.mubr.bf16.gmra.mxu0 %v6787
      %v7169 = vpop.f32.mrf.mxu0
      %v7170 = vadd.f32 %v6868, %v7169
      %v7171 = vpop.f32.mrf.mxu0
      %v7172 = vadd.f32 %v6872, %v7171
      %v7173 = vpop.f32.mrf.mxu0
      %v7174 = vadd.f32 %v6868, %v7173
      %v7175 = vpop.f32.mrf.mxu0
      %v7176 = vadd.f32 %v6872, %v7175
      %7177 = vmatprep.mubr.bf16.mxu0 %v6790
      %7178 = vmatmul.mubr.bf16.gmra.mxu0 %v6789
      %v7179 = vpop.f32.mrf.mxu0
      %v7180 = vadd.f32 %v6868, %v7179
      %v7181 = vpop.f32.mrf.mxu0
      %v7182 = vadd.f32 %v6872, %v7181
      %v7183 = vpop.f32.mrf.mxu0
      %v7184 = vadd.f32 %v6868, %v7183
      %v7185 = vpop.f32.mrf.mxu0
      %v7186 = vadd.f32 %v6872, %v7185
      %7187 = vmatprep.mubr.bf16.mxu0 %v6792
      %7188 = vmatmul.mubr.bf16.gmra.mxu0 %v6791
      %v7189 = vpop.f32.mrf.mxu0
      %v7190 = vadd.f32 %v6868, %v7189
      %v7191 = vpop.f32.mrf.mxu0
      %v7192 = vadd.f32 %v6872, %v7191
      %v7193 = vpop.f32.mrf.mxu0
      %v7194 = vadd.f32 %v6868, %v7193
      %v7195 = vpop.f32.mrf.mxu0
      %v7196 = vadd.f32 %v6872, %v7195
      %7197 = vmatprep.mubr.bf16.mxu0 %v6794
      %7198 = vmatmul.mubr.bf16.gmra.mxu0 %v6793
      %v7199 = vpop.f32.mrf.mxu0
      %v7200 = vadd.f32 %v6868, %v7199
      %v7201 = vpop.f32.mrf.mxu0
      %v7202 = vadd.f32 %v6872, %v7201
      %v7203 = vpop.f32.mrf.mxu0
      %v7204 = vadd.f32 %v6868, %v7203
      %v7205 = vpop.f32.mrf.mxu0
      %v7206 = vadd.f32 %v6872, %v7205
      %7207 = vmatprep.mubr.bf16.mxu0 %v6796
      %7208 = vmatmul.mubr.bf16.gmra.mxu0 %v6795
      %v7209 = vpop.f32.mrf.mxu0
      %v7210 = vadd.f32 %v6868, %v7209
      %v7211 = vpop.f32.mrf.mxu0
      %v7212 = vadd.f32 %v6872, %v7211
      %v7213 = vpop.f32.mrf.mxu0
      %v7214 = vadd.f32 %v6868, %v7213
      %v7215 = vpop.f32.mrf.mxu0
      %v7216 = vadd.f32 %v6872, %v7215
      %7217 = vmatprep.mubr.bf16.mxu0 %v6798
      %7218 = vmatmul.mubr.bf16.gmra.mxu0 %v6797
      %v7219 = vpop.f32.mrf.mxu0
      %v7220 = vadd.f32 %v6868, %v7219
      %v7221 = vpop.f32.mrf.mxu0
      %v7222 = vadd.f32 %v6872, %v7221
      %v7223 = vpop.f32.mrf.mxu0
      %v7224 = vadd.f32 %v6868, %v7223
      %v7225 = vpop.f32.mrf.mxu0
      %v7226 = vadd.f32 %v6872, %v7225
      %7227 = vmatprep.mubr.bf16.mxu0 %v6800
      %7228 = vmatmul.mubr.bf16.gmra.mxu0 %v6799
      %v7229 = vpop.f32.mrf.mxu0
      %v7230 = vadd.f32 %v6868, %v7229
      %v7231 = vpop.f32.mrf.mxu0
      %v7232 = vadd.f32 %v6872, %v7231
      %v7233 = vpop.f32.mrf.mxu0
      %v7234 = vadd.f32 %v6868, %v7233
      %v7235 = vpop.f32.mrf.mxu0
      %v7236 = vadd.f32 %v6872, %v7235
      %7237 = vmatprep.mubr.bf16.mxu0 %v6802
      %7238 = vmatmul.mubr.bf16.gmra.mxu0 %v6801
      %v7239 = vpop.f32.mrf.mxu0
      %v7240 = vadd.f32 %v6868, %v7239
      %v7241 = vpop.f32.mrf.mxu0
      %v7242 = vadd.f32 %v6872, %v7241
      %v7243 = vpop.f32.mrf.mxu0
      %v7244 = vadd.f32 %v6868, %v7243
      %v7245 = vpop.f32.mrf.mxu0
      %v7246 = vadd.f32 %v6872, %v7245
      %7247 = vmatprep.mubr.bf16.mxu0 %v6804
      %7248 = vmatmul.mubr.bf16.gmra.mxu0 %v6803
      %v7249 = vpop.f32.mrf.mxu0
      %v7250 = vadd.f32 %v6868, %v7249
      %v7251 = vpop.f32.mrf.mxu0
      %v7252 = vadd.f32 %v6872, %v7251
      %v7253 = vpop.f32.mrf.mxu0
      %v7254 = vadd.f32 %v6868, %v7253
      %v7255 = vpop.f32.mrf.mxu0
      %v7256 = vadd.f32 %v6872, %v7255
      %7257 = vmatprep.mubr.bf16.mxu0 %v6806
      %7258 = vmatmul.mubr.bf16.gmra.mxu0 %v6805
      %v7259 = vpop.f32.mrf.mxu0
      %v7260 = vadd.f32 %v6868, %v7259
      %v7261 = vpop.f32.mrf.mxu0
      %v7262 = vadd.f32 %v6872, %v7261
      %v7263 = vpop.f32.mrf.mxu0
      %v7264 = vadd.f32 %v6868, %v7263
      %v7265 = vpop.f32.mrf.mxu0
      %v7266 = vadd.f32 %v6872, %v7265
      %7267 = vmatprep.mubr.bf16.mxu0 %v6808
      %7268 = vmatmul.mubr.bf16.gmra.mxu0 %v6807
      %v7269 = vpop.f32.mrf.mxu0
      %v7270 = vadd.f32 %v6868, %v7269
      %v7271 = vpop.f32.mrf.mxu0
      %v7272 = vadd.f32 %v6872, %v7271
      %v7273 = vpop.f32.mrf.mxu0
      %v7274 = vadd.f32 %v6868, %v7273
      %v7275 = vpop.f32.mrf.mxu0
      %v7276 = vadd.f32 %v6872, %v7275
      %7277 = vmatprep.mubr.bf16.mxu0 %v6810
      %7278 = vmatmul.mubr.bf16.gmra.mxu0 %v6809
      %v7279 = vpop.f32.mrf.mxu0
      %v7280 = vadd.f32 %v6868, %v7279
      %v7281 = vpop.f32.mrf.mxu0
      %v7282 = vadd.f32 %v6872, %v7281
      %v7283 = vpop.f32.mrf.mxu0
      %v7284 = vadd.f32 %v6868, %v7283
      %v7285 = vpop.f32.mrf.mxu0
      %v7286 = vadd.f32 %v6872, %v7285
      %7287 = vmatprep.mubr.bf16.mxu0 %v6812
      %7288 = vmatmul.mubr.bf16.gmra.mxu0 %v6811
      %v7289 = vpop.f32.mrf.mxu0
      %v7290 = vadd.f32 %v6868, %v7289
      %v7291 = vpop.f32.mrf.mxu0
      %v7292 = vadd.f32 %v6872, %v7291
      %v7293 = vpop.f32.mrf.mxu0
      %v7294 = vadd.f32 %v6868, %v7293
      %v7295 = vpop.f32.mrf.mxu0
      %v7296 = vadd.f32 %v6872, %v7295
      %7297 = vmatprep.mubr.bf16.mxu0 %v6814
      %7298 = vmatmul.mubr.bf16.gmra.mxu0 %v6813
      %v7299 = vpop.f32.mrf.mxu0
      %v7300 = vadd.f32 %v6868, %v7299
      %v7301 = vpop.f32.mrf.mxu0
      %v7302 = vadd.f32 %v6872, %v7301
      %v7303 = vpop.f32.mrf.mxu0
      %v7304 = vadd.f32 %v6868, %v7303
      %v7305 = vpop.f32.mrf.mxu0
      %v7306 = vadd.f32 %v6872, %v7305
      %7307 = vmatprep.mubr.bf16.mxu0 %v6816
      %7308 = vmatmul.mubr.bf16.gmra.mxu0 %v6815
      %v7309 = vpop.f32.mrf.mxu0
      %v7310 = vadd.f32 %v6868, %v7309
      %v7311 = vpop.f32.mrf.mxu0
      %v7312 = vadd.f32 %v6872, %v7311
      %v7313 = vpop.f32.mrf.mxu0
      %v7314 = vadd.f32 %v6868, %v7313
      %v7315 = vpop.f32.mrf.mxu0
      %v7316 = vadd.f32 %v6872, %v7315
      %7317 = vmatprep.mubr.bf16.mxu0 %v6818
      %7318 = vmatmul.mubr.bf16.gmra.mxu0 %v6817
      %v7319 = vpop.f32.mrf.mxu0
      %v7320 = vadd.f32 %v6868, %v7319
      %v7321 = vpop.f32.mrf.mxu0
      %v7322 = vadd.f32 %v6872, %v7321
      %v7323 = vpop.f32.mrf.mxu0
      %v7324 = vadd.f32 %v6868, %v7323
      %v7325 = vpop.f32.mrf.mxu0
      %v7326 = vadd.f32 %v6872, %v7325
      %7327 = vmatprep.mubr.bf16.mxu0 %v6820
      %7328 = vmatmul.mubr.bf16.gmra.mxu0 %v6819
      %v7329 = vpop.f32.mrf.mxu0
      %v7330 = vadd.f32 %v6868, %v7329
      %v7331 = vpop.f32.mrf.mxu0
      %v7332 = vadd.f32 %v6872, %v7331
      %v7333 = vpop.f32.mrf.mxu0
      %v7334 = vadd.f32 %v6868, %v7333
      %v7335 = vpop.f32.mrf.mxu0
      %v7336 = vadd.f32 %v6872, %v7335
      %7337 = vmatprep.mubr.bf16.mxu0 %v6822
      %7338 = vmatmul.mubr.bf16.gmra.mxu0 %v6821
      %v7339 = vpop.f32.mrf.mxu0
      %v7340 = vadd.f32 %v6868, %v7339
      %v7341 = vpop.f32.mrf.mxu0
      %v7342 = vadd.f32 %v6872, %v7341
      %v7343 = vpop.f32.mrf.mxu0
      %v7344 = vadd.f32 %v6868, %v7343
      %v7345 = vpop.f32.mrf.mxu0
      %v7346 = vadd.f32 %v6872, %v7345
      %7347 = vmatprep.mubr.bf16.mxu0 %v6824
      %7348 = vmatmul.mubr.bf16.gmra.mxu0 %v6823
      %v7349 = vpop.f32.mrf.mxu0
      %v7350 = vadd.f32 %v6868, %v7349
      %v7351 = vpop.f32.mrf.mxu0
      %v7352 = vadd.f32 %v6872, %v7351
      %v7353 = vpop.f32.mrf.mxu0
      %v7354 = vadd.f32 %v6868, %v7353
      %v7355 = vpop.f32.mrf.mxu0
      %v7356 = vadd.f32 %v6872, %v7355
      %7357 = vmatprep.mubr.bf16.mxu0 %v6826
      %7358 = vmatmul.mubr.bf16.gmra.mxu0 %v6825
      %v7359 = vpop.f32.mrf.mxu0
      %v7360 = vadd.f32 %v6868, %v7359
      %v7361 = vpop.f32.mrf.mxu0
      %v7362 = vadd.f32 %v6872, %v7361
      %v7363 = vpop.f32.mrf.mxu0
      %v7364 = vadd.f32 %v6868, %v7363
      %v7365 = vpop.f32.mrf.mxu0
      %v7366 = vadd.f32 %v6872, %v7365
      %7367 = vmatprep.mubr.bf16.mxu0 %v6828
      %7368 = vmatmul.mubr.bf16.gmra.mxu0 %v6827
      %v7369 = vpop.f32.mrf.mxu0
      %v7370 = vadd.f32 %v6868, %v7369
      %v7371 = vpop.f32.mrf.mxu0
      %v7372 = vadd.f32 %v6872, %v7371
      %v7373 = vpop.f32.mrf.mxu0
      %v7374 = vadd.f32 %v6868, %v7373
      %v7375 = vpop.f32.mrf.mxu0
      %v7376 = vadd.f32 %v6872, %v7375
      %7377 = vmatprep.mubr.bf16.mxu0 %v6830
      %7378 = vmatmul.mubr.bf16.gmra.mxu0 %v6829
      %v7379 = vpop.f32.mrf.mxu0
      %v7380 = vadd.f32 %v6868, %v7379
      %v7381 = vpop.f32.mrf.mxu0
      %v7382 = vadd.f32 %v6872, %v7381
      %v7383 = vpop.f32.mrf.mxu0
      %v7384 = vadd.f32 %v6868, %v7383
      %v7385 = vpop.f32.mrf.mxu0
      %v7386 = vadd.f32 %v6872, %v7385
      %7387 = vdwg.mxu0
      %v7388 = vmax.f32 %v7070, 0.0
      %v7389 = vmax.f32 %v7072, 0.0
      %v7390 = vmax.f32 %v7074, 0.0
      %v7391 = vmax.f32 %v7076, 0.0
      %v7392 = vmax.f32 %v7080, 0.0
      %v7393 = vmax.f32 %v7082, 0.0
      %v7394 = vmax.f32 %v7084, 0.0
      %v7395 = vmax.f32 %v7086, 0.0
      %v7396 = vmax.f32 %v7090, 0.0
      %v7397 = vmax.f32 %v7092, 0.0
      %v7398 = vmax.f32 %v7094, 0.0
      %v7399 = vmax.f32 %v7096, 0.0
      %v7400 = vmax.f32 %v7100, 0.0
      %v7401 = vmax.f32 %v7102, 0.0
      %v7402 = vmax.f32 %v7104, 0.0
      %v7403 = vmax.f32 %v7106, 0.0
      %v7404 = vmax.f32 %v7110, 0.0
      %v7405 = vmax.f32 %v7112, 0.0
      %v7406 = vmax.f32 %v7114, 0.0
      %v7407 = vmax.f32 %v7116, 0.0
      %v7408 = vmax.f32 %v7120, 0.0
      %v7409 = vmax.f32 %v7122, 0.0
      %v7410 = vmax.f32 %v7124, 0.0
      %v7411 = vmax.f32 %v7126, 0.0
      %v7412 = vmax.f32 %v7130, 0.0
      %v7413 = vmax.f32 %v7132, 0.0
      %v7414 = vmax.f32 %v7134, 0.0
      %v7415 = vmax.f32 %v7136, 0.0
      %v7416 = vmax.f32 %v7140, 0.0
      %v7417 = vmax.f32 %v7142, 0.0
      %v7418 = vmax.f32 %v7144, 0.0
      %v7419 = vmax.f32 %v7146, 0.0
      %v7420 = vmax.f32 %v7150, 0.0
      %v7421 = vmax.f32 %v7152, 0.0
      %v7422 = vmax.f32 %v7154, 0.0
      %v7423 = vmax.f32 %v7156, 0.0
      %v7424 = vmax.f32 %v7160, 0.0
      %v7425 = vmax.f32 %v7162, 0.0
      %v7426 = vmax.f32 %v7164, 0.0
      %v7427 = vmax.f32 %v7166, 0.0
      %v7428 = vmax.f32 %v7170, 0.0
      %v7429 = vmax.f32 %v7172, 0.0
      %v7430 = vmax.f32 %v7174, 0.0
      %v7431 = vmax.f32 %v7176, 0.0
      %v7432 = vmax.f32 %v7180, 0.0
      %v7433 = vmax.f32 %v7182, 0.0
      %v7434 = vmax.f32 %v7184, 0.0
      %v7435 = vmax.f32 %v7186, 0.0
      %v7436 = vmax.f32 %v7190, 0.0
      %v7437 = vmax.f32 %v7192, 0.0
      %v7438 = vmax.f32 %v7194, 0.0
      %v7439 = vmax.f32 %v7196, 0.0
      %v7440 = vmax.f32 %v7200, 0.0
      %v7441 = vmax.f32 %v7202, 0.0
      %v7442 = vmax.f32 %v7204, 0.0
      %v7443 = vmax.f32 %v7206, 0.0
      %v7444 = vmax.f32 %v7210, 0.0
      %v7445 = vmax.f32 %v7212, 0.0
      %v7446 = vmax.f32 %v7214, 0.0
      %v7447 = vmax.f32 %v7216, 0.0
      %v7448 = vmax.f32 %v7220, 0.0
      %v7449 = vmax.f32 %v7222, 0.0
      %v7450 = vmax.f32 %v7224, 0.0
      %v7451 = vmax.f32 %v7226, 0.0
      %v7452 = vmax.f32 %v7230, 0.0
      %v7453 = vmax.f32 %v7232, 0.0
      %v7454 = vmax.f32 %v7234, 0.0
      %v7455 = vmax.f32 %v7236, 0.0
      %v7456 = vmax.f32 %v7240, 0.0
      %v7457 = vmax.f32 %v7242, 0.0
      %v7458 = vmax.f32 %v7244, 0.0
      %v7459 = vmax.f32 %v7246, 0.0
      %v7460 = vmax.f32 %v7250, 0.0
      %v7461 = vmax.f32 %v7252, 0.0
      %v7462 = vmax.f32 %v7254, 0.0
      %v7463 = vmax.f32 %v7256, 0.0
      %v7464 = vmax.f32 %v7260, 0.0
      %v7465 = vmax.f32 %v7262, 0.0
      %v7466 = vmax.f32 %v7264, 0.0
      %v7467 = vmax.f32 %v7266, 0.0
      %v7468 = vmax.f32 %v7270, 0.0
      %v7469 = vmax.f32 %v7272, 0.0
      %v7470 = vmax.f32 %v7274, 0.0
      %v7471 = vmax.f32 %v7276, 0.0
      %v7472 = vmax.f32 %v7280, 0.0
      %v7473 = vmax.f32 %v7282, 0.0
      %v7474 = vmax.f32 %v7284, 0.0
      %v7475 = vmax.f32 %v7286, 0.0
      %v7476 = vmax.f32 %v7290, 0.0
      %v7477 = vmax.f32 %v7292, 0.0
      %v7478 = vmax.f32 %v7294, 0.0
      %v7479 = vmax.f32 %v7296, 0.0
      %v7480 = vmax.f32 %v7300, 0.0
      %v7481 = vmax.f32 %v7302, 0.0
      %v7482 = vmax.f32 %v7304, 0.0
      %v7483 = vmax.f32 %v7306, 0.0
      %v7484 = vmax.f32 %v7310, 0.0
      %v7485 = vmax.f32 %v7312, 0.0
      %v7486 = vmax.f32 %v7314, 0.0
      %v7487 = vmax.f32 %v7316, 0.0
      %v7488 = vmax.f32 %v7320, 0.0
      %v7489 = vmax.f32 %v7322, 0.0
      %v7490 = vmax.f32 %v7324, 0.0
      %v7491 = vmax.f32 %v7326, 0.0
      %v7492 = vmax.f32 %v7330, 0.0
      %v7493 = vmax.f32 %v7332, 0.0
      %v7494 = vmax.f32 %v7334, 0.0
      %v7495 = vmax.f32 %v7336, 0.0
      %v7496 = vmax.f32 %v7340, 0.0
      %v7497 = vmax.f32 %v7342, 0.0
      %v7498 = vmax.f32 %v7344, 0.0
      %v7499 = vmax.f32 %v7346, 0.0
      %v7500 = vmax.f32 %v7350, 0.0
      %v7501 = vmax.f32 %v7352, 0.0
      %v7502 = vmax.f32 %v7354, 0.0
      %v7503 = vmax.f32 %v7356, 0.0
      %v7504 = vmax.f32 %v7360, 0.0
      %v7505 = vmax.f32 %v7362, 0.0
      %v7506 = vmax.f32 %v7364, 0.0
      %v7507 = vmax.f32 %v7366, 0.0
      %v7508 = vmax.f32 %v7370, 0.0
      %v7509 = vmax.f32 %v7372, 0.0
      %v7510 = vmax.f32 %v7374, 0.0
      %v7511 = vmax.f32 %v7376, 0.0
      %v7512 = vmax.f32 %v7380, 0.0
      %v7513 = vmax.f32 %v7382, 0.0
      %v7514 = vmax.f32 %v7384, 0.0
      %v7515 = vmax.f32 %v7386, 0.0
      %v7516 = vpack.c.bf16 %v7390, %v7388
      %v7517 = vpack.c.bf16 %v7391, %v7389
      %v7518 = vpack.c.bf16 %v7394, %v7392
      %v7519 = vpack.c.bf16 %v7395, %v7393
      %v7520 = vpack.c.bf16 %v7398, %v7396
      %v7521 = vpack.c.bf16 %v7399, %v7397
      %v7522 = vpack.c.bf16 %v7402, %v7400
      %v7523 = vpack.c.bf16 %v7403, %v7401
      %v7524 = vpack.c.bf16 %v7406, %v7404
      %v7525 = vpack.c.bf16 %v7407, %v7405
      %v7526 = vpack.c.bf16 %v7410, %v7408
      %v7527 = vpack.c.bf16 %v7411, %v7409
      %v7528 = vpack.c.bf16 %v7414, %v7412
      %v7529 = vpack.c.bf16 %v7415, %v7413
      %v7530 = vpack.c.bf16 %v7418, %v7416
      %v7531 = vpack.c.bf16 %v7419, %v7417
      %v7532 = vpack.c.bf16 %v7422, %v7420
      %v7533 = vpack.c.bf16 %v7423, %v7421
      %v7534 = vpack.c.bf16 %v7426, %v7424
      %v7535 = vpack.c.bf16 %v7427, %v7425
      %v7536 = vpack.c.bf16 %v7430, %v7428
      %v7537 = vpack.c.bf16 %v7431, %v7429
      %v7538 = vpack.c.bf16 %v7434, %v7432
      %v7539 = vpack.c.bf16 %v7435, %v7433
      %v7540 = vpack.c.bf16 %v7438, %v7436
      %v7541 = vpack.c.bf16 %v7439, %v7437
      %v7542 = vpack.c.bf16 %v7442, %v7440
      %v7543 = vpack.c.bf16 %v7443, %v7441
      %v7544 = vpack.c.bf16 %v7446, %v7444
      %v7545 = vpack.c.bf16 %v7447, %v7445
      %v7546 = vpack.c.bf16 %v7450, %v7448
      %v7547 = vpack.c.bf16 %v7451, %v7449
      %v7548 = vpack.c.bf16 %v7454, %v7452
      %v7549 = vpack.c.bf16 %v7455, %v7453
      %v7550 = vpack.c.bf16 %v7458, %v7456
      %v7551 = vpack.c.bf16 %v7459, %v7457
      %v7552 = vpack.c.bf16 %v7462, %v7460
      %v7553 = vpack.c.bf16 %v7463, %v7461
      %v7554 = vpack.c.bf16 %v7466, %v7464
      %v7555 = vpack.c.bf16 %v7467, %v7465
      %v7556 = vpack.c.bf16 %v7470, %v7468
      %v7557 = vpack.c.bf16 %v7471, %v7469
      %v7558 = vpack.c.bf16 %v7474, %v7472
      %v7559 = vpack.c.bf16 %v7475, %v7473
      %v7560 = vpack.c.bf16 %v7478, %v7476
      %v7561 = vpack.c.bf16 %v7479, %v7477
      %v7562 = vpack.c.bf16 %v7482, %v7480
      %v7563 = vpack.c.bf16 %v7483, %v7481
      %v7564 = vpack.c.bf16 %v7486, %v7484
      %v7565 = vpack.c.bf16 %v7487, %v7485
      %v7566 = vpack.c.bf16 %v7490, %v7488
      %v7567 = vpack.c.bf16 %v7491, %v7489
      %v7568 = vpack.c.bf16 %v7494, %v7492
      %v7569 = vpack.c.bf16 %v7495, %v7493
      %v7570 = vpack.c.bf16 %v7498, %v7496
      %v7571 = vpack.c.bf16 %v7499, %v7497
      %v7572 = vpack.c.bf16 %v7502, %v7500
      %v7573 = vpack.c.bf16 %v7503, %v7501
      %v7574 = vpack.c.bf16 %v7506, %v7504
      %v7575 = vpack.c.bf16 %v7507, %v7505
      %v7576 = vpack.c.bf16 %v7510, %v7508
      %v7577 = vpack.c.bf16 %v7511, %v7509
      %v7578 = vpack.c.bf16 %v7514, %v7512
      %v7579 = vpack.c.bf16 %v7515, %v7513
      %v7580 = vld [vmem:[%s19] sm:$0xff]
      %v7581 = vld [vmem:[%s19 + $0x8] sm:$0xf]
      %v7582 = vld [vmem:[%s19 + $0xc] sm:$0xff]
      %v7583 = vld [vmem:[%s19 + $0x14] sm:$0xf]
      %v7584 = vld [vmem:[%s19 + $0x18] sm:$0xff]
      %v7585 = vld [vmem:[%s19 + $0x20] sm:$0xf]
      %v7586 = vld [vmem:[%s19 + $0x24] sm:$0xff]
      %v7587 = vld [vmem:[%s19 + $0x2c] sm:$0xf]
      %v7588 = vld [vmem:[%s19 + $0x30] sm:$0xff]
      %v7589 = vld [vmem:[%s19 + $0x38] sm:$0xf]
      %v7590 = vld [vmem:[%s19 + $0x3c] sm:$0xff]
      %v7591 = vld [vmem:[%s19 + $0x44] sm:$0xf]
      %v7592 = vld [vmem:[%s19 + $0x48] sm:$0xff]
      %v7593 = vld [vmem:[%s19 + $0x50] sm:$0xf]
      %v7594 = vld [vmem:[%s19 + $0x54] sm:$0xff]
      %v7595 = vld [vmem:[%s19 + $0x5c] sm:$0xf]
      %v7596 = vld [vmem:[%s19 + $0x60] sm:$0xff]
      %v7597 = vld [vmem:[%s19 + $0x68] sm:$0xf]
      %v7598 = vld [vmem:[%s19 + $0x6c] sm:$0xff]
      %v7599 = vld [vmem:[%s19 + $0x74] sm:$0xf]
      %v7600 = vld [vmem:[%s19 + $0x78] sm:$0xff]
      %v7601 = vld [vmem:[%s19 + $0x80] sm:$0xf]
      %v7602 = vld [vmem:[%s19 + $0x84] sm:$0xff]
      %v7603 = vld [vmem:[%s19 + $0x8c] sm:$0xf]
      %v7604 = vld [vmem:[%s19 + $0x90] sm:$0xff]
      %v7605 = vld [vmem:[%s19 + $0x98] sm:$0xf]
      %v7606 = vld [vmem:[%s19 + $0x9c] sm:$0xff]
      %v7607 = vld [vmem:[%s19 + $0xa4] sm:$0xf]
      %v7608 = vld [vmem:[%s19 + $0xa8] sm:$0xff]
      %v7609 = vld [vmem:[%s19 + $0xb0] sm:$0xf]
      %v7610 = vld [vmem:[%s19 + $0xb4] sm:$0xff]
      %v7611 = vld [vmem:[%s19 + $0xbc] sm:$0xf]
      %v7612 = vld [vmem:[%s19 + $0xc0] sm:$0xff]
      %v7613 = vld [vmem:[%s19 + $0xc8] sm:$0xf]
      %v7614 = vld [vmem:[%s19 + $0xcc] sm:$0xff]
      %v7615 = vld [vmem:[%s19 + $0xd4] sm:$0xf]
      %v7616 = vld [vmem:[%s19 + $0xd8] sm:$0xff]
      %v7617 = vld [vmem:[%s19 + $0xe0] sm:$0xf]
      %v7618 = vld [vmem:[%s19 + $0xe4] sm:$0xff]
      %v7619 = vld [vmem:[%s19 + $0xec] sm:$0xf]
      %v7620 = vld [vmem:[%s19 + $0xf0] sm:$0xff]
      %v7621 = vld [vmem:[%s19 + $0xf8] sm:$0xf]
      %v7622 = vld [vmem:[%s19 + $0xfc] sm:$0xff]
      %v7623 = vld [vmem:[%s19 + $0x104] sm:$0xf]
      %v7624 = vld [vmem:[%s19 + $0x108] sm:$0xff]
      %v7625 = vld [vmem:[%s19 + $0x110] sm:$0xf]
      %v7626 = vld [vmem:[%s19 + $0x114] sm:$0xff]
      %v7627 = vld [vmem:[%s19 + $0x11c] sm:$0xf]
      %v7628 = vld [vmem:[%s19 + $0x120] sm:$0xff]
      %v7629 = vld [vmem:[%s19 + $0x128] sm:$0xf]
      %v7630 = vld [vmem:[%s19 + $0x12c] sm:$0xff]
      %v7631 = vld [vmem:[%s19 + $0x134] sm:$0xf]
      %v7632 = vld [vmem:[%s19 + $0x138] sm:$0xff]
      %v7633 = vld [vmem:[%s19 + $0x140] sm:$0xf]
      %v7634 = vld [vmem:[%s19 + $0x144] sm:$0xff]
      %v7635 = vld [vmem:[%s19 + $0x14c] sm:$0xf]
      %v7636 = vld [vmem:[%s19 + $0x150] sm:$0xff]
      %v7637 = vld [vmem:[%s19 + $0x158] sm:$0xf]
      %v7638 = vld [vmem:[%s19 + $0x15c] sm:$0xff]
      %v7639 = vld [vmem:[%s19 + $0x164] sm:$0xf]
      %v7640 = vld [vmem:[%s19 + $0x168] sm:$0xff]
      %v7641 = vld [vmem:[%s19 + $0x170] sm:$0xf]
      %v7642 = vld [vmem:[%s19 + $0x174] sm:$0xff]
      %v7643 = vld [vmem:[%s19 + $0x17c] sm:$0xf]
      %v7644 = vld [vmem:[%s20] sm:$0x7]
      %v7646 = vlaneseq
      %v7647 = vshrl.u32 %v7646, 7
      %v7648 = vsub.s32 0, %v7647
      %v7649 = vrot.slane %v7644, %v7648
      %v7650 = vlaneseq
      %v7651 = vshrl.u32 %v7650, 7
      %v7652 = vsub.s32 1, %v7651
      %v7653 = vrot.slane %v7644, %v7652
      %v7654 = vlaneseq
      %v7655 = vshrl.u32 %v7654, 7
      %v7656 = vsub.s32 2, %v7655
      %v7657 = vrot.slane %v7644, %v7656
      %v7725 = vunpack.c.l.b16 %v7580
      %v7726 = vunpack.c.h.b16 %v7580
      %v7727 = vunpack.c.l.b16 %v7581
      %v7728 = vunpack.c.l.b16 %v7582
      %v7729 = vunpack.c.h.b16 %v7582
      %v7730 = vunpack.c.l.b16 %v7583
      %v7731 = vunpack.c.l.b16 %v7584
      %v7732 = vunpack.c.h.b16 %v7584
      %v7733 = vunpack.c.l.b16 %v7585
      %v7734 = vunpack.c.l.b16 %v7586
      %v7735 = vunpack.c.h.b16 %v7586
      %v7736 = vunpack.c.l.b16 %v7587
      %v7737 = vunpack.c.l.b16 %v7588
      %v7738 = vunpack.c.h.b16 %v7588
      %v7739 = vunpack.c.l.b16 %v7589
      %v7740 = vunpack.c.l.b16 %v7590
      %v7741 = vunpack.c.h.b16 %v7590
      %v7742 = vunpack.c.l.b16 %v7591
      %v7743 = vunpack.c.l.b16 %v7592
      %v7744 = vunpack.c.h.b16 %v7592
      %v7745 = vunpack.c.l.b16 %v7593
      %v7746 = vunpack.c.l.b16 %v7594
      %v7747 = vunpack.c.h.b16 %v7594
      %v7748 = vunpack.c.l.b16 %v7595
      %v7749 = vunpack.c.l.b16 %v7596
      %v7750 = vunpack.c.h.b16 %v7596
      %v7751 = vunpack.c.l.b16 %v7597
      %v7752 = vunpack.c.l.b16 %v7598
      %v7753 = vunpack.c.h.b16 %v7598
      %v7754 = vunpack.c.l.b16 %v7599
      %v7755 = vunpack.c.l.b16 %v7600
      %v7756 = vunpack.c.h.b16 %v7600
      %v7757 = vunpack.c.l.b16 %v7601
      %v7758 = vunpack.c.l.b16 %v7602
      %v7759 = vunpack.c.h.b16 %v7602
      %v7760 = vunpack.c.l.b16 %v7603
      %v7761 = vunpack.c.l.b16 %v7604
      %v7762 = vunpack.c.h.b16 %v7604
      %v7763 = vunpack.c.l.b16 %v7605
      %v7764 = vunpack.c.l.b16 %v7606
      %v7765 = vunpack.c.h.b16 %v7606
      %v7766 = vunpack.c.l.b16 %v7607
      %v7767 = vunpack.c.l.b16 %v7608
      %v7768 = vunpack.c.h.b16 %v7608
      %v7769 = vunpack.c.l.b16 %v7609
      %v7770 = vunpack.c.l.b16 %v7610
      %v7771 = vunpack.c.h.b16 %v7610
      %v7772 = vunpack.c.l.b16 %v7611
      %v7773 = vunpack.c.l.b16 %v7612
      %v7774 = vunpack.c.h.b16 %v7612
      %v7775 = vunpack.c.l.b16 %v7613
      %v7776 = vunpack.c.l.b16 %v7614
      %v7777 = vunpack.c.h.b16 %v7614
      %v7778 = vunpack.c.l.b16 %v7615
      %v7779 = vunpack.c.l.b16 %v7616
      %v7780 = vunpack.c.h.b16 %v7616
      %v7781 = vunpack.c.l.b16 %v7617
      %v7782 = vunpack.c.l.b16 %v7618
      %v7783 = vunpack.c.h.b16 %v7618
      %v7784 = vunpack.c.l.b16 %v7619
      %v7785 = vunpack.c.l.b16 %v7620
      %v7786 = vunpack.c.h.b16 %v7620
      %v7787 = vunpack.c.l.b16 %v7621
      %v7788 = vunpack.c.l.b16 %v7622
      %v7789 = vunpack.c.h.b16 %v7622
      %v7790 = vunpack.c.l.b16 %v7623
      %v7791 = vunpack.c.l.b16 %v7624
      %v7792 = vunpack.c.h.b16 %v7624
      %v7793 = vunpack.c.l.b16 %v7625
      %v7794 = vunpack.c.l.b16 %v7626
      %v7795 = vunpack.c.h.b16 %v7626
      %v7796 = vunpack.c.l.b16 %v7627
      %v7797 = vunpack.c.l.b16 %v7628
      %v7798 = vunpack.c.h.b16 %v7628
      %v7799 = vunpack.c.l.b16 %v7629
      %v7800 = vunpack.c.l.b16 %v7630
      %v7801 = vunpack.c.h.b16 %v7630
      %v7802 = vunpack.c.l.b16 %v7631
      %v7803 = vunpack.c.l.b16 %v7632
      %v7804 = vunpack.c.h.b16 %v7632
      %v7805 = vunpack.c.l.b16 %v7633
      %v7806 = vunpack.c.l.b16 %v7634
      %v7807 = vunpack.c.h.b16 %v7634
      %v7808 = vunpack.c.l.b16 %v7635
      %v7809 = vunpack.c.l.b16 %v7636
      %v7810 = vunpack.c.h.b16 %v7636
      %v7811 = vunpack.c.l.b16 %v7637
      %v7812 = vunpack.c.l.b16 %v7638
      %v7813 = vunpack.c.h.b16 %v7638
      %v7814 = vunpack.c.l.b16 %v7639
      %v7815 = vunpack.c.l.b16 %v7640
      %v7816 = vunpack.c.h.b16 %v7640
      %v7817 = vunpack.c.l.b16 %v7641
      %v7818 = vunpack.c.l.b16 %v7642
      %v7819 = vunpack.c.h.b16 %v7642
      %v7820 = vunpack.c.l.b16 %v7643
      %v7821 = vpack.c.b16 %v7728, %v7725
      %v7822 = vpack.c.b16 %v7729, %v7726
      %v7823 = vpack.c.b16 %v7730, %v7727
      %v7824 = vpack.c.b16 %v7734, %v7731
      %v7825 = vpack.c.b16 %v7735, %v7732
      %v7826 = vpack.c.b16 %v7736, %v7733
      %v7827 = vpack.c.b16 %v7740, %v7737
      %v7828 = vpack.c.b16 %v7741, %v7738
      %v7829 = vpack.c.b16 %v7742, %v7739
      %v7830 = vpack.c.b16 %v7746, %v7743
      %v7831 = vpack.c.b16 %v7747, %v7744
      %v7832 = vpack.c.b16 %v7748, %v7745
      %v7833 = vpack.c.b16 %v7752, %v7749
      %v7834 = vpack.c.b16 %v7753, %v7750
      %v7835 = vpack.c.b16 %v7754, %v7751
      %v7836 = vpack.c.b16 %v7758, %v7755
      %v7837 = vpack.c.b16 %v7759, %v7756
      %v7838 = vpack.c.b16 %v7760, %v7757
      %v7839 = vpack.c.b16 %v7764, %v7761
      %v7840 = vpack.c.b16 %v7765, %v7762
      %v7841 = vpack.c.b16 %v7766, %v7763
      %v7842 = vpack.c.b16 %v7770, %v7767
      %v7843 = vpack.c.b16 %v7771, %v7768
      %v7844 = vpack.c.b16 %v7772, %v7769
      %v7845 = vpack.c.b16 %v7776, %v7773
      %v7846 = vpack.c.b16 %v7777, %v7774
      %v7847 = vpack.c.b16 %v7778, %v7775
      %v7848 = vpack.c.b16 %v7782, %v7779
      %v7849 = vpack.c.b16 %v7783, %v7780
      %v7850 = vpack.c.b16 %v7784, %v7781
      %v7851 = vpack.c.b16 %v7788, %v7785
      %v7852 = vpack.c.b16 %v7789, %v7786
      %v7853 = vpack.c.b16 %v7790, %v7787
      %v7854 = vpack.c.b16 %v7794, %v7791
      %v7855 = vpack.c.b16 %v7795, %v7792
      %v7856 = vpack.c.b16 %v7796, %v7793
      %v7857 = vpack.c.b16 %v7800, %v7797
      %v7858 = vpack.c.b16 %v7801, %v7798
      %v7859 = vpack.c.b16 %v7802, %v7799
      %v7860 = vpack.c.b16 %v7806, %v7803
      %v7861 = vpack.c.b16 %v7807, %v7804
      %v7862 = vpack.c.b16 %v7808, %v7805
      %v7863 = vpack.c.b16 %v7812, %v7809
      %v7864 = vpack.c.b16 %v7813, %v7810
      %v7865 = vpack.c.b16 %v7814, %v7811
      %v7866 = vpack.c.b16 %v7818, %v7815
      %v7867 = vpack.c.b16 %v7819, %v7816
      %v7868 = vpack.c.b16 %v7820, %v7817
      %7917 = vmatprep.subr.bf16.mxu0 %v7843
      %7918 = vmatpush1.bf16.msra.mxu0 %v7842
      %7919 = vmatprep.subr.bf16.mxu0 %v7840
      %7920 = vmatpush1.bf16.msra.mxu0 %v7839
      %7921 = vmatprep.subr.bf16.mxu0 %v7837
      %7922 = vmatpush1.bf16.msra.mxu0 %v7836
      %7923 = vmatprep.subr.bf16.mxu0 %v7834
      %7924 = vmatpush1.bf16.msra.mxu0 %v7833
      %7925 = vmatprep.subr.bf16.mxu0 %v7831
      %7926 = vmatpush1.bf16.msra.mxu0 %v7830
      %7927 = vmatprep.subr.bf16.mxu0 %v7828
      %7928 = vmatpush1.bf16.msra.mxu0 %v7827
      %7929 = vmatprep.subr.bf16.mxu0 %v7825
      %7930 = vmatpush1.bf16.msra.mxu0 %v7824
      %7931 = vmatprep.subr.bf16.mxu0 %v7822
      %7932 = vmatpush1.bf16.msra.mxu0 %v7821
      %7933 = vmatprep.subr.bf16.mxu0 %v7867
      %7934 = vmatpush2.bf16.msra.mxu0 %v7866
      %7935 = vmatprep.subr.bf16.mxu0 %v7864
      %7936 = vmatpush2.bf16.msra.mxu0 %v7863
      %7937 = vmatprep.subr.bf16.mxu0 %v7861
      %7938 = vmatpush2.bf16.msra.mxu0 %v7860
      %7939 = vmatprep.subr.bf16.mxu0 %v7858
      %7940 = vmatpush2.bf16.msra.mxu0 %v7857
      %7941 = vmatprep.subr.bf16.mxu0 %v7855
      %7942 = vmatpush2.bf16.msra.mxu0 %v7854
      %7943 = vmatprep.subr.bf16.mxu0 %v7852
      %7944 = vmatpush2.bf16.msra.mxu0 %v7851
      %7945 = vmatprep.subr.bf16.mxu0 %v7849
      %7946 = vmatpush2.bf16.msra.mxu0 %v7848
      %7947 = vmatprep.subr.bf16.mxu0 %v7846
      %7948 = vmatpush2.bf16.msra.mxu0 %v7845
      %7949 = vmatprep.mubr.bf16.mxu0 %v7517
      %7950 = vmatmul.mubr.bf16.gmra.mxu0 %v7516
      %v7951 = vpop.f32.mrf.mxu0
      %v7952 = vadd.f32 %v7649, %v7951
      %v7953 = vpop.f32.mrf.mxu0
      %v7954 = vadd.f32 %v7653, %v7953
      %v7955 = vpop.f32.mrf.mxu0
      %v7956 = vadd.f32 %v7649, %v7955
      %v7957 = vpop.f32.mrf.mxu0
      %v7958 = vadd.f32 %v7653, %v7957
      %7959 = vmatprep.mubr.bf16.mxu0 %v7519
      %7960 = vmatmul.mubr.bf16.gmra.mxu0 %v7518
      %v7961 = vpop.f32.mrf.mxu0
      %v7962 = vadd.f32 %v7649, %v7961
      %v7963 = vpop.f32.mrf.mxu0
      %v7964 = vadd.f32 %v7653, %v7963
      %v7965 = vpop.f32.mrf.mxu0
      %v7966 = vadd.f32 %v7649, %v7965
      %v7967 = vpop.f32.mrf.mxu0
      %v7968 = vadd.f32 %v7653, %v7967
      %7969 = vmatprep.mubr.bf16.mxu0 %v7521
      %7970 = vmatmul.mubr.bf16.gmra.mxu0 %v7520
      %v7971 = vpop.f32.mrf.mxu0
      %v7972 = vadd.f32 %v7649, %v7971
      %v7973 = vpop.f32.mrf.mxu0
      %v7974 = vadd.f32 %v7653, %v7973
      %v7975 = vpop.f32.mrf.mxu0
      %v7976 = vadd.f32 %v7649, %v7975
      %v7977 = vpop.f32.mrf.mxu0
      %v7978 = vadd.f32 %v7653, %v7977
      %7979 = vmatprep.mubr.bf16.mxu0 %v7523
      %7980 = vmatmul.mubr.bf16.gmra.mxu0 %v7522
      %v7981 = vpop.f32.mrf.mxu0
      %v7982 = vadd.f32 %v7649, %v7981
      %v7983 = vpop.f32.mrf.mxu0
      %v7984 = vadd.f32 %v7653, %v7983
      %v7985 = vpop.f32.mrf.mxu0
      %v7986 = vadd.f32 %v7649, %v7985
      %v7987 = vpop.f32.mrf.mxu0
      %v7988 = vadd.f32 %v7653, %v7987
      %7989 = vmatprep.mubr.bf16.mxu0 %v7525
      %7990 = vmatmul.mubr.bf16.gmra.mxu0 %v7524
      %v7991 = vpop.f32.mrf.mxu0
      %v7992 = vadd.f32 %v7649, %v7991
      %v7993 = vpop.f32.mrf.mxu0
      %v7994 = vadd.f32 %v7653, %v7993
      %v7995 = vpop.f32.mrf.mxu0
      %v7996 = vadd.f32 %v7649, %v7995
      %v7997 = vpop.f32.mrf.mxu0
      %v7998 = vadd.f32 %v7653, %v7997
      %7999 = vmatprep.mubr.bf16.mxu0 %v7527
      %8000 = vmatmul.mubr.bf16.gmra.mxu0 %v7526
      %v8001 = vpop.f32.mrf.mxu0
      %v8002 = vadd.f32 %v7649, %v8001
      %v8003 = vpop.f32.mrf.mxu0
      %v8004 = vadd.f32 %v7653, %v8003
      %v8005 = vpop.f32.mrf.mxu0
      %v8006 = vadd.f32 %v7649, %v8005
      %v8007 = vpop.f32.mrf.mxu0
      %v8008 = vadd.f32 %v7653, %v8007
      %8009 = vmatprep.mubr.bf16.mxu0 %v7529
      %8010 = vmatmul.mubr.bf16.gmra.mxu0 %v7528
      %v8011 = vpop.f32.mrf.mxu0
      %v8012 = vadd.f32 %v7649, %v8011
      %v8013 = vpop.f32.mrf.mxu0
      %v8014 = vadd.f32 %v7653, %v8013
      %v8015 = vpop.f32.mrf.mxu0
      %v8016 = vadd.f32 %v7649, %v8015
      %v8017 = vpop.f32.mrf.mxu0
      %v8018 = vadd.f32 %v7653, %v8017
      %8019 = vmatprep.mubr.bf16.mxu0 %v7531
      %8020 = vmatmul.mubr.bf16.gmra.mxu0 %v7530
      %v8021 = vpop.f32.mrf.mxu0
      %v8022 = vadd.f32 %v7649, %v8021
      %v8023 = vpop.f32.mrf.mxu0
      %v8024 = vadd.f32 %v7653, %v8023
      %v8025 = vpop.f32.mrf.mxu0
      %v8026 = vadd.f32 %v7649, %v8025
      %v8027 = vpop.f32.mrf.mxu0
      %v8028 = vadd.f32 %v7653, %v8027
      %8029 = vmatprep.mubr.bf16.mxu0 %v7533
      %8030 = vmatmul.mubr.bf16.gmra.mxu0 %v7532
      %v8031 = vpop.f32.mrf.mxu0
      %v8032 = vadd.f32 %v7649, %v8031
      %v8033 = vpop.f32.mrf.mxu0
      %v8034 = vadd.f32 %v7653, %v8033
      %v8035 = vpop.f32.mrf.mxu0
      %v8036 = vadd.f32 %v7649, %v8035
      %v8037 = vpop.f32.mrf.mxu0
      %v8038 = vadd.f32 %v7653, %v8037
      %8039 = vmatprep.mubr.bf16.mxu0 %v7535
      %8040 = vmatmul.mubr.bf16.gmra.mxu0 %v7534
      %v8041 = vpop.f32.mrf.mxu0
      %v8042 = vadd.f32 %v7649, %v8041
      %v8043 = vpop.f32.mrf.mxu0
      %v8044 = vadd.f32 %v7653, %v8043
      %v8045 = vpop.f32.mrf.mxu0
      %v8046 = vadd.f32 %v7649, %v8045
      %v8047 = vpop.f32.mrf.mxu0
      %v8048 = vadd.f32 %v7653, %v8047
      %8049 = vmatprep.mubr.bf16.mxu0 %v7537
      %8050 = vmatmul.mubr.bf16.gmra.mxu0 %v7536
      %v8051 = vpop.f32.mrf.mxu0
      %v8052 = vadd.f32 %v7649, %v8051
      %v8053 = vpop.f32.mrf.mxu0
      %v8054 = vadd.f32 %v7653, %v8053
      %v8055 = vpop.f32.mrf.mxu0
      %v8056 = vadd.f32 %v7649, %v8055
      %v8057 = vpop.f32.mrf.mxu0
      %v8058 = vadd.f32 %v7653, %v8057
      %8059 = vmatprep.mubr.bf16.mxu0 %v7539
      %8060 = vmatmul.mubr.bf16.gmra.mxu0 %v7538
      %v8061 = vpop.f32.mrf.mxu0
      %v8062 = vadd.f32 %v7649, %v8061
      %v8063 = vpop.f32.mrf.mxu0
      %v8064 = vadd.f32 %v7653, %v8063
      %v8065 = vpop.f32.mrf.mxu0
      %v8066 = vadd.f32 %v7649, %v8065
      %v8067 = vpop.f32.mrf.mxu0
      %v8068 = vadd.f32 %v7653, %v8067
      %8069 = vmatprep.mubr.bf16.mxu0 %v7541
      %8070 = vmatmul.mubr.bf16.gmra.mxu0 %v7540
      %v8071 = vpop.f32.mrf.mxu0
      %v8072 = vadd.f32 %v7649, %v8071
      %v8073 = vpop.f32.mrf.mxu0
      %v8074 = vadd.f32 %v7653, %v8073
      %v8075 = vpop.f32.mrf.mxu0
      %v8076 = vadd.f32 %v7649, %v8075
      %v8077 = vpop.f32.mrf.mxu0
      %v8078 = vadd.f32 %v7653, %v8077
      %8079 = vmatprep.mubr.bf16.mxu0 %v7543
      %8080 = vmatmul.mubr.bf16.gmra.mxu0 %v7542
      %v8081 = vpop.f32.mrf.mxu0
      %v8082 = vadd.f32 %v7649, %v8081
      %v8083 = vpop.f32.mrf.mxu0
      %v8084 = vadd.f32 %v7653, %v8083
      %v8085 = vpop.f32.mrf.mxu0
      %v8086 = vadd.f32 %v7649, %v8085
      %v8087 = vpop.f32.mrf.mxu0
      %v8088 = vadd.f32 %v7653, %v8087
      %8089 = vmatprep.mubr.bf16.mxu0 %v7545
      %8090 = vmatmul.mubr.bf16.gmra.mxu0 %v7544
      %v8091 = vpop.f32.mrf.mxu0
      %v8092 = vadd.f32 %v7649, %v8091
      %v8093 = vpop.f32.mrf.mxu0
      %v8094 = vadd.f32 %v7653, %v8093
      %v8095 = vpop.f32.mrf.mxu0
      %v8096 = vadd.f32 %v7649, %v8095
      %v8097 = vpop.f32.mrf.mxu0
      %v8098 = vadd.f32 %v7653, %v8097
      %8099 = vmatprep.mubr.bf16.mxu0 %v7547
      %8100 = vmatmul.mubr.bf16.gmra.mxu0 %v7546
      %v8101 = vpop.f32.mrf.mxu0
      %v8102 = vadd.f32 %v7649, %v8101
      %v8103 = vpop.f32.mrf.mxu0
      %v8104 = vadd.f32 %v7653, %v8103
      %v8105 = vpop.f32.mrf.mxu0
      %v8106 = vadd.f32 %v7649, %v8105
      %v8107 = vpop.f32.mrf.mxu0
      %v8108 = vadd.f32 %v7653, %v8107
      %8109 = vmatprep.mubr.bf16.mxu0 %v7549
      %8110 = vmatmul.mubr.bf16.gmra.mxu0 %v7548
      %v8111 = vpop.f32.mrf.mxu0
      %v8112 = vadd.f32 %v7649, %v8111
      %v8113 = vpop.f32.mrf.mxu0
      %v8114 = vadd.f32 %v7653, %v8113
      %v8115 = vpop.f32.mrf.mxu0
      %v8116 = vadd.f32 %v7649, %v8115
      %v8117 = vpop.f32.mrf.mxu0
      %v8118 = vadd.f32 %v7653, %v8117
      %8119 = vmatprep.mubr.bf16.mxu0 %v7551
      %8120 = vmatmul.mubr.bf16.gmra.mxu0 %v7550
      %v8121 = vpop.f32.mrf.mxu0
      %v8122 = vadd.f32 %v7649, %v8121
      %v8123 = vpop.f32.mrf.mxu0
      %v8124 = vadd.f32 %v7653, %v8123
      %v8125 = vpop.f32.mrf.mxu0
      %v8126 = vadd.f32 %v7649, %v8125
      %v8127 = vpop.f32.mrf.mxu0
      %v8128 = vadd.f32 %v7653, %v8127
      %8129 = vmatprep.mubr.bf16.mxu0 %v7553
      %8130 = vmatmul.mubr.bf16.gmra.mxu0 %v7552
      %v8131 = vpop.f32.mrf.mxu0
      %v8132 = vadd.f32 %v7649, %v8131
      %v8133 = vpop.f32.mrf.mxu0
      %v8134 = vadd.f32 %v7653, %v8133
      %v8135 = vpop.f32.mrf.mxu0
      %v8136 = vadd.f32 %v7649, %v8135
      %v8137 = vpop.f32.mrf.mxu0
      %v8138 = vadd.f32 %v7653, %v8137
      %8139 = vmatprep.mubr.bf16.mxu0 %v7555
      %8140 = vmatmul.mubr.bf16.gmra.mxu0 %v7554
      %v8141 = vpop.f32.mrf.mxu0
      %v8142 = vadd.f32 %v7649, %v8141
      %v8143 = vpop.f32.mrf.mxu0
      %v8144 = vadd.f32 %v7653, %v8143
      %v8145 = vpop.f32.mrf.mxu0
      %v8146 = vadd.f32 %v7649, %v8145
      %v8147 = vpop.f32.mrf.mxu0
      %v8148 = vadd.f32 %v7653, %v8147
      %8149 = vmatprep.mubr.bf16.mxu0 %v7557
      %8150 = vmatmul.mubr.bf16.gmra.mxu0 %v7556
      %v8151 = vpop.f32.mrf.mxu0
      %v8152 = vadd.f32 %v7649, %v8151
      %v8153 = vpop.f32.mrf.mxu0
      %v8154 = vadd.f32 %v7653, %v8153
      %v8155 = vpop.f32.mrf.mxu0
      %v8156 = vadd.f32 %v7649, %v8155
      %v8157 = vpop.f32.mrf.mxu0
      %v8158 = vadd.f32 %v7653, %v8157
      %8159 = vmatprep.mubr.bf16.mxu0 %v7559
      %8160 = vmatmul.mubr.bf16.gmra.mxu0 %v7558
      %v8161 = vpop.f32.mrf.mxu0
      %v8162 = vadd.f32 %v7649, %v8161
      %v8163 = vpop.f32.mrf.mxu0
      %v8164 = vadd.f32 %v7653, %v8163
      %v8165 = vpop.f32.mrf.mxu0
      %v8166 = vadd.f32 %v7649, %v8165
      %v8167 = vpop.f32.mrf.mxu0
      %v8168 = vadd.f32 %v7653, %v8167
      %8169 = vmatprep.mubr.bf16.mxu0 %v7561
      %8170 = vmatmul.mubr.bf16.gmra.mxu0 %v7560
      %v8171 = vpop.f32.mrf.mxu0
      %v8172 = vadd.f32 %v7649, %v8171
      %v8173 = vpop.f32.mrf.mxu0
      %v8174 = vadd.f32 %v7653, %v8173
      %v8175 = vpop.f32.mrf.mxu0
      %v8176 = vadd.f32 %v7649, %v8175
      %v8177 = vpop.f32.mrf.mxu0
      %v8178 = vadd.f32 %v7653, %v8177
      %8179 = vmatprep.mubr.bf16.mxu0 %v7563
      %8180 = vmatmul.mubr.bf16.gmra.mxu0 %v7562
      %v8181 = vpop.f32.mrf.mxu0
      %v8182 = vadd.f32 %v7649, %v8181
      %v8183 = vpop.f32.mrf.mxu0
      %v8184 = vadd.f32 %v7653, %v8183
      %v8185 = vpop.f32.mrf.mxu0
      %v8186 = vadd.f32 %v7649, %v8185
      %v8187 = vpop.f32.mrf.mxu0
      %v8188 = vadd.f32 %v7653, %v8187
      %8189 = vmatprep.mubr.bf16.mxu0 %v7565
      %8190 = vmatmul.mubr.bf16.gmra.mxu0 %v7564
      %v8191 = vpop.f32.mrf.mxu0
      %v8192 = vadd.f32 %v7649, %v8191
      %v8193 = vpop.f32.mrf.mxu0
      %v8194 = vadd.f32 %v7653, %v8193
      %v8195 = vpop.f32.mrf.mxu0
      %v8196 = vadd.f32 %v7649, %v8195
      %v8197 = vpop.f32.mrf.mxu0
      %v8198 = vadd.f32 %v7653, %v8197
      %8199 = vmatprep.mubr.bf16.mxu0 %v7567
      %8200 = vmatmul.mubr.bf16.gmra.mxu0 %v7566
      %v8201 = vpop.f32.mrf.mxu0
      %v8202 = vadd.f32 %v7649, %v8201
      %v8203 = vpop.f32.mrf.mxu0
      %v8204 = vadd.f32 %v7653, %v8203
      %v8205 = vpop.f32.mrf.mxu0
      %v8206 = vadd.f32 %v7649, %v8205
      %v8207 = vpop.f32.mrf.mxu0
      %v8208 = vadd.f32 %v7653, %v8207
      %8209 = vmatprep.mubr.bf16.mxu0 %v7569
      %8210 = vmatmul.mubr.bf16.gmra.mxu0 %v7568
      %v8211 = vpop.f32.mrf.mxu0
      %v8212 = vadd.f32 %v7649, %v8211
      %v8213 = vpop.f32.mrf.mxu0
      %v8214 = vadd.f32 %v7653, %v8213
      %v8215 = vpop.f32.mrf.mxu0
      %v8216 = vadd.f32 %v7649, %v8215
      %v8217 = vpop.f32.mrf.mxu0
      %v8218 = vadd.f32 %v7653, %v8217
      %8219 = vmatprep.mubr.bf16.mxu0 %v7571
      %8220 = vmatmul.mubr.bf16.gmra.mxu0 %v7570
      %v8221 = vpop.f32.mrf.mxu0
      %v8222 = vadd.f32 %v7649, %v8221
      %v8223 = vpop.f32.mrf.mxu0
      %v8224 = vadd.f32 %v7653, %v8223
      %v8225 = vpop.f32.mrf.mxu0
      %v8226 = vadd.f32 %v7649, %v8225
      %v8227 = vpop.f32.mrf.mxu0
      %v8228 = vadd.f32 %v7653, %v8227
      %8229 = vmatprep.mubr.bf16.mxu0 %v7573
      %8230 = vmatmul.mubr.bf16.gmra.mxu0 %v7572
      %v8231 = vpop.f32.mrf.mxu0
      %v8232 = vadd.f32 %v7649, %v8231
      %v8233 = vpop.f32.mrf.mxu0
      %v8234 = vadd.f32 %v7653, %v8233
      %v8235 = vpop.f32.mrf.mxu0
      %v8236 = vadd.f32 %v7649, %v8235
      %v8237 = vpop.f32.mrf.mxu0
      %v8238 = vadd.f32 %v7653, %v8237
      %8239 = vmatprep.mubr.bf16.mxu0 %v7575
      %8240 = vmatmul.mubr.bf16.gmra.mxu0 %v7574
      %v8241 = vpop.f32.mrf.mxu0
      %v8242 = vadd.f32 %v7649, %v8241
      %v8243 = vpop.f32.mrf.mxu0
      %v8244 = vadd.f32 %v7653, %v8243
      %v8245 = vpop.f32.mrf.mxu0
      %v8246 = vadd.f32 %v7649, %v8245
      %v8247 = vpop.f32.mrf.mxu0
      %v8248 = vadd.f32 %v7653, %v8247
      %8249 = vmatprep.mubr.bf16.mxu0 %v7577
      %8250 = vmatmul.mubr.bf16.gmra.mxu0 %v7576
      %v8251 = vpop.f32.mrf.mxu0
      %v8252 = vadd.f32 %v7649, %v8251
      %v8253 = vpop.f32.mrf.mxu0
      %v8254 = vadd.f32 %v7653, %v8253
      %v8255 = vpop.f32.mrf.mxu0
      %v8256 = vadd.f32 %v7649, %v8255
      %v8257 = vpop.f32.mrf.mxu0
      %v8258 = vadd.f32 %v7653, %v8257
      %8259 = vmatprep.mubr.bf16.mxu0 %v7579
      %8260 = vmatmul.mubr.bf16.gmra.mxu0 %v7578
      %v8261 = vpop.f32.mrf.mxu0
      %v8262 = vadd.f32 %v7649, %v8261
      %v8263 = vpop.f32.mrf.mxu0
      %v8264 = vadd.f32 %v7653, %v8263
      %v8265 = vpop.f32.mrf.mxu0
      %v8266 = vadd.f32 %v7649, %v8265
      %v8267 = vpop.f32.mrf.mxu0
      %v8268 = vadd.f32 %v7653, %v8267
      %8269 = vdwg.mxu0
      %8270 = vmatprep.subr.bf16.mxu0 0
      %8271 = vmatpush1.bf16.msra.mxu0 %v7844
      %8272 = vmatprep.subr.bf16.mxu0 0
      %8273 = vmatpush1.bf16.msra.mxu0 %v7841
      %8274 = vmatprep.subr.bf16.mxu0 0
      %8275 = vmatpush1.bf16.msra.mxu0 %v7838
      %8276 = vmatprep.subr.bf16.mxu0 0
      %8277 = vmatpush1.bf16.msra.mxu0 %v7835
      %8278 = vmatprep.subr.bf16.mxu0 0
      %8279 = vmatpush1.bf16.msra.mxu0 %v7832
      %8280 = vmatprep.subr.bf16.mxu0 0
      %8281 = vmatpush1.bf16.msra.mxu0 %v7829
      %8282 = vmatprep.subr.bf16.mxu0 0
      %8283 = vmatpush1.bf16.msra.mxu0 %v7826
      %8284 = vmatprep.subr.bf16.mxu0 0
      %8285 = vmatpush1.bf16.msra.mxu0 %v7823
      %8286 = vmatprep.subr.bf16.mxu0 0
      %8287 = vmatpush2.bf16.msra.mxu0 %v7868
      %8288 = vmatprep.subr.bf16.mxu0 0
      %8289 = vmatpush2.bf16.msra.mxu0 %v7865
      %8290 = vmatprep.subr.bf16.mxu0 0
      %8291 = vmatpush2.bf16.msra.mxu0 %v7862
      %8292 = vmatprep.subr.bf16.mxu0 0
      %8293 = vmatpush2.bf16.msra.mxu0 %v7859
      %8294 = vmatprep.subr.bf16.mxu0 0
      %8295 = vmatpush2.bf16.msra.mxu0 %v7856
      %8296 = vmatprep.subr.bf16.mxu0 0
      %8297 = vmatpush2.bf16.msra.mxu0 %v7853
      %8298 = vmatprep.subr.bf16.mxu0 0
      %8299 = vmatpush2.bf16.msra.mxu0 %v7850
      %8300 = vmatprep.subr.bf16.mxu0 0
      %8301 = vmatpush2.bf16.msra.mxu0 %v7847
      %8302 = vmatprep.mubr.bf16.mxu0 %v7517
      %8303 = vmatmul.mubr.bf16.gmra.mxu0 %v7516
      %v8304 = vpop.f32.mrf.mxu0
      %v8305 = vadd.f32 %v7657, %v8304
      %v8306 = vpop.f32.mrf.mxu0
      %v8307 = vpop.f32.mrf.mxu0
      %v8308 = vadd.f32 %v7657, %v8307
      %v8309 = vpop.f32.mrf.mxu0
      %8310 = vmatprep.mubr.bf16.mxu0 %v7519
      %8311 = vmatmul.mubr.bf16.gmra.mxu0 %v7518
      %v8312 = vpop.f32.mrf.mxu0
      %v8313 = vadd.f32 %v7657, %v8312
      %v8314 = vpop.f32.mrf.mxu0
      %v8315 = vpop.f32.mrf.mxu0
      %v8316 = vadd.f32 %v7657, %v8315
      %v8317 = vpop.f32.mrf.mxu0
      %8318 = vmatprep.mubr.bf16.mxu0 %v7521
      %8319 = vmatmul.mubr.bf16.gmra.mxu0 %v7520
      %v8320 = vpop.f32.mrf.mxu0
      %v8321 = vadd.f32 %v7657, %v8320
      %v8322 = vpop.f32.mrf.mxu0
      %v8323 = vpop.f32.mrf.mxu0
      %v8324 = vadd.f32 %v7657, %v8323
      %v8325 = vpop.f32.mrf.mxu0
      %8326 = vmatprep.mubr.bf16.mxu0 %v7523
      %8327 = vmatmul.mubr.bf16.gmra.mxu0 %v7522
      %v8328 = vpop.f32.mrf.mxu0
      %v8329 = vadd.f32 %v7657, %v8328
      %v8330 = vpop.f32.mrf.mxu0
      %v8331 = vpop.f32.mrf.mxu0
      %v8332 = vadd.f32 %v7657, %v8331
      %v8333 = vpop.f32.mrf.mxu0
      %8334 = vmatprep.mubr.bf16.mxu0 %v7525
      %8335 = vmatmul.mubr.bf16.gmra.mxu0 %v7524
      %v8336 = vpop.f32.mrf.mxu0
      %v8337 = vadd.f32 %v7657, %v8336
      %v8338 = vpop.f32.mrf.mxu0
      %v8339 = vpop.f32.mrf.mxu0
      %v8340 = vadd.f32 %v7657, %v8339
      %v8341 = vpop.f32.mrf.mxu0
      %8342 = vmatprep.mubr.bf16.mxu0 %v7527
      %8343 = vmatmul.mubr.bf16.gmra.mxu0 %v7526
      %v8344 = vpop.f32.mrf.mxu0
      %v8345 = vadd.f32 %v7657, %v8344
      %v8346 = vpop.f32.mrf.mxu0
      %v8347 = vpop.f32.mrf.mxu0
      %v8348 = vadd.f32 %v7657, %v8347
      %v8349 = vpop.f32.mrf.mxu0
      %8350 = vmatprep.mubr.bf16.mxu0 %v7529
      %8351 = vmatmul.mubr.bf16.gmra.mxu0 %v7528
      %v8352 = vpop.f32.mrf.mxu0
      %v8353 = vadd.f32 %v7657, %v8352
      %v8354 = vpop.f32.mrf.mxu0
      %v8355 = vpop.f32.mrf.mxu0
      %v8356 = vadd.f32 %v7657, %v8355
      %v8357 = vpop.f32.mrf.mxu0
      %8358 = vmatprep.mubr.bf16.mxu0 %v7531
      %8359 = vmatmul.mubr.bf16.gmra.mxu0 %v7530
      %v8360 = vpop.f32.mrf.mxu0
      %v8361 = vadd.f32 %v7657, %v8360
      %v8362 = vpop.f32.mrf.mxu0
      %v8363 = vpop.f32.mrf.mxu0
      %v8364 = vadd.f32 %v7657, %v8363
      %v8365 = vpop.f32.mrf.mxu0
      %8366 = vmatprep.mubr.bf16.mxu0 %v7533
      %8367 = vmatmul.mubr.bf16.gmra.mxu0 %v7532
      %v8368 = vpop.f32.mrf.mxu0
      %v8369 = vadd.f32 %v7657, %v8368
      %v8370 = vpop.f32.mrf.mxu0
      %v8371 = vpop.f32.mrf.mxu0
      %v8372 = vadd.f32 %v7657, %v8371
      %v8373 = vpop.f32.mrf.mxu0
      %8374 = vmatprep.mubr.bf16.mxu0 %v7535
      %8375 = vmatmul.mubr.bf16.gmra.mxu0 %v7534
      %v8376 = vpop.f32.mrf.mxu0
      %v8377 = vadd.f32 %v7657, %v8376
      %v8378 = vpop.f32.mrf.mxu0
      %v8379 = vpop.f32.mrf.mxu0
      %v8380 = vadd.f32 %v7657, %v8379
      %v8381 = vpop.f32.mrf.mxu0
      %8382 = vmatprep.mubr.bf16.mxu0 %v7537
      %8383 = vmatmul.mubr.bf16.gmra.mxu0 %v7536
      %v8384 = vpop.f32.mrf.mxu0
      %v8385 = vadd.f32 %v7657, %v8384
      %v8386 = vpop.f32.mrf.mxu0
      %v8387 = vpop.f32.mrf.mxu0
      %v8388 = vadd.f32 %v7657, %v8387
      %v8389 = vpop.f32.mrf.mxu0
      %8390 = vmatprep.mubr.bf16.mxu0 %v7539
      %8391 = vmatmul.mubr.bf16.gmra.mxu0 %v7538
      %v8392 = vpop.f32.mrf.mxu0
      %v8393 = vadd.f32 %v7657, %v8392
      %v8394 = vpop.f32.mrf.mxu0
      %v8395 = vpop.f32.mrf.mxu0
      %v8396 = vadd.f32 %v7657, %v8395
      %v8397 = vpop.f32.mrf.mxu0
      %8398 = vmatprep.mubr.bf16.mxu0 %v7541
      %8399 = vmatmul.mubr.bf16.gmra.mxu0 %v7540
      %v8400 = vpop.f32.mrf.mxu0
      %v8401 = vadd.f32 %v7657, %v8400
      %v8402 = vpop.f32.mrf.mxu0
      %v8403 = vpop.f32.mrf.mxu0
      %v8404 = vadd.f32 %v7657, %v8403
      %v8405 = vpop.f32.mrf.mxu0
      %8406 = vmatprep.mubr.bf16.mxu0 %v7543
      %8407 = vmatmul.mubr.bf16.gmra.mxu0 %v7542
      %v8408 = vpop.f32.mrf.mxu0
      %v8409 = vadd.f32 %v7657, %v8408
      %v8410 = vpop.f32.mrf.mxu0
      %v8411 = vpop.f32.mrf.mxu0
      %v8412 = vadd.f32 %v7657, %v8411
      %v8413 = vpop.f32.mrf.mxu0
      %8414 = vmatprep.mubr.bf16.mxu0 %v7545
      %8415 = vmatmul.mubr.bf16.gmra.mxu0 %v7544
      %v8416 = vpop.f32.mrf.mxu0
      %v8417 = vadd.f32 %v7657, %v8416
      %v8418 = vpop.f32.mrf.mxu0
      %v8419 = vpop.f32.mrf.mxu0
      %v8420 = vadd.f32 %v7657, %v8419
      %v8421 = vpop.f32.mrf.mxu0
      %8422 = vmatprep.mubr.bf16.mxu0 %v7547
      %8423 = vmatmul.mubr.bf16.gmra.mxu0 %v7546
      %v8424 = vpop.f32.mrf.mxu0
      %v8425 = vadd.f32 %v7657, %v8424
      %v8426 = vpop.f32.mrf.mxu0
      %v8427 = vpop.f32.mrf.mxu0
      %v8428 = vadd.f32 %v7657, %v8427
      %v8429 = vpop.f32.mrf.mxu0
      %8430 = vmatprep.mubr.bf16.mxu0 %v7549
      %8431 = vmatmul.mubr.bf16.gmra.mxu0 %v7548
      %v8432 = vpop.f32.mrf.mxu0
      %v8433 = vadd.f32 %v7657, %v8432
      %v8434 = vpop.f32.mrf.mxu0
      %v8435 = vpop.f32.mrf.mxu0
      %v8436 = vadd.f32 %v7657, %v8435
      %v8437 = vpop.f32.mrf.mxu0
      %8438 = vmatprep.mubr.bf16.mxu0 %v7551
      %8439 = vmatmul.mubr.bf16.gmra.mxu0 %v7550
      %v8440 = vpop.f32.mrf.mxu0
      %v8441 = vadd.f32 %v7657, %v8440
      %v8442 = vpop.f32.mrf.mxu0
      %v8443 = vpop.f32.mrf.mxu0
      %v8444 = vadd.f32 %v7657, %v8443
      %v8445 = vpop.f32.mrf.mxu0
      %8446 = vmatprep.mubr.bf16.mxu0 %v7553
      %8447 = vmatmul.mubr.bf16.gmra.mxu0 %v7552
      %v8448 = vpop.f32.mrf.mxu0
      %v8449 = vadd.f32 %v7657, %v8448
      %v8450 = vpop.f32.mrf.mxu0
      %v8451 = vpop.f32.mrf.mxu0
      %v8452 = vadd.f32 %v7657, %v8451
      %v8453 = vpop.f32.mrf.mxu0
      %8454 = vmatprep.mubr.bf16.mxu0 %v7555
      %8455 = vmatmul.mubr.bf16.gmra.mxu0 %v7554
      %v8456 = vpop.f32.mrf.mxu0
      %v8457 = vadd.f32 %v7657, %v8456
      %v8458 = vpop.f32.mrf.mxu0
      %v8459 = vpop.f32.mrf.mxu0
      %v8460 = vadd.f32 %v7657, %v8459
      %v8461 = vpop.f32.mrf.mxu0
      %8462 = vmatprep.mubr.bf16.mxu0 %v7557
      %8463 = vmatmul.mubr.bf16.gmra.mxu0 %v7556
      %v8464 = vpop.f32.mrf.mxu0
      %v8465 = vadd.f32 %v7657, %v8464
      %v8466 = vpop.f32.mrf.mxu0
      %v8467 = vpop.f32.mrf.mxu0
      %v8468 = vadd.f32 %v7657, %v8467
      %v8469 = vpop.f32.mrf.mxu0
      %8470 = vmatprep.mubr.bf16.mxu0 %v7559
      %8471 = vmatmul.mubr.bf16.gmra.mxu0 %v7558
      %v8472 = vpop.f32.mrf.mxu0
      %v8473 = vadd.f32 %v7657, %v8472
      %v8474 = vpop.f32.mrf.mxu0
      %v8475 = vpop.f32.mrf.mxu0
      %v8476 = vadd.f32 %v7657, %v8475
      %v8477 = vpop.f32.mrf.mxu0
      %8478 = vmatprep.mubr.bf16.mxu0 %v7561
      %8479 = vmatmul.mubr.bf16.gmra.mxu0 %v7560
      %v8480 = vpop.f32.mrf.mxu0
      %v8481 = vadd.f32 %v7657, %v8480
      %v8482 = vpop.f32.mrf.mxu0
      %v8483 = vpop.f32.mrf.mxu0
      %v8484 = vadd.f32 %v7657, %v8483
      %v8485 = vpop.f32.mrf.mxu0
      %8486 = vmatprep.mubr.bf16.mxu0 %v7563
      %8487 = vmatmul.mubr.bf16.gmra.mxu0 %v7562
      %v8488 = vpop.f32.mrf.mxu0
      %v8489 = vadd.f32 %v7657, %v8488
      %v8490 = vpop.f32.mrf.mxu0
      %v8491 = vpop.f32.mrf.mxu0
      %v8492 = vadd.f32 %v7657, %v8491
      %v8493 = vpop.f32.mrf.mxu0
      %8494 = vmatprep.mubr.bf16.mxu0 %v7565
      %8495 = vmatmul.mubr.bf16.gmra.mxu0 %v7564
      %v8496 = vpop.f32.mrf.mxu0
      %v8497 = vadd.f32 %v7657, %v8496
      %v8498 = vpop.f32.mrf.mxu0
      %v8499 = vpop.f32.mrf.mxu0
      %v8500 = vadd.f32 %v7657, %v8499
      %v8501 = vpop.f32.mrf.mxu0
      %8502 = vmatprep.mubr.bf16.mxu0 %v7567
      %8503 = vmatmul.mubr.bf16.gmra.mxu0 %v7566
      %v8504 = vpop.f32.mrf.mxu0
      %v8505 = vadd.f32 %v7657, %v8504
      %v8506 = vpop.f32.mrf.mxu0
      %v8507 = vpop.f32.mrf.mxu0
      %v8508 = vadd.f32 %v7657, %v8507
      %v8509 = vpop.f32.mrf.mxu0
      %8510 = vmatprep.mubr.bf16.mxu0 %v7569
      %8511 = vmatmul.mubr.bf16.gmra.mxu0 %v7568
      %v8512 = vpop.f32.mrf.mxu0
      %v8513 = vadd.f32 %v7657, %v8512
      %v8514 = vpop.f32.mrf.mxu0
      %v8515 = vpop.f32.mrf.mxu0
      %v8516 = vadd.f32 %v7657, %v8515
      %v8517 = vpop.f32.mrf.mxu0
      %8518 = vmatprep.mubr.bf16.mxu0 %v7571
      %8519 = vmatmul.mubr.bf16.gmra.mxu0 %v7570
      %v8520 = vpop.f32.mrf.mxu0
      %v8521 = vadd.f32 %v7657, %v8520
      %v8522 = vpop.f32.mrf.mxu0
      %v8523 = vpop.f32.mrf.mxu0
      %v8524 = vadd.f32 %v7657, %v8523
      %v8525 = vpop.f32.mrf.mxu0
      %8526 = vmatprep.mubr.bf16.mxu0 %v7573
      %8527 = vmatmul.mubr.bf16.gmra.mxu0 %v7572
      %v8528 = vpop.f32.mrf.mxu0
      %v8529 = vadd.f32 %v7657, %v8528
      %v8530 = vpop.f32.mrf.mxu0
      %v8531 = vpop.f32.mrf.mxu0
      %v8532 = vadd.f32 %v7657, %v8531
      %v8533 = vpop.f32.mrf.mxu0
      %8534 = vmatprep.mubr.bf16.mxu0 %v7575
      %8535 = vmatmul.mubr.bf16.gmra.mxu0 %v7574
      %v8536 = vpop.f32.mrf.mxu0
      %v8537 = vadd.f32 %v7657, %v8536
      %v8538 = vpop.f32.mrf.mxu0
      %v8539 = vpop.f32.mrf.mxu0
      %v8540 = vadd.f32 %v7657, %v8539
      %v8541 = vpop.f32.mrf.mxu0
      %8542 = vmatprep.mubr.bf16.mxu0 %v7577
      %8543 = vmatmul.mubr.bf16.gmra.mxu0 %v7576
      %v8544 = vpop.f32.mrf.mxu0
      %v8545 = vadd.f32 %v7657, %v8544
      %v8546 = vpop.f32.mrf.mxu0
      %v8547 = vpop.f32.mrf.mxu0
      %v8548 = vadd.f32 %v7657, %v8547
      %v8549 = vpop.f32.mrf.mxu0
      %8550 = vmatprep.mubr.bf16.mxu0 %v7579
      %8551 = vmatmul.mubr.bf16.gmra.mxu0 %v7578
      %v8552 = vpop.f32.mrf.mxu0
      %v8553 = vadd.f32 %v7657, %v8552
      %v8554 = vpop.f32.mrf.mxu0
      %v8555 = vpop.f32.mrf.mxu0
      %v8556 = vadd.f32 %v7657, %v8555
      %v8557 = vpop.f32.mrf.mxu0
      %8558 = vdwg.mxu0
      %v8559 = vmax.f32 %v8305, 0.0
      %v8560 = vmax.f32 %v8308, 0.0
      %v8561 = vmax.f32 %v8313, 0.0
      %v8562 = vmax.f32 %v8316, 0.0
      %v8563 = vmax.f32 %v8321, 0.0
      %v8564 = vmax.f32 %v8324, 0.0
      %v8565 = vmax.f32 %v8329, 0.0
      %v8566 = vmax.f32 %v8332, 0.0
      %v8567 = vmax.f32 %v8337, 0.0
      %v8568 = vmax.f32 %v8340, 0.0
      %v8569 = vmax.f32 %v8345, 0.0
      %v8570 = vmax.f32 %v8348, 0.0
      %v8571 = vmax.f32 %v8353, 0.0
      %v8572 = vmax.f32 %v8356, 0.0
      %v8573 = vmax.f32 %v8361, 0.0
      %v8574 = vmax.f32 %v8364, 0.0
      %v8575 = vmax.f32 %v8369, 0.0
      %v8576 = vmax.f32 %v8372, 0.0
      %v8577 = vmax.f32 %v8377, 0.0
      %v8578 = vmax.f32 %v8380, 0.0
      %v8579 = vmax.f32 %v8385, 0.0
      %v8580 = vmax.f32 %v8388, 0.0
      %v8581 = vmax.f32 %v8393, 0.0
      %v8582 = vmax.f32 %v8396, 0.0
      %v8583 = vmax.f32 %v8401, 0.0
      %v8584 = vmax.f32 %v8404, 0.0
      %v8585 = vmax.f32 %v8409, 0.0
      %v8586 = vmax.f32 %v8412, 0.0
      %v8587 = vmax.f32 %v8417, 0.0
      %v8588 = vmax.f32 %v8420, 0.0
      %v8589 = vmax.f32 %v8425, 0.0
      %v8590 = vmax.f32 %v8428, 0.0
      %v8591 = vmax.f32 %v8433, 0.0
      %v8592 = vmax.f32 %v8436, 0.0
      %v8593 = vmax.f32 %v8441, 0.0
      %v8594 = vmax.f32 %v8444, 0.0
      %v8595 = vmax.f32 %v8449, 0.0
      %v8596 = vmax.f32 %v8452, 0.0
      %v8597 = vmax.f32 %v8457, 0.0
      %v8598 = vmax.f32 %v8460, 0.0
      %v8599 = vmax.f32 %v8465, 0.0
      %v8600 = vmax.f32 %v8468, 0.0
      %v8601 = vmax.f32 %v8473, 0.0
      %v8602 = vmax.f32 %v8476, 0.0
      %v8603 = vmax.f32 %v8481, 0.0
      %v8604 = vmax.f32 %v8484, 0.0
      %v8605 = vmax.f32 %v8489, 0.0
      %v8606 = vmax.f32 %v8492, 0.0
      %v8607 = vmax.f32 %v8497, 0.0
      %v8608 = vmax.f32 %v8500, 0.0
      %v8609 = vmax.f32 %v8505, 0.0
      %v8610 = vmax.f32 %v8508, 0.0
      %v8611 = vmax.f32 %v8513, 0.0
      %v8612 = vmax.f32 %v8516, 0.0
      %v8613 = vmax.f32 %v8521, 0.0
      %v8614 = vmax.f32 %v8524, 0.0
      %v8615 = vmax.f32 %v8529, 0.0
      %v8616 = vmax.f32 %v8532, 0.0
      %v8617 = vmax.f32 %v8537, 0.0
      %v8618 = vmax.f32 %v8540, 0.0
      %v8619 = vmax.f32 %v8545, 0.0
      %v8620 = vmax.f32 %v8548, 0.0
      %v8621 = vmax.f32 %v8553, 0.0
      %v8622 = vmax.f32 %v8556, 0.0
      %v8623 = vpack.c.bf16 %v7956, %v7952
      %v8624 = vpack.c.bf16 %v7958, %v7954
      %v8625 = vpack.c.bf16 %v7966, %v7962
      %v8626 = vpack.c.bf16 %v7968, %v7964
      %v8627 = vpack.c.bf16 %v7976, %v7972
      %v8628 = vpack.c.bf16 %v7978, %v7974
      %v8629 = vpack.c.bf16 %v7986, %v7982
      %v8630 = vpack.c.bf16 %v7988, %v7984
      %v8631 = vpack.c.bf16 %v7996, %v7992
      %v8632 = vpack.c.bf16 %v7998, %v7994
      %v8633 = vpack.c.bf16 %v8006, %v8002
      %v8634 = vpack.c.bf16 %v8008, %v8004
      %v8635 = vpack.c.bf16 %v8016, %v8012
      %v8636 = vpack.c.bf16 %v8018, %v8014
      %v8637 = vpack.c.bf16 %v8026, %v8022
      %v8638 = vpack.c.bf16 %v8028, %v8024
      %v8639 = vpack.c.bf16 %v8036, %v8032
      %v8640 = vpack.c.bf16 %v8038, %v8034
      %v8641 = vpack.c.bf16 %v8046, %v8042
      %v8642 = vpack.c.bf16 %v8048, %v8044
      %v8643 = vpack.c.bf16 %v8056, %v8052
      %v8644 = vpack.c.bf16 %v8058, %v8054
      %v8645 = vpack.c.bf16 %v8066, %v8062
      %v8646 = vpack.c.bf16 %v8068, %v8064
      %v8647 = vpack.c.bf16 %v8076, %v8072
      %v8648 = vpack.c.bf16 %v8078, %v8074
      %v8649 = vpack.c.bf16 %v8086, %v8082
      %v8650 = vpack.c.bf16 %v8088, %v8084
      %v8651 = vpack.c.bf16 %v8096, %v8092
      %v8652 = vpack.c.bf16 %v8098, %v8094
      %v8653 = vpack.c.bf16 %v8106, %v8102
      %v8654 = vpack.c.bf16 %v8108, %v8104
      %v8655 = vpack.c.bf16 %v8116, %v8112
      %v8656 = vpack.c.bf16 %v8118, %v8114
      %v8657 = vpack.c.bf16 %v8126, %v8122
      %v8658 = vpack.c.bf16 %v8128, %v8124
      %v8659 = vpack.c.bf16 %v8136, %v8132
      %v8660 = vpack.c.bf16 %v8138, %v8134
      %v8661 = vpack.c.bf16 %v8146, %v8142
      %v8662 = vpack.c.bf16 %v8148, %v8144
      %v8663 = vpack.c.bf16 %v8156, %v8152
      %v8664 = vpack.c.bf16 %v8158, %v8154
      %v8665 = vpack.c.bf16 %v8166, %v8162
      %v8666 = vpack.c.bf16 %v8168, %v8164
      %v8667 = vpack.c.bf16 %v8176, %v8172
      %v8668 = vpack.c.bf16 %v8178, %v8174
      %v8669 = vpack.c.bf16 %v8186, %v8182
      %v8670 = vpack.c.bf16 %v8188, %v8184
      %v8671 = vpack.c.bf16 %v8196, %v8192
      %v8672 = vpack.c.bf16 %v8198, %v8194
      %v8673 = vpack.c.bf16 %v8206, %v8202
      %v8674 = vpack.c.bf16 %v8208, %v8204
      %v8675 = vpack.c.bf16 %v8216, %v8212
      %v8676 = vpack.c.bf16 %v8218, %v8214
      %v8677 = vpack.c.bf16 %v8226, %v8222
      %v8678 = vpack.c.bf16 %v8228, %v8224
      %v8679 = vpack.c.bf16 %v8236, %v8232
      %v8680 = vpack.c.bf16 %v8238, %v8234
      %v8681 = vpack.c.bf16 %v8246, %v8242
      %v8682 = vpack.c.bf16 %v8248, %v8244
      %v8683 = vpack.c.bf16 %v8256, %v8252
      %v8684 = vpack.c.bf16 %v8258, %v8254
      %v8685 = vpack.c.bf16 %v8266, %v8262
      %v8686 = vpack.c.bf16 %v8268, %v8264
      %v8687 = vld [vmem:[%s21] sm:$0xf]
      %v8688 = vld [vmem:[%s21 + $0x4] sm:$0xf]
      %v8689 = vld [vmem:[%s21 + $0x8] sm:$0xf]
      %v8690 = vld [vmem:[%s21 + $0xc] sm:$0xf]
      %v8691 = vld [vmem:[%s21 + $0x10] sm:$0xf]
      %v8692 = vld [vmem:[%s21 + $0x14] sm:$0xf]
      %v8693 = vld [vmem:[%s21 + $0x18] sm:$0xf]
      %v8694 = vld [vmem:[%s21 + $0x1c] sm:$0xf]
      %v8695 = vld [vmem:[%s21 + $0x20] sm:$0xf]
      %v8696 = vld [vmem:[%s21 + $0x24] sm:$0xf]
      %v8697 = vld [vmem:[%s21 + $0x28] sm:$0xf]
      %v8698 = vld [vmem:[%s21 + $0x2c] sm:$0xf]
      %v8699 = vld [vmem:[%s21 + $0x30] sm:$0xf]
      %v8700 = vld [vmem:[%s21 + $0x34] sm:$0xf]
      %v8701 = vld [vmem:[%s21 + $0x38] sm:$0xf]
      %v8702 = vld [vmem:[%s21 + $0x3c] sm:$0xf]
      %v8703 = vld [vmem:[%s21 + $0x40] sm:$0xf]
      %v8704 = vld [vmem:[%s21 + $0x44] sm:$0xf]
      %v8705 = vld [vmem:[%s21 + $0x48] sm:$0xf]
      %v8706 = vld [vmem:[%s21 + $0x4c] sm:$0xf]
      %v8707 = vld [vmem:[%s21 + $0x50] sm:$0xf]
      %v8708 = vld [vmem:[%s21 + $0x54] sm:$0xf]
      %v8709 = vld [vmem:[%s21 + $0x58] sm:$0xf]
      %v8710 = vld [vmem:[%s21 + $0x5c] sm:$0xf]
      %v8711 = vld [vmem:[%s21 + $0x60] sm:$0xf]
      %v8712 = vld [vmem:[%s21 + $0x64] sm:$0xf]
      %v8713 = vld [vmem:[%s21 + $0x68] sm:$0xf]
      %v8714 = vld [vmem:[%s21 + $0x6c] sm:$0xf]
      %v8715 = vld [vmem:[%s21 + $0x70] sm:$0xf]
      %v8716 = vld [vmem:[%s21 + $0x74] sm:$0xf]
      %v8717 = vld [vmem:[%s21 + $0x78] sm:$0xf]
      %v8718 = vld [vmem:[%s21 + $0x7c] sm:$0xf]
      %v8719 = vld [vmem:[%s22] sm:$0xf]
      %v8720 = vld [vmem:[%s22 + $0x4] sm:$0xf]
      %v8721 = vld [vmem:[%s22 + $0x8] sm:$0xf]
      %v8722 = vld [vmem:[%s22 + $0xc] sm:$0xf]
      %v8787 = vunpack.c.l.b16 %v882
      %v8788 = vunpack.c.l.b16 %v883
      %v8789 = vunpack.c.l.b16 %v884
      %v8790 = vunpack.c.l.b16 %v885
      %v8791 = vunpack.c.l.b16 %v886
      %v8792 = vunpack.c.l.b16 %v887
      %v8793 = vunpack.c.l.b16 %v888
      %v8794 = vunpack.c.l.b16 %v889
      %v8795 = vunpack.c.l.b16 %v890
      %v8796 = vunpack.c.l.b16 %v891
      %v8797 = vunpack.c.l.b16 %v892
      %v8798 = vunpack.c.l.b16 %v893
      %v8799 = vunpack.c.l.b16 %v894
      %v8800 = vunpack.c.l.b16 %v895
      %v8801 = vunpack.c.l.b16 %v896
      %v8802 = vunpack.c.l.b16 %v897
      %v8803 = vunpack.c.l.b16 %v898
      %v8804 = vunpack.c.l.b16 %v899
      %v8805 = vunpack.c.l.b16 %v900
      %v8806 = vunpack.c.l.b16 %v901
      %v8807 = vunpack.c.l.b16 %v902
      %v8808 = vunpack.c.l.b16 %v903
      %v8809 = vunpack.c.l.b16 %v904
      %v8810 = vunpack.c.l.b16 %v905
      %v8811 = vunpack.c.l.b16 %v906
      %v8812 = vunpack.c.l.b16 %v907
      %v8813 = vunpack.c.l.b16 %v908
      %v8814 = vunpack.c.l.b16 %v909
      %v8815 = vunpack.c.l.b16 %v910
      %v8816 = vunpack.c.l.b16 %v911
      %v8817 = vunpack.c.l.b16 %v912
      %v8818 = vunpack.c.l.b16 %v913
      %v8819 = vunpack.c.l.b16 %v914
      %v8820 = vunpack.c.l.b16 %v915
      %v8821 = vunpack.c.l.b16 %v916
      %v8822 = vunpack.c.l.b16 %v917
      %v8823 = vunpack.c.l.b16 %v918
      %v8824 = vunpack.c.l.b16 %v919
      %v8825 = vunpack.c.l.b16 %v920
      %v8826 = vunpack.c.l.b16 %v921
      %v8827 = vunpack.c.l.b16 %v922
      %v8828 = vunpack.c.l.b16 %v923
      %v8829 = vunpack.c.l.b16 %v924
      %v8830 = vunpack.c.l.b16 %v925
      %v8831 = vunpack.c.l.b16 %v926
      %v8832 = vunpack.c.l.b16 %v927
      %v8833 = vunpack.c.l.b16 %v928
      %v8834 = vunpack.c.l.b16 %v929
      %v8835 = vunpack.c.l.b16 %v930
      %v8836 = vunpack.c.l.b16 %v931
      %v8837 = vunpack.c.l.b16 %v932
      %v8838 = vunpack.c.l.b16 %v933
      %v8839 = vunpack.c.l.b16 %v934
      %v8840 = vunpack.c.l.b16 %v935
      %v8841 = vunpack.c.l.b16 %v936
      %v8842 = vunpack.c.l.b16 %v937
      %v8843 = vunpack.c.l.b16 %v938
      %v8844 = vunpack.c.l.b16 %v939
      %v8845 = vunpack.c.l.b16 %v940
      %v8846 = vunpack.c.l.b16 %v941
      %v8847 = vunpack.c.l.b16 %v942
      %v8848 = vunpack.c.l.b16 %v943
      %v8849 = vunpack.c.l.b16 %v944
      %v8850 = vunpack.c.l.b16 %v945
      %v8851 = vpack.c.b16 %v8788, %v8787
      %v8852 = vpack.c.b16 %v8790, %v8789
      %v8853 = vpack.c.b16 %v8792, %v8791
      %v8854 = vpack.c.b16 %v8794, %v8793
      %v8855 = vpack.c.b16 %v8796, %v8795
      %v8856 = vpack.c.b16 %v8798, %v8797
      %v8857 = vpack.c.b16 %v8800, %v8799
      %v8858 = vpack.c.b16 %v8802, %v8801
      %v8859 = vpack.c.b16 %v8804, %v8803
      %v8860 = vpack.c.b16 %v8806, %v8805
      %v8861 = vpack.c.b16 %v8808, %v8807
      %v8862 = vpack.c.b16 %v8810, %v8809
      %v8863 = vpack.c.b16 %v8812, %v8811
      %v8864 = vpack.c.b16 %v8814, %v8813
      %v8865 = vpack.c.b16 %v8816, %v8815
      %v8866 = vpack.c.b16 %v8818, %v8817
      %v8867 = vpack.c.b16 %v8820, %v8819
      %v8868 = vpack.c.b16 %v8822, %v8821
      %v8869 = vpack.c.b16 %v8824, %v8823
      %v8870 = vpack.c.b16 %v8826, %v8825
      %v8871 = vpack.c.b16 %v8828, %v8827
      %v8872 = vpack.c.b16 %v8830, %v8829
      %v8873 = vpack.c.b16 %v8832, %v8831
      %v8874 = vpack.c.b16 %v8834, %v8833
      %v8875 = vpack.c.b16 %v8836, %v8835
      %v8876 = vpack.c.b16 %v8838, %v8837
      %v8877 = vpack.c.b16 %v8840, %v8839
      %v8878 = vpack.c.b16 %v8842, %v8841
      %v8879 = vpack.c.b16 %v8844, %v8843
      %v8880 = vpack.c.b16 %v8846, %v8845
      %v8881 = vpack.c.b16 %v8848, %v8847
      %v8882 = vpack.c.b16 %v8850, %v8849
      %v8887 = vunpack.c.l.b16 %v8719
      %v8888 = vunpack.c.l.b16 %v8720
      %v8889 = vunpack.c.l.b16 %v8721
      %v8890 = vunpack.c.l.b16 %v8722
      %v8891 = vpack.c.b16 %v8888, %v8887
      %v8892 = vpack.c.b16 %v8890, %v8889
      %vm8895 = vcmask 261120
      %v8897 = vsel %vm8895, %v8851, 0
      %v8900 = vsel %vm8895, %v8852, 0
      %v8903 = vsel %vm8895, %v8853, 0
      %v8906 = vsel %vm8895, %v8854, 0
      %v8909 = vsel %vm8895, %v8855, 0
      %v8912 = vsel %vm8895, %v8856, 0
      %v8915 = vsel %vm8895, %v8857, 0
      %v8918 = vsel %vm8895, %v8858, 0
      %v8921 = vsel %vm8895, %v8859, 0
      %v8924 = vsel %vm8895, %v8860, 0
      %v8927 = vsel %vm8895, %v8861, 0
      %v8930 = vsel %vm8895, %v8862, 0
      %v8933 = vsel %vm8895, %v8863, 0
      %v8936 = vsel %vm8895, %v8864, 0
      %v8939 = vsel %vm8895, %v8865, 0
      %v8942 = vsel %vm8895, %v8866, 0
      %v8945 = vsel %vm8895, %v8867, 0
      %v8948 = vsel %vm8895, %v8868, 0
      %v8951 = vsel %vm8895, %v8869, 0
      %v8954 = vsel %vm8895, %v8870, 0
      %v8957 = vsel %vm8895, %v8871, 0
      %v8960 = vsel %vm8895, %v8872, 0
      %v8963 = vsel %vm8895, %v8873, 0
      %v8966 = vsel %vm8895, %v8874, 0
      %v8969 = vsel %vm8895, %v8875, 0
      %v8972 = vsel %vm8895, %v8876, 0
      %v8975 = vsel %vm8895, %v8877, 0
      %v8978 = vsel %vm8895, %v8878, 0
      %v8981 = vsel %vm8895, %v8879, 0
      %v8984 = vsel %vm8895, %v8880, 0
      %v8987 = vsel %vm8895, %v8881, 0
      %v8990 = vsel %vm8895, %v8882, 0
      %8992 = vmatprep.subr.bf16.mxu0 0
      %8993 = vmatpush1.bf16.msra.mxu0 0
      %8994 = vmatprep.subr.bf16.mxu0 0
      %8995 = vmatpush1.bf16.msra.mxu0 0
      %8996 = vmatprep.subr.bf16.mxu0 0
      %8997 = vmatpush1.bf16.msra.mxu0 0
      %8998 = vmatprep.subr.bf16.mxu0 0
      %8999 = vmatpush1.bf16.msra.mxu0 0
      %9000 = vmatprep.subr.bf16.mxu0 0
      %9001 = vmatpush1.bf16.msra.mxu0 0
      %9002 = vmatprep.subr.bf16.mxu0 0
      %9003 = vmatpush1.bf16.msra.mxu0 0
      %9004 = vmatprep.subr.bf16.mxu0 0
      %9005 = vmatpush1.bf16.msra.mxu0 %v8892
      %9006 = vmatprep.subr.bf16.mxu0 0
      %9007 = vmatpush1.bf16.msra.mxu0 %v8891
      %9008 = vmatprep.subr.bf16.mxu0 0
      %9009 = vmatpush2.bf16.msra.mxu0 0
      %9010 = vmatprep.subr.bf16.mxu0 0
      %9011 = vmatpush2.bf16.msra.mxu0 0
      %9012 = vmatprep.subr.bf16.mxu0 0
      %9013 = vmatpush2.bf16.msra.mxu0 0
      %9014 = vmatprep.subr.bf16.mxu0 0
      %9015 = vmatpush2.bf16.msra.mxu0 0
      %9016 = vmatprep.subr.bf16.mxu0 0
      %9017 = vmatpush2.bf16.msra.mxu0 0
      %9018 = vmatprep.subr.bf16.mxu0 0
      %9019 = vmatpush2.bf16.msra.mxu0 0
      %9020 = vmatprep.subr.bf16.mxu0 0
      %9021 = vmatpush2.bf16.msra.mxu0 0
      %9022 = vmatprep.subr.bf16.mxu0 0
      %9023 = vmatpush2.bf16.msra.mxu0 0
      %9024 = vmatprep.mubr.bf16.mxu0 0
      %9025 = vmatmul.mubr.bf16.gmra.mxu0 %v8897
      %v9026 = vpop.f32.mrf.mxu0
      %v9027 = vadd.f32 0.0, %v9026
      %v9028 = vpop.f32.mrf.mxu0
      %v9029 = vpop.f32.mrf.mxu0
      %v9030 = vadd.f32 0.0, %v9029
      %v9031 = vpop.f32.mrf.mxu0
      %9032 = vmatprep.mubr.bf16.mxu0 0
      %9033 = vmatmul.mubr.bf16.gmra.mxu0 %v8900
      %v9034 = vpop.f32.mrf.mxu0
      %v9035 = vadd.f32 0.0, %v9034
      %v9036 = vpop.f32.mrf.mxu0
      %v9037 = vpop.f32.mrf.mxu0
      %v9038 = vadd.f32 0.0, %v9037
      %v9039 = vpop.f32.mrf.mxu0
      %9040 = vmatprep.mubr.bf16.mxu0 0
      %9041 = vmatmul.mubr.bf16.gmra.mxu0 %v8903
      %v9042 = vpop.f32.mrf.mxu0
      %v9043 = vadd.f32 0.0, %v9042
      %v9044 = vpop.f32.mrf.mxu0
      %v9045 = vpop.f32.mrf.mxu0
      %v9046 = vadd.f32 0.0, %v9045
      %v9047 = vpop.f32.mrf.mxu0
      %9048 = vmatprep.mubr.bf16.mxu0 0
      %9049 = vmatmul.mubr.bf16.gmra.mxu0 %v8906
      %v9050 = vpop.f32.mrf.mxu0
      %v9051 = vadd.f32 0.0, %v9050
      %v9052 = vpop.f32.mrf.mxu0
      %v9053 = vpop.f32.mrf.mxu0
      %v9054 = vadd.f32 0.0, %v9053
      %v9055 = vpop.f32.mrf.mxu0
      %9056 = vmatprep.mubr.bf16.mxu0 0
      %9057 = vmatmul.mubr.bf16.gmra.mxu0 %v8909
      %v9058 = vpop.f32.mrf.mxu0
      %v9059 = vadd.f32 0.0, %v9058
      %v9060 = vpop.f32.mrf.mxu0
      %v9061 = vpop.f32.mrf.mxu0
      %v9062 = vadd.f32 0.0, %v9061
      %v9063 = vpop.f32.mrf.mxu0
      %9064 = vmatprep.mubr.bf16.mxu0 0
      %9065 = vmatmul.mubr.bf16.gmra.mxu0 %v8912
      %v9066 = vpop.f32.mrf.mxu0
      %v9067 = vadd.f32 0.0, %v9066
      %v9068 = vpop.f32.mrf.mxu0
      %v9069 = vpop.f32.mrf.mxu0
      %v9070 = vadd.f32 0.0, %v9069
      %v9071 = vpop.f32.mrf.mxu0
      %9072 = vmatprep.mubr.bf16.mxu0 0
      %9073 = vmatmul.mubr.bf16.gmra.mxu0 %v8915
      %v9074 = vpop.f32.mrf.mxu0
      %v9075 = vadd.f32 0.0, %v9074
      %v9076 = vpop.f32.mrf.mxu0
      %v9077 = vpop.f32.mrf.mxu0
      %v9078 = vadd.f32 0.0, %v9077
      %v9079 = vpop.f32.mrf.mxu0
      %9080 = vmatprep.mubr.bf16.mxu0 0
      %9081 = vmatmul.mubr.bf16.gmra.mxu0 %v8918
      %v9082 = vpop.f32.mrf.mxu0
      %v9083 = vadd.f32 0.0, %v9082
      %v9084 = vpop.f32.mrf.mxu0
      %v9085 = vpop.f32.mrf.mxu0
      %v9086 = vadd.f32 0.0, %v9085
      %v9087 = vpop.f32.mrf.mxu0
      %9088 = vmatprep.mubr.bf16.mxu0 0
      %9089 = vmatmul.mubr.bf16.gmra.mxu0 %v8921
      %v9090 = vpop.f32.mrf.mxu0
      %v9091 = vadd.f32 0.0, %v9090
      %v9092 = vpop.f32.mrf.mxu0
      %v9093 = vpop.f32.mrf.mxu0
      %v9094 = vadd.f32 0.0, %v9093
      %v9095 = vpop.f32.mrf.mxu0
      %9096 = vmatprep.mubr.bf16.mxu0 0
      %9097 = vmatmul.mubr.bf16.gmra.mxu0 %v8924
      %v9098 = vpop.f32.mrf.mxu0
      %v9099 = vadd.f32 0.0, %v9098
      %v9100 = vpop.f32.mrf.mxu0
      %v9101 = vpop.f32.mrf.mxu0
      %v9102 = vadd.f32 0.0, %v9101
      %v9103 = vpop.f32.mrf.mxu0
      %9104 = vmatprep.mubr.bf16.mxu0 0
      %9105 = vmatmul.mubr.bf16.gmra.mxu0 %v8927
      %v9106 = vpop.f32.mrf.mxu0
      %v9107 = vadd.f32 0.0, %v9106
      %v9108 = vpop.f32.mrf.mxu0
      %v9109 = vpop.f32.mrf.mxu0
      %v9110 = vadd.f32 0.0, %v9109
      %v9111 = vpop.f32.mrf.mxu0
      %9112 = vmatprep.mubr.bf16.mxu0 0
      %9113 = vmatmul.mubr.bf16.gmra.mxu0 %v8930
      %v9114 = vpop.f32.mrf.mxu0
      %v9115 = vadd.f32 0.0, %v9114
      %v9116 = vpop.f32.mrf.mxu0
      %v9117 = vpop.f32.mrf.mxu0
      %v9118 = vadd.f32 0.0, %v9117
      %v9119 = vpop.f32.mrf.mxu0
      %9120 = vmatprep.mubr.bf16.mxu0 0
      %9121 = vmatmul.mubr.bf16.gmra.mxu0 %v8933
      %v9122 = vpop.f32.mrf.mxu0
      %v9123 = vadd.f32 0.0, %v9122
      %v9124 = vpop.f32.mrf.mxu0
      %v9125 = vpop.f32.mrf.mxu0
      %v9126 = vadd.f32 0.0, %v9125
      %v9127 = vpop.f32.mrf.mxu0
      %9128 = vmatprep.mubr.bf16.mxu0 0
      %9129 = vmatmul.mubr.bf16.gmra.mxu0 %v8936
      %v9130 = vpop.f32.mrf.mxu0
      %v9131 = vadd.f32 0.0, %v9130
      %v9132 = vpop.f32.mrf.mxu0
      %v9133 = vpop.f32.mrf.mxu0
      %v9134 = vadd.f32 0.0, %v9133
      %v9135 = vpop.f32.mrf.mxu0
      %9136 = vmatprep.mubr.bf16.mxu0 0
      %9137 = vmatmul.mubr.bf16.gmra.mxu0 %v8939
      %v9138 = vpop.f32.mrf.mxu0
      %v9139 = vadd.f32 0.0, %v9138
      %v9140 = vpop.f32.mrf.mxu0
      %v9141 = vpop.f32.mrf.mxu0
      %v9142 = vadd.f32 0.0, %v9141
      %v9143 = vpop.f32.mrf.mxu0
      %9144 = vmatprep.mubr.bf16.mxu0 0
      %9145 = vmatmul.mubr.bf16.gmra.mxu0 %v8942
      %v9146 = vpop.f32.mrf.mxu0
      %v9147 = vadd.f32 0.0, %v9146
      %v9148 = vpop.f32.mrf.mxu0
      %v9149 = vpop.f32.mrf.mxu0
      %v9150 = vadd.f32 0.0, %v9149
      %v9151 = vpop.f32.mrf.mxu0
      %9152 = vmatprep.mubr.bf16.mxu0 0
      %9153 = vmatmul.mubr.bf16.gmra.mxu0 %v8945
      %v9154 = vpop.f32.mrf.mxu0
      %v9155 = vadd.f32 0.0, %v9154
      %v9156 = vpop.f32.mrf.mxu0
      %v9157 = vpop.f32.mrf.mxu0
      %v9158 = vadd.f32 0.0, %v9157
      %v9159 = vpop.f32.mrf.mxu0
      %9160 = vmatprep.mubr.bf16.mxu0 0
      %9161 = vmatmul.mubr.bf16.gmra.mxu0 %v8948
      %v9162 = vpop.f32.mrf.mxu0
      %v9163 = vadd.f32 0.0, %v9162
      %v9164 = vpop.f32.mrf.mxu0
      %v9165 = vpop.f32.mrf.mxu0
      %v9166 = vadd.f32 0.0, %v9165
      %v9167 = vpop.f32.mrf.mxu0
      %9168 = vmatprep.mubr.bf16.mxu0 0
      %9169 = vmatmul.mubr.bf16.gmra.mxu0 %v8951
      %v9170 = vpop.f32.mrf.mxu0
      %v9171 = vadd.f32 0.0, %v9170
      %v9172 = vpop.f32.mrf.mxu0
      %v9173 = vpop.f32.mrf.mxu0
      %v9174 = vadd.f32 0.0, %v9173
      %v9175 = vpop.f32.mrf.mxu0
      %9176 = vmatprep.mubr.bf16.mxu0 0
      %9177 = vmatmul.mubr.bf16.gmra.mxu0 %v8954
      %v9178 = vpop.f32.mrf.mxu0
      %v9179 = vadd.f32 0.0, %v9178
      %v9180 = vpop.f32.mrf.mxu0
      %v9181 = vpop.f32.mrf.mxu0
      %v9182 = vadd.f32 0.0, %v9181
      %v9183 = vpop.f32.mrf.mxu0
      %9184 = vmatprep.mubr.bf16.mxu0 0
      %9185 = vmatmul.mubr.bf16.gmra.mxu0 %v8957
      %v9186 = vpop.f32.mrf.mxu0
      %v9187 = vadd.f32 0.0, %v9186
      %v9188 = vpop.f32.mrf.mxu0
      %v9189 = vpop.f32.mrf.mxu0
      %v9190 = vadd.f32 0.0, %v9189
      %v9191 = vpop.f32.mrf.mxu0
      %9192 = vmatprep.mubr.bf16.mxu0 0
      %9193 = vmatmul.mubr.bf16.gmra.mxu0 %v8960
      %v9194 = vpop.f32.mrf.mxu0
      %v9195 = vadd.f32 0.0, %v9194
      %v9196 = vpop.f32.mrf.mxu0
      %v9197 = vpop.f32.mrf.mxu0
      %v9198 = vadd.f32 0.0, %v9197
      %v9199 = vpop.f32.mrf.mxu0
      %9200 = vmatprep.mubr.bf16.mxu0 0
      %9201 = vmatmul.mubr.bf16.gmra.mxu0 %v8963
      %v9202 = vpop.f32.mrf.mxu0
      %v9203 = vadd.f32 0.0, %v9202
      %v9204 = vpop.f32.mrf.mxu0
      %v9205 = vpop.f32.mrf.mxu0
      %v9206 = vadd.f32 0.0, %v9205
      %v9207 = vpop.f32.mrf.mxu0
      %9208 = vmatprep.mubr.bf16.mxu0 0
      %9209 = vmatmul.mubr.bf16.gmra.mxu0 %v8966
      %v9210 = vpop.f32.mrf.mxu0
      %v9211 = vadd.f32 0.0, %v9210
      %v9212 = vpop.f32.mrf.mxu0
      %v9213 = vpop.f32.mrf.mxu0
      %v9214 = vadd.f32 0.0, %v9213
      %v9215 = vpop.f32.mrf.mxu0
      %9216 = vmatprep.mubr.bf16.mxu0 0
      %9217 = vmatmul.mubr.bf16.gmra.mxu0 %v8969
      %v9218 = vpop.f32.mrf.mxu0
      %v9219 = vadd.f32 0.0, %v9218
      %v9220 = vpop.f32.mrf.mxu0
      %v9221 = vpop.f32.mrf.mxu0
      %v9222 = vadd.f32 0.0, %v9221
      %v9223 = vpop.f32.mrf.mxu0
      %9224 = vmatprep.mubr.bf16.mxu0 0
      %9225 = vmatmul.mubr.bf16.gmra.mxu0 %v8972
      %v9226 = vpop.f32.mrf.mxu0
      %v9227 = vadd.f32 0.0, %v9226
      %v9228 = vpop.f32.mrf.mxu0
      %v9229 = vpop.f32.mrf.mxu0
      %v9230 = vadd.f32 0.0, %v9229
      %v9231 = vpop.f32.mrf.mxu0
      %9232 = vmatprep.mubr.bf16.mxu0 0
      %9233 = vmatmul.mubr.bf16.gmra.mxu0 %v8975
      %v9234 = vpop.f32.mrf.mxu0
      %v9235 = vadd.f32 0.0, %v9234
      %v9236 = vpop.f32.mrf.mxu0
      %v9237 = vpop.f32.mrf.mxu0
      %v9238 = vadd.f32 0.0, %v9237
      %v9239 = vpop.f32.mrf.mxu0
      %9240 = vmatprep.mubr.bf16.mxu0 0
      %9241 = vmatmul.mubr.bf16.gmra.mxu0 %v8978
      %v9242 = vpop.f32.mrf.mxu0
      %v9243 = vadd.f32 0.0, %v9242
      %v9244 = vpop.f32.mrf.mxu0
      %v9245 = vpop.f32.mrf.mxu0
      %v9246 = vadd.f32 0.0, %v9245
      %v9247 = vpop.f32.mrf.mxu0
      %9248 = vmatprep.mubr.bf16.mxu0 0
      %9249 = vmatmul.mubr.bf16.gmra.mxu0 %v8981
      %v9250 = vpop.f32.mrf.mxu0
      %v9251 = vadd.f32 0.0, %v9250
      %v9252 = vpop.f32.mrf.mxu0
      %v9253 = vpop.f32.mrf.mxu0
      %v9254 = vadd.f32 0.0, %v9253
      %v9255 = vpop.f32.mrf.mxu0
      %9256 = vmatprep.mubr.bf16.mxu0 0
      %9257 = vmatmul.mubr.bf16.gmra.mxu0 %v8984
      %v9258 = vpop.f32.mrf.mxu0
      %v9259 = vadd.f32 0.0, %v9258
      %v9260 = vpop.f32.mrf.mxu0
      %v9261 = vpop.f32.mrf.mxu0
      %v9262 = vadd.f32 0.0, %v9261
      %v9263 = vpop.f32.mrf.mxu0
      %9264 = vmatprep.mubr.bf16.mxu0 0
      %9265 = vmatmul.mubr.bf16.gmra.mxu0 %v8987
      %v9266 = vpop.f32.mrf.mxu0
      %v9267 = vadd.f32 0.0, %v9266
      %v9268 = vpop.f32.mrf.mxu0
      %v9269 = vpop.f32.mrf.mxu0
      %v9270 = vadd.f32 0.0, %v9269
      %v9271 = vpop.f32.mrf.mxu0
      %9272 = vmatprep.mubr.bf16.mxu0 0
      %9273 = vmatmul.mubr.bf16.gmra.mxu0 %v8990
      %v9274 = vpop.f32.mrf.mxu0
      %v9275 = vadd.f32 0.0, %v9274
      %v9276 = vpop.f32.mrf.mxu0
      %v9277 = vpop.f32.mrf.mxu0
      %v9278 = vadd.f32 0.0, %v9277
      %v9279 = vpop.f32.mrf.mxu0
      %9280 = vdwg.mxu0
      %v9313 = vunpack.c.l.b16 %v8687
      %v9314 = vunpack.c.l.b16 %v8688
      %v9315 = vunpack.c.l.b16 %v8689
      %v9316 = vunpack.c.l.b16 %v8690
      %v9317 = vunpack.c.l.b16 %v8691
      %v9318 = vunpack.c.l.b16 %v8692
      %v9319 = vunpack.c.l.b16 %v8693
      %v9320 = vunpack.c.l.b16 %v8694
      %v9321 = vunpack.c.l.b16 %v8695
      %v9322 = vunpack.c.l.b16 %v8696
      %v9323 = vunpack.c.l.b16 %v8697
      %v9324 = vunpack.c.l.b16 %v8698
      %v9325 = vunpack.c.l.b16 %v8699
      %v9326 = vunpack.c.l.b16 %v8700
      %v9327 = vunpack.c.l.b16 %v8701
      %v9328 = vunpack.c.l.b16 %v8702
      %v9329 = vunpack.c.l.b16 %v8703
      %v9330 = vunpack.c.l.b16 %v8704
      %v9331 = vunpack.c.l.b16 %v8705
      %v9332 = vunpack.c.l.b16 %v8706
      %v9333 = vunpack.c.l.b16 %v8707
      %v9334 = vunpack.c.l.b16 %v8708
      %v9335 = vunpack.c.l.b16 %v8709
      %v9336 = vunpack.c.l.b16 %v8710
      %v9337 = vunpack.c.l.b16 %v8711
      %v9338 = vunpack.c.l.b16 %v8712
      %v9339 = vunpack.c.l.b16 %v8713
      %v9340 = vunpack.c.l.b16 %v8714
      %v9341 = vunpack.c.l.b16 %v8715
      %v9342 = vunpack.c.l.b16 %v8716
      %v9343 = vunpack.c.l.b16 %v8717
      %v9344 = vunpack.c.l.b16 %v8718
      %v9345 = vpack.c.b16 %v9314, %v9313
      %v9346 = vpack.c.b16 %v9316, %v9315
      %v9347 = vpack.c.b16 %v9318, %v9317
      %v9348 = vpack.c.b16 %v9320, %v9319
      %v9349 = vpack.c.b16 %v9322, %v9321
      %v9350 = vpack.c.b16 %v9324, %v9323
      %v9351 = vpack.c.b16 %v9326, %v9325
      %v9352 = vpack.c.b16 %v9328, %v9327
      %v9353 = vpack.c.b16 %v9330, %v9329
      %v9354 = vpack.c.b16 %v9332, %v9331
      %v9355 = vpack.c.b16 %v9334, %v9333
      %v9356 = vpack.c.b16 %v9336, %v9335
      %v9357 = vpack.c.b16 %v9338, %v9337
      %v9358 = vpack.c.b16 %v9340, %v9339
      %v9359 = vpack.c.b16 %v9342, %v9341
      %v9360 = vpack.c.b16 %v9344, %v9343
      %9377 = vmatprep.subr.bf16.mxu0 0
      %9378 = vmatpush1.bf16.msra.mxu0 %v9352
      %9379 = vmatprep.subr.bf16.mxu0 0
      %9380 = vmatpush1.bf16.msra.mxu0 %v9351
      %9381 = vmatprep.subr.bf16.mxu0 0
      %9382 = vmatpush1.bf16.msra.mxu0 %v9350
      %9383 = vmatprep.subr.bf16.mxu0 0
      %9384 = vmatpush1.bf16.msra.mxu0 %v9349
      %9385 = vmatprep.subr.bf16.mxu0 0
      %9386 = vmatpush1.bf16.msra.mxu0 %v9348
      %9387 = vmatprep.subr.bf16.mxu0 0
      %9388 = vmatpush1.bf16.msra.mxu0 %v9347
      %9389 = vmatprep.subr.bf16.mxu0 0
      %9390 = vmatpush1.bf16.msra.mxu0 %v9346
      %9391 = vmatprep.subr.bf16.mxu0 0
      %9392 = vmatpush1.bf16.msra.mxu0 %v9345
      %9393 = vmatprep.subr.bf16.mxu0 0
      %9394 = vmatpush2.bf16.msra.mxu0 %v9360
      %9395 = vmatprep.subr.bf16.mxu0 0
      %9396 = vmatpush2.bf16.msra.mxu0 %v9359
      %9397 = vmatprep.subr.bf16.mxu0 0
      %9398 = vmatpush2.bf16.msra.mxu0 %v9358
      %9399 = vmatprep.subr.bf16.mxu0 0
      %9400 = vmatpush2.bf16.msra.mxu0 %v9357
      %9401 = vmatprep.subr.bf16.mxu0 0
      %9402 = vmatpush2.bf16.msra.mxu0 %v9356
      %9403 = vmatprep.subr.bf16.mxu0 0
      %9404 = vmatpush2.bf16.msra.mxu0 %v9355
      %9405 = vmatprep.subr.bf16.mxu0 0
      %9406 = vmatpush2.bf16.msra.mxu0 %v9354
      %9407 = vmatprep.subr.bf16.mxu0 0
      %9408 = vmatpush2.bf16.msra.mxu0 %v9353
      %9409 = vmatprep.mubr.bf16.mxu0 %v8624
      %9410 = vmatmul.mubr.bf16.gmra.mxu0 %v8623
      %v9411 = vpop.f32.mrf.mxu0
      %v9412 = vadd.f32 %v9027, %v9411
      %v9413 = vpop.f32.mrf.mxu0
      %v9414 = vpop.f32.mrf.mxu0
      %v9415 = vadd.f32 %v9030, %v9414
      %v9416 = vpop.f32.mrf.mxu0
      %9417 = vmatprep.mubr.bf16.mxu0 %v8626
      %9418 = vmatmul.mubr.bf16.gmra.mxu0 %v8625
      %v9419 = vpop.f32.mrf.mxu0
      %v9420 = vadd.f32 %v9035, %v9419
      %v9421 = vpop.f32.mrf.mxu0
      %v9422 = vpop.f32.mrf.mxu0
      %v9423 = vadd.f32 %v9038, %v9422
      %v9424 = vpop.f32.mrf.mxu0
      %9425 = vmatprep.mubr.bf16.mxu0 %v8628
      %9426 = vmatmul.mubr.bf16.gmra.mxu0 %v8627
      %v9427 = vpop.f32.mrf.mxu0
      %v9428 = vadd.f32 %v9043, %v9427
      %v9429 = vpop.f32.mrf.mxu0
      %v9430 = vpop.f32.mrf.mxu0
      %v9431 = vadd.f32 %v9046, %v9430
      %v9432 = vpop.f32.mrf.mxu0
      %9433 = vmatprep.mubr.bf16.mxu0 %v8630
      %9434 = vmatmul.mubr.bf16.gmra.mxu0 %v8629
      %v9435 = vpop.f32.mrf.mxu0
      %v9436 = vadd.f32 %v9051, %v9435
      %v9437 = vpop.f32.mrf.mxu0
      %v9438 = vpop.f32.mrf.mxu0
      %v9439 = vadd.f32 %v9054, %v9438
      %v9440 = vpop.f32.mrf.mxu0
      %9441 = vmatprep.mubr.bf16.mxu0 %v8632
      %9442 = vmatmul.mubr.bf16.gmra.mxu0 %v8631
      %v9443 = vpop.f32.mrf.mxu0
      %v9444 = vadd.f32 %v9059, %v9443
      %v9445 = vpop.f32.mrf.mxu0
      %v9446 = vpop.f32.mrf.mxu0
      %v9447 = vadd.f32 %v9062, %v9446
      %v9448 = vpop.f32.mrf.mxu0
      %9449 = vmatprep.mubr.bf16.mxu0 %v8634
      %9450 = vmatmul.mubr.bf16.gmra.mxu0 %v8633
      %v9451 = vpop.f32.mrf.mxu0
      %v9452 = vadd.f32 %v9067, %v9451
      %v9453 = vpop.f32.mrf.mxu0
      %v9454 = vpop.f32.mrf.mxu0
      %v9455 = vadd.f32 %v9070, %v9454
      %v9456 = vpop.f32.mrf.mxu0
      %9457 = vmatprep.mubr.bf16.mxu0 %v8636
      %9458 = vmatmul.mubr.bf16.gmra.mxu0 %v8635
      %v9459 = vpop.f32.mrf.mxu0
      %v9460 = vadd.f32 %v9075, %v9459
      %v9461 = vpop.f32.mrf.mxu0
      %v9462 = vpop.f32.mrf.mxu0
      %v9463 = vadd.f32 %v9078, %v9462
      %v9464 = vpop.f32.mrf.mxu0
      %9465 = vmatprep.mubr.bf16.mxu0 %v8638
      %9466 = vmatmul.mubr.bf16.gmra.mxu0 %v8637
      %v9467 = vpop.f32.mrf.mxu0
      %v9468 = vadd.f32 %v9083, %v9467
      %v9469 = vpop.f32.mrf.mxu0
      %v9470 = vpop.f32.mrf.mxu0
      %v9471 = vadd.f32 %v9086, %v9470
      %v9472 = vpop.f32.mrf.mxu0
      %9473 = vmatprep.mubr.bf16.mxu0 %v8640
      %9474 = vmatmul.mubr.bf16.gmra.mxu0 %v8639
      %v9475 = vpop.f32.mrf.mxu0
      %v9476 = vadd.f32 %v9091, %v9475
      %v9477 = vpop.f32.mrf.mxu0
      %v9478 = vpop.f32.mrf.mxu0
      %v9479 = vadd.f32 %v9094, %v9478
      %v9480 = vpop.f32.mrf.mxu0
      %9481 = vmatprep.mubr.bf16.mxu0 %v8642
      %9482 = vmatmul.mubr.bf16.gmra.mxu0 %v8641
      %v9483 = vpop.f32.mrf.mxu0
      %v9484 = vadd.f32 %v9099, %v9483
      %v9485 = vpop.f32.mrf.mxu0
      %v9486 = vpop.f32.mrf.mxu0
      %v9487 = vadd.f32 %v9102, %v9486
      %v9488 = vpop.f32.mrf.mxu0
      %9489 = vmatprep.mubr.bf16.mxu0 %v8644
      %9490 = vmatmul.mubr.bf16.gmra.mxu0 %v8643
      %v9491 = vpop.f32.mrf.mxu0
      %v9492 = vadd.f32 %v9107, %v9491
      %v9493 = vpop.f32.mrf.mxu0
      %v9494 = vpop.f32.mrf.mxu0
      %v9495 = vadd.f32 %v9110, %v9494
      %v9496 = vpop.f32.mrf.mxu0
      %9497 = vmatprep.mubr.bf16.mxu0 %v8646
      %9498 = vmatmul.mubr.bf16.gmra.mxu0 %v8645
      %v9499 = vpop.f32.mrf.mxu0
      %v9500 = vadd.f32 %v9115, %v9499
      %v9501 = vpop.f32.mrf.mxu0
      %v9502 = vpop.f32.mrf.mxu0
      %v9503 = vadd.f32 %v9118, %v9502
      %v9504 = vpop.f32.mrf.mxu0
      %9505 = vmatprep.mubr.bf16.mxu0 %v8648
      %9506 = vmatmul.mubr.bf16.gmra.mxu0 %v8647
      %v9507 = vpop.f32.mrf.mxu0
      %v9508 = vadd.f32 %v9123, %v9507
      %v9509 = vpop.f32.mrf.mxu0
      %v9510 = vpop.f32.mrf.mxu0
      %v9511 = vadd.f32 %v9126, %v9510
      %v9512 = vpop.f32.mrf.mxu0
      %9513 = vmatprep.mubr.bf16.mxu0 %v8650
      %9514 = vmatmul.mubr.bf16.gmra.mxu0 %v8649
      %v9515 = vpop.f32.mrf.mxu0
      %v9516 = vadd.f32 %v9131, %v9515
      %v9517 = vpop.f32.mrf.mxu0
      %v9518 = vpop.f32.mrf.mxu0
      %v9519 = vadd.f32 %v9134, %v9518
      %v9520 = vpop.f32.mrf.mxu0
      %9521 = vmatprep.mubr.bf16.mxu0 %v8652
      %9522 = vmatmul.mubr.bf16.gmra.mxu0 %v8651
      %v9523 = vpop.f32.mrf.mxu0
      %v9524 = vadd.f32 %v9139, %v9523
      %v9525 = vpop.f32.mrf.mxu0
      %v9526 = vpop.f32.mrf.mxu0
      %v9527 = vadd.f32 %v9142, %v9526
      %v9528 = vpop.f32.mrf.mxu0
      %9529 = vmatprep.mubr.bf16.mxu0 %v8654
      %9530 = vmatmul.mubr.bf16.gmra.mxu0 %v8653
      %v9531 = vpop.f32.mrf.mxu0
      %v9532 = vadd.f32 %v9147, %v9531
      %v9533 = vpop.f32.mrf.mxu0
      %v9534 = vpop.f32.mrf.mxu0
      %v9535 = vadd.f32 %v9150, %v9534
      %v9536 = vpop.f32.mrf.mxu0
      %9537 = vmatprep.mubr.bf16.mxu0 %v8656
      %9538 = vmatmul.mubr.bf16.gmra.mxu0 %v8655
      %v9539 = vpop.f32.mrf.mxu0
      %v9540 = vadd.f32 %v9155, %v9539
      %v9541 = vpop.f32.mrf.mxu0
      %v9542 = vpop.f32.mrf.mxu0
      %v9543 = vadd.f32 %v9158, %v9542
      %v9544 = vpop.f32.mrf.mxu0
      %9545 = vmatprep.mubr.bf16.mxu0 %v8658
      %9546 = vmatmul.mubr.bf16.gmra.mxu0 %v8657
      %v9547 = vpop.f32.mrf.mxu0
      %v9548 = vadd.f32 %v9163, %v9547
      %v9549 = vpop.f32.mrf.mxu0
      %v9550 = vpop.f32.mrf.mxu0
      %v9551 = vadd.f32 %v9166, %v9550
      %v9552 = vpop.f32.mrf.mxu0
      %9553 = vmatprep.mubr.bf16.mxu0 %v8660
      %9554 = vmatmul.mubr.bf16.gmra.mxu0 %v8659
      %v9555 = vpop.f32.mrf.mxu0
      %v9556 = vadd.f32 %v9171, %v9555
      %v9557 = vpop.f32.mrf.mxu0
      %v9558 = vpop.f32.mrf.mxu0
      %v9559 = vadd.f32 %v9174, %v9558
      %v9560 = vpop.f32.mrf.mxu0
      %9561 = vmatprep.mubr.bf16.mxu0 %v8662
      %9562 = vmatmul.mubr.bf16.gmra.mxu0 %v8661
      %v9563 = vpop.f32.mrf.mxu0
      %v9564 = vadd.f32 %v9179, %v9563
      %v9565 = vpop.f32.mrf.mxu0
      %v9566 = vpop.f32.mrf.mxu0
      %v9567 = vadd.f32 %v9182, %v9566
      %v9568 = vpop.f32.mrf.mxu0
      %9569 = vmatprep.mubr.bf16.mxu0 %v8664
      %9570 = vmatmul.mubr.bf16.gmra.mxu0 %v8663
      %v9571 = vpop.f32.mrf.mxu0
      %v9572 = vadd.f32 %v9187, %v9571
      %v9573 = vpop.f32.mrf.mxu0
      %v9574 = vpop.f32.mrf.mxu0
      %v9575 = vadd.f32 %v9190, %v9574
      %v9576 = vpop.f32.mrf.mxu0
      %9577 = vmatprep.mubr.bf16.mxu0 %v8666
      %9578 = vmatmul.mubr.bf16.gmra.mxu0 %v8665
      %v9579 = vpop.f32.mrf.mxu0
      %v9580 = vadd.f32 %v9195, %v9579
      %v9581 = vpop.f32.mrf.mxu0
      %v9582 = vpop.f32.mrf.mxu0
      %v9583 = vadd.f32 %v9198, %v9582
      %v9584 = vpop.f32.mrf.mxu0
      %9585 = vmatprep.mubr.bf16.mxu0 %v8668
      %9586 = vmatmul.mubr.bf16.gmra.mxu0 %v8667
      %v9587 = vpop.f32.mrf.mxu0
      %v9588 = vadd.f32 %v9203, %v9587
      %v9589 = vpop.f32.mrf.mxu0
      %v9590 = vpop.f32.mrf.mxu0
      %v9591 = vadd.f32 %v9206, %v9590
      %v9592 = vpop.f32.mrf.mxu0
      %9593 = vmatprep.mubr.bf16.mxu0 %v8670
      %9594 = vmatmul.mubr.bf16.gmra.mxu0 %v8669
      %v9595 = vpop.f32.mrf.mxu0
      %v9596 = vadd.f32 %v9211, %v9595
      %v9597 = vpop.f32.mrf.mxu0
      %v9598 = vpop.f32.mrf.mxu0
      %v9599 = vadd.f32 %v9214, %v9598
      %v9600 = vpop.f32.mrf.mxu0
      %9601 = vmatprep.mubr.bf16.mxu0 %v8672
      %9602 = vmatmul.mubr.bf16.gmra.mxu0 %v8671
      %v9603 = vpop.f32.mrf.mxu0
      %v9604 = vadd.f32 %v9219, %v9603
      %v9605 = vpop.f32.mrf.mxu0
      %v9606 = vpop.f32.mrf.mxu0
      %v9607 = vadd.f32 %v9222, %v9606
      %v9608 = vpop.f32.mrf.mxu0
      %9609 = vmatprep.mubr.bf16.mxu0 %v8674
      %9610 = vmatmul.mubr.bf16.gmra.mxu0 %v8673
      %v9611 = vpop.f32.mrf.mxu0
      %v9612 = vadd.f32 %v9227, %v9611
      %v9613 = vpop.f32.mrf.mxu0
      %v9614 = vpop.f32.mrf.mxu0
      %v9615 = vadd.f32 %v9230, %v9614
      %v9616 = vpop.f32.mrf.mxu0
      %9617 = vmatprep.mubr.bf16.mxu0 %v8676
      %9618 = vmatmul.mubr.bf16.gmra.mxu0 %v8675
      %v9619 = vpop.f32.mrf.mxu0
      %v9620 = vadd.f32 %v9235, %v9619
      %v9621 = vpop.f32.mrf.mxu0
      %v9622 = vpop.f32.mrf.mxu0
      %v9623 = vadd.f32 %v9238, %v9622
      %v9624 = vpop.f32.mrf.mxu0
      %9625 = vmatprep.mubr.bf16.mxu0 %v8678
      %9626 = vmatmul.mubr.bf16.gmra.mxu0 %v8677
      %v9627 = vpop.f32.mrf.mxu0
      %v9628 = vadd.f32 %v9243, %v9627
      %v9629 = vpop.f32.mrf.mxu0
      %v9630 = vpop.f32.mrf.mxu0
      %v9631 = vadd.f32 %v9246, %v9630
      %v9632 = vpop.f32.mrf.mxu0
      %9633 = vmatprep.mubr.bf16.mxu0 %v8680
      %9634 = vmatmul.mubr.bf16.gmra.mxu0 %v8679
      %v9635 = vpop.f32.mrf.mxu0
      %v9636 = vadd.f32 %v9251, %v9635
      %v9637 = vpop.f32.mrf.mxu0
      %v9638 = vpop.f32.mrf.mxu0
      %v9639 = vadd.f32 %v9254, %v9638
      %v9640 = vpop.f32.mrf.mxu0
      %9641 = vmatprep.mubr.bf16.mxu0 %v8682
      %9642 = vmatmul.mubr.bf16.gmra.mxu0 %v8681
      %v9643 = vpop.f32.mrf.mxu0
      %v9644 = vadd.f32 %v9259, %v9643
      %v9645 = vpop.f32.mrf.mxu0
      %v9646 = vpop.f32.mrf.mxu0
      %v9647 = vadd.f32 %v9262, %v9646
      %v9648 = vpop.f32.mrf.mxu0
      %9649 = vmatprep.mubr.bf16.mxu0 %v8684
      %9650 = vmatmul.mubr.bf16.gmra.mxu0 %v8683
      %v9651 = vpop.f32.mrf.mxu0
      %v9652 = vadd.f32 %v9267, %v9651
      %v9653 = vpop.f32.mrf.mxu0
      %v9654 = vpop.f32.mrf.mxu0
      %v9655 = vadd.f32 %v9270, %v9654
      %v9656 = vpop.f32.mrf.mxu0
      %9657 = vmatprep.mubr.bf16.mxu0 %v8686
      %9658 = vmatmul.mubr.bf16.gmra.mxu0 %v8685
      %v9659 = vpop.f32.mrf.mxu0
      %v9660 = vadd.f32 %v9275, %v9659
      %v9661 = vpop.f32.mrf.mxu0
      %v9662 = vpop.f32.mrf.mxu0
      %v9663 = vadd.f32 %v9278, %v9662
      %v9664 = vpop.f32.mrf.mxu0
      %9665 = vdwg.mxu0
      %v9666 = vld [vmem:[%s23] sm:$0x1]
      %v9668 = vlaneseq
      %v9669 = vshrl.u32 %v9668, 7
      %v9670 = vsub.s32 0, %v9669
      %v9671 = vrot.slane %v9666, %v9670
      %v9673 = vadd.f32 %v9412, %v9671
      %v9674 = vadd.f32 %v9415, %v9671
      %v9675 = vadd.f32 %v9420, %v9671
      %v9676 = vadd.f32 %v9423, %v9671
      %v9677 = vadd.f32 %v9428, %v9671
      %v9678 = vadd.f32 %v9431, %v9671
      %v9679 = vadd.f32 %v9436, %v9671
      %v9680 = vadd.f32 %v9439, %v9671
      %v9681 = vadd.f32 %v9444, %v9671
      %v9682 = vadd.f32 %v9447, %v9671
      %v9683 = vadd.f32 %v9452, %v9671
      %v9684 = vadd.f32 %v9455, %v9671
      %v9685 = vadd.f32 %v9460, %v9671
      %v9686 = vadd.f32 %v9463, %v9671
      %v9687 = vadd.f32 %v9468, %v9671
      %v9688 = vadd.f32 %v9471, %v9671
      %v9689 = vadd.f32 %v9476, %v9671
      %v9690 = vadd.f32 %v9479, %v9671
      %v9691 = vadd.f32 %v9484, %v9671
      %v9692 = vadd.f32 %v9487, %v9671
      %v9693 = vadd.f32 %v9492, %v9671
      %v9694 = vadd.f32 %v9495, %v9671
      %v9695 = vadd.f32 %v9500, %v9671
      %v9696 = vadd.f32 %v9503, %v9671
      %v9697 = vadd.f32 %v9508, %v9671
      %v9698 = vadd.f32 %v9511, %v9671
      %v9699 = vadd.f32 %v9516, %v9671
      %v9700 = vadd.f32 %v9519, %v9671
      %v9701 = vadd.f32 %v9524, %v9671
      %v9702 = vadd.f32 %v9527, %v9671
      %v9703 = vadd.f32 %v9532, %v9671
      %v9704 = vadd.f32 %v9535, %v9671
      %v9705 = vadd.f32 %v9540, %v9671
      %v9706 = vadd.f32 %v9543, %v9671
      %v9707 = vadd.f32 %v9548, %v9671
      %v9708 = vadd.f32 %v9551, %v9671
      %v9709 = vadd.f32 %v9556, %v9671
      %v9710 = vadd.f32 %v9559, %v9671
      %v9711 = vadd.f32 %v9564, %v9671
      %v9712 = vadd.f32 %v9567, %v9671
      %v9713 = vadd.f32 %v9572, %v9671
      %v9714 = vadd.f32 %v9575, %v9671
      %v9715 = vadd.f32 %v9580, %v9671
      %v9716 = vadd.f32 %v9583, %v9671
      %v9717 = vadd.f32 %v9588, %v9671
      %v9718 = vadd.f32 %v9591, %v9671
      %v9719 = vadd.f32 %v9596, %v9671
      %v9720 = vadd.f32 %v9599, %v9671
      %v9721 = vadd.f32 %v9604, %v9671
      %v9722 = vadd.f32 %v9607, %v9671
      %v9723 = vadd.f32 %v9612, %v9671
      %v9724 = vadd.f32 %v9615, %v9671
      %v9725 = vadd.f32 %v9620, %v9671
      %v9726 = vadd.f32 %v9623, %v9671
      %v9727 = vadd.f32 %v9628, %v9671
      %v9728 = vadd.f32 %v9631, %v9671
      %v9729 = vadd.f32 %v9636, %v9671
      %v9730 = vadd.f32 %v9639, %v9671
      %v9731 = vadd.f32 %v9644, %v9671
      %v9732 = vadd.f32 %v9647, %v9671
      %v9733 = vadd.f32 %v9652, %v9671
      %v9734 = vadd.f32 %v9655, %v9671
      %v9735 = vadd.f32 %v9660, %v9671
      %v9736 = vadd.f32 %v9663, %v9671
      %v9737 = vmax.f32 %v9673, 0.0
      %v9738 = vmax.f32 %v9674, 0.0
      %v9739 = vmax.f32 %v9675, 0.0
      %v9740 = vmax.f32 %v9676, 0.0
      %v9741 = vmax.f32 %v9677, 0.0
      %v9742 = vmax.f32 %v9678, 0.0
      %v9743 = vmax.f32 %v9679, 0.0
      %v9744 = vmax.f32 %v9680, 0.0
      %v9745 = vmax.f32 %v9681, 0.0
      %v9746 = vmax.f32 %v9682, 0.0
      %v9747 = vmax.f32 %v9683, 0.0
      %v9748 = vmax.f32 %v9684, 0.0
      %v9749 = vmax.f32 %v9685, 0.0
      %v9750 = vmax.f32 %v9686, 0.0
      %v9751 = vmax.f32 %v9687, 0.0
      %v9752 = vmax.f32 %v9688, 0.0
      %v9753 = vmax.f32 %v9689, 0.0
      %v9754 = vmax.f32 %v9690, 0.0
      %v9755 = vmax.f32 %v9691, 0.0
      %v9756 = vmax.f32 %v9692, 0.0
      %v9757 = vmax.f32 %v9693, 0.0
      %v9758 = vmax.f32 %v9694, 0.0
      %v9759 = vmax.f32 %v9695, 0.0
      %v9760 = vmax.f32 %v9696, 0.0
      %v9761 = vmax.f32 %v9697, 0.0
      %v9762 = vmax.f32 %v9698, 0.0
      %v9763 = vmax.f32 %v9699, 0.0
      %v9764 = vmax.f32 %v9700, 0.0
      %v9765 = vmax.f32 %v9701, 0.0
      %v9766 = vmax.f32 %v9702, 0.0
      %v9767 = vmax.f32 %v9703, 0.0
      %v9768 = vmax.f32 %v9704, 0.0
      %v9769 = vmax.f32 %v9705, 0.0
      %v9770 = vmax.f32 %v9706, 0.0
      %v9771 = vmax.f32 %v9707, 0.0
      %v9772 = vmax.f32 %v9708, 0.0
      %v9773 = vmax.f32 %v9709, 0.0
      %v9774 = vmax.f32 %v9710, 0.0
      %v9775 = vmax.f32 %v9711, 0.0
      %v9776 = vmax.f32 %v9712, 0.0
      %v9777 = vmax.f32 %v9713, 0.0
      %v9778 = vmax.f32 %v9714, 0.0
      %v9779 = vmax.f32 %v9715, 0.0
      %v9780 = vmax.f32 %v9716, 0.0
      %v9781 = vmax.f32 %v9717, 0.0
      %v9782 = vmax.f32 %v9718, 0.0
      %v9783 = vmax.f32 %v9719, 0.0
      %v9784 = vmax.f32 %v9720, 0.0
      %v9785 = vmax.f32 %v9721, 0.0
      %v9786 = vmax.f32 %v9722, 0.0
      %v9787 = vmax.f32 %v9723, 0.0
      %v9788 = vmax.f32 %v9724, 0.0
      %v9789 = vmax.f32 %v9725, 0.0
      %v9790 = vmax.f32 %v9726, 0.0
      %v9791 = vmax.f32 %v9727, 0.0
      %v9792 = vmax.f32 %v9728, 0.0
      %v9793 = vmax.f32 %v9729, 0.0
      %v9794 = vmax.f32 %v9730, 0.0
      %v9795 = vmax.f32 %v9731, 0.0
      %v9796 = vmax.f32 %v9732, 0.0
      %v9797 = vmax.f32 %v9733, 0.0
      %v9798 = vmax.f32 %v9734, 0.0
      %v9799 = vmax.f32 %v9735, 0.0
      %v9800 = vmax.f32 %v9736, 0.0
      %v9801 = vpack.c.bf16 %v9738, %v9737
      %v9802 = vpack.c.bf16 %v9740, %v9739
      %v9803 = vpack.c.bf16 %v9742, %v9741
      %v9804 = vpack.c.bf16 %v9744, %v9743
      %v9805 = vpack.c.bf16 %v9746, %v9745
      %v9806 = vpack.c.bf16 %v9748, %v9747
      %v9807 = vpack.c.bf16 %v9750, %v9749
      %v9808 = vpack.c.bf16 %v9752, %v9751
      %v9809 = vpack.c.bf16 %v9754, %v9753
      %v9810 = vpack.c.bf16 %v9756, %v9755
      %v9811 = vpack.c.bf16 %v9758, %v9757
      %v9812 = vpack.c.bf16 %v9760, %v9759
      %v9813 = vpack.c.bf16 %v9762, %v9761
      %v9814 = vpack.c.bf16 %v9764, %v9763
      %v9815 = vpack.c.bf16 %v9766, %v9765
      %v9816 = vpack.c.bf16 %v9768, %v9767
      %v9817 = vpack.c.bf16 %v9770, %v9769
      %v9818 = vpack.c.bf16 %v9772, %v9771
      %v9819 = vpack.c.bf16 %v9774, %v9773
      %v9820 = vpack.c.bf16 %v9776, %v9775
      %v9821 = vpack.c.bf16 %v9778, %v9777
      %v9822 = vpack.c.bf16 %v9780, %v9779
      %v9823 = vpack.c.bf16 %v9782, %v9781
      %v9824 = vpack.c.bf16 %v9784, %v9783
      %v9825 = vpack.c.bf16 %v9786, %v9785
      %v9826 = vpack.c.bf16 %v9788, %v9787
      %v9827 = vpack.c.bf16 %v9790, %v9789
      %v9828 = vpack.c.bf16 %v9792, %v9791
      %v9829 = vpack.c.bf16 %v9794, %v9793
      %v9830 = vpack.c.bf16 %v9796, %v9795
      %v9831 = vpack.c.bf16 %v9798, %v9797
      %v9832 = vpack.c.bf16 %v9800, %v9799
      %v9833 = vld [vmem:[%s24] sm:$0xf]
      %v9834 = vld [vmem:[%s24 + $0x4] sm:$0xf]
      %v9835 = vld [vmem:[%s24 + $0x8] sm:$0xf]
      %v9836 = vld [vmem:[%s24 + $0xc] sm:$0xf]
      %v9837 = vld [vmem:[%s24 + $0x10] sm:$0xf]
      %v9838 = vld [vmem:[%s24 + $0x14] sm:$0xf]
      %v9839 = vld [vmem:[%s24 + $0x18] sm:$0xf]
      %v9840 = vld [vmem:[%s24 + $0x1c] sm:$0xf]
      %v9841 = vld [vmem:[%s24 + $0x20] sm:$0xf]
      %v9842 = vld [vmem:[%s24 + $0x24] sm:$0xf]
      %v9843 = vld [vmem:[%s24 + $0x28] sm:$0xf]
      %v9844 = vld [vmem:[%s24 + $0x2c] sm:$0xf]
      %v9845 = vld [vmem:[%s24 + $0x30] sm:$0xf]
      %v9846 = vld [vmem:[%s24 + $0x34] sm:$0xf]
      %v9847 = vld [vmem:[%s24 + $0x38] sm:$0xf]
      %v9848 = vld [vmem:[%s24 + $0x3c] sm:$0xf]
      %v9849 = vld [vmem:[%s25] sm:$0x1]
      %v9851 = vlaneseq
      %v9852 = vshrl.u32 %v9851, 7
      %v9853 = vsub.s32 0, %v9852
      %v9854 = vrot.slane %v9849, %v9853
      %v9872 = vunpack.c.l.b16 %v9833
      %v9873 = vunpack.c.l.b16 %v9834
      %v9874 = vunpack.c.l.b16 %v9835
      %v9875 = vunpack.c.l.b16 %v9836
      %v9876 = vunpack.c.l.b16 %v9837
      %v9877 = vunpack.c.l.b16 %v9838
      %v9878 = vunpack.c.l.b16 %v9839
      %v9879 = vunpack.c.l.b16 %v9840
      %v9880 = vunpack.c.l.b16 %v9841
      %v9881 = vunpack.c.l.b16 %v9842
      %v9882 = vunpack.c.l.b16 %v9843
      %v9883 = vunpack.c.l.b16 %v9844
      %v9884 = vunpack.c.l.b16 %v9845
      %v9885 = vunpack.c.l.b16 %v9846
      %v9886 = vunpack.c.l.b16 %v9847
      %v9887 = vunpack.c.l.b16 %v9848
      %v9888 = vpack.c.b16 %v9873, %v9872
      %v9889 = vpack.c.b16 %v9875, %v9874
      %v9890 = vpack.c.b16 %v9877, %v9876
      %v9891 = vpack.c.b16 %v9879, %v9878
      %v9892 = vpack.c.b16 %v9881, %v9880
      %v9893 = vpack.c.b16 %v9883, %v9882
      %v9894 = vpack.c.b16 %v9885, %v9884
      %v9895 = vpack.c.b16 %v9887, %v9886
      %9904 = vmatprep.subr.bf16.mxu0 0
      %9905 = vmatpush1.bf16.msra.mxu0 %v9895
      %9906 = vmatprep.subr.bf16.mxu0 0
      %9907 = vmatpush1.bf16.msra.mxu0 %v9894
      %9908 = vmatprep.subr.bf16.mxu0 0
      %9909 = vmatpush1.bf16.msra.mxu0 %v9893
      %9910 = vmatprep.subr.bf16.mxu0 0
      %9911 = vmatpush1.bf16.msra.mxu0 %v9892
      %9912 = vmatprep.subr.bf16.mxu0 0
      %9913 = vmatpush1.bf16.msra.mxu0 %v9891
      %9914 = vmatprep.subr.bf16.mxu0 0
      %9915 = vmatpush1.bf16.msra.mxu0 %v9890
      %9916 = vmatprep.subr.bf16.mxu0 0
      %9917 = vmatpush1.bf16.msra.mxu0 %v9889
      %9918 = vmatprep.subr.bf16.mxu0 0
      %9919 = vmatpush1.bf16.msra.mxu0 %v9888
      %9920 = vmatprep.subr.bf16.mxu0 0
      %9921 = vmatpush2.bf16.msra.mxu0 0
      %9922 = vmatprep.subr.bf16.mxu0 0
      %9923 = vmatpush2.bf16.msra.mxu0 0
      %9924 = vmatprep.subr.bf16.mxu0 0
      %9925 = vmatpush2.bf16.msra.mxu0 0
      %9926 = vmatprep.subr.bf16.mxu0 0
      %9927 = vmatpush2.bf16.msra.mxu0 0
      %9928 = vmatprep.subr.bf16.mxu0 0
      %9929 = vmatpush2.bf16.msra.mxu0 0
      %9930 = vmatprep.subr.bf16.mxu0 0
      %9931 = vmatpush2.bf16.msra.mxu0 0
      %9932 = vmatprep.subr.bf16.mxu0 0
      %9933 = vmatpush2.bf16.msra.mxu0 0
      %9934 = vmatprep.subr.bf16.mxu0 0
      %9935 = vmatpush2.bf16.msra.mxu0 0
      %9936 = vmatprep.mubr.bf16.mxu0 0
      %9937 = vmatmul.mubr.bf16.gmra.mxu0 %v9801
      %v9938 = vpop.f32.mrf.mxu0
      %v9939 = vadd.f32 %v9854, %v9938
      %v9940 = vpop.f32.mrf.mxu0
      %v9941 = vpop.f32.mrf.mxu0
      %v9942 = vadd.f32 %v9854, %v9941
      %v9943 = vpop.f32.mrf.mxu0
      %9944 = vmatprep.mubr.bf16.mxu0 0
      %9945 = vmatmul.mubr.bf16.gmra.mxu0 %v9802
      %v9946 = vpop.f32.mrf.mxu0
      %v9947 = vadd.f32 %v9854, %v9946
      %v9948 = vpop.f32.mrf.mxu0
      %v9949 = vpop.f32.mrf.mxu0
      %v9950 = vadd.f32 %v9854, %v9949
      %v9951 = vpop.f32.mrf.mxu0
      %9952 = vmatprep.mubr.bf16.mxu0 0
      %9953 = vmatmul.mubr.bf16.gmra.mxu0 %v9803
      %v9954 = vpop.f32.mrf.mxu0
      %v9955 = vadd.f32 %v9854, %v9954
      %v9956 = vpop.f32.mrf.mxu0
      %v9957 = vpop.f32.mrf.mxu0
      %v9958 = vadd.f32 %v9854, %v9957
      %v9959 = vpop.f32.mrf.mxu0
      %9960 = vmatprep.mubr.bf16.mxu0 0
      %9961 = vmatmul.mubr.bf16.gmra.mxu0 %v9804
      %v9962 = vpop.f32.mrf.mxu0
      %v9963 = vadd.f32 %v9854, %v9962
      %v9964 = vpop.f32.mrf.mxu0
      %v9965 = vpop.f32.mrf.mxu0
      %v9966 = vadd.f32 %v9854, %v9965
      %v9967 = vpop.f32.mrf.mxu0
      %9968 = vmatprep.mubr.bf16.mxu0 0
      %9969 = vmatmul.mubr.bf16.gmra.mxu0 %v9805
      %v9970 = vpop.f32.mrf.mxu0
      %v9971 = vadd.f32 %v9854, %v9970
      %v9972 = vpop.f32.mrf.mxu0
      %v9973 = vpop.f32.mrf.mxu0
      %v9974 = vadd.f32 %v9854, %v9973
      %v9975 = vpop.f32.mrf.mxu0
      %9976 = vmatprep.mubr.bf16.mxu0 0
      %9977 = vmatmul.mubr.bf16.gmra.mxu0 %v9806
      %v9978 = vpop.f32.mrf.mxu0
      %v9979 = vadd.f32 %v9854, %v9978
      %v9980 = vpop.f32.mrf.mxu0
      %v9981 = vpop.f32.mrf.mxu0
      %v9982 = vadd.f32 %v9854, %v9981
      %v9983 = vpop.f32.mrf.mxu0
      %9984 = vmatprep.mubr.bf16.mxu0 0
      %9985 = vmatmul.mubr.bf16.gmra.mxu0 %v9807
      %v9986 = vpop.f32.mrf.mxu0
      %v9987 = vadd.f32 %v9854, %v9986
      %v9988 = vpop.f32.mrf.mxu0
      %v9989 = vpop.f32.mrf.mxu0
      %v9990 = vadd.f32 %v9854, %v9989
      %v9991 = vpop.f32.mrf.mxu0
      %9992 = vmatprep.mubr.bf16.mxu0 0
      %9993 = vmatmul.mubr.bf16.gmra.mxu0 %v9808
      %v9994 = vpop.f32.mrf.mxu0
      %v9995 = vadd.f32 %v9854, %v9994
      %v9996 = vpop.f32.mrf.mxu0
      %v9997 = vpop.f32.mrf.mxu0
      %v9998 = vadd.f32 %v9854, %v9997
      %v9999 = vpop.f32.mrf.mxu0
      %10000 = vmatprep.mubr.bf16.mxu0 0
      %10001 = vmatmul.mubr.bf16.gmra.mxu0 %v9809
      %v10002 = vpop.f32.mrf.mxu0
      %v10003 = vadd.f32 %v9854, %v10002
      %v10004 = vpop.f32.mrf.mxu0
      %v10005 = vpop.f32.mrf.mxu0
      %v10006 = vadd.f32 %v9854, %v10005
      %v10007 = vpop.f32.mrf.mxu0
      %10008 = vmatprep.mubr.bf16.mxu0 0
      %10009 = vmatmul.mubr.bf16.gmra.mxu0 %v9810
      %v10010 = vpop.f32.mrf.mxu0
      %v10011 = vadd.f32 %v9854, %v10010
      %v10012 = vpop.f32.mrf.mxu0
      %v10013 = vpop.f32.mrf.mxu0
      %v10014 = vadd.f32 %v9854, %v10013
      %v10015 = vpop.f32.mrf.mxu0
      %10016 = vmatprep.mubr.bf16.mxu0 0
      %10017 = vmatmul.mubr.bf16.gmra.mxu0 %v9811
      %v10018 = vpop.f32.mrf.mxu0
      %v10019 = vadd.f32 %v9854, %v10018
      %v10020 = vpop.f32.mrf.mxu0
      %v10021 = vpop.f32.mrf.mxu0
      %v10022 = vadd.f32 %v9854, %v10021
      %v10023 = vpop.f32.mrf.mxu0
      %10024 = vmatprep.mubr.bf16.mxu0 0
      %10025 = vmatmul.mubr.bf16.gmra.mxu0 %v9812
      %v10026 = vpop.f32.mrf.mxu0
      %v10027 = vadd.f32 %v9854, %v10026
      %v10028 = vpop.f32.mrf.mxu0
      %v10029 = vpop.f32.mrf.mxu0
      %v10030 = vadd.f32 %v9854, %v10029
      %v10031 = vpop.f32.mrf.mxu0
      %10032 = vmatprep.mubr.bf16.mxu0 0
      %10033 = vmatmul.mubr.bf16.gmra.mxu0 %v9813
      %v10034 = vpop.f32.mrf.mxu0
      %v10035 = vadd.f32 %v9854, %v10034
      %v10036 = vpop.f32.mrf.mxu0
      %v10037 = vpop.f32.mrf.mxu0
      %v10038 = vadd.f32 %v9854, %v10037
      %v10039 = vpop.f32.mrf.mxu0
      %10040 = vmatprep.mubr.bf16.mxu0 0
      %10041 = vmatmul.mubr.bf16.gmra.mxu0 %v9814
      %v10042 = vpop.f32.mrf.mxu0
      %v10043 = vadd.f32 %v9854, %v10042
      %v10044 = vpop.f32.mrf.mxu0
      %v10045 = vpop.f32.mrf.mxu0
      %v10046 = vadd.f32 %v9854, %v10045
      %v10047 = vpop.f32.mrf.mxu0
      %10048 = vmatprep.mubr.bf16.mxu0 0
      %10049 = vmatmul.mubr.bf16.gmra.mxu0 %v9815
      %v10050 = vpop.f32.mrf.mxu0
      %v10051 = vadd.f32 %v9854, %v10050
      %v10052 = vpop.f32.mrf.mxu0
      %v10053 = vpop.f32.mrf.mxu0
      %v10054 = vadd.f32 %v9854, %v10053
      %v10055 = vpop.f32.mrf.mxu0
      %10056 = vmatprep.mubr.bf16.mxu0 0
      %10057 = vmatmul.mubr.bf16.gmra.mxu0 %v9816
      %v10058 = vpop.f32.mrf.mxu0
      %v10059 = vadd.f32 %v9854, %v10058
      %v10060 = vpop.f32.mrf.mxu0
      %v10061 = vpop.f32.mrf.mxu0
      %v10062 = vadd.f32 %v9854, %v10061
      %v10063 = vpop.f32.mrf.mxu0
      %10064 = vmatprep.mubr.bf16.mxu0 0
      %10065 = vmatmul.mubr.bf16.gmra.mxu0 %v9817
      %v10066 = vpop.f32.mrf.mxu0
      %v10067 = vadd.f32 %v9854, %v10066
      %v10068 = vpop.f32.mrf.mxu0
      %v10069 = vpop.f32.mrf.mxu0
      %v10070 = vadd.f32 %v9854, %v10069
      %v10071 = vpop.f32.mrf.mxu0
      %10072 = vmatprep.mubr.bf16.mxu0 0
      %10073 = vmatmul.mubr.bf16.gmra.mxu0 %v9818
      %v10074 = vpop.f32.mrf.mxu0
      %v10075 = vadd.f32 %v9854, %v10074
      %v10076 = vpop.f32.mrf.mxu0
      %v10077 = vpop.f32.mrf.mxu0
      %v10078 = vadd.f32 %v9854, %v10077
      %v10079 = vpop.f32.mrf.mxu0
      %10080 = vmatprep.mubr.bf16.mxu0 0
      %10081 = vmatmul.mubr.bf16.gmra.mxu0 %v9819
      %v10082 = vpop.f32.mrf.mxu0
      %v10083 = vadd.f32 %v9854, %v10082
      %v10084 = vpop.f32.mrf.mxu0
      %v10085 = vpop.f32.mrf.mxu0
      %v10086 = vadd.f32 %v9854, %v10085
      %v10087 = vpop.f32.mrf.mxu0
      %10088 = vmatprep.mubr.bf16.mxu0 0
      %10089 = vmatmul.mubr.bf16.gmra.mxu0 %v9820
      %v10090 = vpop.f32.mrf.mxu0
      %v10091 = vadd.f32 %v9854, %v10090
      %v10092 = vpop.f32.mrf.mxu0
      %v10093 = vpop.f32.mrf.mxu0
      %v10094 = vadd.f32 %v9854, %v10093
      %v10095 = vpop.f32.mrf.mxu0
      %10096 = vmatprep.mubr.bf16.mxu0 0
      %10097 = vmatmul.mubr.bf16.gmra.mxu0 %v9821
      %v10098 = vpop.f32.mrf.mxu0
      %v10099 = vadd.f32 %v9854, %v10098
      %v10100 = vpop.f32.mrf.mxu0
      %v10101 = vpop.f32.mrf.mxu0
      %v10102 = vadd.f32 %v9854, %v10101
      %v10103 = vpop.f32.mrf.mxu0
      %10104 = vmatprep.mubr.bf16.mxu0 0
      %10105 = vmatmul.mubr.bf16.gmra.mxu0 %v9822
      %v10106 = vpop.f32.mrf.mxu0
      %v10107 = vadd.f32 %v9854, %v10106
      %v10108 = vpop.f32.mrf.mxu0
      %v10109 = vpop.f32.mrf.mxu0
      %v10110 = vadd.f32 %v9854, %v10109
      %v10111 = vpop.f32.mrf.mxu0
      %10112 = vmatprep.mubr.bf16.mxu0 0
      %10113 = vmatmul.mubr.bf16.gmra.mxu0 %v9823
      %v10114 = vpop.f32.mrf.mxu0
      %v10115 = vadd.f32 %v9854, %v10114
      %v10116 = vpop.f32.mrf.mxu0
      %v10117 = vpop.f32.mrf.mxu0
      %v10118 = vadd.f32 %v9854, %v10117
      %v10119 = vpop.f32.mrf.mxu0
      %10120 = vmatprep.mubr.bf16.mxu0 0
      %10121 = vmatmul.mubr.bf16.gmra.mxu0 %v9824
      %v10122 = vpop.f32.mrf.mxu0
      %v10123 = vadd.f32 %v9854, %v10122
      %v10124 = vpop.f32.mrf.mxu0
      %v10125 = vpop.f32.mrf.mxu0
      %v10126 = vadd.f32 %v9854, %v10125
      %v10127 = vpop.f32.mrf.mxu0
      %10128 = vmatprep.mubr.bf16.mxu0 0
      %10129 = vmatmul.mubr.bf16.gmra.mxu0 %v9825
      %v10130 = vpop.f32.mrf.mxu0
      %v10131 = vadd.f32 %v9854, %v10130
      %v10132 = vpop.f32.mrf.mxu0
      %v10133 = vpop.f32.mrf.mxu0
      %v10134 = vadd.f32 %v9854, %v10133
      %v10135 = vpop.f32.mrf.mxu0
      %10136 = vmatprep.mubr.bf16.mxu0 0
      %10137 = vmatmul.mubr.bf16.gmra.mxu0 %v9826
      %v10138 = vpop.f32.mrf.mxu0
      %v10139 = vadd.f32 %v9854, %v10138
      %v10140 = vpop.f32.mrf.mxu0
      %v10141 = vpop.f32.mrf.mxu0
      %v10142 = vadd.f32 %v9854, %v10141
      %v10143 = vpop.f32.mrf.mxu0
      %10144 = vmatprep.mubr.bf16.mxu0 0
      %10145 = vmatmul.mubr.bf16.gmra.mxu0 %v9827
      %v10146 = vpop.f32.mrf.mxu0
      %v10147 = vadd.f32 %v9854, %v10146
      %v10148 = vpop.f32.mrf.mxu0
      %v10149 = vpop.f32.mrf.mxu0
      %v10150 = vadd.f32 %v9854, %v10149
      %v10151 = vpop.f32.mrf.mxu0
      %10152 = vmatprep.mubr.bf16.mxu0 0
      %10153 = vmatmul.mubr.bf16.gmra.mxu0 %v9828
      %v10154 = vpop.f32.mrf.mxu0
      %v10155 = vadd.f32 %v9854, %v10154
      %v10156 = vpop.f32.mrf.mxu0
      %v10157 = vpop.f32.mrf.mxu0
      %v10158 = vadd.f32 %v9854, %v10157
      %v10159 = vpop.f32.mrf.mxu0
      %10160 = vmatprep.mubr.bf16.mxu0 0
      %10161 = vmatmul.mubr.bf16.gmra.mxu0 %v9829
      %v10162 = vpop.f32.mrf.mxu0
      %v10163 = vadd.f32 %v9854, %v10162
      %v10164 = vpop.f32.mrf.mxu0
      %v10165 = vpop.f32.mrf.mxu0
      %v10166 = vadd.f32 %v9854, %v10165
      %v10167 = vpop.f32.mrf.mxu0
      %10168 = vmatprep.mubr.bf16.mxu0 0
      %10169 = vmatmul.mubr.bf16.gmra.mxu0 %v9830
      %v10170 = vpop.f32.mrf.mxu0
      %v10171 = vadd.f32 %v9854, %v10170
      %v10172 = vpop.f32.mrf.mxu0
      %v10173 = vpop.f32.mrf.mxu0
      %v10174 = vadd.f32 %v9854, %v10173
      %v10175 = vpop.f32.mrf.mxu0
      %10176 = vmatprep.mubr.bf16.mxu0 0
      %10177 = vmatmul.mubr.bf16.gmra.mxu0 %v9831
      %v10178 = vpop.f32.mrf.mxu0
      %v10179 = vadd.f32 %v9854, %v10178
      %v10180 = vpop.f32.mrf.mxu0
      %v10181 = vpop.f32.mrf.mxu0
      %v10182 = vadd.f32 %v9854, %v10181
      %v10183 = vpop.f32.mrf.mxu0
      %10184 = vmatprep.mubr.bf16.mxu0 0
      %10185 = vmatmul.mubr.bf16.gmra.mxu0 %v9832
      %v10186 = vpop.f32.mrf.mxu0
      %v10187 = vadd.f32 %v9854, %v10186
      %v10188 = vpop.f32.mrf.mxu0
      %v10189 = vpop.f32.mrf.mxu0
      %v10190 = vadd.f32 %v9854, %v10189
      %v10191 = vpop.f32.mrf.mxu0
      %10192 = vdwg.mxu0
      %v10193 = vxor.u32 %v9939, 2147483648
      %v10194 = vxor.u32 %v9942, 2147483648
      %v10195 = vxor.u32 %v9947, 2147483648
      %v10196 = vxor.u32 %v9950, 2147483648
      %v10197 = vxor.u32 %v9955, 2147483648
      %v10198 = vxor.u32 %v9958, 2147483648
      %v10199 = vxor.u32 %v9963, 2147483648
      %v10200 = vxor.u32 %v9966, 2147483648
      %v10201 = vxor.u32 %v9971, 2147483648
      %v10202 = vxor.u32 %v9974, 2147483648
      %v10203 = vxor.u32 %v9979, 2147483648
      %v10204 = vxor.u32 %v9982, 2147483648
      %v10205 = vxor.u32 %v9987, 2147483648
      %v10206 = vxor.u32 %v9990, 2147483648
      %v10207 = vxor.u32 %v9995, 2147483648
      %v10208 = vxor.u32 %v9998, 2147483648
      %v10209 = vxor.u32 %v10003, 2147483648
      %v10210 = vxor.u32 %v10006, 2147483648
      %v10211 = vxor.u32 %v10011, 2147483648
      %v10212 = vxor.u32 %v10014, 2147483648
      %v10213 = vxor.u32 %v10019, 2147483648
      %v10214 = vxor.u32 %v10022, 2147483648
      %v10215 = vxor.u32 %v10027, 2147483648
      %v10216 = vxor.u32 %v10030, 2147483648
      %v10217 = vxor.u32 %v10035, 2147483648
      %v10218 = vxor.u32 %v10038, 2147483648
      %v10219 = vxor.u32 %v10043, 2147483648
      %v10220 = vxor.u32 %v10046, 2147483648
      %v10221 = vxor.u32 %v10051, 2147483648
      %v10222 = vxor.u32 %v10054, 2147483648
      %v10223 = vxor.u32 %v10059, 2147483648
      %v10224 = vxor.u32 %v10062, 2147483648
      %v10225 = vxor.u32 %v10067, 2147483648
      %v10226 = vxor.u32 %v10070, 2147483648
      %v10227 = vxor.u32 %v10075, 2147483648
      %v10228 = vxor.u32 %v10078, 2147483648
      %v10229 = vxor.u32 %v10083, 2147483648
      %v10230 = vxor.u32 %v10086, 2147483648
      %v10231 = vxor.u32 %v10091, 2147483648
      %v10232 = vxor.u32 %v10094, 2147483648
      %v10233 = vxor.u32 %v10099, 2147483648
      %v10234 = vxor.u32 %v10102, 2147483648
      %v10235 = vxor.u32 %v10107, 2147483648
      %v10236 = vxor.u32 %v10110, 2147483648
      %v10237 = vxor.u32 %v10115, 2147483648
      %v10238 = vxor.u32 %v10118, 2147483648
      %v10239 = vxor.u32 %v10123, 2147483648
      %v10240 = vxor.u32 %v10126, 2147483648
      %v10241 = vxor.u32 %v10131, 2147483648
      %v10242 = vxor.u32 %v10134, 2147483648
      %v10243 = vxor.u32 %v10139, 2147483648
      %v10244 = vxor.u32 %v10142, 2147483648
      %v10245 = vxor.u32 %v10147, 2147483648
      %v10246 = vxor.u32 %v10150, 2147483648
      %v10247 = vxor.u32 %v10155, 2147483648
      %v10248 = vxor.u32 %v10158, 2147483648
      %v10249 = vxor.u32 %v10163, 2147483648
      %v10250 = vxor.u32 %v10166, 2147483648
      %v10251 = vxor.u32 %v10171, 2147483648
      %v10252 = vxor.u32 %v10174, 2147483648
      %v10253 = vxor.u32 %v10179, 2147483648
      %v10254 = vxor.u32 %v10182, 2147483648
      %v10255 = vxor.u32 %v10187, 2147483648
      %v10256 = vxor.u32 %v10190, 2147483648
      %v10257 = vmul.f32 %v10193, 1.442695
      %v10258 = vpow.pop %v10257
      %v10259 = vmul.f32 %v10194, 1.442695
      %v10260 = vpow.pop %v10259
      %v10261 = vmul.f32 %v10195, 1.442695
      %v10262 = vpow.pop %v10261
      %v10263 = vmul.f32 %v10196, 1.442695
      %v10264 = vpow.pop %v10263
      %v10265 = vmul.f32 %v10197, 1.442695
      %v10266 = vpow.pop %v10265
      %v10267 = vmul.f32 %v10198, 1.442695
      %v10268 = vpow.pop %v10267
      %v10269 = vmul.f32 %v10199, 1.442695
      %v10270 = vpow.pop %v10269
      %v10271 = vmul.f32 %v10200, 1.442695
      %v10272 = vpow.pop %v10271
      %v10273 = vmul.f32 %v10201, 1.442695
      %v10274 = vpow.pop %v10273
      %v10275 = vmul.f32 %v10202, 1.442695
      %v10276 = vpow.pop %v10275
      %v10277 = vmul.f32 %v10203, 1.442695
      %v10278 = vpow.pop %v10277
      %v10279 = vmul.f32 %v10204, 1.442695
      %v10280 = vpow.pop %v10279
      %v10281 = vmul.f32 %v10205, 1.442695
      %v10282 = vpow.pop %v10281
      %v10283 = vmul.f32 %v10206, 1.442695
      %v10284 = vpow.pop %v10283
      %v10285 = vmul.f32 %v10207, 1.442695
      %v10286 = vpow.pop %v10285
      %v10287 = vmul.f32 %v10208, 1.442695
      %v10288 = vpow.pop %v10287
      %v10289 = vmul.f32 %v10209, 1.442695
      %v10290 = vpow.pop %v10289
      %v10291 = vmul.f32 %v10210, 1.442695
      %v10292 = vpow.pop %v10291
      %v10293 = vmul.f32 %v10211, 1.442695
      %v10294 = vpow.pop %v10293
      %v10295 = vmul.f32 %v10212, 1.442695
      %v10296 = vpow.pop %v10295
      %v10297 = vmul.f32 %v10213, 1.442695
      %v10298 = vpow.pop %v10297
      %v10299 = vmul.f32 %v10214, 1.442695
      %v10300 = vpow.pop %v10299
      %v10301 = vmul.f32 %v10215, 1.442695
      %v10302 = vpow.pop %v10301
      %v10303 = vmul.f32 %v10216, 1.442695
      %v10304 = vpow.pop %v10303
      %v10305 = vmul.f32 %v10217, 1.442695
      %v10306 = vpow.pop %v10305
      %v10307 = vmul.f32 %v10218, 1.442695
      %v10308 = vpow.pop %v10307
      %v10309 = vmul.f32 %v10219, 1.442695
      %v10310 = vpow.pop %v10309
      %v10311 = vmul.f32 %v10220, 1.442695
      %v10312 = vpow.pop %v10311
      %v10313 = vmul.f32 %v10221, 1.442695
      %v10314 = vpow.pop %v10313
      %v10315 = vmul.f32 %v10222, 1.442695
      %v10316 = vpow.pop %v10315
      %v10317 = vmul.f32 %v10223, 1.442695
      %v10318 = vpow.pop %v10317
      %v10319 = vmul.f32 %v10224, 1.442695
      %v10320 = vpow.pop %v10319
      %v10321 = vmul.f32 %v10225, 1.442695
      %v10322 = vpow.pop %v10321
      %v10323 = vmul.f32 %v10226, 1.442695
      %v10324 = vpow.pop %v10323
      %v10325 = vmul.f32 %v10227, 1.442695
      %v10326 = vpow.pop %v10325
      %v10327 = vmul.f32 %v10228, 1.442695
      %v10328 = vpow.pop %v10327
      %v10329 = vmul.f32 %v10229, 1.442695
      %v10330 = vpow.pop %v10329
      %v10331 = vmul.f32 %v10230, 1.442695
      %v10332 = vpow.pop %v10331
      %v10333 = vmul.f32 %v10231, 1.442695
      %v10334 = vpow.pop %v10333
      %v10335 = vmul.f32 %v10232, 1.442695
      %v10336 = vpow.pop %v10335
      %v10337 = vmul.f32 %v10233, 1.442695
      %v10338 = vpow.pop %v10337
      %v10339 = vmul.f32 %v10234, 1.442695
      %v10340 = vpow.pop %v10339
      %v10341 = vmul.f32 %v10235, 1.442695
      %v10342 = vpow.pop %v10341
      %v10343 = vmul.f32 %v10236, 1.442695
      %v10344 = vpow.pop %v10343
      %v10345 = vmul.f32 %v10237, 1.442695
      %v10346 = vpow.pop %v10345
      %v10347 = vmul.f32 %v10238, 1.442695
      %v10348 = vpow.pop %v10347
      %v10349 = vmul.f32 %v10239, 1.442695
      %v10350 = vpow.pop %v10349
      %v10351 = vmul.f32 %v10240, 1.442695
      %v10352 = vpow.pop %v10351
      %v10353 = vmul.f32 %v10241, 1.442695
      %v10354 = vpow.pop %v10353
      %v10355 = vmul.f32 %v10242, 1.442695
      %v10356 = vpow.pop %v10355
      %v10357 = vmul.f32 %v10243, 1.442695
      %v10358 = vpow.pop %v10357
      %v10359 = vmul.f32 %v10244, 1.442695
      %v10360 = vpow.pop %v10359
      %v10361 = vmul.f32 %v10245, 1.442695
      %v10362 = vpow.pop %v10361
      %v10363 = vmul.f32 %v10246, 1.442695
      %v10364 = vpow.pop %v10363
      %v10365 = vmul.f32 %v10247, 1.442695
      %v10366 = vpow.pop %v10365
      %v10367 = vmul.f32 %v10248, 1.442695
      %v10368 = vpow.pop %v10367
      %v10369 = vmul.f32 %v10249, 1.442695
      %v10370 = vpow.pop %v10369
      %v10371 = vmul.f32 %v10250, 1.442695
      %v10372 = vpow.pop %v10371
      %v10373 = vmul.f32 %v10251, 1.442695
      %v10374 = vpow.pop %v10373
      %v10375 = vmul.f32 %v10252, 1.442695
      %v10376 = vpow.pop %v10375
      %v10377 = vmul.f32 %v10253, 1.442695
      %v10378 = vpow.pop %v10377
      %v10379 = vmul.f32 %v10254, 1.442695
      %v10380 = vpow.pop %v10379
      %v10381 = vmul.f32 %v10255, 1.442695
      %v10382 = vpow.pop %v10381
      %v10383 = vmul.f32 %v10256, 1.442695
      %v10384 = vpow.pop %v10383
      %v10385 = vadd.f32 %v10258, 1.0
      %v10386 = vadd.f32 %v10260, 1.0
      %v10387 = vadd.f32 %v10262, 1.0
      %v10388 = vadd.f32 %v10264, 1.0
      %v10389 = vadd.f32 %v10266, 1.0
      %v10390 = vadd.f32 %v10268, 1.0
      %v10391 = vadd.f32 %v10270, 1.0
      %v10392 = vadd.f32 %v10272, 1.0
      %v10393 = vadd.f32 %v10274, 1.0
      %v10394 = vadd.f32 %v10276, 1.0
      %v10395 = vadd.f32 %v10278, 1.0
      %v10396 = vadd.f32 %v10280, 1.0
      %v10397 = vadd.f32 %v10282, 1.0
      %v10398 = vadd.f32 %v10284, 1.0
      %v10399 = vadd.f32 %v10286, 1.0
      %v10400 = vadd.f32 %v10288, 1.0
      %v10401 = vadd.f32 %v10290, 1.0
      %v10402 = vadd.f32 %v10292, 1.0
      %v10403 = vadd.f32 %v10294, 1.0
      %v10404 = vadd.f32 %v10296, 1.0
      %v10405 = vadd.f32 %v10298, 1.0
      %v10406 = vadd.f32 %v10300, 1.0
      %v10407 = vadd.f32 %v10302, 1.0
      %v10408 = vadd.f32 %v10304, 1.0
      %v10409 = vadd.f32 %v10306, 1.0
      %v10410 = vadd.f32 %v10308, 1.0
      %v10411 = vadd.f32 %v10310, 1.0
      %v10412 = vadd.f32 %v10312, 1.0
      %v10413 = vadd.f32 %v10314, 1.0
      %v10414 = vadd.f32 %v10316, 1.0
      %v10415 = vadd.f32 %v10318, 1.0
      %v10416 = vadd.f32 %v10320, 1.0
      %v10417 = vadd.f32 %v10322, 1.0
      %v10418 = vadd.f32 %v10324, 1.0
      %v10419 = vadd.f32 %v10326, 1.0
      %v10420 = vadd.f32 %v10328, 1.0
      %v10421 = vadd.f32 %v10330, 1.0
      %v10422 = vadd.f32 %v10332, 1.0
      %v10423 = vadd.f32 %v10334, 1.0
      %v10424 = vadd.f32 %v10336, 1.0
      %v10425 = vadd.f32 %v10338, 1.0
      %v10426 = vadd.f32 %v10340, 1.0
      %v10427 = vadd.f32 %v10342, 1.0
      %v10428 = vadd.f32 %v10344, 1.0
      %v10429 = vadd.f32 %v10346, 1.0
      %v10430 = vadd.f32 %v10348, 1.0
      %v10431 = vadd.f32 %v10350, 1.0
      %v10432 = vadd.f32 %v10352, 1.0
      %v10433 = vadd.f32 %v10354, 1.0
      %v10434 = vadd.f32 %v10356, 1.0
      %v10435 = vadd.f32 %v10358, 1.0
      %v10436 = vadd.f32 %v10360, 1.0
      %v10437 = vadd.f32 %v10362, 1.0
      %v10438 = vadd.f32 %v10364, 1.0
      %v10439 = vadd.f32 %v10366, 1.0
      %v10440 = vadd.f32 %v10368, 1.0
      %v10441 = vadd.f32 %v10370, 1.0
      %v10442 = vadd.f32 %v10372, 1.0
      %v10443 = vadd.f32 %v10374, 1.0
      %v10444 = vadd.f32 %v10376, 1.0
      %v10445 = vadd.f32 %v10378, 1.0
      %v10446 = vadd.f32 %v10380, 1.0
      %v10447 = vadd.f32 %v10382, 1.0
      %v10448 = vadd.f32 %v10384, 1.0
      %v10449 = vrcp.pop %v10385
      %v10450 = vmul.f32 1.0, %v10449
      %v10451 = vrcp.pop %v10386
      %v10452 = vmul.f32 1.0, %v10451
      %v10453 = vrcp.pop %v10387
      %v10454 = vmul.f32 1.0, %v10453
      %v10455 = vrcp.pop %v10388
      %v10456 = vmul.f32 1.0, %v10455
      %v10457 = vrcp.pop %v10389
      %v10458 = vmul.f32 1.0, %v10457
      %v10459 = vrcp.pop %v10390
      %v10460 = vmul.f32 1.0, %v10459
      %v10461 = vrcp.pop %v10391
      %v10462 = vmul.f32 1.0, %v10461
      %v10463 = vrcp.pop %v10392
      %v10464 = vmul.f32 1.0, %v10463
      %v10465 = vrcp.pop %v10393
      %v10466 = vmul.f32 1.0, %v10465
      %v10467 = vrcp.pop %v10394
      %v10468 = vmul.f32 1.0, %v10467
      %v10469 = vrcp.pop %v10395
      %v10470 = vmul.f32 1.0, %v10469
      %v10471 = vrcp.pop %v10396
      %v10472 = vmul.f32 1.0, %v10471
      %v10473 = vrcp.pop %v10397
      %v10474 = vmul.f32 1.0, %v10473
      %v10475 = vrcp.pop %v10398
      %v10476 = vmul.f32 1.0, %v10475
      %v10477 = vrcp.pop %v10399
      %v10478 = vmul.f32 1.0, %v10477
      %v10479 = vrcp.pop %v10400
      %v10480 = vmul.f32 1.0, %v10479
      %v10481 = vrcp.pop %v10401
      %v10482 = vmul.f32 1.0, %v10481
      %v10483 = vrcp.pop %v10402
      %v10484 = vmul.f32 1.0, %v10483
      %v10485 = vrcp.pop %v10403
      %v10486 = vmul.f32 1.0, %v10485
      %v10487 = vrcp.pop %v10404
      %v10488 = vmul.f32 1.0, %v10487
      %v10489 = vrcp.pop %v10405
      %v10490 = vmul.f32 1.0, %v10489
      %v10491 = vrcp.pop %v10406
      %v10492 = vmul.f32 1.0, %v10491
      %v10493 = vrcp.pop %v10407
      %v10494 = vmul.f32 1.0, %v10493
      %v10495 = vrcp.pop %v10408
      %v10496 = vmul.f32 1.0, %v10495
      %v10497 = vrcp.pop %v10409
      %v10498 = vmul.f32 1.0, %v10497
      %v10499 = vrcp.pop %v10410
      %v10500 = vmul.f32 1.0, %v10499
      %v10501 = vrcp.pop %v10411
      %v10502 = vmul.f32 1.0, %v10501
      %v10503 = vrcp.pop %v10412
      %v10504 = vmul.f32 1.0, %v10503
      %v10505 = vrcp.pop %v10413
      %v10506 = vmul.f32 1.0, %v10505
      %v10507 = vrcp.pop %v10414
      %v10508 = vmul.f32 1.0, %v10507
      %v10509 = vrcp.pop %v10415
      %v10510 = vmul.f32 1.0, %v10509
      %v10511 = vrcp.pop %v10416
      %v10512 = vmul.f32 1.0, %v10511
      %v10513 = vrcp.pop %v10417
      %v10514 = vmul.f32 1.0, %v10513
      %v10515 = vrcp.pop %v10418
      %v10516 = vmul.f32 1.0, %v10515
      %v10517 = vrcp.pop %v10419
      %v10518 = vmul.f32 1.0, %v10517
      %v10519 = vrcp.pop %v10420
      %v10520 = vmul.f32 1.0, %v10519
      %v10521 = vrcp.pop %v10421
      %v10522 = vmul.f32 1.0, %v10521
      %v10523 = vrcp.pop %v10422
      %v10524 = vmul.f32 1.0, %v10523
      %v10525 = vrcp.pop %v10423
      %v10526 = vmul.f32 1.0, %v10525
      %v10527 = vrcp.pop %v10424
      %v10528 = vmul.f32 1.0, %v10527
      %v10529 = vrcp.pop %v10425
      %v10530 = vmul.f32 1.0, %v10529
      %v10531 = vrcp.pop %v10426
      %v10532 = vmul.f32 1.0, %v10531
      %v10533 = vrcp.pop %v10427
      %v10534 = vmul.f32 1.0, %v10533
      %v10535 = vrcp.pop %v10428
      %v10536 = vmul.f32 1.0, %v10535
      %v10537 = vrcp.pop %v10429
      %v10538 = vmul.f32 1.0, %v10537
      %v10539 = vrcp.pop %v10430
      %v10540 = vmul.f32 1.0, %v10539
      %v10541 = vrcp.pop %v10431
      %v10542 = vmul.f32 1.0, %v10541
      %v10543 = vrcp.pop %v10432
      %v10544 = vmul.f32 1.0, %v10543
      %v10545 = vrcp.pop %v10433
      %v10546 = vmul.f32 1.0, %v10545
      %v10547 = vrcp.pop %v10434
      %v10548 = vmul.f32 1.0, %v10547
      %v10549 = vrcp.pop %v10435
      %v10550 = vmul.f32 1.0, %v10549
      %v10551 = vrcp.pop %v10436
      %v10552 = vmul.f32 1.0, %v10551
      %v10553 = vrcp.pop %v10437
      %v10554 = vmul.f32 1.0, %v10553
      %v10555 = vrcp.pop %v10438
      %v10556 = vmul.f32 1.0, %v10555
      %v10557 = vrcp.pop %v10439
      %v10558 = vmul.f32 1.0, %v10557
      %v10559 = vrcp.pop %v10440
      %v10560 = vmul.f32 1.0, %v10559
      %v10561 = vrcp.pop %v10441
      %v10562 = vmul.f32 1.0, %v10561
      %v10563 = vrcp.pop %v10442
      %v10564 = vmul.f32 1.0, %v10563
      %v10565 = vrcp.pop %v10443
      %v10566 = vmul.f32 1.0, %v10565
      %v10567 = vrcp.pop %v10444
      %v10568 = vmul.f32 1.0, %v10567
      %v10569 = vrcp.pop %v10445
      %v10570 = vmul.f32 1.0, %v10569
      %v10571 = vrcp.pop %v10446
      %v10572 = vmul.f32 1.0, %v10571
      %v10573 = vrcp.pop %v10447
      %v10574 = vmul.f32 1.0, %v10573
      %v10575 = vrcp.pop %v10448
      %v10576 = vmul.f32 1.0, %v10575
      %v10577 = vlaneseq
      %v10578 = vand.u32 %v10577, 127
      %vm10579 = vcmp.eq.s32.totalorder %v10578, 3
      %v10580 = vsel %vm10579, %v8559, %v10450
      %v10581 = vsel %vm10579, %v8560, %v10452
      %v10582 = vsel %vm10579, %v8561, %v10454
      %v10583 = vsel %vm10579, %v8562, %v10456
      %v10584 = vsel %vm10579, %v8563, %v10458
      %v10585 = vsel %vm10579, %v8564, %v10460
      %v10586 = vsel %vm10579, %v8565, %v10462
      %v10587 = vsel %vm10579, %v8566, %v10464
      %v10588 = vsel %vm10579, %v8567, %v10466
      %v10589 = vsel %vm10579, %v8568, %v10468
      %v10590 = vsel %vm10579, %v8569, %v10470
      %v10591 = vsel %vm10579, %v8570, %v10472
      %v10592 = vsel %vm10579, %v8571, %v10474
      %v10593 = vsel %vm10579, %v8572, %v10476
      %v10594 = vsel %vm10579, %v8573, %v10478
      %v10595 = vsel %vm10579, %v8574, %v10480
      %v10596 = vsel %vm10579, %v8575, %v10482
      %v10597 = vsel %vm10579, %v8576, %v10484
      %v10598 = vsel %vm10579, %v8577, %v10486
      %v10599 = vsel %vm10579, %v8578, %v10488
      %v10600 = vsel %vm10579, %v8579, %v10490
      %v10601 = vsel %vm10579, %v8580, %v10492
      %v10602 = vsel %vm10579, %v8581, %v10494
      %v10603 = vsel %vm10579, %v8582, %v10496
      %v10604 = vsel %vm10579, %v8583, %v10498
      %v10605 = vsel %vm10579, %v8584, %v10500
      %v10606 = vsel %vm10579, %v8585, %v10502
      %v10607 = vsel %vm10579, %v8586, %v10504
      %v10608 = vsel %vm10579, %v8587, %v10506
      %v10609 = vsel %vm10579, %v8588, %v10508
      %v10610 = vsel %vm10579, %v8589, %v10510
      %v10611 = vsel %vm10579, %v8590, %v10512
      %v10612 = vsel %vm10579, %v8591, %v10514
      %v10613 = vsel %vm10579, %v8592, %v10516
      %v10614 = vsel %vm10579, %v8593, %v10518
      %v10615 = vsel %vm10579, %v8594, %v10520
      %v10616 = vsel %vm10579, %v8595, %v10522
      %v10617 = vsel %vm10579, %v8596, %v10524
      %v10618 = vsel %vm10579, %v8597, %v10526
      %v10619 = vsel %vm10579, %v8598, %v10528
      %v10620 = vsel %vm10579, %v8599, %v10530
      %v10621 = vsel %vm10579, %v8600, %v10532
      %v10622 = vsel %vm10579, %v8601, %v10534
      %v10623 = vsel %vm10579, %v8602, %v10536
      %v10624 = vsel %vm10579, %v8603, %v10538
      %v10625 = vsel %vm10579, %v8604, %v10540
      %v10626 = vsel %vm10579, %v8605, %v10542
      %v10627 = vsel %vm10579, %v8606, %v10544
      %v10628 = vsel %vm10579, %v8607, %v10546
      %v10629 = vsel %vm10579, %v8608, %v10548
      %v10630 = vsel %vm10579, %v8609, %v10550
      %v10631 = vsel %vm10579, %v8610, %v10552
      %v10632 = vsel %vm10579, %v8611, %v10554
      %v10633 = vsel %vm10579, %v8612, %v10556
      %v10634 = vsel %vm10579, %v8613, %v10558
      %v10635 = vsel %vm10579, %v8614, %v10560
      %v10636 = vsel %vm10579, %v8615, %v10562
      %v10637 = vsel %vm10579, %v8616, %v10564
      %v10638 = vsel %vm10579, %v8617, %v10566
      %v10639 = vsel %vm10579, %v8618, %v10568
      %v10640 = vsel %vm10579, %v8619, %v10570
      %v10641 = vsel %vm10579, %v8620, %v10572
      %v10642 = vsel %vm10579, %v8621, %v10574
      %v10643 = vsel %vm10579, %v8622, %v10576
      %10644 = vst [vmem:[%s815] sm:$0xff] %v10580
      %10645 = vst [vmem:[%s815 + $0x8] sm:$0xff] %v10581
      %10646 = vst [vmem:[%s815 + $0x10] sm:$0xff] %v10582
      %10647 = vst [vmem:[%s815 + $0x18] sm:$0xff] %v10583
      %10648 = vst [vmem:[%s815 + $0x20] sm:$0xff] %v10584
      %10649 = vst [vmem:[%s815 + $0x28] sm:$0xff] %v10585
      %10650 = vst [vmem:[%s815 + $0x30] sm:$0xff] %v10586
      %10651 = vst [vmem:[%s815 + $0x38] sm:$0xff] %v10587
      %10652 = vst [vmem:[%s815 + $0x40] sm:$0xff] %v10588
      %10653 = vst [vmem:[%s815 + $0x48] sm:$0xff] %v10589
      %10654 = vst [vmem:[%s815 + $0x50] sm:$0xff] %v10590
      %10655 = vst [vmem:[%s815 + $0x58] sm:$0xff] %v10591
      %10656 = vst [vmem:[%s815 + $0x60] sm:$0xff] %v10592
      %10657 = vst [vmem:[%s815 + $0x68] sm:$0xff] %v10593
      %10658 = vst [vmem:[%s815 + $0x70] sm:$0xff] %v10594
      %10659 = vst [vmem:[%s815 + $0x78] sm:$0xff] %v10595
      %10660 = vst [vmem:[%s815 + $0x80] sm:$0xff] %v10596
      %10661 = vst [vmem:[%s815 + $0x88] sm:$0xff] %v10597
      %10662 = vst [vmem:[%s815 + $0x90] sm:$0xff] %v10598
      %10663 = vst [vmem:[%s815 + $0x98] sm:$0xff] %v10599
      %10664 = vst [vmem:[%s815 + $0xa0] sm:$0xff] %v10600
      %10665 = vst [vmem:[%s815 + $0xa8] sm:$0xff] %v10601
      %10666 = vst [vmem:[%s815 + $0xb0] sm:$0xff] %v10602
      %10667 = vst [vmem:[%s815 + $0xb8] sm:$0xff] %v10603
      %10668 = vst [vmem:[%s815 + $0xc0] sm:$0xff] %v10604
      %10669 = vst [vmem:[%s815 + $0xc8] sm:$0xff] %v10605
      %10670 = vst [vmem:[%s815 + $0xd0] sm:$0xff] %v10606
      %10671 = vst [vmem:[%s815 + $0xd8] sm:$0xff] %v10607
      %10672 = vst [vmem:[%s815 + $0xe0] sm:$0xff] %v10608
      %10673 = vst [vmem:[%s815 + $0xe8] sm:$0xff] %v10609
      %10674 = vst [vmem:[%s815 + $0xf0] sm:$0xff] %v10610
      %10675 = vst [vmem:[%s815 + $0xf8] sm:$0xff] %v10611
      %10676 = vst [vmem:[%s815 + $0x100] sm:$0xff] %v10612
      %10677 = vst [vmem:[%s815 + $0x108] sm:$0xff] %v10613
      %10678 = vst [vmem:[%s815 + $0x110] sm:$0xff] %v10614
      %10679 = vst [vmem:[%s815 + $0x118] sm:$0xff] %v10615
      %10680 = vst [vmem:[%s815 + $0x120] sm:$0xff] %v10616
      %10681 = vst [vmem:[%s815 + $0x128] sm:$0xff] %v10617
      %10682 = vst [vmem:[%s815 + $0x130] sm:$0xff] %v10618
      %10683 = vst [vmem:[%s815 + $0x138] sm:$0xff] %v10619
      %10684 = vst [vmem:[%s815 + $0x140] sm:$0xff] %v10620
      %10685 = vst [vmem:[%s815 + $0x148] sm:$0xff] %v10621
      %10686 = vst [vmem:[%s815 + $0x150] sm:$0xff] %v10622
      %10687 = vst [vmem:[%s815 + $0x158] sm:$0xff] %v10623
      %10688 = vst [vmem:[%s815 + $0x160] sm:$0xff] %v10624
      %10689 = vst [vmem:[%s815 + $0x168] sm:$0xff] %v10625
      %10690 = vst [vmem:[%s815 + $0x170] sm:$0xff] %v10626
      %10691 = vst [vmem:[%s815 + $0x178] sm:$0xff] %v10627
      %10692 = vst [vmem:[%s815 + $0x180] sm:$0xff] %v10628
      %10693 = vst [vmem:[%s815 + $0x188] sm:$0xff] %v10629
      %10694 = vst [vmem:[%s815 + $0x190] sm:$0xff] %v10630
      %10695 = vst [vmem:[%s815 + $0x198] sm:$0xff] %v10631
      %10696 = vst [vmem:[%s815 + $0x1a0] sm:$0xff] %v10632
      %10697 = vst [vmem:[%s815 + $0x1a8] sm:$0xff] %v10633
      %10698 = vst [vmem:[%s815 + $0x1b0] sm:$0xff] %v10634
      %10699 = vst [vmem:[%s815 + $0x1b8] sm:$0xff] %v10635
      %10700 = vst [vmem:[%s815 + $0x1c0] sm:$0xff] %v10636
      %10701 = vst [vmem:[%s815 + $0x1c8] sm:$0xff] %v10637
      %10702 = vst [vmem:[%s815 + $0x1d0] sm:$0xff] %v10638
      %10703 = vst [vmem:[%s815 + $0x1d8] sm:$0xff] %v10639
      %10704 = vst [vmem:[%s815 + $0x1e0] sm:$0xff] %v10640
      %10705 = vst [vmem:[%s815 + $0x1e8] sm:$0xff] %v10641
      %10706 = vst [vmem:[%s815 + $0x1f0] sm:$0xff] %v10642
      %10707 = vst [vmem:[%s815 + $0x1f8] sm:$0xff] %v10643
      %s10708 = smul.u32 64, %s37
      %p10709 = scmp.lt.s32.totalorder %s10708, 1023
      %s10710 = scalar_select %p10709, %s10708, 1023
      %s10711 = smul.addr %s10710, 8
      %s10712 = scalar_lea.vmem %s26, %s10711
      // Predicated region
      $region125: #{_forward_impl.1} parent=123 // pred_check
        %p10713 = pneg %p611
      $region126: #{_forward_impl.1} parent=123 // pred_check_branch
        %10715 = sbr.rel (%p10713) target = $region128
      $region127: #{_forward_impl.1} parent=123 // pred_region
        %s10716 = smul.u32 64, %s37
      $region128: #{_forward_impl.1} parent=123 // pred_fallthru
        _
    $region124: #{_forward_impl.1} parent=5 // pred_fallthru
      _
    %p10717 = scmp.le.s32.totalorder 2, %s32
    // Predicated region
    $region129: #{_forward_impl.1} parent=5 // pred_check
      %p10718 = pneg %p10717
    $region130: #{_forward_impl.1} parent=5 // pred_check_branch
      %10720 = sbr.rel (%p10718) target = $region132
    $region131: #{_forward_impl.1} parent=5 // pred_region
      %s10721 = ssub.s32 %s32, 2
      // Predicated region
      $region133: #{_forward_impl.1} parent=131 // pred_check
        %p10722 = pneg %p617
      $region134: #{_forward_impl.1} parent=131 // pred_check_branch
        %10724 = sbr.rel (%p10722) target = $region136
      $region135: #{_forward_impl.1} parent=131 // pred_region
        %s10725 = smul.u32 64, %s38
        %p10726 = scmp.lt.s32.totalorder %s10725, 1023
        %s10727 = scalar_select %p10726, %s10725, 1023
        %s10728 = smul.addr %s10727, 8
        %s10729 = scalar_lea.vmem %s26, %s10728
      $region136: #{_forward_impl.1} parent=131 // pred_fallthru
        _
    $region132: #{_forward_impl.1} parent=5 // pred_fallthru
      _
  $region6: #{_forward_impl.1} parent=0 // loop_footer
    %s36 = sadd.s32 1, %s32
  $region7: #{_forward_impl.1} parent=0 // loop_footer_branch
    %31 = sbr.rel target = $region3
  $region8: #{_forward_impl.1} parent=0 // loop_exit
    _

</llo_original>
